<compile_context>
chip_gen: v7x
topology: tpu7x:2x2x1
jax: 0.10.0
libtpu: 0.0.40
codegen_flags: <defaults>
</compile_context>

<pallas_src>
import jax
import jax.numpy as jnp
import numpy as np
from jax.experimental import pallas as pl
from jax.experimental.pallas import tpu as pltpu

DEGREE = 3
EPS = 1e-5          # torch.nn.LayerNorm default eps
OUT_DIM = 10
OUT_PAD = 128       # lane-dense padded output width


def _round_up(n, m):
    return ((n + m - 1) // m) * m


def _num_tensorcores():
    """2 on v7x (megacore-style split pays off), else 1 (v5e/v6e)."""
    try:
        kind = jax.devices()[0].device_kind.lower()
        if "v7" in kind or "7x" in kind:
            return 2
    except Exception:
        pass
    return 1


# ---------------------------------------------------------------------------
# Pallas kernel: full forward pass for one batch tile.
# ---------------------------------------------------------------------------
def _trig_block(h, cs_ref, cc_ref, bias_ref):
    """y = bias + sum_{d=1..3} sin(d*h) @ cs[d-1] + cos(d*h) @ cc[d-1].

    One transcendental sin/cos pair (EUP), higher harmonics via Chebyshev-form
    angle-addition identities (cheap VPU math).  Matmul operands are cast to
    the weight dtype (bf16 for layer 1, f32 for layers 2/3); accumulation is
    always f32 on the MXU.
    """
    mxu_dtype = cs_ref.dtype

    s = jnp.sin(h)
    c = jnp.cos(h)
    ss = s * s
    s2 = 2.0 * s * c
    c2 = 1.0 - 2.0 * ss
    s3 = s * (3.0 - 4.0 * ss)
    c3 = c * (4.0 * (c * c) - 3.0)

    sins = (s.astype(mxu_dtype), s2.astype(mxu_dtype), s3.astype(mxu_dtype))
    coss = (c.astype(mxu_dtype), c2.astype(mxu_dtype), c3.astype(mxu_dtype))

    acc = jnp.dot(sins[0], cs_ref[0], preferred_element_type=jnp.float32)
    acc = acc + jnp.dot(coss[0], cc_ref[0], preferred_element_type=jnp.float32)
    for d in (1, 2):  # static unroll, refs sliced per degree
        acc = acc + jnp.dot(sins[d], cs_ref[d],
                            preferred_element_type=jnp.float32)
        acc = acc + jnp.dot(coss[d], cc_ref[d],
                            preferred_element_type=jnp.float32)
    return acc + bias_ref[...]


def _layernorm(h, gamma, beta):
    mu = jnp.mean(h, axis=-1, keepdims=True)
    var = jnp.mean((h - mu) ** 2, axis=-1, keepdims=True)
    # NOTE: eps keeps padded (all-zero) batch rows finite through LN; they are
    # sliced off in the wrapper.  Do not remove.
    return (h - mu) * jax.lax.rsqrt(var + EPS) * gamma + beta


def tkan_kernel(x_ref,
                c1s_ref, c1c_ref, bias1_ref, g1_ref, b1_ref,
                c2s_ref, c2c_ref, bias2_ref, g2_ref, b2_ref,
                c3s_ref, c3c_ref, bias3_ref,
                o_ref):
    x = x_ref[...].astype(jnp.float32)                       # (TB, 784)
    h = _trig_block(x, c1s_ref, c1c_ref, bias1_ref)          # (TB, 32)  bf16 MXU
    h = _layernorm(h, g1_ref[...], b1_ref[...])
    h = _trig_block(h, c2s_ref, c2c_ref, bias2_ref)          # (TB, 16)  f32
    h = _layernorm(h, g2_ref[...], b2_ref[...])
    o = _trig_block(h, c3s_ref, c3c_ref, bias3_ref)          # (TB, 128) padded
    o_ref[...] = o.astype(o_ref.dtype)


# ---------------------------------------------------------------------------
# Wrapper
# ---------------------------------------------------------------------------
def t_kan_forward(x, params, *, tb=512):
    """x: (B, 784) float32.  params: kernel_params from init_params()."""
    B, I = x.shape
    weights = params

    n_tc = _num_tensorcores()
    if n_tc > 1:
        # v7x: at least n_tc grid steps, padded so the step count is an even
        # multiple of n_tc (both TensorCores get equal work).
        tb_eff = max(8, min(tb, _round_up(pl.cdiv(B, n_tc), 8)))
        Bp = _round_up(B, n_tc * tb_eff)
    else:
        # v5e / v6e: single TensorCore -> no benefit from splitting a small
        # batch; use one tile when B <= tb.
        tb_eff = max(8, min(tb, _round_up(B, 8)))
        Bp = _round_up(B, tb_eff)

    if Bp != B:
        x = jnp.pad(x, ((0, Bp - B), (0, 0)))

    def full_spec(a):
        nd = a.ndim
        return pl.BlockSpec(a.shape, lambda i, _nd=nd: (0,) * _nd)

    out = pl.pallas_call(
        tkan_kernel,
        out_shape=jax.ShapeDtypeStruct((Bp, OUT_PAD), jnp.float32),
        grid=(Bp // tb_eff,),
        in_specs=[pl.BlockSpec((tb_eff, I), lambda i: (i, 0))]
                 + [full_spec(a) for a in weights],
        out_specs=pl.BlockSpec((tb_eff, OUT_PAD), lambda i: (i, 0)),
        compiler_params=pltpu.CompilerParams(
            dimension_semantics=("parallel",),
            vmem_limit_bytes=48 * 1024 * 1024),
    )(x, *weights)
    return out[:B, :OUT_DIM]


# ---------------------------------------------------------------------------
# Deterministic parameter init (mirrors the PyTorch __init__)
# ---------------------------------------------------------------------------
def init_trig_layer(key, in_dim, out_dim, degree, weight_dtype=jnp.float32):
    std = 1.0 / (in_dim * (degree + 1))
    c = std * jax.random.normal(key, (in_dim, out_dim, degree + 1, 2),
                                dtype=jnp.float32)
    cs = jnp.transpose(c[..., 0], (2, 0, 1))[1:]   # (degree, I, O) sin, d=1..D
    cc = jnp.transpose(c[..., 1], (2, 0, 1))[1:]   # (degree, I, O) cos, d=1..D
    bias = jnp.sum(c[:, :, 0, 1], axis=0)[None, :]  # d=0: cos(0)=1 -> bias (1,O)
    return c, cs.astype(weight_dtype), cc.astype(weight_dtype), bias


def init_params(key):
    k1, k2, k3 = jax.random.split(key, 3)
    # Layer 1 weights in bf16 (MXU-native operands for the dominant K=784
    # dots); layers 2/3 kept f32 (negligible cost, better accuracy margin).
    c1, c1s, c1c, bias1 = init_trig_layer(k1, 784, 32, DEGREE,
                                          weight_dtype=jnp.bfloat16)
    c2, c2s, c2c, bias2 = init_trig_layer(k2, 32, 16, DEGREE)
    c3, c3s, c3c, bias3 = init_trig_layer(k3, 16, OUT_DIM, DEGREE)

    # Pad the last layer's output dim to 128 (zero columns) for lane-dense
    # stores; wrapper slices back to OUT_DIM.
    pad = OUT_PAD - OUT_DIM
    c3s = jnp.pad(c3s, ((0, 0), (0, 0), (0, pad)))
    c3c = jnp.pad(c3c, ((0, 0), (0, 0), (0, pad)))
    bias3 = jnp.pad(bias3, ((0, 0), (0, pad)))

    # nn.LayerNorm default init: weight=1, bias=0 (kept (1, N) for 2-D refs)
    g1 = jnp.ones((1, 32), jnp.float32); b1 = jnp.zeros((1, 32), jnp.float32)
    g2 = jnp.ones((1, 16), jnp.float32); b2 = jnp.zeros((1, 16), jnp.float32)

    kernel_params = (c1s, c1c, bias1, g1, b1,
                     c2s, c2c, bias2, g2, b2,
                     c3s, c3c, bias3)
    raw_coeffs = (c1, c2, c3)
    return kernel_params, raw_coeffs


# ---------------------------------------------------------------------------
# Pure-JAX reference (matches the PyTorch einsum exactly, full f32)
# ---------------------------------------------------------------------------
def trig_ref(x, coeffs, degree):
    ar = jnp.arange(degree + 1, dtype=jnp.float32)
    xe = x[:, :, None] * ar                                    # (B, I, D+1)
    xt = jnp.stack((jnp.sin(xe), jnp.cos(xe)), axis=-1)        # (B, I, D+1, 2)
    return jnp.einsum('bidk,iodk->bo', xt, coeffs,
                      precision=jax.lax.Precision.HIGHEST)


def ln_ref(h):
    mu = jnp.mean(h, axis=-1, keepdims=True)
    var = jnp.mean((h - mu) ** 2, axis=-1, keepdims=True)
    return (h - mu) / jnp.sqrt(var + EPS)


def t_kan_ref(x, raw_coeffs):
    c1, c2, c3 = raw_coeffs
    h = trig_ref(x, c1, DEGREE)
    h = ln_ref(h)
    h = trig_ref(h, c2, DEGREE)
    h = ln_ref(h)
    return trig_ref(h, c3, DEGREE)


if __name__ == "__main__":
    key = jax.random.PRNGKey(0)
    kp_key, x_key = jax.random.split(key)
    kernel_params, raw_coeffs = init_params(kp_key)

    B = 16
    x = jax.random.normal(x_key, (B, 784), dtype=jnp.float32)

    out = t_kan_forward(x, kernel_params)
    out = jax.block_until_ready(out)

    ref = jax.block_until_ready(t_kan_ref(x, raw_coeffs))
    # Tolerance accounts for bf16 MXU operands in layer 1 (f32 accumulation);
    # a broken kernel would be off by O(0.1).
    np.testing.assert_allclose(np.asarray(out), np.asarray(ref),
                               rtol=2e-2, atol=5e-3)

    print("KERNEL_OK")
</pallas_src>

<mosaic_0001>
module attributes {stable_mosaic.version = 11 : i64} {
  func.func @tkan_kernel(%arg0: i32, %arg1: memref<16x784xf32, #tpu.memory_space<vmem>>, %arg2: memref<3x784x32xbf16, #tpu.memory_space<vmem>>, %arg3: memref<3x784x32xbf16, #tpu.memory_space<vmem>>, %arg4: memref<1x32xf32, #tpu.memory_space<vmem>>, %arg5: memref<1x32xf32, #tpu.memory_space<vmem>>, %arg6: memref<1x32xf32, #tpu.memory_space<vmem>>, %arg7: memref<3x32x16xf32, #tpu.memory_space<vmem>>, %arg8: memref<3x32x16xf32, #tpu.memory_space<vmem>>, %arg9: memref<1x16xf32, #tpu.memory_space<vmem>>, %arg10: memref<1x16xf32, #tpu.memory_space<vmem>>, %arg11: memref<1x16xf32, #tpu.memory_space<vmem>>, %arg12: memref<3x16x128xf32, #tpu.memory_space<vmem>>, %arg13: memref<3x16x128xf32, #tpu.memory_space<vmem>>, %arg14: memref<1x128xf32, #tpu.memory_space<vmem>>, %arg15: memref<16x128xf32, #tpu.memory_space<vmem>>) attributes {dimension_semantics = [#tpu.dimension_semantics<parallel>], iteration_bounds = array<i64: 1>, scalar_prefetch = 0 : i64, scratch_operands = 0 : i64, tpu.core_type = #tpu.core_type<tc>, window_params = [{transform_indices = @transform_0, window_bounds = array<i64: 16, 784>}, {pipeline_mode = #tpu.pipeline_mode<synchronous>, transform_indices = @transform_1, window_bounds = array<i64: 3, 784, 32>}, {pipeline_mode = #tpu.pipeline_mode<synchronous>, transform_indices = @transform_2, window_bounds = array<i64: 3, 784, 32>}, {pipeline_mode = #tpu.pipeline_mode<synchronous>, transform_indices = @transform_3, window_bounds = array<i64: 1, 32>}, {pipeline_mode = #tpu.pipeline_mode<synchronous>, transform_indices = @transform_4, window_bounds = array<i64: 1, 32>}, {pipeline_mode = #tpu.pipeline_mode<synchronous>, transform_indices = @transform_5, window_bounds = array<i64: 1, 32>}, {pipeline_mode = #tpu.pipeline_mode<synchronous>, transform_indices = @transform_6, window_bounds = array<i64: 3, 32, 16>}, {pipeline_mode = #tpu.pipeline_mode<synchronous>, transform_indices = @transform_7, window_bounds = array<i64: 3, 32, 16>}, {pipeline_mode = #tpu.pipeline_mode<synchronous>, transform_indices = @transform_8, window_bounds = array<i64: 1, 16>}, {pipeline_mode = #tpu.pipeline_mode<synchronous>, transform_indices = @transform_9, window_bounds = array<i64: 1, 16>}, {pipeline_mode = #tpu.pipeline_mode<synchronous>, transform_indices = @transform_10, window_bounds = array<i64: 1, 16>}, {pipeline_mode = #tpu.pipeline_mode<synchronous>, transform_indices = @transform_11, window_bounds = array<i64: 3, 16, 128>}, {pipeline_mode = #tpu.pipeline_mode<synchronous>, transform_indices = @transform_12, window_bounds = array<i64: 3, 16, 128>}, {pipeline_mode = #tpu.pipeline_mode<synchronous>, transform_indices = @transform_13, window_bounds = array<i64: 1, 128>}, {transform_indices = @transform_14, window_bounds = array<i64: 16, 128>}]} {
    %c0 = arith.constant 0 : index
    %c0_0 = arith.constant 0 : index
    %0 = vector.load %arg1[%c0, %c0_0] : memref<16x784xf32, #tpu.memory_space<vmem>>, vector<16x784xf32>
    %1 = math.sin %0 : vector<16x784xf32>
    %2 = math.cos %0 : vector<16x784xf32>
    %3 = arith.mulf %1, %1 : vector<16x784xf32>
    %cst = arith.constant 2.000000e+00 : f32
    %4 = vector.broadcast %cst : f32 to vector<16x784xf32>
    %5 = arith.mulf %4, %1 : vector<16x784xf32>
    %6 = arith.mulf %5, %2 : vector<16x784xf32>
    %cst_1 = arith.constant 2.000000e+00 : f32
    %7 = vector.broadcast %cst_1 : f32 to vector<16x784xf32>
    %8 = arith.mulf %7, %3 : vector<16x784xf32>
    %cst_2 = arith.constant 1.000000e+00 : f32
    %9 = vector.broadcast %cst_2 : f32 to vector<16x784xf32>
    %10 = arith.subf %9, %8 : vector<16x784xf32>
    %cst_3 = arith.constant 4.000000e+00 : f32
    %11 = vector.broadcast %cst_3 : f32 to vector<16x784xf32>
    %12 = arith.mulf %11, %3 : vector<16x784xf32>
    %cst_4 = arith.constant 3.000000e+00 : f32
    %13 = vector.broadcast %cst_4 : f32 to vector<16x784xf32>
    %14 = arith.subf %13, %12 : vector<16x784xf32>
    %15 = arith.mulf %1, %14 : vector<16x784xf32>
    %16 = arith.mulf %2, %2 : vector<16x784xf32>
    %cst_5 = arith.constant 4.000000e+00 : f32
    %17 = vector.broadcast %cst_5 : f32 to vector<16x784xf32>
    %18 = arith.mulf %17, %16 : vector<16x784xf32>
    %cst_6 = arith.constant 3.000000e+00 : f32
    %19 = vector.broadcast %cst_6 : f32 to vector<16x784xf32>
    %20 = arith.subf %18, %19 : vector<16x784xf32>
    %21 = arith.mulf %2, %20 : vector<16x784xf32>
    %22 = arith.truncf %1 : vector<16x784xf32> to vector<16x784xbf16>
    %23 = arith.truncf %6 : vector<16x784xf32> to vector<16x784xbf16>
    %24 = arith.truncf %15 : vector<16x784xf32> to vector<16x784xbf16>
    %25 = arith.truncf %2 : vector<16x784xf32> to vector<16x784xbf16>
    %26 = arith.truncf %10 : vector<16x784xf32> to vector<16x784xbf16>
    %27 = arith.truncf %21 : vector<16x784xf32> to vector<16x784xbf16>
    %c0_7 = arith.constant 0 : index
    %c0_8 = arith.constant 0 : index
    %c0_9 = arith.constant 0 : index
    %28 = vector.load %arg2[%c0_7, %c0_8, %c0_9] : memref<3x784x32xbf16, #tpu.memory_space<vmem>>, vector<1x784x32xbf16>
    %29 = vector.shape_cast %28 : vector<1x784x32xbf16> to vector<784x32xbf16>
    %cst_10 = arith.constant dense<0.000000e+00> : vector<16x32xf32>
    %30 = tpu.matmul %22, %29, %cst_10 {dimension_numbers = #tpu.dot_dimension_numbers<[1], [0], [0], [1], [0, 0, 1, 1], [], []>} : vector<16x784xbf16>, vector<784x32xbf16>, vector<16x32xf32> -> vector<16x32xf32>
    %c0_11 = arith.constant 0 : index
    %c0_12 = arith.constant 0 : index
    %c0_13 = arith.constant 0 : index
    %31 = vector.load %arg3[%c0_11, %c0_12, %c0_13] : memref<3x784x32xbf16, #tpu.memory_space<vmem>>, vector<1x784x32xbf16>
    %32 = vector.shape_cast %31 : vector<1x784x32xbf16> to vector<784x32xbf16>
    %cst_14 = arith.constant dense<0.000000e+00> : vector<16x32xf32>
    %33 = tpu.matmul %25, %32, %cst_14 {dimension_numbers = #tpu.dot_dimension_numbers<[1], [0], [0], [1], [0, 0, 1, 1], [], []>} : vector<16x784xbf16>, vector<784x32xbf16>, vector<16x32xf32> -> vector<16x32xf32>
    %34 = arith.addf %30, %33 : vector<16x32xf32>
    %c1 = arith.constant 1 : index
    %c0_15 = arith.constant 0 : index
    %c0_16 = arith.constant 0 : index
    %35 = vector.load %arg2[%c1, %c0_15, %c0_16] : memref<3x784x32xbf16, #tpu.memory_space<vmem>>, vector<1x784x32xbf16>
    %36 = vector.shape_cast %35 : vector<1x784x32xbf16> to vector<784x32xbf16>
    %cst_17 = arith.constant dense<0.000000e+00> : vector<16x32xf32>
    %37 = tpu.matmul %23, %36, %cst_17 {dimension_numbers = #tpu.dot_dimension_numbers<[1], [0], [0], [1], [0, 0, 1, 1], [], []>} : vector<16x784xbf16>, vector<784x32xbf16>, vector<16x32xf32> -> vector<16x32xf32>
    %38 = arith.addf %34, %37 : vector<16x32xf32>
    %c1_18 = arith.constant 1 : index
    %c0_19 = arith.constant 0 : index
    %c0_20 = arith.constant 0 : index
    %39 = vector.load %arg3[%c1_18, %c0_19, %c0_20] : memref<3x784x32xbf16, #tpu.memory_space<vmem>>, vector<1x784x32xbf16>
    %40 = vector.shape_cast %39 : vector<1x784x32xbf16> to vector<784x32xbf16>
    %cst_21 = arith.constant dense<0.000000e+00> : vector<16x32xf32>
    %41 = tpu.matmul %26, %40, %cst_21 {dimension_numbers = #tpu.dot_dimension_numbers<[1], [0], [0], [1], [0, 0, 1, 1], [], []>} : vector<16x784xbf16>, vector<784x32xbf16>, vector<16x32xf32> -> vector<16x32xf32>
    %42 = arith.addf %38, %41 : vector<16x32xf32>
    %c2 = arith.constant 2 : index
    %c0_22 = arith.constant 0 : index
    %c0_23 = arith.constant 0 : index
    %43 = vector.load %arg2[%c2, %c0_22, %c0_23] : memref<3x784x32xbf16, #tpu.memory_space<vmem>>, vector<1x784x32xbf16>
    %44 = vector.shape_cast %43 : vector<1x784x32xbf16> to vector<784x32xbf16>
    %cst_24 = arith.constant dense<0.000000e+00> : vector<16x32xf32>
    %45 = tpu.matmul %24, %44, %cst_24 {dimension_numbers = #tpu.dot_dimension_numbers<[1], [0], [0], [1], [0, 0, 1, 1], [], []>} : vector<16x784xbf16>, vector<784x32xbf16>, vector<16x32xf32> -> vector<16x32xf32>
    %46 = arith.addf %42, %45 : vector<16x32xf32>
    %c2_25 = arith.constant 2 : index
    %c0_26 = arith.constant 0 : index
    %c0_27 = arith.constant 0 : index
    %47 = vector.load %arg3[%c2_25, %c0_26, %c0_27] : memref<3x784x32xbf16, #tpu.memory_space<vmem>>, vector<1x784x32xbf16>
    %48 = vector.shape_cast %47 : vector<1x784x32xbf16> to vector<784x32xbf16>
    %cst_28 = arith.constant dense<0.000000e+00> : vector<16x32xf32>
    %49 = tpu.matmul %27, %48, %cst_28 {dimension_numbers = #tpu.dot_dimension_numbers<[1], [0], [0], [1], [0, 0, 1, 1], [], []>} : vector<16x784xbf16>, vector<784x32xbf16>, vector<16x32xf32> -> vector<16x32xf32>
    %50 = arith.addf %46, %49 : vector<16x32xf32>
    %c0_29 = arith.constant 0 : index
    %c0_30 = arith.constant 0 : index
    %51 = vector.load %arg4[%c0_29, %c0_30] : memref<1x32xf32, #tpu.memory_space<vmem>>, vector<1x32xf32>
    %52 = vector.broadcast %51 : vector<1x32xf32> to vector<16x32xf32>
    %53 = arith.addf %50, %52 : vector<16x32xf32>
    %c0_31 = arith.constant 0 : index
    %c0_32 = arith.constant 0 : index
    %54 = vector.load %arg5[%c0_31, %c0_32] : memref<1x32xf32, #tpu.memory_space<vmem>>, vector<1x32xf32>
    %c0_33 = arith.constant 0 : index
    %c0_34 = arith.constant 0 : index
    %55 = vector.load %arg6[%c0_33, %c0_34] : memref<1x32xf32, #tpu.memory_space<vmem>>, vector<1x32xf32>
    %cst_35 = arith.constant dense<0.000000e+00> : vector<16xf32>
    %56 = vector.multi_reduction <add>, %53, %cst_35 [1] : vector<16x32xf32> to vector<16xf32>
    %57 = vector.shape_cast %56 : vector<16xf32> to vector<16x1xf32>
    %cst_36 = arith.constant 3.200000e+01 : f32
    %58 = vector.broadcast %cst_36 : f32 to vector<16x1xf32>
    %59 = arith.divf %57, %58 : vector<16x1xf32>
    %60 = vector.broadcast %59 : vector<16x1xf32> to vector<16x32xf32>
    %61 = arith.subf %53, %60 : vector<16x32xf32>
    %62 = arith.mulf %61, %61 : vector<16x32xf32>
    %cst_37 = arith.constant dense<0.000000e+00> : vector<16xf32>
    %63 = vector.multi_reduction <add>, %62, %cst_37 [1] : vector<16x32xf32> to vector<16xf32>
    %64 = vector.shape_cast %63 : vector<16xf32> to vector<16x1xf32>
    %cst_38 = arith.constant 3.200000e+01 : f32
    %65 = vector.broadcast %cst_38 : f32 to vector<16x1xf32>
    %66 = arith.divf %64, %65 : vector<16x1xf32>
    %67 = vector.broadcast %59 : vector<16x1xf32> to vector<16x32xf32>
    %68 = arith.subf %53, %67 : vector<16x32xf32>
    %cst_39 = arith.constant 9.99999974E-6 : f32
    %69 = vector.broadcast %cst_39 : f32 to vector<16x1xf32>
    %70 = arith.addf %66, %69 : vector<16x1xf32>
    %71 = math.rsqrt %70 : vector<16x1xf32>
    %72 = vector.broadcast %71 : vector<16x1xf32> to vector<16x32xf32>
    %73 = arith.mulf %68, %72 : vector<16x32xf32>
    %74 = vector.broadcast %54 : vector<1x32xf32> to vector<16x32xf32>
    %75 = arith.mulf %73, %74 : vector<16x32xf32>
    %76 = vector.broadcast %55 : vector<1x32xf32> to vector<16x32xf32>
    %77 = arith.addf %75, %76 : vector<16x32xf32>
    %78 = math.sin %77 : vector<16x32xf32>
    %79 = math.cos %77 : vector<16x32xf32>
    %80 = arith.mulf %78, %78 : vector<16x32xf32>
    %cst_40 = arith.constant 2.000000e+00 : f32
    %81 = vector.broadcast %cst_40 : f32 to vector<16x32xf32>
    %82 = arith.mulf %81, %78 : vector<16x32xf32>
    %83 = arith.mulf %82, %79 : vector<16x32xf32>
    %cst_41 = arith.constant 2.000000e+00 : f32
    %84 = vector.broadcast %cst_41 : f32 to vector<16x32xf32>
    %85 = arith.mulf %84, %80 : vector<16x32xf32>
    %cst_42 = arith.constant 1.000000e+00 : f32
    %86 = vector.broadcast %cst_42 : f32 to vector<16x32xf32>
    %87 = arith.subf %86, %85 : vector<16x32xf32>
    %cst_43 = arith.constant 4.000000e+00 : f32
    %88 = vector.broadcast %cst_43 : f32 to vector<16x32xf32>
    %89 = arith.mulf %88, %80 : vector<16x32xf32>
    %cst_44 = arith.constant 3.000000e+00 : f32
    %90 = vector.broadcast %cst_44 : f32 to vector<16x32xf32>
    %91 = arith.subf %90, %89 : vector<16x32xf32>
    %92 = arith.mulf %78, %91 : vector<16x32xf32>
    %93 = arith.mulf %79, %79 : vector<16x32xf32>
    %cst_45 = arith.constant 4.000000e+00 : f32
    %94 = vector.broadcast %cst_45 : f32 to vector<16x32xf32>
    %95 = arith.mulf %94, %93 : vector<16x32xf32>
    %cst_46 = arith.constant 3.000000e+00 : f32
    %96 = vector.broadcast %cst_46 : f32 to vector<16x32xf32>
    %97 = arith.subf %95, %96 : vector<16x32xf32>
    %98 = arith.mulf %79, %97 : vector<16x32xf32>
    %c0_47 = arith.constant 0 : index
    %c0_48 = arith.constant 0 : index
    %c0_49 = arith.constant 0 : index
    %99 = vector.load %arg7[%c0_47, %c0_48, %c0_49] : memref<3x32x16xf32, #tpu.memory_space<vmem>>, vector<1x32x16xf32>
    %100 = vector.shape_cast %99 : vector<1x32x16xf32> to vector<32x16xf32>
    %cst_50 = arith.constant dense<0.000000e+00> : vector<16x16xf32>
    %101 = tpu.matmul %78, %100, %cst_50 {dimension_numbers = #tpu.dot_dimension_numbers<[1], [0], [0], [1], [0, 0, 1, 1], [], []>} : vector<16x32xf32>, vector<32x16xf32>, vector<16x16xf32> -> vector<16x16xf32>
    %c0_51 = arith.constant 0 : index
    %c0_52 = arith.constant 0 : index
    %c0_53 = arith.constant 0 : index
    %102 = vector.load %arg8[%c0_51, %c0_52, %c0_53] : memref<3x32x16xf32, #tpu.memory_space<vmem>>, vector<1x32x16xf32>
    %103 = vector.shape_cast %102 : vector<1x32x16xf32> to vector<32x16xf32>
    %cst_54 = arith.constant dense<0.000000e+00> : vector<16x16xf32>
    %104 = tpu.matmul %79, %103, %cst_54 {dimension_numbers = #tpu.dot_dimension_numbers<[1], [0], [0], [1], [0, 0, 1, 1], [], []>} : vector<16x32xf32>, vector<32x16xf32>, vector<16x16xf32> -> vector<16x16xf32>
    %105 = arith.addf %101, %104 : vector<16x16xf32>
    %c1_55 = arith.constant 1 : index
    %c0_56 = arith.constant 0 : index
    %c0_57 = arith.constant 0 : index
    %106 = vector.load %arg7[%c1_55, %c0_56, %c0_57] : memref<3x32x16xf32, #tpu.memory_space<vmem>>, vector<1x32x16xf32>
    %107 = vector.shape_cast %106 : vector<1x32x16xf32> to vector<32x16xf32>
    %cst_58 = arith.constant dense<0.000000e+00> : vector<16x16xf32>
    %108 = tpu.matmul %83, %107, %cst_58 {dimension_numbers = #tpu.dot_dimension_numbers<[1], [0], [0], [1], [0, 0, 1, 1], [], []>} : vector<16x32xf32>, vector<32x16xf32>, vector<16x16xf32> -> vector<16x16xf32>
    %109 = arith.addf %105, %108 : vector<16x16xf32>
    %c1_59 = arith.constant 1 : index
    %c0_60 = arith.constant 0 : index
    %c0_61 = arith.constant 0 : index
    %110 = vector.load %arg8[%c1_59, %c0_60, %c0_61] : memref<3x32x16xf32, #tpu.memory_space<vmem>>, vector<1x32x16xf32>
    %111 = vector.shape_cast %110 : vector<1x32x16xf32> to vector<32x16xf32>
    %cst_62 = arith.constant dense<0.000000e+00> : vector<16x16xf32>
    %112 = tpu.matmul %87, %111, %cst_62 {dimension_numbers = #tpu.dot_dimension_numbers<[1], [0], [0], [1], [0, 0, 1, 1], [], []>} : vector<16x32xf32>, vector<32x16xf32>, vector<16x16xf32> -> vector<16x16xf32>
    %113 = arith.addf %109, %112 : vector<16x16xf32>
    %c2_63 = arith.constant 2 : index
    %c0_64 = arith.constant 0 : index
    %c0_65 = arith.constant 0 : index
    %114 = vector.load %arg7[%c2_63, %c0_64, %c0_65] : memref<3x32x16xf32, #tpu.memory_space<vmem>>, vector<1x32x16xf32>
    %115 = vector.shape_cast %114 : vector<1x32x16xf32> to vector<32x16xf32>
    %cst_66 = arith.constant dense<0.000000e+00> : vector<16x16xf32>
    %116 = tpu.matmul %92, %115, %cst_66 {dimension_numbers = #tpu.dot_dimension_numbers<[1], [0], [0], [1], [0, 0, 1, 1], [], []>} : vector<16x32xf32>, vector<32x16xf32>, vector<16x16xf32> -> vector<16x16xf32>
    %117 = arith.addf %113, %116 : vector<16x16xf32>
    %c2_67 = arith.constant 2 : index
    %c0_68 = arith.constant 0 : index
    %c0_69 = arith.constant 0 : index
    %118 = vector.load %arg8[%c2_67, %c0_68, %c0_69] : memref<3x32x16xf32, #tpu.memory_space<vmem>>, vector<1x32x16xf32>
    %119 = vector.shape_cast %118 : vector<1x32x16xf32> to vector<32x16xf32>
    %cst_70 = arith.constant dense<0.000000e+00> : vector<16x16xf32>
    %120 = tpu.matmul %98, %119, %cst_70 {dimension_numbers = #tpu.dot_dimension_numbers<[1], [0], [0], [1], [0, 0, 1, 1], [], []>} : vector<16x32xf32>, vector<32x16xf32>, vector<16x16xf32> -> vector<16x16xf32>
    %121 = arith.addf %117, %120 : vector<16x16xf32>
    %c0_71 = arith.constant 0 : index
    %c0_72 = arith.constant 0 : index
    %122 = vector.load %arg9[%c0_71, %c0_72] : memref<1x16xf32, #tpu.memory_space<vmem>>, vector<1x16xf32>
    %123 = vector.broadcast %122 : vector<1x16xf32> to vector<16x16xf32>
    %124 = arith.addf %121, %123 : vector<16x16xf32>
    %c0_73 = arith.constant 0 : index
    %c0_74 = arith.constant 0 : index
    %125 = vector.load %arg10[%c0_73, %c0_74] : memref<1x16xf32, #tpu.memory_space<vmem>>, vector<1x16xf32>
    %c0_75 = arith.constant 0 : index
    %c0_76 = arith.constant 0 : index
    %126 = vector.load %arg11[%c0_75, %c0_76] : memref<1x16xf32, #tpu.memory_space<vmem>>, vector<1x16xf32>
    %cst_77 = arith.constant dense<0.000000e+00> : vector<16xf32>
    %127 = vector.multi_reduction <add>, %124, %cst_77 [1] : vector<16x16xf32> to vector<16xf32>
    %128 = vector.shape_cast %127 : vector<16xf32> to vector<16x1xf32>
    %cst_78 = arith.constant 1.600000e+01 : f32
    %129 = vector.broadcast %cst_78 : f32 to vector<16x1xf32>
    %130 = arith.divf %128, %129 : vector<16x1xf32>
    %131 = vector.broadcast %130 : vector<16x1xf32> to vector<16x16xf32>
    %132 = arith.subf %124, %131 : vector<16x16xf32>
    %133 = arith.mulf %132, %132 : vector<16x16xf32>
    %cst_79 = arith.constant dense<0.000000e+00> : vector<16xf32>
    %134 = vector.multi_reduction <add>, %133, %cst_79 [1] : vector<16x16xf32> to vector<16xf32>
    %135 = vector.shape_cast %134 : vector<16xf32> to vector<16x1xf32>
    %cst_80 = arith.constant 1.600000e+01 : f32
    %136 = vector.broadcast %cst_80 : f32 to vector<16x1xf32>
    %137 = arith.divf %135, %136 : vector<16x1xf32>
    %138 = vector.broadcast %130 : vector<16x1xf32> to vector<16x16xf32>
    %139 = arith.subf %124, %138 : vector<16x16xf32>
    %cst_81 = arith.constant 9.99999974E-6 : f32
    %140 = vector.broadcast %cst_81 : f32 to vector<16x1xf32>
    %141 = arith.addf %137, %140 : vector<16x1xf32>
    %142 = math.rsqrt %141 : vector<16x1xf32>
    %143 = vector.broadcast %142 : vector<16x1xf32> to vector<16x16xf32>
    %144 = arith.mulf %139, %143 : vector<16x16xf32>
    %145 = vector.broadcast %125 : vector<1x16xf32> to vector<16x16xf32>
    %146 = arith.mulf %144, %145 : vector<16x16xf32>
    %147 = vector.broadcast %126 : vector<1x16xf32> to vector<16x16xf32>
    %148 = arith.addf %146, %147 : vector<16x16xf32>
    %149 = math.sin %148 : vector<16x16xf32>
    %150 = math.cos %148 : vector<16x16xf32>
    %151 = arith.mulf %149, %149 : vector<16x16xf32>
    %cst_82 = arith.constant 2.000000e+00 : f32
    %152 = vector.broadcast %cst_82 : f32 to vector<16x16xf32>
    %153 = arith.mulf %152, %149 : vector<16x16xf32>
    %154 = arith.mulf %153, %150 : vector<16x16xf32>
    %cst_83 = arith.constant 2.000000e+00 : f32
    %155 = vector.broadcast %cst_83 : f32 to vector<16x16xf32>
    %156 = arith.mulf %155, %151 : vector<16x16xf32>
    %cst_84 = arith.constant 1.000000e+00 : f32
    %157 = vector.broadcast %cst_84 : f32 to vector<16x16xf32>
    %158 = arith.subf %157, %156 : vector<16x16xf32>
    %cst_85 = arith.constant 4.000000e+00 : f32
    %159 = vector.broadcast %cst_85 : f32 to vector<16x16xf32>
    %160 = arith.mulf %159, %151 : vector<16x16xf32>
    %cst_86 = arith.constant 3.000000e+00 : f32
    %161 = vector.broadcast %cst_86 : f32 to vector<16x16xf32>
    %162 = arith.subf %161, %160 : vector<16x16xf32>
    %163 = arith.mulf %149, %162 : vector<16x16xf32>
    %164 = arith.mulf %150, %150 : vector<16x16xf32>
    %cst_87 = arith.constant 4.000000e+00 : f32
    %165 = vector.broadcast %cst_87 : f32 to vector<16x16xf32>
    %166 = arith.mulf %165, %164 : vector<16x16xf32>
    %cst_88 = arith.constant 3.000000e+00 : f32
    %167 = vector.broadcast %cst_88 : f32 to vector<16x16xf32>
    %168 = arith.subf %166, %167 : vector<16x16xf32>
    %169 = arith.mulf %150, %168 : vector<16x16xf32>
    %c0_89 = arith.constant 0 : index
    %c0_90 = arith.constant 0 : index
    %c0_91 = arith.constant 0 : index
    %170 = vector.load %arg12[%c0_89, %c0_90, %c0_91] : memref<3x16x128xf32, #tpu.memory_space<vmem>>, vector<1x16x128xf32>
    %171 = vector.shape_cast %170 : vector<1x16x128xf32> to vector<16x128xf32>
    %cst_92 = arith.constant dense<0.000000e+00> : vector<16x128xf32>
    %172 = tpu.matmul %149, %171, %cst_92 {dimension_numbers = #tpu.dot_dimension_numbers<[1], [0], [0], [1], [0, 0, 1, 1], [], []>} : vector<16x16xf32>, vector<16x128xf32>, vector<16x128xf32> -> vector<16x128xf32>
    %c0_93 = arith.constant 0 : index
    %c0_94 = arith.constant 0 : index
    %c0_95 = arith.constant 0 : index
    %173 = vector.load %arg13[%c0_93, %c0_94, %c0_95] : memref<3x16x128xf32, #tpu.memory_space<vmem>>, vector<1x16x128xf32>
    %174 = vector.shape_cast %173 : vector<1x16x128xf32> to vector<16x128xf32>
    %cst_96 = arith.constant dense<0.000000e+00> : vector<16x128xf32>
    %175 = tpu.matmul %150, %174, %cst_96 {dimension_numbers = #tpu.dot_dimension_numbers<[1], [0], [0], [1], [0, 0, 1, 1], [], []>} : vector<16x16xf32>, vector<16x128xf32>, vector<16x128xf32> -> vector<16x128xf32>
    %176 = arith.addf %172, %175 : vector<16x128xf32>
    %c1_97 = arith.constant 1 : index
    %c0_98 = arith.constant 0 : index
    %c0_99 = arith.constant 0 : index
    %177 = vector.load %arg12[%c1_97, %c0_98, %c0_99] : memref<3x16x128xf32, #tpu.memory_space<vmem>>, vector<1x16x128xf32>
    %178 = vector.shape_cast %177 : vector<1x16x128xf32> to vector<16x128xf32>
    %cst_100 = arith.constant dense<0.000000e+00> : vector<16x128xf32>
    %179 = tpu.matmul %154, %178, %cst_100 {dimension_numbers = #tpu.dot_dimension_numbers<[1], [0], [0], [1], [0, 0, 1, 1], [], []>} : vector<16x16xf32>, vector<16x128xf32>, vector<16x128xf32> -> vector<16x128xf32>
    %180 = arith.addf %176, %179 : vector<16x128xf32>
    %c1_101 = arith.constant 1 : index
    %c0_102 = arith.constant 0 : index
    %c0_103 = arith.constant 0 : index
    %181 = vector.load %arg13[%c1_101, %c0_102, %c0_103] : memref<3x16x128xf32, #tpu.memory_space<vmem>>, vector<1x16x128xf32>
    %182 = vector.shape_cast %181 : vector<1x16x128xf32> to vector<16x128xf32>
    %cst_104 = arith.constant dense<0.000000e+00> : vector<16x128xf32>
    %183 = tpu.matmul %158, %182, %cst_104 {dimension_numbers = #tpu.dot_dimension_numbers<[1], [0], [0], [1], [0, 0, 1, 1], [], []>} : vector<16x16xf32>, vector<16x128xf32>, vector<16x128xf32> -> vector<16x128xf32>
    %184 = arith.addf %180, %183 : vector<16x128xf32>
    %c2_105 = arith.constant 2 : index
    %c0_106 = arith.constant 0 : index
    %c0_107 = arith.constant 0 : index
    %185 = vector.load %arg12[%c2_105, %c0_106, %c0_107] : memref<3x16x128xf32, #tpu.memory_space<vmem>>, vector<1x16x128xf32>
    %186 = vector.shape_cast %185 : vector<1x16x128xf32> to vector<16x128xf32>
    %cst_108 = arith.constant dense<0.000000e+00> : vector<16x128xf32>
    %187 = tpu.matmul %163, %186, %cst_108 {dimension_numbers = #tpu.dot_dimension_numbers<[1], [0], [0], [1], [0, 0, 1, 1], [], []>} : vector<16x16xf32>, vector<16x128xf32>, vector<16x128xf32> -> vector<16x128xf32>
    %188 = arith.addf %184, %187 : vector<16x128xf32>
    %c2_109 = arith.constant 2 : index
    %c0_110 = arith.constant 0 : index
    %c0_111 = arith.constant 0 : index
    %189 = vector.load %arg13[%c2_109, %c0_110, %c0_111] : memref<3x16x128xf32, #tpu.memory_space<vmem>>, vector<1x16x128xf32>
    %190 = vector.shape_cast %189 : vector<1x16x128xf32> to vector<16x128xf32>
    %cst_112 = arith.constant dense<0.000000e+00> : vector<16x128xf32>
    %191 = tpu.matmul %169, %190, %cst_112 {dimension_numbers = #tpu.dot_dimension_numbers<[1], [0], [0], [1], [0, 0, 1, 1], [], []>} : vector<16x16xf32>, vector<16x128xf32>, vector<16x128xf32> -> vector<16x128xf32>
    %192 = arith.addf %188, %191 : vector<16x128xf32>
    %c0_113 = arith.constant 0 : index
    %c0_114 = arith.constant 0 : index
    %193 = vector.load %arg14[%c0_113, %c0_114] : memref<1x128xf32, #tpu.memory_space<vmem>>, vector<1x128xf32>
    %194 = vector.broadcast %193 : vector<1x128xf32> to vector<16x128xf32>
    %195 = arith.addf %192, %194 : vector<16x128xf32>
    %c0_115 = arith.constant 0 : index
    %c0_116 = arith.constant 0 : index
    %196 = vector.load %arg15[%c0_115, %c0_116] : memref<16x128xf32, #tpu.memory_space<vmem>>, vector<16x128xf32>
    tpu.vector_store %arg15[%c0_115, %c0_116], %195 {strides = array<i32>} : memref<16x128xf32, #tpu.memory_space<vmem>>, vector<16x128xf32>,
    return
  }
  func.func @transform_0(%arg0: i32) -> (i32, i32) {
    %c0_i32 = arith.constant 0 : i32
    %c0_i32_0 = arith.constant 0 : i32
    return %arg0, %c0_i32 : i32, i32
  }
  func.func @transform_1(%arg0: i32) -> (i32, i32, i32) {
    %c0_i32 = arith.constant 0 : i32
    %c0_i32_0 = arith.constant 0 : i32
    %c0_i32_1 = arith.constant 0 : i32
    %c0_i32_2 = arith.constant 0 : i32
    return %c0_i32, %c0_i32_0, %c0_i32_1 : i32, i32, i32
  }
  func.func @transform_2(%arg0: i32) -> (i32, i32, i32) {
    %c0_i32 = arith.constant 0 : i32
    %c0_i32_0 = arith.constant 0 : i32
    %c0_i32_1 = arith.constant 0 : i32
    %c0_i32_2 = arith.constant 0 : i32
    return %c0_i32, %c0_i32_0, %c0_i32_1 : i32, i32, i32
  }
  func.func @transform_3(%arg0: i32) -> (i32, i32) {
    %c0_i32 = arith.constant 0 : i32
    %c0_i32_0 = arith.constant 0 : i32
    %c0_i32_1 = arith.constant 0 : i32
    return %c0_i32, %c0_i32_0 : i32, i32
  }
  func.func @transform_4(%arg0: i32) -> (i32, i32) {
    %c0_i32 = arith.constant 0 : i32
    %c0_i32_0 = arith.constant 0 : i32
    %c0_i32_1 = arith.constant 0 : i32
    return %c0_i32, %c0_i32_0 : i32, i32
  }
  func.func @transform_5(%arg0: i32) -> (i32, i32) {
    %c0_i32 = arith.constant 0 : i32
    %c0_i32_0 = arith.constant 0 : i32
    %c0_i32_1 = arith.constant 0 : i32
    return %c0_i32, %c0_i32_0 : i32, i32
  }
  func.func @transform_6(%arg0: i32) -> (i32, i32, i32) {
    %c0_i32 = arith.constant 0 : i32
    %c0_i32_0 = arith.constant 0 : i32
    %c0_i32_1 = arith.constant 0 : i32
    %c0_i32_2 = arith.constant 0 : i32
    return %c0_i32, %c0_i32_0, %c0_i32_1 : i32, i32, i32
  }
  func.func @transform_7(%arg0: i32) -> (i32, i32, i32) {
    %c0_i32 = arith.constant 0 : i32
    %c0_i32_0 = arith.constant 0 : i32
    %c0_i32_1 = arith.constant 0 : i32
    %c0_i32_2 = arith.constant 0 : i32
    return %c0_i32, %c0_i32_0, %c0_i32_1 : i32, i32, i32
  }
  func.func @transform_8(%arg0: i32) -> (i32, i32) {
    %c0_i32 = arith.constant 0 : i32
    %c0_i32_0 = arith.constant 0 : i32
    %c0_i32_1 = arith.constant 0 : i32
    return %c0_i32, %c0_i32_0 : i32, i32
  }
  func.func @transform_9(%arg0: i32) -> (i32, i32) {
    %c0_i32 = arith.constant 0 : i32
    %c0_i32_0 = arith.constant 0 : i32
    %c0_i32_1 = arith.constant 0 : i32
    return %c0_i32, %c0_i32_0 : i32, i32
  }
  func.func @transform_10(%arg0: i32) -> (i32, i32) {
    %c0_i32 = arith.constant 0 : i32
    %c0_i32_0 = arith.constant 0 : i32
    %c0_i32_1 = arith.constant 0 : i32
    return %c0_i32, %c0_i32_0 : i32, i32
  }
  func.func @transform_11(%arg0: i32) -> (i32, i32, i32) {
    %c0_i32 = arith.constant 0 : i32
    %c0_i32_0 = arith.constant 0 : i32
    %c0_i32_1 = arith.constant 0 : i32
    %c0_i32_2 = arith.constant 0 : i32
    return %c0_i32, %c0_i32_0, %c0_i32_1 : i32, i32, i32
  }
  func.func @transform_12(%arg0: i32) -> (i32, i32, i32) {
    %c0_i32 = arith.constant 0 : i32
    %c0_i32_0 = arith.constant 0 : i32
    %c0_i32_1 = arith.constant 0 : i32
    %c0_i32_2 = arith.constant 0 : i32
    return %c0_i32, %c0_i32_0, %c0_i32_1 : i32, i32, i32
  }
  func.func @transform_13(%arg0: i32) -> (i32, i32) {
    %c0_i32 = arith.constant 0 : i32
    %c0_i32_0 = arith.constant 0 : i32
    %c0_i32_1 = arith.constant 0 : i32
    return %c0_i32, %c0_i32_0 : i32, i32
  }
  func.func @transform_14(%arg0: i32) -> (i32, i32) {
    %c0_i32 = arith.constant 0 : i32
    %c0_i32_0 = arith.constant 0 : i32
    return %arg0, %c0_i32 : i32, i32
  }
}

</mosaic_0001>

<llo_original>
// kernel: tpu_custom_call.1
$region0: #{tpu_custom_call.1}
  #allocation0 [shape = 'u32[]', space=smem, size = 0x4, offset = 0x4, fixed_abs, tag = 'smem constant byte address 0x4 - core index']
  #allocation1 [shape = 'u32[144,128]{1,0:T(1,128)}', space=vmem, size = 0x12000, scoped, tag = 'internal scratch']
  %s0 = inlined_call_operand.vmem [shape: f32[16,784], index: 0, kind: input, shape index: {}]
  %s1 = inlined_call_operand.vmem [shape: bf16[3,784,32], index: 1, kind: input, shape index: {}]
  %s2 = inlined_call_operand.vmem [shape: bf16[3,784,32], index: 2, kind: input, shape index: {}]
  %s3 = inlined_call_operand.vmem [shape: f32[1,32], index: 3, kind: input, shape index: {}]
  %s4 = inlined_call_operand.vmem [shape: f32[1,32], index: 4, kind: input, shape index: {}]
  %s5 = inlined_call_operand.vmem [shape: f32[1,32], index: 5, kind: input, shape index: {}]
  %s6 = inlined_call_operand.vmem [shape: f32[3,32,16], index: 6, kind: input, shape index: {}]
  %s7 = inlined_call_operand.vmem [shape: f32[3,32,16], index: 7, kind: input, shape index: {}]
  %s8 = inlined_call_operand.vmem [shape: f32[1,16], index: 8, kind: input, shape index: {}]
  %s9 = inlined_call_operand.vmem [shape: f32[1,16], index: 9, kind: input, shape index: {}]
  %s10 = inlined_call_operand.vmem [shape: f32[1,16], index: 10, kind: input, shape index: {}]
  %s11 = inlined_call_operand.vmem [shape: f32[3,16,128], index: 11, kind: input, shape index: {}]
  %s12 = inlined_call_operand.vmem [shape: f32[3,16,128], index: 12, kind: input, shape index: {}]
  %s13 = inlined_call_operand.vmem [shape: f32[1,128], index: 13, kind: input, shape index: {}]
  %s14 = inlined_call_operand.hbm [shape: f32[16,128], index: 14, kind: output, shape index: {}]
  %s15 = sld [smem:[#allocation0]]
  $region66: #{tpu_custom_call.1} parent=0
    _
  %s17 = ssub.s32 1, %s15
  %s18 = scalar_select 0, %s17, %s15
  $region1: #{tpu_custom_call.1} parent=0
    #allocation2 [shape = 'u8[8192]{0}', space=vmem, size = 0x2000, scoped, tag = 'output window, operand 0, single buffered']
    #allocation3 [shape = 's32[1]{0}', space=sflag, size = 0x4, scoped, tag = 'scoped memory for tpu_custom_call.1']
    %19 = vsyncpa [#allocation3], 0
    // Predicated region
    $region2: #{tpu_custom_call.1} parent=1 // pred_check
      _
    $region3: #{tpu_custom_call.1} parent=1 // pred_check_branch
      %21 = sbr.rel (0) target = $region5
    $region4: #{tpu_custom_call.1} parent=1 // pred_region
      _
    $region5: #{tpu_custom_call.1} parent=1 // pred_fallthru
      _
    // Predicated region
    $region6: #{tpu_custom_call.1} parent=1 // pred_check
      _
    $region7: #{tpu_custom_call.1} parent=1 // pred_check_branch
      %23 = sbr.rel (0) target = $region9
    $region8: #{tpu_custom_call.1} parent=1 // pred_region
      _
    $region9: #{tpu_custom_call.1} parent=1 // pred_fallthru
      _
    // Predicated region
    $region10: #{tpu_custom_call.1} parent=1 // pred_check
      _
    $region11: #{tpu_custom_call.1} parent=1 // pred_check_branch
      %25 = sbr.rel (0) target = $region13
    $region12: #{tpu_custom_call.1} parent=1 // pred_region
      _
    $region13: #{tpu_custom_call.1} parent=1 // pred_fallthru
      _
    // Predicated region
    $region14: #{tpu_custom_call.1} parent=1 // pred_check
      _
    $region15: #{tpu_custom_call.1} parent=1 // pred_check_branch
      %27 = sbr.rel (0) target = $region17
    $region16: #{tpu_custom_call.1} parent=1 // pred_region
      _
    $region17: #{tpu_custom_call.1} parent=1 // pred_fallthru
      _
    // Predicated region
    $region18: #{tpu_custom_call.1} parent=1 // pred_check
      _
    $region19: #{tpu_custom_call.1} parent=1 // pred_check_branch
      %29 = sbr.rel (0) target = $region21
    $region20: #{tpu_custom_call.1} parent=1 // pred_region
      _
    $region21: #{tpu_custom_call.1} parent=1 // pred_fallthru
      _
    // Predicated region
    $region22: #{tpu_custom_call.1} parent=1 // pred_check
      _
    $region23: #{tpu_custom_call.1} parent=1 // pred_check_branch
      %31 = sbr.rel (0) target = $region25
    $region24: #{tpu_custom_call.1} parent=1 // pred_region
      _
    $region25: #{tpu_custom_call.1} parent=1 // pred_fallthru
      _
    // Predicated region
    $region26: #{tpu_custom_call.1} parent=1 // pred_check
      _
    $region27: #{tpu_custom_call.1} parent=1 // pred_check_branch
      %33 = sbr.rel (0) target = $region29
    $region28: #{tpu_custom_call.1} parent=1 // pred_region
      _
    $region29: #{tpu_custom_call.1} parent=1 // pred_fallthru
      _
    // Predicated region
    $region30: #{tpu_custom_call.1} parent=1 // pred_check
      _
    $region31: #{tpu_custom_call.1} parent=1 // pred_check_branch
      %35 = sbr.rel (0) target = $region33
    $region32: #{tpu_custom_call.1} parent=1 // pred_region
      _
    $region33: #{tpu_custom_call.1} parent=1 // pred_fallthru
      _
    // Predicated region
    $region34: #{tpu_custom_call.1} parent=1 // pred_check
      _
    $region35: #{tpu_custom_call.1} parent=1 // pred_check_branch
      %37 = sbr.rel (0) target = $region37
    $region36: #{tpu_custom_call.1} parent=1 // pred_region
      _
    $region37: #{tpu_custom_call.1} parent=1 // pred_fallthru
      _
    // Predicated region
    $region38: #{tpu_custom_call.1} parent=1 // pred_check
      _
    $region39: #{tpu_custom_call.1} parent=1 // pred_check_branch
      %39 = sbr.rel (0) target = $region41
    $region40: #{tpu_custom_call.1} parent=1 // pred_region
      _
    $region41: #{tpu_custom_call.1} parent=1 // pred_fallthru
      _
    // Predicated region
    $region42: #{tpu_custom_call.1} parent=1 // pred_check
      _
    $region43: #{tpu_custom_call.1} parent=1 // pred_check_branch
      %41 = sbr.rel (0) target = $region45
    $region44: #{tpu_custom_call.1} parent=1 // pred_region
      _
    $region45: #{tpu_custom_call.1} parent=1 // pred_fallthru
      _
    // Predicated region
    $region46: #{tpu_custom_call.1} parent=1 // pred_check
      _
    $region47: #{tpu_custom_call.1} parent=1 // pred_check_branch
      %43 = sbr.rel (0) target = $region49
    $region48: #{tpu_custom_call.1} parent=1 // pred_region
      _
    $region49: #{tpu_custom_call.1} parent=1 // pred_fallthru
      _
    // Predicated region
    $region50: #{tpu_custom_call.1} parent=1 // pred_check
      _
    $region51: #{tpu_custom_call.1} parent=1 // pred_check_branch
      %45 = sbr.rel (0) target = $region53
    $region52: #{tpu_custom_call.1} parent=1 // pred_region
      _
    $region53: #{tpu_custom_call.1} parent=1 // pred_fallthru
      _
    // Predicated region
    $region54: #{tpu_custom_call.1} parent=1 // pred_check
      _
    $region55: #{tpu_custom_call.1} parent=1 // pred_check_branch
      %47 = sbr.rel (0) target = $region57
    $region56: #{tpu_custom_call.1} parent=1 // pred_region
      _
    $region57: #{tpu_custom_call.1} parent=1 // pred_fallthru
      _
    %v49 = vld [vmem:[%s0] sm:$0xff]
    %v50 = vld [vmem:[%s0 + $0x8] sm:$0xff]
    %v51 = vld [vmem:[%s0 + $0x10] sm:$0xff]
    %v52 = vld [vmem:[%s0 + $0x18] sm:$0xff]
    %v53 = vld [vmem:[%s0 + $0x20] sm:$0xff]
    %v54 = vld [vmem:[%s0 + $0x28] sm:$0xff]
    %v55 = vld [vmem:[%s0 + $0x30] sm:$0xff]
    %v56 = vld [vmem:[%s0 + $0x38] sm:$0xff]
    %v57 = vld [vmem:[%s0 + $0x40] sm:$0xff]
    %v58 = vld [vmem:[%s0 + $0x48] sm:$0xff]
    %v59 = vld [vmem:[%s0 + $0x50] sm:$0xff]
    %v60 = vld [vmem:[%s0 + $0x58] sm:$0xff]
    %v61 = vld [vmem:[%s0 + $0x60] sm:$0xff]
    %v62 = vld [vmem:[%s0 + $0x68] sm:$0xff]
    %v63 = vand.u32 2147483647, %v49
    %vm64 = vcmp.le.f32.partialorder %v63, 0.7853982
    %vm65 = vcmp.lt.s32.totalorder %v49, 0
    %v66 = vand.u32 %v49, 2139095040
    %v67 = vshrl.u32 %v66, 23
    %v68 = vsub.s32 %v67, 127
    %v69 = vand.u32 2147483647, %v49
    %v70 = vand.u32 %v69, 8388607
    %v71 = vor.u32 %v70, 8388608
    %v72 = vsub.s32 0, %v71
    %v73 = vadd.s32 %v68, 1
    %vm74 = vcmp.gt.s32.totalorder %v73, 0
    %v75 = vsel %vm74, %v73, 0
    %v76 = vshrl.u32 %v75, 5
    %v77 = vand.u32 %v75, 31
    %v78 = vsub.s32 32, %v77
    %v79 = vshrl.u32 683565275, %v78
    %v80 = vshll.u32 683565275, %v77
    %v81 = vshrl.u32 2475754826, %v78
    %v82 = vor.u32 %v80, %v81
    %v83 = vshll.u32 2475754826, %v77
    %v84 = vshrl.u32 2131351028, %v78
    %v85 = vor.u32 %v83, %v84
    %v86 = vshll.u32 2131351028, %v77
    %v87 = vshrl.u32 2102212464, %v78
    %v88 = vor.u32 %v86, %v87
    %v89 = vshll.u32 2102212464, %v77
    %v90 = vshrl.u32 920167782, %v78
    %v91 = vor.u32 %v89, %v90
    %v92 = vshll.u32 920167782, %v77
    %v93 = vshrl.u32 1326507024, %v78
    %v94 = vor.u32 %v92, %v93
    %vm95 = vcmp.lt.s32.totalorder %v76, 1
    %vm96 = vcmp.lt.s32.totalorder %v76, 2
    %vm97 = vcmp.lt.s32.totalorder %v76, 3
    %vm98 = vcmp.lt.s32.totalorder %v76, 4
    %v99 = vsel %vm95, %v79, %v82
    %v100 = vsel %vm98, %v88, 2102212464
    %v101 = vsel %vm97, %v85, %v100
    %v102 = vsel %vm96, %v99, %v101
    %v103 = vsel %vm95, %v82, %v85
    %v104 = vsel %vm98, %v91, 920167782
    %v105 = vsel %vm97, %v88, %v104
    %v106 = vsel %vm96, %v103, %v105
    %v107 = vsel %vm95, %v85, %v88
    %v108 = vsel %vm98, %v94, 1326507024
    %v109 = vsel %vm97, %v91, %v108
    %v110 = vsel %vm96, %v107, %v109
    %v111 = vshll.u32 %v71, 8
    %v112 = vmul.u32.u64.compose %v111, %v110
    %v113 = vextract.low.u32 %v112
    %v114 = vextract.high.u32 %v112
    %v115 = vmul.u32.u64.compose %v111, %v106
    %v116 = vextract.low.u32 %v115
    %v117 = vextract.high.u32 %v115
    %v118 = vmul.u32 %v111, %v102
    %v119 = vadd.s32 %v114, %v116
    %vm120 = vc.u32 %v114, %v116
    %v121 = vadd.s32 %v117, 1
    %v122 = vsel %vm120, %v121, %v117
    %v123 = vadd.s32 %v118, %v122
    %v124 = vadd.s32 %v123, 536870912
    %v125 = vshrl.u32 %v124, 30
    %v126 = vshll.u32 %v125, 30
    %v127 = vsub.s32 %v123, %v126
    %vm128 = vcmp.lt.s32.totalorder %v127, 0
    %v129 = vsub.s32 0, %v127
    %v130 = vsel %vm128, %v129, %v127
    %v131 = vclz %v130
    %v132 = vsub.s32 %v131, 2
    %vm133 = vcmp.gt.s32.totalorder 0, %v132
    %v134 = vsel %vm133, 0, %v132
    %v135 = vsub.s32 32, %v134
    %v136 = vshll.u32 %v127, %v134
    %v137 = vshrl.u32 %v119, %v135
    %v138 = vor.u32 %v136, %v137
    %v139 = vsub.s32 4294967266, %v134
    %v140 = vadd.s32 %v139, 127
    %v141 = vshll.u32 %v140, 23
    %v142 = vor.u32 4788187, %v141
    %v143 = vand.u32 2147483647, %v142
    %v145 = vcvt.s32.f32 %v138
    %v146 = vmul.f32 %v145, %v143
    %v147 = vxor.u32 %v146, 2147483648
    %v148 = vsel %vm65, %v147, %v146
    %v149 = vsub.s32 4, %v125
    %v150 = vsel %vm65, %v149, %v125
    %v151 = vsel %vm64, %v49, %v148
    %v152 = vsel %vm64, 0, %v150
    %v153 = vcosq.f32.pop %v151
    %v154 = vsinq.f32.pop %v151
    %vm155 = vweird.f32 %v49
    %v156 = vadd.s32 %v152, 3
    %v157 = vand.u32 %v156, 3
    %vm158 = vcmp.lt.s32.totalorder %v157, 2
    %vm159 = vcmp.eq.s32.totalorder %v157, 0
    %v160 = vxor.u32 %v154, 2147483648
    %v161 = vsel %vm159, %v153, %v160
    %vm162 = vcmp.eq.s32.totalorder %v157, 2
    %v163 = vxor.u32 %v153, 2147483648
    %v164 = vsel %vm162, %v163, %v154
    %v165 = vsel %vm158, %v161, %v164
    %v166 = vsel %vm155, nan, %v165
    %v167 = vand.u32 2147483647, %v50
    %vm168 = vcmp.le.f32.partialorder %v167, 0.7853982
    %vm169 = vcmp.lt.s32.totalorder %v50, 0
    %v170 = vand.u32 %v50, 2139095040
    %v171 = vshrl.u32 %v170, 23
    %v172 = vsub.s32 %v171, 127
    %v173 = vand.u32 2147483647, %v50
    %v174 = vand.u32 %v173, 8388607
    %v175 = vor.u32 %v174, 8388608
    %v176 = vsub.s32 0, %v175
    %v177 = vadd.s32 %v172, 1
    %vm178 = vcmp.gt.s32.totalorder %v177, 0
    %v179 = vsel %vm178, %v177, 0
    %v180 = vshrl.u32 %v179, 5
    %v181 = vand.u32 %v179, 31
    %v182 = vsub.s32 32, %v181
    %v183 = vshrl.u32 683565275, %v182
    %v184 = vshll.u32 683565275, %v181
    %v185 = vshrl.u32 2475754826, %v182
    %v186 = vor.u32 %v184, %v185
    %v187 = vshll.u32 2475754826, %v181
    %v188 = vshrl.u32 2131351028, %v182
    %v189 = vor.u32 %v187, %v188
    %v190 = vshll.u32 2131351028, %v181
    %v191 = vshrl.u32 2102212464, %v182
    %v192 = vor.u32 %v190, %v191
    %v193 = vshll.u32 2102212464, %v181
    %v194 = vshrl.u32 920167782, %v182
    %v195 = vor.u32 %v193, %v194
    %v196 = vshll.u32 920167782, %v181
    %v197 = vshrl.u32 1326507024, %v182
    %v198 = vor.u32 %v196, %v197
    %vm199 = vcmp.lt.s32.totalorder %v180, 1
    %vm200 = vcmp.lt.s32.totalorder %v180, 2
    %vm201 = vcmp.lt.s32.totalorder %v180, 3
    %vm202 = vcmp.lt.s32.totalorder %v180, 4
    %v203 = vsel %vm199, %v183, %v186
    %v204 = vsel %vm202, %v192, 2102212464
    %v205 = vsel %vm201, %v189, %v204
    %v206 = vsel %vm200, %v203, %v205
    %v207 = vsel %vm199, %v186, %v189
    %v208 = vsel %vm202, %v195, 920167782
    %v209 = vsel %vm201, %v192, %v208
    %v210 = vsel %vm200, %v207, %v209
    %v211 = vsel %vm199, %v189, %v192
    %v212 = vsel %vm202, %v198, 1326507024
    %v213 = vsel %vm201, %v195, %v212
    %v214 = vsel %vm200, %v211, %v213
    %v215 = vshll.u32 %v175, 8
    %v216 = vmul.u32.u64.compose %v215, %v214
    %v217 = vextract.low.u32 %v216
    %v218 = vextract.high.u32 %v216
    %v219 = vmul.u32.u64.compose %v215, %v210
    %v220 = vextract.low.u32 %v219
    %v221 = vextract.high.u32 %v219
    %v222 = vmul.u32 %v215, %v206
    %v223 = vadd.s32 %v218, %v220
    %vm224 = vc.u32 %v218, %v220
    %v225 = vadd.s32 %v221, 1
    %v226 = vsel %vm224, %v225, %v221
    %v227 = vadd.s32 %v222, %v226
    %v228 = vadd.s32 %v227, 536870912
    %v229 = vshrl.u32 %v228, 30
    %v230 = vshll.u32 %v229, 30
    %v231 = vsub.s32 %v227, %v230
    %vm232 = vcmp.lt.s32.totalorder %v231, 0
    %v233 = vsub.s32 0, %v231
    %v234 = vsel %vm232, %v233, %v231
    %v235 = vclz %v234
    %v236 = vsub.s32 %v235, 2
    %vm237 = vcmp.gt.s32.totalorder 0, %v236
    %v238 = vsel %vm237, 0, %v236
    %v239 = vsub.s32 32, %v238
    %v240 = vshll.u32 %v231, %v238
    %v241 = vshrl.u32 %v223, %v239
    %v242 = vor.u32 %v240, %v241
    %v243 = vsub.s32 4294967266, %v238
    %v244 = vadd.s32 %v243, 127
    %v245 = vshll.u32 %v244, 23
    %v246 = vor.u32 4788187, %v245
    %v247 = vand.u32 2147483647, %v246
    %v249 = vcvt.s32.f32 %v242
    %v250 = vmul.f32 %v249, %v247
    %v251 = vxor.u32 %v250, 2147483648
    %v252 = vsel %vm169, %v251, %v250
    %v253 = vsub.s32 4, %v229
    %v254 = vsel %vm169, %v253, %v229
    %v255 = vsel %vm168, %v50, %v252
    %v256 = vsel %vm168, 0, %v254
    %v257 = vcosq.f32.pop %v255
    %v258 = vsinq.f32.pop %v255
    %vm259 = vweird.f32 %v50
    %v260 = vadd.s32 %v256, 3
    %v261 = vand.u32 %v260, 3
    %vm262 = vcmp.lt.s32.totalorder %v261, 2
    %vm263 = vcmp.eq.s32.totalorder %v261, 0
    %v264 = vxor.u32 %v258, 2147483648
    %v265 = vsel %vm263, %v257, %v264
    %vm266 = vcmp.eq.s32.totalorder %v261, 2
    %v267 = vxor.u32 %v257, 2147483648
    %v268 = vsel %vm266, %v267, %v258
    %v269 = vsel %vm262, %v265, %v268
    %v270 = vsel %vm259, nan, %v269
    %v271 = vand.u32 2147483647, %v51
    %vm272 = vcmp.le.f32.partialorder %v271, 0.7853982
    %vm273 = vcmp.lt.s32.totalorder %v51, 0
    %v274 = vand.u32 %v51, 2139095040
    %v275 = vshrl.u32 %v274, 23
    %v276 = vsub.s32 %v275, 127
    %v277 = vand.u32 2147483647, %v51
    %v278 = vand.u32 %v277, 8388607
    %v279 = vor.u32 %v278, 8388608
    %v280 = vsub.s32 0, %v279
    %v281 = vadd.s32 %v276, 1
    %vm282 = vcmp.gt.s32.totalorder %v281, 0
    %v283 = vsel %vm282, %v281, 0
    %v284 = vshrl.u32 %v283, 5
    %v285 = vand.u32 %v283, 31
    %v286 = vsub.s32 32, %v285
    %v287 = vshrl.u32 683565275, %v286
    %v288 = vshll.u32 683565275, %v285
    %v289 = vshrl.u32 2475754826, %v286
    %v290 = vor.u32 %v288, %v289
    %v291 = vshll.u32 2475754826, %v285
    %v292 = vshrl.u32 2131351028, %v286
    %v293 = vor.u32 %v291, %v292
    %v294 = vshll.u32 2131351028, %v285
    %v295 = vshrl.u32 2102212464, %v286
    %v296 = vor.u32 %v294, %v295
    %v297 = vshll.u32 2102212464, %v285
    %v298 = vshrl.u32 920167782, %v286
    %v299 = vor.u32 %v297, %v298
    %v300 = vshll.u32 920167782, %v285
    %v301 = vshrl.u32 1326507024, %v286
    %v302 = vor.u32 %v300, %v301
    %vm303 = vcmp.lt.s32.totalorder %v284, 1
    %vm304 = vcmp.lt.s32.totalorder %v284, 2
    %vm305 = vcmp.lt.s32.totalorder %v284, 3
    %vm306 = vcmp.lt.s32.totalorder %v284, 4
    %v307 = vsel %vm303, %v287, %v290
    %v308 = vsel %vm306, %v296, 2102212464
    %v309 = vsel %vm305, %v293, %v308
    %v310 = vsel %vm304, %v307, %v309
    %v311 = vsel %vm303, %v290, %v293
    %v312 = vsel %vm306, %v299, 920167782
    %v313 = vsel %vm305, %v296, %v312
    %v314 = vsel %vm304, %v311, %v313
    %v315 = vsel %vm303, %v293, %v296
    %v316 = vsel %vm306, %v302, 1326507024
    %v317 = vsel %vm305, %v299, %v316
    %v318 = vsel %vm304, %v315, %v317
    %v319 = vshll.u32 %v279, 8
    %v320 = vmul.u32.u64.compose %v319, %v318
    %v321 = vextract.low.u32 %v320
    %v322 = vextract.high.u32 %v320
    %v323 = vmul.u32.u64.compose %v319, %v314
    %v324 = vextract.low.u32 %v323
    %v325 = vextract.high.u32 %v323
    %v326 = vmul.u32 %v319, %v310
    %v327 = vadd.s32 %v322, %v324
    %vm328 = vc.u32 %v322, %v324
    %v329 = vadd.s32 %v325, 1
    %v330 = vsel %vm328, %v329, %v325
    %v331 = vadd.s32 %v326, %v330
    %v332 = vadd.s32 %v331, 536870912
    %v333 = vshrl.u32 %v332, 30
    %v334 = vshll.u32 %v333, 30
    %v335 = vsub.s32 %v331, %v334
    %vm336 = vcmp.lt.s32.totalorder %v335, 0
    %v337 = vsub.s32 0, %v335
    %v338 = vsel %vm336, %v337, %v335
    %v339 = vclz %v338
    %v340 = vsub.s32 %v339, 2
    %vm341 = vcmp.gt.s32.totalorder 0, %v340
    %v342 = vsel %vm341, 0, %v340
    %v343 = vsub.s32 32, %v342
    %v344 = vshll.u32 %v335, %v342
    %v345 = vshrl.u32 %v327, %v343
    %v346 = vor.u32 %v344, %v345
    %v347 = vsub.s32 4294967266, %v342
    %v348 = vadd.s32 %v347, 127
    %v349 = vshll.u32 %v348, 23
    %v350 = vor.u32 4788187, %v349
    %v351 = vand.u32 2147483647, %v350
    %v353 = vcvt.s32.f32 %v346
    %v354 = vmul.f32 %v353, %v351
    %v355 = vxor.u32 %v354, 2147483648
    %v356 = vsel %vm273, %v355, %v354
    %v357 = vsub.s32 4, %v333
    %v358 = vsel %vm273, %v357, %v333
    %v359 = vsel %vm272, %v51, %v356
    %v360 = vsel %vm272, 0, %v358
    %v361 = vcosq.f32.pop %v359
    %v362 = vsinq.f32.pop %v359
    %vm363 = vweird.f32 %v51
    %v364 = vadd.s32 %v360, 3
    %v365 = vand.u32 %v364, 3
    %vm366 = vcmp.lt.s32.totalorder %v365, 2
    %vm367 = vcmp.eq.s32.totalorder %v365, 0
    %v368 = vxor.u32 %v362, 2147483648
    %v369 = vsel %vm367, %v361, %v368
    %vm370 = vcmp.eq.s32.totalorder %v365, 2
    %v371 = vxor.u32 %v361, 2147483648
    %v372 = vsel %vm370, %v371, %v362
    %v373 = vsel %vm366, %v369, %v372
    %v374 = vsel %vm363, nan, %v373
    %v375 = vand.u32 2147483647, %v52
    %vm376 = vcmp.le.f32.partialorder %v375, 0.7853982
    %vm377 = vcmp.lt.s32.totalorder %v52, 0
    %v378 = vand.u32 %v52, 2139095040
    %v379 = vshrl.u32 %v378, 23
    %v380 = vsub.s32 %v379, 127
    %v381 = vand.u32 2147483647, %v52
    %v382 = vand.u32 %v381, 8388607
    %v383 = vor.u32 %v382, 8388608
    %v384 = vsub.s32 0, %v383
    %v385 = vadd.s32 %v380, 1
    %vm386 = vcmp.gt.s32.totalorder %v385, 0
    %v387 = vsel %vm386, %v385, 0
    %v388 = vshrl.u32 %v387, 5
    %v389 = vand.u32 %v387, 31
    %v390 = vsub.s32 32, %v389
    %v391 = vshrl.u32 683565275, %v390
    %v392 = vshll.u32 683565275, %v389
    %v393 = vshrl.u32 2475754826, %v390
    %v394 = vor.u32 %v392, %v393
    %v395 = vshll.u32 2475754826, %v389
    %v396 = vshrl.u32 2131351028, %v390
    %v397 = vor.u32 %v395, %v396
    %v398 = vshll.u32 2131351028, %v389
    %v399 = vshrl.u32 2102212464, %v390
    %v400 = vor.u32 %v398, %v399
    %v401 = vshll.u32 2102212464, %v389
    %v402 = vshrl.u32 920167782, %v390
    %v403 = vor.u32 %v401, %v402
    %v404 = vshll.u32 920167782, %v389
    %v405 = vshrl.u32 1326507024, %v390
    %v406 = vor.u32 %v404, %v405
    %vm407 = vcmp.lt.s32.totalorder %v388, 1
    %vm408 = vcmp.lt.s32.totalorder %v388, 2
    %vm409 = vcmp.lt.s32.totalorder %v388, 3
    %vm410 = vcmp.lt.s32.totalorder %v388, 4
    %v411 = vsel %vm407, %v391, %v394
    %v412 = vsel %vm410, %v400, 2102212464
    %v413 = vsel %vm409, %v397, %v412
    %v414 = vsel %vm408, %v411, %v413
    %v415 = vsel %vm407, %v394, %v397
    %v416 = vsel %vm410, %v403, 920167782
    %v417 = vsel %vm409, %v400, %v416
    %v418 = vsel %vm408, %v415, %v417
    %v419 = vsel %vm407, %v397, %v400
    %v420 = vsel %vm410, %v406, 1326507024
    %v421 = vsel %vm409, %v403, %v420
    %v422 = vsel %vm408, %v419, %v421
    %v423 = vshll.u32 %v383, 8
    %v424 = vmul.u32.u64.compose %v423, %v422
    %v425 = vextract.low.u32 %v424
    %v426 = vextract.high.u32 %v424
    %v427 = vmul.u32.u64.compose %v423, %v418
    %v428 = vextract.low.u32 %v427
    %v429 = vextract.high.u32 %v427
    %v430 = vmul.u32 %v423, %v414
    %v431 = vadd.s32 %v426, %v428
    %vm432 = vc.u32 %v426, %v428
    %v433 = vadd.s32 %v429, 1
    %v434 = vsel %vm432, %v433, %v429
    %v435 = vadd.s32 %v430, %v434
    %v436 = vadd.s32 %v435, 536870912
    %v437 = vshrl.u32 %v436, 30
    %v438 = vshll.u32 %v437, 30
    %v439 = vsub.s32 %v435, %v438
    %vm440 = vcmp.lt.s32.totalorder %v439, 0
    %v441 = vsub.s32 0, %v439
    %v442 = vsel %vm440, %v441, %v439
    %v443 = vclz %v442
    %v444 = vsub.s32 %v443, 2
    %vm445 = vcmp.gt.s32.totalorder 0, %v444
    %v446 = vsel %vm445, 0, %v444
    %v447 = vsub.s32 32, %v446
    %v448 = vshll.u32 %v439, %v446
    %v449 = vshrl.u32 %v431, %v447
    %v450 = vor.u32 %v448, %v449
    %v451 = vsub.s32 4294967266, %v446
    %v452 = vadd.s32 %v451, 127
    %v453 = vshll.u32 %v452, 23
    %v454 = vor.u32 4788187, %v453
    %v455 = vand.u32 2147483647, %v454
    %v457 = vcvt.s32.f32 %v450
    %v458 = vmul.f32 %v457, %v455
    %v459 = vxor.u32 %v458, 2147483648
    %v460 = vsel %vm377, %v459, %v458
    %v461 = vsub.s32 4, %v437
    %v462 = vsel %vm377, %v461, %v437
    %v463 = vsel %vm376, %v52, %v460
    %v464 = vsel %vm376, 0, %v462
    %v465 = vcosq.f32.pop %v463
    %v466 = vsinq.f32.pop %v463
    %vm467 = vweird.f32 %v52
    %v468 = vadd.s32 %v464, 3
    %v469 = vand.u32 %v468, 3
    %vm470 = vcmp.lt.s32.totalorder %v469, 2
    %vm471 = vcmp.eq.s32.totalorder %v469, 0
    %v472 = vxor.u32 %v466, 2147483648
    %v473 = vsel %vm471, %v465, %v472
    %vm474 = vcmp.eq.s32.totalorder %v469, 2
    %v475 = vxor.u32 %v465, 2147483648
    %v476 = vsel %vm474, %v475, %v466
    %v477 = vsel %vm470, %v473, %v476
    %v478 = vsel %vm467, nan, %v477
    %v479 = vand.u32 2147483647, %v53
    %vm480 = vcmp.le.f32.partialorder %v479, 0.7853982
    %vm481 = vcmp.lt.s32.totalorder %v53, 0
    %v482 = vand.u32 %v53, 2139095040
    %v483 = vshrl.u32 %v482, 23
    %v484 = vsub.s32 %v483, 127
    %v485 = vand.u32 2147483647, %v53
    %v486 = vand.u32 %v485, 8388607
    %v487 = vor.u32 %v486, 8388608
    %v488 = vsub.s32 0, %v487
    %v489 = vadd.s32 %v484, 1
    %vm490 = vcmp.gt.s32.totalorder %v489, 0
    %v491 = vsel %vm490, %v489, 0
    %v492 = vshrl.u32 %v491, 5
    %v493 = vand.u32 %v491, 31
    %v494 = vsub.s32 32, %v493
    %v495 = vshrl.u32 683565275, %v494
    %v496 = vshll.u32 683565275, %v493
    %v497 = vshrl.u32 2475754826, %v494
    %v498 = vor.u32 %v496, %v497
    %v499 = vshll.u32 2475754826, %v493
    %v500 = vshrl.u32 2131351028, %v494
    %v501 = vor.u32 %v499, %v500
    %v502 = vshll.u32 2131351028, %v493
    %v503 = vshrl.u32 2102212464, %v494
    %v504 = vor.u32 %v502, %v503
    %v505 = vshll.u32 2102212464, %v493
    %v506 = vshrl.u32 920167782, %v494
    %v507 = vor.u32 %v505, %v506
    %v508 = vshll.u32 920167782, %v493
    %v509 = vshrl.u32 1326507024, %v494
    %v510 = vor.u32 %v508, %v509
    %vm511 = vcmp.lt.s32.totalorder %v492, 1
    %vm512 = vcmp.lt.s32.totalorder %v492, 2
    %vm513 = vcmp.lt.s32.totalorder %v492, 3
    %vm514 = vcmp.lt.s32.totalorder %v492, 4
    %v515 = vsel %vm511, %v495, %v498
    %v516 = vsel %vm514, %v504, 2102212464
    %v517 = vsel %vm513, %v501, %v516
    %v518 = vsel %vm512, %v515, %v517
    %v519 = vsel %vm511, %v498, %v501
    %v520 = vsel %vm514, %v507, 920167782
    %v521 = vsel %vm513, %v504, %v520
    %v522 = vsel %vm512, %v519, %v521
    %v523 = vsel %vm511, %v501, %v504
    %v524 = vsel %vm514, %v510, 1326507024
    %v525 = vsel %vm513, %v507, %v524
    %v526 = vsel %vm512, %v523, %v525
    %v527 = vshll.u32 %v487, 8
    %v528 = vmul.u32.u64.compose %v527, %v526
    %v529 = vextract.low.u32 %v528
    %v530 = vextract.high.u32 %v528
    %v531 = vmul.u32.u64.compose %v527, %v522
    %v532 = vextract.low.u32 %v531
    %v533 = vextract.high.u32 %v531
    %v534 = vmul.u32 %v527, %v518
    %v535 = vadd.s32 %v530, %v532
    %vm536 = vc.u32 %v530, %v532
    %v537 = vadd.s32 %v533, 1
    %v538 = vsel %vm536, %v537, %v533
    %v539 = vadd.s32 %v534, %v538
    %v540 = vadd.s32 %v539, 536870912
    %v541 = vshrl.u32 %v540, 30
    %v542 = vshll.u32 %v541, 30
    %v543 = vsub.s32 %v539, %v542
    %vm544 = vcmp.lt.s32.totalorder %v543, 0
    %v545 = vsub.s32 0, %v543
    %v546 = vsel %vm544, %v545, %v543
    %v547 = vclz %v546
    %v548 = vsub.s32 %v547, 2
    %vm549 = vcmp.gt.s32.totalorder 0, %v548
    %v550 = vsel %vm549, 0, %v548
    %v551 = vsub.s32 32, %v550
    %v552 = vshll.u32 %v543, %v550
    %v553 = vshrl.u32 %v535, %v551
    %v554 = vor.u32 %v552, %v553
    %v555 = vsub.s32 4294967266, %v550
    %v556 = vadd.s32 %v555, 127
    %v557 = vshll.u32 %v556, 23
    %v558 = vor.u32 4788187, %v557
    %v559 = vand.u32 2147483647, %v558
    %v561 = vcvt.s32.f32 %v554
    %v562 = vmul.f32 %v561, %v559
    %v563 = vxor.u32 %v562, 2147483648
    %v564 = vsel %vm481, %v563, %v562
    %v565 = vsub.s32 4, %v541
    %v566 = vsel %vm481, %v565, %v541
    %v567 = vsel %vm480, %v53, %v564
    %v568 = vsel %vm480, 0, %v566
    %v569 = vcosq.f32.pop %v567
    %v570 = vsinq.f32.pop %v567
    %vm571 = vweird.f32 %v53
    %v572 = vadd.s32 %v568, 3
    %v573 = vand.u32 %v572, 3
    %vm574 = vcmp.lt.s32.totalorder %v573, 2
    %vm575 = vcmp.eq.s32.totalorder %v573, 0
    %v576 = vxor.u32 %v570, 2147483648
    %v577 = vsel %vm575, %v569, %v576
    %vm578 = vcmp.eq.s32.totalorder %v573, 2
    %v579 = vxor.u32 %v569, 2147483648
    %v580 = vsel %vm578, %v579, %v570
    %v581 = vsel %vm574, %v577, %v580
    %v582 = vsel %vm571, nan, %v581
    %v583 = vand.u32 2147483647, %v54
    %vm584 = vcmp.le.f32.partialorder %v583, 0.7853982
    %vm585 = vcmp.lt.s32.totalorder %v54, 0
    %v586 = vand.u32 %v54, 2139095040
    %v587 = vshrl.u32 %v586, 23
    %v588 = vsub.s32 %v587, 127
    %v589 = vand.u32 2147483647, %v54
    %v590 = vand.u32 %v589, 8388607
    %v591 = vor.u32 %v590, 8388608
    %v592 = vsub.s32 0, %v591
    %v593 = vadd.s32 %v588, 1
    %vm594 = vcmp.gt.s32.totalorder %v593, 0
    %v595 = vsel %vm594, %v593, 0
    %v596 = vshrl.u32 %v595, 5
    %v597 = vand.u32 %v595, 31
    %v598 = vsub.s32 32, %v597
    %v599 = vshrl.u32 683565275, %v598
    %v600 = vshll.u32 683565275, %v597
    %v601 = vshrl.u32 2475754826, %v598
    %v602 = vor.u32 %v600, %v601
    %v603 = vshll.u32 2475754826, %v597
    %v604 = vshrl.u32 2131351028, %v598
    %v605 = vor.u32 %v603, %v604
    %v606 = vshll.u32 2131351028, %v597
    %v607 = vshrl.u32 2102212464, %v598
    %v608 = vor.u32 %v606, %v607
    %v609 = vshll.u32 2102212464, %v597
    %v610 = vshrl.u32 920167782, %v598
    %v611 = vor.u32 %v609, %v610
    %v612 = vshll.u32 920167782, %v597
    %v613 = vshrl.u32 1326507024, %v598
    %v614 = vor.u32 %v612, %v613
    %vm615 = vcmp.lt.s32.totalorder %v596, 1
    %vm616 = vcmp.lt.s32.totalorder %v596, 2
    %vm617 = vcmp.lt.s32.totalorder %v596, 3
    %vm618 = vcmp.lt.s32.totalorder %v596, 4
    %v619 = vsel %vm615, %v599, %v602
    %v620 = vsel %vm618, %v608, 2102212464
    %v621 = vsel %vm617, %v605, %v620
    %v622 = vsel %vm616, %v619, %v621
    %v623 = vsel %vm615, %v602, %v605
    %v624 = vsel %vm618, %v611, 920167782
    %v625 = vsel %vm617, %v608, %v624
    %v626 = vsel %vm616, %v623, %v625
    %v627 = vsel %vm615, %v605, %v608
    %v628 = vsel %vm618, %v614, 1326507024
    %v629 = vsel %vm617, %v611, %v628
    %v630 = vsel %vm616, %v627, %v629
    %v631 = vshll.u32 %v591, 8
    %v632 = vmul.u32.u64.compose %v631, %v630
    %v633 = vextract.low.u32 %v632
    %v634 = vextract.high.u32 %v632
    %v635 = vmul.u32.u64.compose %v631, %v626
    %v636 = vextract.low.u32 %v635
    %v637 = vextract.high.u32 %v635
    %v638 = vmul.u32 %v631, %v622
    %v639 = vadd.s32 %v634, %v636
    %vm640 = vc.u32 %v634, %v636
    %v641 = vadd.s32 %v637, 1
    %v642 = vsel %vm640, %v641, %v637
    %v643 = vadd.s32 %v638, %v642
    %v644 = vadd.s32 %v643, 536870912
    %v645 = vshrl.u32 %v644, 30
    %v646 = vshll.u32 %v645, 30
    %v647 = vsub.s32 %v643, %v646
    %vm648 = vcmp.lt.s32.totalorder %v647, 0
    %v649 = vsub.s32 0, %v647
    %v650 = vsel %vm648, %v649, %v647
    %v651 = vclz %v650
    %v652 = vsub.s32 %v651, 2
    %vm653 = vcmp.gt.s32.totalorder 0, %v652
    %v654 = vsel %vm653, 0, %v652
    %v655 = vsub.s32 32, %v654
    %v656 = vshll.u32 %v647, %v654
    %v657 = vshrl.u32 %v639, %v655
    %v658 = vor.u32 %v656, %v657
    %v659 = vsub.s32 4294967266, %v654
    %v660 = vadd.s32 %v659, 127
    %v661 = vshll.u32 %v660, 23
    %v662 = vor.u32 4788187, %v661
    %v663 = vand.u32 2147483647, %v662
    %v665 = vcvt.s32.f32 %v658
    %v666 = vmul.f32 %v665, %v663
    %v667 = vxor.u32 %v666, 2147483648
    %v668 = vsel %vm585, %v667, %v666
    %v669 = vsub.s32 4, %v645
    %v670 = vsel %vm585, %v669, %v645
    %v671 = vsel %vm584, %v54, %v668
    %v672 = vsel %vm584, 0, %v670
    %v673 = vcosq.f32.pop %v671
    %v674 = vsinq.f32.pop %v671
    %vm675 = vweird.f32 %v54
    %v676 = vadd.s32 %v672, 3
    %v677 = vand.u32 %v676, 3
    %vm678 = vcmp.lt.s32.totalorder %v677, 2
    %vm679 = vcmp.eq.s32.totalorder %v677, 0
    %v680 = vxor.u32 %v674, 2147483648
    %v681 = vsel %vm679, %v673, %v680
    %vm682 = vcmp.eq.s32.totalorder %v677, 2
    %v683 = vxor.u32 %v673, 2147483648
    %v684 = vsel %vm682, %v683, %v674
    %v685 = vsel %vm678, %v681, %v684
    %v686 = vsel %vm675, nan, %v685
    %v687 = vand.u32 2147483647, %v55
    %vm688 = vcmp.le.f32.partialorder %v687, 0.7853982
    %vm689 = vcmp.lt.s32.totalorder %v55, 0
    %v690 = vand.u32 %v55, 2139095040
    %v691 = vshrl.u32 %v690, 23
    %v692 = vsub.s32 %v691, 127
    %v693 = vand.u32 2147483647, %v55
    %v694 = vand.u32 %v693, 8388607
    %v695 = vor.u32 %v694, 8388608
    %v696 = vsub.s32 0, %v695
    %v697 = vadd.s32 %v692, 1
    %vm698 = vcmp.gt.s32.totalorder %v697, 0
    %v699 = vsel %vm698, %v697, 0
    %v700 = vshrl.u32 %v699, 5
    %v701 = vand.u32 %v699, 31
    %v702 = vsub.s32 32, %v701
    %v703 = vshrl.u32 683565275, %v702
    %v704 = vshll.u32 683565275, %v701
    %v705 = vshrl.u32 2475754826, %v702
    %v706 = vor.u32 %v704, %v705
    %v707 = vshll.u32 2475754826, %v701
    %v708 = vshrl.u32 2131351028, %v702
    %v709 = vor.u32 %v707, %v708
    %v710 = vshll.u32 2131351028, %v701
    %v711 = vshrl.u32 2102212464, %v702
    %v712 = vor.u32 %v710, %v711
    %v713 = vshll.u32 2102212464, %v701
    %v714 = vshrl.u32 920167782, %v702
    %v715 = vor.u32 %v713, %v714
    %v716 = vshll.u32 920167782, %v701
    %v717 = vshrl.u32 1326507024, %v702
    %v718 = vor.u32 %v716, %v717
    %vm719 = vcmp.lt.s32.totalorder %v700, 1
    %vm720 = vcmp.lt.s32.totalorder %v700, 2
    %vm721 = vcmp.lt.s32.totalorder %v700, 3
    %vm722 = vcmp.lt.s32.totalorder %v700, 4
    %v723 = vsel %vm719, %v703, %v706
    %v724 = vsel %vm722, %v712, 2102212464
    %v725 = vsel %vm721, %v709, %v724
    %v726 = vsel %vm720, %v723, %v725
    %v727 = vsel %vm719, %v706, %v709
    %v728 = vsel %vm722, %v715, 920167782
    %v729 = vsel %vm721, %v712, %v728
    %v730 = vsel %vm720, %v727, %v729
    %v731 = vsel %vm719, %v709, %v712
    %v732 = vsel %vm722, %v718, 1326507024
    %v733 = vsel %vm721, %v715, %v732
    %v734 = vsel %vm720, %v731, %v733
    %v735 = vshll.u32 %v695, 8
    %v736 = vmul.u32.u64.compose %v735, %v734
    %v737 = vextract.low.u32 %v736
    %v738 = vextract.high.u32 %v736
    %v739 = vmul.u32.u64.compose %v735, %v730
    %v740 = vextract.low.u32 %v739
    %v741 = vextract.high.u32 %v739
    %v742 = vmul.u32 %v735, %v726
    %v743 = vadd.s32 %v738, %v740
    %vm744 = vc.u32 %v738, %v740
    %v745 = vadd.s32 %v741, 1
    %v746 = vsel %vm744, %v745, %v741
    %v747 = vadd.s32 %v742, %v746
    %v748 = vadd.s32 %v747, 536870912
    %v749 = vshrl.u32 %v748, 30
    %v750 = vshll.u32 %v749, 30
    %v751 = vsub.s32 %v747, %v750
    %vm752 = vcmp.lt.s32.totalorder %v751, 0
    %v753 = vsub.s32 0, %v751
    %v754 = vsel %vm752, %v753, %v751
    %v755 = vclz %v754
    %v756 = vsub.s32 %v755, 2
    %vm757 = vcmp.gt.s32.totalorder 0, %v756
    %v758 = vsel %vm757, 0, %v756
    %v759 = vsub.s32 32, %v758
    %v760 = vshll.u32 %v751, %v758
    %v761 = vshrl.u32 %v743, %v759
    %v762 = vor.u32 %v760, %v761
    %v763 = vsub.s32 4294967266, %v758
    %v764 = vadd.s32 %v763, 127
    %v765 = vshll.u32 %v764, 23
    %v766 = vor.u32 4788187, %v765
    %v767 = vand.u32 2147483647, %v766
    %v769 = vcvt.s32.f32 %v762
    %v770 = vmul.f32 %v769, %v767
    %v771 = vxor.u32 %v770, 2147483648
    %v772 = vsel %vm689, %v771, %v770
    %v773 = vsub.s32 4, %v749
    %v774 = vsel %vm689, %v773, %v749
    %v775 = vsel %vm688, %v55, %v772
    %v776 = vsel %vm688, 0, %v774
    %v777 = vcosq.f32.pop %v775
    %v778 = vsinq.f32.pop %v775
    %vm779 = vweird.f32 %v55
    %v780 = vadd.s32 %v776, 3
    %v781 = vand.u32 %v780, 3
    %vm782 = vcmp.lt.s32.totalorder %v781, 2
    %vm783 = vcmp.eq.s32.totalorder %v781, 0
    %v784 = vxor.u32 %v778, 2147483648
    %v785 = vsel %vm783, %v777, %v784
    %vm786 = vcmp.eq.s32.totalorder %v781, 2
    %v787 = vxor.u32 %v777, 2147483648
    %v788 = vsel %vm786, %v787, %v778
    %v789 = vsel %vm782, %v785, %v788
    %v790 = vsel %vm779, nan, %v789
    %v791 = vand.u32 2147483647, %v56
    %vm792 = vcmp.le.f32.partialorder %v791, 0.7853982
    %vm793 = vcmp.lt.s32.totalorder %v56, 0
    %v794 = vand.u32 %v56, 2139095040
    %v795 = vshrl.u32 %v794, 23
    %v796 = vsub.s32 %v795, 127
    %v797 = vand.u32 2147483647, %v56
    %v798 = vand.u32 %v797, 8388607
    %v799 = vor.u32 %v798, 8388608
    %v800 = vsub.s32 0, %v799
    %v801 = vadd.s32 %v796, 1
    %vm802 = vcmp.gt.s32.totalorder %v801, 0
    %v803 = vsel %vm802, %v801, 0
    %v804 = vshrl.u32 %v803, 5
    %v805 = vand.u32 %v803, 31
    %v806 = vsub.s32 32, %v805
    %v807 = vshrl.u32 683565275, %v806
    %v808 = vshll.u32 683565275, %v805
    %v809 = vshrl.u32 2475754826, %v806
    %v810 = vor.u32 %v808, %v809
    %v811 = vshll.u32 2475754826, %v805
    %v812 = vshrl.u32 2131351028, %v806
    %v813 = vor.u32 %v811, %v812
    %v814 = vshll.u32 2131351028, %v805
    %v815 = vshrl.u32 2102212464, %v806
    %v816 = vor.u32 %v814, %v815
    %v817 = vshll.u32 2102212464, %v805
    %v818 = vshrl.u32 920167782, %v806
    %v819 = vor.u32 %v817, %v818
    %v820 = vshll.u32 920167782, %v805
    %v821 = vshrl.u32 1326507024, %v806
    %v822 = vor.u32 %v820, %v821
    %vm823 = vcmp.lt.s32.totalorder %v804, 1
    %vm824 = vcmp.lt.s32.totalorder %v804, 2
    %vm825 = vcmp.lt.s32.totalorder %v804, 3
    %vm826 = vcmp.lt.s32.totalorder %v804, 4
    %v827 = vsel %vm823, %v807, %v810
    %v828 = vsel %vm826, %v816, 2102212464
    %v829 = vsel %vm825, %v813, %v828
    %v830 = vsel %vm824, %v827, %v829
    %v831 = vsel %vm823, %v810, %v813
    %v832 = vsel %vm826, %v819, 920167782
    %v833 = vsel %vm825, %v816, %v832
    %v834 = vsel %vm824, %v831, %v833
    %v835 = vsel %vm823, %v813, %v816
    %v836 = vsel %vm826, %v822, 1326507024
    %v837 = vsel %vm825, %v819, %v836
    %v838 = vsel %vm824, %v835, %v837
    %v839 = vshll.u32 %v799, 8
    %v840 = vmul.u32.u64.compose %v839, %v838
    %v841 = vextract.low.u32 %v840
    %v842 = vextract.high.u32 %v840
    %v843 = vmul.u32.u64.compose %v839, %v834
    %v844 = vextract.low.u32 %v843
    %v845 = vextract.high.u32 %v843
    %v846 = vmul.u32 %v839, %v830
    %v847 = vadd.s32 %v842, %v844
    %vm848 = vc.u32 %v842, %v844
    %v849 = vadd.s32 %v845, 1
    %v850 = vsel %vm848, %v849, %v845
    %v851 = vadd.s32 %v846, %v850
    %v852 = vadd.s32 %v851, 536870912
    %v853 = vshrl.u32 %v852, 30
    %v854 = vshll.u32 %v853, 30
    %v855 = vsub.s32 %v851, %v854
    %vm856 = vcmp.lt.s32.totalorder %v855, 0
    %v857 = vsub.s32 0, %v855
    %v858 = vsel %vm856, %v857, %v855
    %v859 = vclz %v858
    %v860 = vsub.s32 %v859, 2
    %vm861 = vcmp.gt.s32.totalorder 0, %v860
    %v862 = vsel %vm861, 0, %v860
    %v863 = vsub.s32 32, %v862
    %v864 = vshll.u32 %v855, %v862
    %v865 = vshrl.u32 %v847, %v863
    %v866 = vor.u32 %v864, %v865
    %v867 = vsub.s32 4294967266, %v862
    %v868 = vadd.s32 %v867, 127
    %v869 = vshll.u32 %v868, 23
    %v870 = vor.u32 4788187, %v869
    %v871 = vand.u32 2147483647, %v870
    %v873 = vcvt.s32.f32 %v866
    %v874 = vmul.f32 %v873, %v871
    %v875 = vxor.u32 %v874, 2147483648
    %v876 = vsel %vm793, %v875, %v874
    %v877 = vsub.s32 4, %v853
    %v878 = vsel %vm793, %v877, %v853
    %v879 = vsel %vm792, %v56, %v876
    %v880 = vsel %vm792, 0, %v878
    %v881 = vcosq.f32.pop %v879
    %v882 = vsinq.f32.pop %v879
    %vm883 = vweird.f32 %v56
    %v884 = vadd.s32 %v880, 3
    %v885 = vand.u32 %v884, 3
    %vm886 = vcmp.lt.s32.totalorder %v885, 2
    %vm887 = vcmp.eq.s32.totalorder %v885, 0
    %v888 = vxor.u32 %v882, 2147483648
    %v889 = vsel %vm887, %v881, %v888
    %vm890 = vcmp.eq.s32.totalorder %v885, 2
    %v891 = vxor.u32 %v881, 2147483648
    %v892 = vsel %vm890, %v891, %v882
    %v893 = vsel %vm886, %v889, %v892
    %v894 = vsel %vm883, nan, %v893
    %v895 = vand.u32 2147483647, %v57
    %vm896 = vcmp.le.f32.partialorder %v895, 0.7853982
    %vm897 = vcmp.lt.s32.totalorder %v57, 0
    %v898 = vand.u32 %v57, 2139095040
    %v899 = vshrl.u32 %v898, 23
    %v900 = vsub.s32 %v899, 127
    %v901 = vand.u32 2147483647, %v57
    %v902 = vand.u32 %v901, 8388607
    %v903 = vor.u32 %v902, 8388608
    %v904 = vsub.s32 0, %v903
    %v905 = vadd.s32 %v900, 1
    %vm906 = vcmp.gt.s32.totalorder %v905, 0
    %v907 = vsel %vm906, %v905, 0
    %v908 = vshrl.u32 %v907, 5
    %v909 = vand.u32 %v907, 31
    %v910 = vsub.s32 32, %v909
    %v911 = vshrl.u32 683565275, %v910
    %v912 = vshll.u32 683565275, %v909
    %v913 = vshrl.u32 2475754826, %v910
    %v914 = vor.u32 %v912, %v913
    %v915 = vshll.u32 2475754826, %v909
    %v916 = vshrl.u32 2131351028, %v910
    %v917 = vor.u32 %v915, %v916
    %v918 = vshll.u32 2131351028, %v909
    %v919 = vshrl.u32 2102212464, %v910
    %v920 = vor.u32 %v918, %v919
    %v921 = vshll.u32 2102212464, %v909
    %v922 = vshrl.u32 920167782, %v910
    %v923 = vor.u32 %v921, %v922
    %v924 = vshll.u32 920167782, %v909
    %v925 = vshrl.u32 1326507024, %v910
    %v926 = vor.u32 %v924, %v925
    %vm927 = vcmp.lt.s32.totalorder %v908, 1
    %vm928 = vcmp.lt.s32.totalorder %v908, 2
    %vm929 = vcmp.lt.s32.totalorder %v908, 3
    %vm930 = vcmp.lt.s32.totalorder %v908, 4
    %v931 = vsel %vm927, %v911, %v914
    %v932 = vsel %vm930, %v920, 2102212464
    %v933 = vsel %vm929, %v917, %v932
    %v934 = vsel %vm928, %v931, %v933
    %v935 = vsel %vm927, %v914, %v917
    %v936 = vsel %vm930, %v923, 920167782
    %v937 = vsel %vm929, %v920, %v936
    %v938 = vsel %vm928, %v935, %v937
    %v939 = vsel %vm927, %v917, %v920
    %v940 = vsel %vm930, %v926, 1326507024
    %v941 = vsel %vm929, %v923, %v940
    %v942 = vsel %vm928, %v939, %v941
    %v943 = vshll.u32 %v903, 8
    %v944 = vmul.u32.u64.compose %v943, %v942
    %v945 = vextract.low.u32 %v944
    %v946 = vextract.high.u32 %v944
    %v947 = vmul.u32.u64.compose %v943, %v938
    %v948 = vextract.low.u32 %v947
    %v949 = vextract.high.u32 %v947
    %v950 = vmul.u32 %v943, %v934
    %v951 = vadd.s32 %v946, %v948
    %vm952 = vc.u32 %v946, %v948
    %v953 = vadd.s32 %v949, 1
    %v954 = vsel %vm952, %v953, %v949
    %v955 = vadd.s32 %v950, %v954
    %v956 = vadd.s32 %v955, 536870912
    %v957 = vshrl.u32 %v956, 30
    %v958 = vshll.u32 %v957, 30
    %v959 = vsub.s32 %v955, %v958
    %vm960 = vcmp.lt.s32.totalorder %v959, 0
    %v961 = vsub.s32 0, %v959
    %v962 = vsel %vm960, %v961, %v959
    %v963 = vclz %v962
    %v964 = vsub.s32 %v963, 2
    %vm965 = vcmp.gt.s32.totalorder 0, %v964
    %v966 = vsel %vm965, 0, %v964
    %v967 = vsub.s32 32, %v966
    %v968 = vshll.u32 %v959, %v966
    %v969 = vshrl.u32 %v951, %v967
    %v970 = vor.u32 %v968, %v969
    %v971 = vsub.s32 4294967266, %v966
    %v972 = vadd.s32 %v971, 127
    %v973 = vshll.u32 %v972, 23
    %v974 = vor.u32 4788187, %v973
    %v975 = vand.u32 2147483647, %v974
    %v977 = vcvt.s32.f32 %v970
    %v978 = vmul.f32 %v977, %v975
    %v979 = vxor.u32 %v978, 2147483648
    %v980 = vsel %vm897, %v979, %v978
    %v981 = vsub.s32 4, %v957
    %v982 = vsel %vm897, %v981, %v957
    %v983 = vsel %vm896, %v57, %v980
    %v984 = vsel %vm896, 0, %v982
    %v985 = vcosq.f32.pop %v983
    %v986 = vsinq.f32.pop %v983
    %vm987 = vweird.f32 %v57
    %v988 = vadd.s32 %v984, 3
    %v989 = vand.u32 %v988, 3
    %vm990 = vcmp.lt.s32.totalorder %v989, 2
    %vm991 = vcmp.eq.s32.totalorder %v989, 0
    %v992 = vxor.u32 %v986, 2147483648
    %v993 = vsel %vm991, %v985, %v992
    %vm994 = vcmp.eq.s32.totalorder %v989, 2
    %v995 = vxor.u32 %v985, 2147483648
    %v996 = vsel %vm994, %v995, %v986
    %v997 = vsel %vm990, %v993, %v996
    %v998 = vsel %vm987, nan, %v997
    %v999 = vand.u32 2147483647, %v58
    %vm1000 = vcmp.le.f32.partialorder %v999, 0.7853982
    %vm1001 = vcmp.lt.s32.totalorder %v58, 0
    %v1002 = vand.u32 %v58, 2139095040
    %v1003 = vshrl.u32 %v1002, 23
    %v1004 = vsub.s32 %v1003, 127
    %v1005 = vand.u32 2147483647, %v58
    %v1006 = vand.u32 %v1005, 8388607
    %v1007 = vor.u32 %v1006, 8388608
    %v1008 = vsub.s32 0, %v1007
    %v1009 = vadd.s32 %v1004, 1
    %vm1010 = vcmp.gt.s32.totalorder %v1009, 0
    %v1011 = vsel %vm1010, %v1009, 0
    %v1012 = vshrl.u32 %v1011, 5
    %v1013 = vand.u32 %v1011, 31
    %v1014 = vsub.s32 32, %v1013
    %v1015 = vshrl.u32 683565275, %v1014
    %v1016 = vshll.u32 683565275, %v1013
    %v1017 = vshrl.u32 2475754826, %v1014
    %v1018 = vor.u32 %v1016, %v1017
    %v1019 = vshll.u32 2475754826, %v1013
    %v1020 = vshrl.u32 2131351028, %v1014
    %v1021 = vor.u32 %v1019, %v1020
    %v1022 = vshll.u32 2131351028, %v1013
    %v1023 = vshrl.u32 2102212464, %v1014
    %v1024 = vor.u32 %v1022, %v1023
    %v1025 = vshll.u32 2102212464, %v1013
    %v1026 = vshrl.u32 920167782, %v1014
    %v1027 = vor.u32 %v1025, %v1026
    %v1028 = vshll.u32 920167782, %v1013
    %v1029 = vshrl.u32 1326507024, %v1014
    %v1030 = vor.u32 %v1028, %v1029
    %vm1031 = vcmp.lt.s32.totalorder %v1012, 1
    %vm1032 = vcmp.lt.s32.totalorder %v1012, 2
    %vm1033 = vcmp.lt.s32.totalorder %v1012, 3
    %vm1034 = vcmp.lt.s32.totalorder %v1012, 4
    %v1035 = vsel %vm1031, %v1015, %v1018
    %v1036 = vsel %vm1034, %v1024, 2102212464
    %v1037 = vsel %vm1033, %v1021, %v1036
    %v1038 = vsel %vm1032, %v1035, %v1037
    %v1039 = vsel %vm1031, %v1018, %v1021
    %v1040 = vsel %vm1034, %v1027, 920167782
    %v1041 = vsel %vm1033, %v1024, %v1040
    %v1042 = vsel %vm1032, %v1039, %v1041
    %v1043 = vsel %vm1031, %v1021, %v1024
    %v1044 = vsel %vm1034, %v1030, 1326507024
    %v1045 = vsel %vm1033, %v1027, %v1044
    %v1046 = vsel %vm1032, %v1043, %v1045
    %v1047 = vshll.u32 %v1007, 8
    %v1048 = vmul.u32.u64.compose %v1047, %v1046
    %v1049 = vextract.low.u32 %v1048
    %v1050 = vextract.high.u32 %v1048
    %v1051 = vmul.u32.u64.compose %v1047, %v1042
    %v1052 = vextract.low.u32 %v1051
    %v1053 = vextract.high.u32 %v1051
    %v1054 = vmul.u32 %v1047, %v1038
    %v1055 = vadd.s32 %v1050, %v1052
    %vm1056 = vc.u32 %v1050, %v1052
    %v1057 = vadd.s32 %v1053, 1
    %v1058 = vsel %vm1056, %v1057, %v1053
    %v1059 = vadd.s32 %v1054, %v1058
    %v1060 = vadd.s32 %v1059, 536870912
    %v1061 = vshrl.u32 %v1060, 30
    %v1062 = vshll.u32 %v1061, 30
    %v1063 = vsub.s32 %v1059, %v1062
    %vm1064 = vcmp.lt.s32.totalorder %v1063, 0
    %v1065 = vsub.s32 0, %v1063
    %v1066 = vsel %vm1064, %v1065, %v1063
    %v1067 = vclz %v1066
    %v1068 = vsub.s32 %v1067, 2
    %vm1069 = vcmp.gt.s32.totalorder 0, %v1068
    %v1070 = vsel %vm1069, 0, %v1068
    %v1071 = vsub.s32 32, %v1070
    %v1072 = vshll.u32 %v1063, %v1070
    %v1073 = vshrl.u32 %v1055, %v1071
    %v1074 = vor.u32 %v1072, %v1073
    %v1075 = vsub.s32 4294967266, %v1070
    %v1076 = vadd.s32 %v1075, 127
    %v1077 = vshll.u32 %v1076, 23
    %v1078 = vor.u32 4788187, %v1077
    %v1079 = vand.u32 2147483647, %v1078
    %v1081 = vcvt.s32.f32 %v1074
    %v1082 = vmul.f32 %v1081, %v1079
    %v1083 = vxor.u32 %v1082, 2147483648
    %v1084 = vsel %vm1001, %v1083, %v1082
    %v1085 = vsub.s32 4, %v1061
    %v1086 = vsel %vm1001, %v1085, %v1061
    %v1087 = vsel %vm1000, %v58, %v1084
    %v1088 = vsel %vm1000, 0, %v1086
    %v1089 = vcosq.f32.pop %v1087
    %v1090 = vsinq.f32.pop %v1087
    %vm1091 = vweird.f32 %v58
    %v1092 = vadd.s32 %v1088, 3
    %v1093 = vand.u32 %v1092, 3
    %vm1094 = vcmp.lt.s32.totalorder %v1093, 2
    %vm1095 = vcmp.eq.s32.totalorder %v1093, 0
    %v1096 = vxor.u32 %v1090, 2147483648
    %v1097 = vsel %vm1095, %v1089, %v1096
    %vm1098 = vcmp.eq.s32.totalorder %v1093, 2
    %v1099 = vxor.u32 %v1089, 2147483648
    %v1100 = vsel %vm1098, %v1099, %v1090
    %v1101 = vsel %vm1094, %v1097, %v1100
    %v1102 = vsel %vm1091, nan, %v1101
    %v1103 = vand.u32 2147483647, %v59
    %vm1104 = vcmp.le.f32.partialorder %v1103, 0.7853982
    %vm1105 = vcmp.lt.s32.totalorder %v59, 0
    %v1106 = vand.u32 %v59, 2139095040
    %v1107 = vshrl.u32 %v1106, 23
    %v1108 = vsub.s32 %v1107, 127
    %v1109 = vand.u32 2147483647, %v59
    %v1110 = vand.u32 %v1109, 8388607
    %v1111 = vor.u32 %v1110, 8388608
    %v1112 = vsub.s32 0, %v1111
    %v1113 = vadd.s32 %v1108, 1
    %vm1114 = vcmp.gt.s32.totalorder %v1113, 0
    %v1115 = vsel %vm1114, %v1113, 0
    %v1116 = vshrl.u32 %v1115, 5
    %v1117 = vand.u32 %v1115, 31
    %v1118 = vsub.s32 32, %v1117
    %v1119 = vshrl.u32 683565275, %v1118
    %v1120 = vshll.u32 683565275, %v1117
    %v1121 = vshrl.u32 2475754826, %v1118
    %v1122 = vor.u32 %v1120, %v1121
    %v1123 = vshll.u32 2475754826, %v1117
    %v1124 = vshrl.u32 2131351028, %v1118
    %v1125 = vor.u32 %v1123, %v1124
    %v1126 = vshll.u32 2131351028, %v1117
    %v1127 = vshrl.u32 2102212464, %v1118
    %v1128 = vor.u32 %v1126, %v1127
    %v1129 = vshll.u32 2102212464, %v1117
    %v1130 = vshrl.u32 920167782, %v1118
    %v1131 = vor.u32 %v1129, %v1130
    %v1132 = vshll.u32 920167782, %v1117
    %v1133 = vshrl.u32 1326507024, %v1118
    %v1134 = vor.u32 %v1132, %v1133
    %vm1135 = vcmp.lt.s32.totalorder %v1116, 1
    %vm1136 = vcmp.lt.s32.totalorder %v1116, 2
    %vm1137 = vcmp.lt.s32.totalorder %v1116, 3
    %vm1138 = vcmp.lt.s32.totalorder %v1116, 4
    %v1139 = vsel %vm1135, %v1119, %v1122
    %v1140 = vsel %vm1138, %v1128, 2102212464
    %v1141 = vsel %vm1137, %v1125, %v1140
    %v1142 = vsel %vm1136, %v1139, %v1141
    %v1143 = vsel %vm1135, %v1122, %v1125
    %v1144 = vsel %vm1138, %v1131, 920167782
    %v1145 = vsel %vm1137, %v1128, %v1144
    %v1146 = vsel %vm1136, %v1143, %v1145
    %v1147 = vsel %vm1135, %v1125, %v1128
    %v1148 = vsel %vm1138, %v1134, 1326507024
    %v1149 = vsel %vm1137, %v1131, %v1148
    %v1150 = vsel %vm1136, %v1147, %v1149
    %v1151 = vshll.u32 %v1111, 8
    %v1152 = vmul.u32.u64.compose %v1151, %v1150
    %v1153 = vextract.low.u32 %v1152
    %v1154 = vextract.high.u32 %v1152
    %v1155 = vmul.u32.u64.compose %v1151, %v1146
    %v1156 = vextract.low.u32 %v1155
    %v1157 = vextract.high.u32 %v1155
    %v1158 = vmul.u32 %v1151, %v1142
    %v1159 = vadd.s32 %v1154, %v1156
    %vm1160 = vc.u32 %v1154, %v1156
    %v1161 = vadd.s32 %v1157, 1
    %v1162 = vsel %vm1160, %v1161, %v1157
    %v1163 = vadd.s32 %v1158, %v1162
    %v1164 = vadd.s32 %v1163, 536870912
    %v1165 = vshrl.u32 %v1164, 30
    %v1166 = vshll.u32 %v1165, 30
    %v1167 = vsub.s32 %v1163, %v1166
    %vm1168 = vcmp.lt.s32.totalorder %v1167, 0
    %v1169 = vsub.s32 0, %v1167
    %v1170 = vsel %vm1168, %v1169, %v1167
    %v1171 = vclz %v1170
    %v1172 = vsub.s32 %v1171, 2
    %vm1173 = vcmp.gt.s32.totalorder 0, %v1172
    %v1174 = vsel %vm1173, 0, %v1172
    %v1175 = vsub.s32 32, %v1174
    %v1176 = vshll.u32 %v1167, %v1174
    %v1177 = vshrl.u32 %v1159, %v1175
    %v1178 = vor.u32 %v1176, %v1177
    %v1179 = vsub.s32 4294967266, %v1174
    %v1180 = vadd.s32 %v1179, 127
    %v1181 = vshll.u32 %v1180, 23
    %v1182 = vor.u32 4788187, %v1181
    %v1183 = vand.u32 2147483647, %v1182
    %v1185 = vcvt.s32.f32 %v1178
    %v1186 = vmul.f32 %v1185, %v1183
    %v1187 = vxor.u32 %v1186, 2147483648
    %v1188 = vsel %vm1105, %v1187, %v1186
    %v1189 = vsub.s32 4, %v1165
    %v1190 = vsel %vm1105, %v1189, %v1165
    %v1191 = vsel %vm1104, %v59, %v1188
    %v1192 = vsel %vm1104, 0, %v1190
    %v1193 = vcosq.f32.pop %v1191
    %v1194 = vsinq.f32.pop %v1191
    %vm1195 = vweird.f32 %v59
    %v1196 = vadd.s32 %v1192, 3
    %v1197 = vand.u32 %v1196, 3
    %vm1198 = vcmp.lt.s32.totalorder %v1197, 2
    %vm1199 = vcmp.eq.s32.totalorder %v1197, 0
    %v1200 = vxor.u32 %v1194, 2147483648
    %v1201 = vsel %vm1199, %v1193, %v1200
    %vm1202 = vcmp.eq.s32.totalorder %v1197, 2
    %v1203 = vxor.u32 %v1193, 2147483648
    %v1204 = vsel %vm1202, %v1203, %v1194
    %v1205 = vsel %vm1198, %v1201, %v1204
    %v1206 = vsel %vm1195, nan, %v1205
    %v1207 = vand.u32 2147483647, %v60
    %vm1208 = vcmp.le.f32.partialorder %v1207, 0.7853982
    %vm1209 = vcmp.lt.s32.totalorder %v60, 0
    %v1210 = vand.u32 %v60, 2139095040
    %v1211 = vshrl.u32 %v1210, 23
    %v1212 = vsub.s32 %v1211, 127
    %v1213 = vand.u32 2147483647, %v60
    %v1214 = vand.u32 %v1213, 8388607
    %v1215 = vor.u32 %v1214, 8388608
    %v1216 = vsub.s32 0, %v1215
    %v1217 = vadd.s32 %v1212, 1
    %vm1218 = vcmp.gt.s32.totalorder %v1217, 0
    %v1219 = vsel %vm1218, %v1217, 0
    %v1220 = vshrl.u32 %v1219, 5
    %v1221 = vand.u32 %v1219, 31
    %v1222 = vsub.s32 32, %v1221
    %v1223 = vshrl.u32 683565275, %v1222
    %v1224 = vshll.u32 683565275, %v1221
    %v1225 = vshrl.u32 2475754826, %v1222
    %v1226 = vor.u32 %v1224, %v1225
    %v1227 = vshll.u32 2475754826, %v1221
    %v1228 = vshrl.u32 2131351028, %v1222
    %v1229 = vor.u32 %v1227, %v1228
    %v1230 = vshll.u32 2131351028, %v1221
    %v1231 = vshrl.u32 2102212464, %v1222
    %v1232 = vor.u32 %v1230, %v1231
    %v1233 = vshll.u32 2102212464, %v1221
    %v1234 = vshrl.u32 920167782, %v1222
    %v1235 = vor.u32 %v1233, %v1234
    %v1236 = vshll.u32 920167782, %v1221
    %v1237 = vshrl.u32 1326507024, %v1222
    %v1238 = vor.u32 %v1236, %v1237
    %vm1239 = vcmp.lt.s32.totalorder %v1220, 1
    %vm1240 = vcmp.lt.s32.totalorder %v1220, 2
    %vm1241 = vcmp.lt.s32.totalorder %v1220, 3
    %vm1242 = vcmp.lt.s32.totalorder %v1220, 4
    %v1243 = vsel %vm1239, %v1223, %v1226
    %v1244 = vsel %vm1242, %v1232, 2102212464
    %v1245 = vsel %vm1241, %v1229, %v1244
    %v1246 = vsel %vm1240, %v1243, %v1245
    %v1247 = vsel %vm1239, %v1226, %v1229
    %v1248 = vsel %vm1242, %v1235, 920167782
    %v1249 = vsel %vm1241, %v1232, %v1248
    %v1250 = vsel %vm1240, %v1247, %v1249
    %v1251 = vsel %vm1239, %v1229, %v1232
    %v1252 = vsel %vm1242, %v1238, 1326507024
    %v1253 = vsel %vm1241, %v1235, %v1252
    %v1254 = vsel %vm1240, %v1251, %v1253
    %v1255 = vshll.u32 %v1215, 8
    %v1256 = vmul.u32.u64.compose %v1255, %v1254
    %v1257 = vextract.low.u32 %v1256
    %v1258 = vextract.high.u32 %v1256
    %v1259 = vmul.u32.u64.compose %v1255, %v1250
    %v1260 = vextract.low.u32 %v1259
    %v1261 = vextract.high.u32 %v1259
    %v1262 = vmul.u32 %v1255, %v1246
    %v1263 = vadd.s32 %v1258, %v1260
    %vm1264 = vc.u32 %v1258, %v1260
    %v1265 = vadd.s32 %v1261, 1
    %v1266 = vsel %vm1264, %v1265, %v1261
    %v1267 = vadd.s32 %v1262, %v1266
    %v1268 = vadd.s32 %v1267, 536870912
    %v1269 = vshrl.u32 %v1268, 30
    %v1270 = vshll.u32 %v1269, 30
    %v1271 = vsub.s32 %v1267, %v1270
    %vm1272 = vcmp.lt.s32.totalorder %v1271, 0
    %v1273 = vsub.s32 0, %v1271
    %v1274 = vsel %vm1272, %v1273, %v1271
    %v1275 = vclz %v1274
    %v1276 = vsub.s32 %v1275, 2
    %vm1277 = vcmp.gt.s32.totalorder 0, %v1276
    %v1278 = vsel %vm1277, 0, %v1276
    %v1279 = vsub.s32 32, %v1278
    %v1280 = vshll.u32 %v1271, %v1278
    %v1281 = vshrl.u32 %v1263, %v1279
    %v1282 = vor.u32 %v1280, %v1281
    %v1283 = vsub.s32 4294967266, %v1278
    %v1284 = vadd.s32 %v1283, 127
    %v1285 = vshll.u32 %v1284, 23
    %v1286 = vor.u32 4788187, %v1285
    %v1287 = vand.u32 2147483647, %v1286
    %v1289 = vcvt.s32.f32 %v1282
    %v1290 = vmul.f32 %v1289, %v1287
    %v1291 = vxor.u32 %v1290, 2147483648
    %v1292 = vsel %vm1209, %v1291, %v1290
    %v1293 = vsub.s32 4, %v1269
    %v1294 = vsel %vm1209, %v1293, %v1269
    %v1295 = vsel %vm1208, %v60, %v1292
    %v1296 = vsel %vm1208, 0, %v1294
    %v1297 = vcosq.f32.pop %v1295
    %v1298 = vsinq.f32.pop %v1295
    %vm1299 = vweird.f32 %v60
    %v1300 = vadd.s32 %v1296, 3
    %v1301 = vand.u32 %v1300, 3
    %vm1302 = vcmp.lt.s32.totalorder %v1301, 2
    %vm1303 = vcmp.eq.s32.totalorder %v1301, 0
    %v1304 = vxor.u32 %v1298, 2147483648
    %v1305 = vsel %vm1303, %v1297, %v1304
    %vm1306 = vcmp.eq.s32.totalorder %v1301, 2
    %v1307 = vxor.u32 %v1297, 2147483648
    %v1308 = vsel %vm1306, %v1307, %v1298
    %v1309 = vsel %vm1302, %v1305, %v1308
    %v1310 = vsel %vm1299, nan, %v1309
    %v1311 = vand.u32 2147483647, %v61
    %vm1312 = vcmp.le.f32.partialorder %v1311, 0.7853982
    %vm1313 = vcmp.lt.s32.totalorder %v61, 0
    %v1314 = vand.u32 %v61, 2139095040
    %v1315 = vshrl.u32 %v1314, 23
    %v1316 = vsub.s32 %v1315, 127
    %v1317 = vand.u32 2147483647, %v61
    %v1318 = vand.u32 %v1317, 8388607
    %v1319 = vor.u32 %v1318, 8388608
    %v1320 = vsub.s32 0, %v1319
    %v1321 = vadd.s32 %v1316, 1
    %vm1322 = vcmp.gt.s32.totalorder %v1321, 0
    %v1323 = vsel %vm1322, %v1321, 0
    %v1324 = vshrl.u32 %v1323, 5
    %v1325 = vand.u32 %v1323, 31
    %v1326 = vsub.s32 32, %v1325
    %v1327 = vshrl.u32 683565275, %v1326
    %v1328 = vshll.u32 683565275, %v1325
    %v1329 = vshrl.u32 2475754826, %v1326
    %v1330 = vor.u32 %v1328, %v1329
    %v1331 = vshll.u32 2475754826, %v1325
    %v1332 = vshrl.u32 2131351028, %v1326
    %v1333 = vor.u32 %v1331, %v1332
    %v1334 = vshll.u32 2131351028, %v1325
    %v1335 = vshrl.u32 2102212464, %v1326
    %v1336 = vor.u32 %v1334, %v1335
    %v1337 = vshll.u32 2102212464, %v1325
    %v1338 = vshrl.u32 920167782, %v1326
    %v1339 = vor.u32 %v1337, %v1338
    %v1340 = vshll.u32 920167782, %v1325
    %v1341 = vshrl.u32 1326507024, %v1326
    %v1342 = vor.u32 %v1340, %v1341
    %vm1343 = vcmp.lt.s32.totalorder %v1324, 1
    %vm1344 = vcmp.lt.s32.totalorder %v1324, 2
    %vm1345 = vcmp.lt.s32.totalorder %v1324, 3
    %vm1346 = vcmp.lt.s32.totalorder %v1324, 4
    %v1347 = vsel %vm1343, %v1327, %v1330
    %v1348 = vsel %vm1346, %v1336, 2102212464
    %v1349 = vsel %vm1345, %v1333, %v1348
    %v1350 = vsel %vm1344, %v1347, %v1349
    %v1351 = vsel %vm1343, %v1330, %v1333
    %v1352 = vsel %vm1346, %v1339, 920167782
    %v1353 = vsel %vm1345, %v1336, %v1352
    %v1354 = vsel %vm1344, %v1351, %v1353
    %v1355 = vsel %vm1343, %v1333, %v1336
    %v1356 = vsel %vm1346, %v1342, 1326507024
    %v1357 = vsel %vm1345, %v1339, %v1356
    %v1358 = vsel %vm1344, %v1355, %v1357
    %v1359 = vshll.u32 %v1319, 8
    %v1360 = vmul.u32.u64.compose %v1359, %v1358
    %v1361 = vextract.low.u32 %v1360
    %v1362 = vextract.high.u32 %v1360
    %v1363 = vmul.u32.u64.compose %v1359, %v1354
    %v1364 = vextract.low.u32 %v1363
    %v1365 = vextract.high.u32 %v1363
    %v1366 = vmul.u32 %v1359, %v1350
    %v1367 = vadd.s32 %v1362, %v1364
    %vm1368 = vc.u32 %v1362, %v1364
    %v1369 = vadd.s32 %v1365, 1
    %v1370 = vsel %vm1368, %v1369, %v1365
    %v1371 = vadd.s32 %v1366, %v1370
    %v1372 = vadd.s32 %v1371, 536870912
    %v1373 = vshrl.u32 %v1372, 30
    %v1374 = vshll.u32 %v1373, 30
    %v1375 = vsub.s32 %v1371, %v1374
    %vm1376 = vcmp.lt.s32.totalorder %v1375, 0
    %v1377 = vsub.s32 0, %v1375
    %v1378 = vsel %vm1376, %v1377, %v1375
    %v1379 = vclz %v1378
    %v1380 = vsub.s32 %v1379, 2
    %vm1381 = vcmp.gt.s32.totalorder 0, %v1380
    %v1382 = vsel %vm1381, 0, %v1380
    %v1383 = vsub.s32 32, %v1382
    %v1384 = vshll.u32 %v1375, %v1382
    %v1385 = vshrl.u32 %v1367, %v1383
    %v1386 = vor.u32 %v1384, %v1385
    %v1387 = vsub.s32 4294967266, %v1382
    %v1388 = vadd.s32 %v1387, 127
    %v1389 = vshll.u32 %v1388, 23
    %v1390 = vor.u32 4788187, %v1389
    %v1391 = vand.u32 2147483647, %v1390
    %v1393 = vcvt.s32.f32 %v1386
    %v1394 = vmul.f32 %v1393, %v1391
    %v1395 = vxor.u32 %v1394, 2147483648
    %v1396 = vsel %vm1313, %v1395, %v1394
    %v1397 = vsub.s32 4, %v1373
    %v1398 = vsel %vm1313, %v1397, %v1373
    %v1399 = vsel %vm1312, %v61, %v1396
    %v1400 = vsel %vm1312, 0, %v1398
    %v1401 = vcosq.f32.pop %v1399
    %v1402 = vsinq.f32.pop %v1399
    %vm1403 = vweird.f32 %v61
    %v1404 = vadd.s32 %v1400, 3
    %v1405 = vand.u32 %v1404, 3
    %vm1406 = vcmp.lt.s32.totalorder %v1405, 2
    %vm1407 = vcmp.eq.s32.totalorder %v1405, 0
    %v1408 = vxor.u32 %v1402, 2147483648
    %v1409 = vsel %vm1407, %v1401, %v1408
    %vm1410 = vcmp.eq.s32.totalorder %v1405, 2
    %v1411 = vxor.u32 %v1401, 2147483648
    %v1412 = vsel %vm1410, %v1411, %v1402
    %v1413 = vsel %vm1406, %v1409, %v1412
    %v1414 = vsel %vm1403, nan, %v1413
    %v1415 = vand.u32 2147483647, %v62
    %vm1416 = vcmp.le.f32.partialorder %v1415, 0.7853982
    %vm1417 = vcmp.lt.s32.totalorder %v62, 0
    %v1418 = vand.u32 %v62, 2139095040
    %v1419 = vshrl.u32 %v1418, 23
    %v1420 = vsub.s32 %v1419, 127
    %v1421 = vand.u32 2147483647, %v62
    %v1422 = vand.u32 %v1421, 8388607
    %v1423 = vor.u32 %v1422, 8388608
    %v1424 = vsub.s32 0, %v1423
    %v1425 = vadd.s32 %v1420, 1
    %vm1426 = vcmp.gt.s32.totalorder %v1425, 0
    %v1427 = vsel %vm1426, %v1425, 0
    %v1428 = vshrl.u32 %v1427, 5
    %v1429 = vand.u32 %v1427, 31
    %v1430 = vsub.s32 32, %v1429
    %v1431 = vshrl.u32 683565275, %v1430
    %v1432 = vshll.u32 683565275, %v1429
    %v1433 = vshrl.u32 2475754826, %v1430
    %v1434 = vor.u32 %v1432, %v1433
    %v1435 = vshll.u32 2475754826, %v1429
    %v1436 = vshrl.u32 2131351028, %v1430
    %v1437 = vor.u32 %v1435, %v1436
    %v1438 = vshll.u32 2131351028, %v1429
    %v1439 = vshrl.u32 2102212464, %v1430
    %v1440 = vor.u32 %v1438, %v1439
    %v1441 = vshll.u32 2102212464, %v1429
    %v1442 = vshrl.u32 920167782, %v1430
    %v1443 = vor.u32 %v1441, %v1442
    %v1444 = vshll.u32 920167782, %v1429
    %v1445 = vshrl.u32 1326507024, %v1430
    %v1446 = vor.u32 %v1444, %v1445
    %vm1447 = vcmp.lt.s32.totalorder %v1428, 1
    %vm1448 = vcmp.lt.s32.totalorder %v1428, 2
    %vm1449 = vcmp.lt.s32.totalorder %v1428, 3
    %vm1450 = vcmp.lt.s32.totalorder %v1428, 4
    %v1451 = vsel %vm1447, %v1431, %v1434
    %v1452 = vsel %vm1450, %v1440, 2102212464
    %v1453 = vsel %vm1449, %v1437, %v1452
    %v1454 = vsel %vm1448, %v1451, %v1453
    %v1455 = vsel %vm1447, %v1434, %v1437
    %v1456 = vsel %vm1450, %v1443, 920167782
    %v1457 = vsel %vm1449, %v1440, %v1456
    %v1458 = vsel %vm1448, %v1455, %v1457
    %v1459 = vsel %vm1447, %v1437, %v1440
    %v1460 = vsel %vm1450, %v1446, 1326507024
    %v1461 = vsel %vm1449, %v1443, %v1460
    %v1462 = vsel %vm1448, %v1459, %v1461
    %v1463 = vshll.u32 %v1423, 8
    %v1464 = vmul.u32.u64.compose %v1463, %v1462
    %v1465 = vextract.low.u32 %v1464
    %v1466 = vextract.high.u32 %v1464
    %v1467 = vmul.u32.u64.compose %v1463, %v1458
    %v1468 = vextract.low.u32 %v1467
    %v1469 = vextract.high.u32 %v1467
    %v1470 = vmul.u32 %v1463, %v1454
    %v1471 = vadd.s32 %v1466, %v1468
    %vm1472 = vc.u32 %v1466, %v1468
    %v1473 = vadd.s32 %v1469, 1
    %v1474 = vsel %vm1472, %v1473, %v1469
    %v1475 = vadd.s32 %v1470, %v1474
    %v1476 = vadd.s32 %v1475, 536870912
    %v1477 = vshrl.u32 %v1476, 30
    %v1478 = vshll.u32 %v1477, 30
    %v1479 = vsub.s32 %v1475, %v1478
    %vm1480 = vcmp.lt.s32.totalorder %v1479, 0
    %v1481 = vsub.s32 0, %v1479
    %v1482 = vsel %vm1480, %v1481, %v1479
    %v1483 = vclz %v1482
    %v1484 = vsub.s32 %v1483, 2
    %vm1485 = vcmp.gt.s32.totalorder 0, %v1484
    %v1486 = vsel %vm1485, 0, %v1484
    %v1487 = vsub.s32 32, %v1486
    %v1488 = vshll.u32 %v1479, %v1486
    %v1489 = vshrl.u32 %v1471, %v1487
    %v1490 = vor.u32 %v1488, %v1489
    %v1491 = vsub.s32 4294967266, %v1486
    %v1492 = vadd.s32 %v1491, 127
    %v1493 = vshll.u32 %v1492, 23
    %v1494 = vor.u32 4788187, %v1493
    %v1495 = vand.u32 2147483647, %v1494
    %v1497 = vcvt.s32.f32 %v1490
    %v1498 = vmul.f32 %v1497, %v1495
    %v1499 = vxor.u32 %v1498, 2147483648
    %v1500 = vsel %vm1417, %v1499, %v1498
    %v1501 = vsub.s32 4, %v1477
    %v1502 = vsel %vm1417, %v1501, %v1477
    %v1503 = vsel %vm1416, %v62, %v1500
    %v1504 = vsel %vm1416, 0, %v1502
    %v1505 = vcosq.f32.pop %v1503
    %v1506 = vsinq.f32.pop %v1503
    %vm1507 = vweird.f32 %v62
    %v1508 = vadd.s32 %v1504, 3
    %v1509 = vand.u32 %v1508, 3
    %vm1510 = vcmp.lt.s32.totalorder %v1509, 2
    %vm1511 = vcmp.eq.s32.totalorder %v1509, 0
    %v1512 = vxor.u32 %v1506, 2147483648
    %v1513 = vsel %vm1511, %v1505, %v1512
    %vm1514 = vcmp.eq.s32.totalorder %v1509, 2
    %v1515 = vxor.u32 %v1505, 2147483648
    %v1516 = vsel %vm1514, %v1515, %v1506
    %v1517 = vsel %vm1510, %v1513, %v1516
    %v1518 = vsel %vm1507, nan, %v1517
    %v1519 = vand.u32 2147483647, %v49
    %vm1520 = vcmp.le.f32.partialorder %v1519, 0.7853982
    %vm1521 = vcmp.lt.s32.totalorder %v49, 0
    %v1522 = vand.u32 %v49, 2139095040
    %v1523 = vshrl.u32 %v1522, 23
    %v1524 = vsub.s32 %v1523, 127
    %v1525 = vand.u32 2147483647, %v49
    %v1526 = vand.u32 %v1525, 8388607
    %v1527 = vor.u32 %v1526, 8388608
    %v1528 = vsub.s32 0, %v1527
    %v1529 = vadd.s32 %v1524, 1
    %vm1530 = vcmp.gt.s32.totalorder %v1529, 0
    %v1531 = vsel %vm1530, %v1529, 0
    %v1532 = vshrl.u32 %v1531, 5
    %v1533 = vand.u32 %v1531, 31
    %v1534 = vsub.s32 32, %v1533
    %v1535 = vshrl.u32 683565275, %v1534
    %v1536 = vshll.u32 683565275, %v1533
    %v1537 = vshrl.u32 2475754826, %v1534
    %v1538 = vor.u32 %v1536, %v1537
    %v1539 = vshll.u32 2475754826, %v1533
    %v1540 = vshrl.u32 2131351028, %v1534
    %v1541 = vor.u32 %v1539, %v1540
    %v1542 = vshll.u32 2131351028, %v1533
    %v1543 = vshrl.u32 2102212464, %v1534
    %v1544 = vor.u32 %v1542, %v1543
    %v1545 = vshll.u32 2102212464, %v1533
    %v1546 = vshrl.u32 920167782, %v1534
    %v1547 = vor.u32 %v1545, %v1546
    %v1548 = vshll.u32 920167782, %v1533
    %v1549 = vshrl.u32 1326507024, %v1534
    %v1550 = vor.u32 %v1548, %v1549
    %vm1551 = vcmp.lt.s32.totalorder %v1532, 1
    %vm1552 = vcmp.lt.s32.totalorder %v1532, 2
    %vm1553 = vcmp.lt.s32.totalorder %v1532, 3
    %vm1554 = vcmp.lt.s32.totalorder %v1532, 4
    %v1555 = vsel %vm1551, %v1535, %v1538
    %v1556 = vsel %vm1554, %v1544, 2102212464
    %v1557 = vsel %vm1553, %v1541, %v1556
    %v1558 = vsel %vm1552, %v1555, %v1557
    %v1559 = vsel %vm1551, %v1538, %v1541
    %v1560 = vsel %vm1554, %v1547, 920167782
    %v1561 = vsel %vm1553, %v1544, %v1560
    %v1562 = vsel %vm1552, %v1559, %v1561
    %v1563 = vsel %vm1551, %v1541, %v1544
    %v1564 = vsel %vm1554, %v1550, 1326507024
    %v1565 = vsel %vm1553, %v1547, %v1564
    %v1566 = vsel %vm1552, %v1563, %v1565
    %v1567 = vshll.u32 %v1527, 8
    %v1568 = vmul.u32.u64.compose %v1567, %v1566
    %v1569 = vextract.low.u32 %v1568
    %v1570 = vextract.high.u32 %v1568
    %v1571 = vmul.u32.u64.compose %v1567, %v1562
    %v1572 = vextract.low.u32 %v1571
    %v1573 = vextract.high.u32 %v1571
    %v1574 = vmul.u32 %v1567, %v1558
    %v1575 = vadd.s32 %v1570, %v1572
    %vm1576 = vc.u32 %v1570, %v1572
    %v1577 = vadd.s32 %v1573, 1
    %v1578 = vsel %vm1576, %v1577, %v1573
    %v1579 = vadd.s32 %v1574, %v1578
    %v1580 = vadd.s32 %v1579, 536870912
    %v1581 = vshrl.u32 %v1580, 30
    %v1582 = vshll.u32 %v1581, 30
    %v1583 = vsub.s32 %v1579, %v1582
    %vm1584 = vcmp.lt.s32.totalorder %v1583, 0
    %v1585 = vsub.s32 0, %v1583
    %v1586 = vsel %vm1584, %v1585, %v1583
    %v1587 = vclz %v1586
    %v1588 = vsub.s32 %v1587, 2
    %vm1589 = vcmp.gt.s32.totalorder 0, %v1588
    %v1590 = vsel %vm1589, 0, %v1588
    %v1591 = vsub.s32 32, %v1590
    %v1592 = vshll.u32 %v1583, %v1590
    %v1593 = vshrl.u32 %v1575, %v1591
    %v1594 = vor.u32 %v1592, %v1593
    %v1595 = vsub.s32 4294967266, %v1590
    %v1596 = vadd.s32 %v1595, 127
    %v1597 = vshll.u32 %v1596, 23
    %v1598 = vor.u32 4788187, %v1597
    %v1599 = vand.u32 2147483647, %v1598
    %v1601 = vcvt.s32.f32 %v1594
    %v1602 = vmul.f32 %v1601, %v1599
    %v1603 = vxor.u32 %v1602, 2147483648
    %v1604 = vsel %vm1521, %v1603, %v1602
    %v1605 = vsub.s32 4, %v1581
    %v1606 = vsel %vm1521, %v1605, %v1581
    %v1607 = vsel %vm1520, %v49, %v1604
    %v1608 = vsel %vm1520, 0, %v1606
    %v1609 = vcosq.f32.pop %v1607
    %v1610 = vsinq.f32.pop %v1607
    %vm1611 = vweird.f32 %v49
    %v1612 = vand.u32 %v1608, 3
    %vm1613 = vcmp.lt.s32.totalorder %v1612, 2
    %vm1614 = vcmp.eq.s32.totalorder %v1612, 0
    %v1615 = vxor.u32 %v1610, 2147483648
    %v1616 = vsel %vm1614, %v1609, %v1615
    %vm1617 = vcmp.eq.s32.totalorder %v1612, 2
    %v1618 = vxor.u32 %v1609, 2147483648
    %v1619 = vsel %vm1617, %v1618, %v1610
    %v1620 = vsel %vm1613, %v1616, %v1619
    %v1621 = vsel %vm1611, nan, %v1620
    %v1622 = vand.u32 2147483647, %v50
    %vm1623 = vcmp.le.f32.partialorder %v1622, 0.7853982
    %vm1624 = vcmp.lt.s32.totalorder %v50, 0
    %v1625 = vand.u32 %v50, 2139095040
    %v1626 = vshrl.u32 %v1625, 23
    %v1627 = vsub.s32 %v1626, 127
    %v1628 = vand.u32 2147483647, %v50
    %v1629 = vand.u32 %v1628, 8388607
    %v1630 = vor.u32 %v1629, 8388608
    %v1631 = vsub.s32 0, %v1630
    %v1632 = vadd.s32 %v1627, 1
    %vm1633 = vcmp.gt.s32.totalorder %v1632, 0
    %v1634 = vsel %vm1633, %v1632, 0
    %v1635 = vshrl.u32 %v1634, 5
    %v1636 = vand.u32 %v1634, 31
    %v1637 = vsub.s32 32, %v1636
    %v1638 = vshrl.u32 683565275, %v1637
    %v1639 = vshll.u32 683565275, %v1636
    %v1640 = vshrl.u32 2475754826, %v1637
    %v1641 = vor.u32 %v1639, %v1640
    %v1642 = vshll.u32 2475754826, %v1636
    %v1643 = vshrl.u32 2131351028, %v1637
    %v1644 = vor.u32 %v1642, %v1643
    %v1645 = vshll.u32 2131351028, %v1636
    %v1646 = vshrl.u32 2102212464, %v1637
    %v1647 = vor.u32 %v1645, %v1646
    %v1648 = vshll.u32 2102212464, %v1636
    %v1649 = vshrl.u32 920167782, %v1637
    %v1650 = vor.u32 %v1648, %v1649
    %v1651 = vshll.u32 920167782, %v1636
    %v1652 = vshrl.u32 1326507024, %v1637
    %v1653 = vor.u32 %v1651, %v1652
    %vm1654 = vcmp.lt.s32.totalorder %v1635, 1
    %vm1655 = vcmp.lt.s32.totalorder %v1635, 2
    %vm1656 = vcmp.lt.s32.totalorder %v1635, 3
    %vm1657 = vcmp.lt.s32.totalorder %v1635, 4
    %v1658 = vsel %vm1654, %v1638, %v1641
    %v1659 = vsel %vm1657, %v1647, 2102212464
    %v1660 = vsel %vm1656, %v1644, %v1659
    %v1661 = vsel %vm1655, %v1658, %v1660
    %v1662 = vsel %vm1654, %v1641, %v1644
    %v1663 = vsel %vm1657, %v1650, 920167782
    %v1664 = vsel %vm1656, %v1647, %v1663
    %v1665 = vsel %vm1655, %v1662, %v1664
    %v1666 = vsel %vm1654, %v1644, %v1647
    %v1667 = vsel %vm1657, %v1653, 1326507024
    %v1668 = vsel %vm1656, %v1650, %v1667
    %v1669 = vsel %vm1655, %v1666, %v1668
    %v1670 = vshll.u32 %v1630, 8
    %v1671 = vmul.u32.u64.compose %v1670, %v1669
    %v1672 = vextract.low.u32 %v1671
    %v1673 = vextract.high.u32 %v1671
    %v1674 = vmul.u32.u64.compose %v1670, %v1665
    %v1675 = vextract.low.u32 %v1674
    %v1676 = vextract.high.u32 %v1674
    %v1677 = vmul.u32 %v1670, %v1661
    %v1678 = vadd.s32 %v1673, %v1675
    %vm1679 = vc.u32 %v1673, %v1675
    %v1680 = vadd.s32 %v1676, 1
    %v1681 = vsel %vm1679, %v1680, %v1676
    %v1682 = vadd.s32 %v1677, %v1681
    %v1683 = vadd.s32 %v1682, 536870912
    %v1684 = vshrl.u32 %v1683, 30
    %v1685 = vshll.u32 %v1684, 30
    %v1686 = vsub.s32 %v1682, %v1685
    %vm1687 = vcmp.lt.s32.totalorder %v1686, 0
    %v1688 = vsub.s32 0, %v1686
    %v1689 = vsel %vm1687, %v1688, %v1686
    %v1690 = vclz %v1689
    %v1691 = vsub.s32 %v1690, 2
    %vm1692 = vcmp.gt.s32.totalorder 0, %v1691
    %v1693 = vsel %vm1692, 0, %v1691
    %v1694 = vsub.s32 32, %v1693
    %v1695 = vshll.u32 %v1686, %v1693
    %v1696 = vshrl.u32 %v1678, %v1694
    %v1697 = vor.u32 %v1695, %v1696
    %v1698 = vsub.s32 4294967266, %v1693
    %v1699 = vadd.s32 %v1698, 127
    %v1700 = vshll.u32 %v1699, 23
    %v1701 = vor.u32 4788187, %v1700
    %v1702 = vand.u32 2147483647, %v1701
    %v1704 = vcvt.s32.f32 %v1697
    %v1705 = vmul.f32 %v1704, %v1702
    %v1706 = vxor.u32 %v1705, 2147483648
    %v1707 = vsel %vm1624, %v1706, %v1705
    %v1708 = vsub.s32 4, %v1684
    %v1709 = vsel %vm1624, %v1708, %v1684
    %v1710 = vsel %vm1623, %v50, %v1707
    %v1711 = vsel %vm1623, 0, %v1709
    %v1712 = vcosq.f32.pop %v1710
    %v1713 = vsinq.f32.pop %v1710
    %vm1714 = vweird.f32 %v50
    %v1715 = vand.u32 %v1711, 3
    %vm1716 = vcmp.lt.s32.totalorder %v1715, 2
    %vm1717 = vcmp.eq.s32.totalorder %v1715, 0
    %v1718 = vxor.u32 %v1713, 2147483648
    %v1719 = vsel %vm1717, %v1712, %v1718
    %vm1720 = vcmp.eq.s32.totalorder %v1715, 2
    %v1721 = vxor.u32 %v1712, 2147483648
    %v1722 = vsel %vm1720, %v1721, %v1713
    %v1723 = vsel %vm1716, %v1719, %v1722
    %v1724 = vsel %vm1714, nan, %v1723
    %v1725 = vand.u32 2147483647, %v51
    %vm1726 = vcmp.le.f32.partialorder %v1725, 0.7853982
    %vm1727 = vcmp.lt.s32.totalorder %v51, 0
    %v1728 = vand.u32 %v51, 2139095040
    %v1729 = vshrl.u32 %v1728, 23
    %v1730 = vsub.s32 %v1729, 127
    %v1731 = vand.u32 2147483647, %v51
    %v1732 = vand.u32 %v1731, 8388607
    %v1733 = vor.u32 %v1732, 8388608
    %v1734 = vsub.s32 0, %v1733
    %v1735 = vadd.s32 %v1730, 1
    %vm1736 = vcmp.gt.s32.totalorder %v1735, 0
    %v1737 = vsel %vm1736, %v1735, 0
    %v1738 = vshrl.u32 %v1737, 5
    %v1739 = vand.u32 %v1737, 31
    %v1740 = vsub.s32 32, %v1739
    %v1741 = vshrl.u32 683565275, %v1740
    %v1742 = vshll.u32 683565275, %v1739
    %v1743 = vshrl.u32 2475754826, %v1740
    %v1744 = vor.u32 %v1742, %v1743
    %v1745 = vshll.u32 2475754826, %v1739
    %v1746 = vshrl.u32 2131351028, %v1740
    %v1747 = vor.u32 %v1745, %v1746
    %v1748 = vshll.u32 2131351028, %v1739
    %v1749 = vshrl.u32 2102212464, %v1740
    %v1750 = vor.u32 %v1748, %v1749
    %v1751 = vshll.u32 2102212464, %v1739
    %v1752 = vshrl.u32 920167782, %v1740
    %v1753 = vor.u32 %v1751, %v1752
    %v1754 = vshll.u32 920167782, %v1739
    %v1755 = vshrl.u32 1326507024, %v1740
    %v1756 = vor.u32 %v1754, %v1755
    %vm1757 = vcmp.lt.s32.totalorder %v1738, 1
    %vm1758 = vcmp.lt.s32.totalorder %v1738, 2
    %vm1759 = vcmp.lt.s32.totalorder %v1738, 3
    %vm1760 = vcmp.lt.s32.totalorder %v1738, 4
    %v1761 = vsel %vm1757, %v1741, %v1744
    %v1762 = vsel %vm1760, %v1750, 2102212464
    %v1763 = vsel %vm1759, %v1747, %v1762
    %v1764 = vsel %vm1758, %v1761, %v1763
    %v1765 = vsel %vm1757, %v1744, %v1747
    %v1766 = vsel %vm1760, %v1753, 920167782
    %v1767 = vsel %vm1759, %v1750, %v1766
    %v1768 = vsel %vm1758, %v1765, %v1767
    %v1769 = vsel %vm1757, %v1747, %v1750
    %v1770 = vsel %vm1760, %v1756, 1326507024
    %v1771 = vsel %vm1759, %v1753, %v1770
    %v1772 = vsel %vm1758, %v1769, %v1771
    %v1773 = vshll.u32 %v1733, 8
    %v1774 = vmul.u32.u64.compose %v1773, %v1772
    %v1775 = vextract.low.u32 %v1774
    %v1776 = vextract.high.u32 %v1774
    %v1777 = vmul.u32.u64.compose %v1773, %v1768
    %v1778 = vextract.low.u32 %v1777
    %v1779 = vextract.high.u32 %v1777
    %v1780 = vmul.u32 %v1773, %v1764
    %v1781 = vadd.s32 %v1776, %v1778
    %vm1782 = vc.u32 %v1776, %v1778
    %v1783 = vadd.s32 %v1779, 1
    %v1784 = vsel %vm1782, %v1783, %v1779
    %v1785 = vadd.s32 %v1780, %v1784
    %v1786 = vadd.s32 %v1785, 536870912
    %v1787 = vshrl.u32 %v1786, 30
    %v1788 = vshll.u32 %v1787, 30
    %v1789 = vsub.s32 %v1785, %v1788
    %vm1790 = vcmp.lt.s32.totalorder %v1789, 0
    %v1791 = vsub.s32 0, %v1789
    %v1792 = vsel %vm1790, %v1791, %v1789
    %v1793 = vclz %v1792
    %v1794 = vsub.s32 %v1793, 2
    %vm1795 = vcmp.gt.s32.totalorder 0, %v1794
    %v1796 = vsel %vm1795, 0, %v1794
    %v1797 = vsub.s32 32, %v1796
    %v1798 = vshll.u32 %v1789, %v1796
    %v1799 = vshrl.u32 %v1781, %v1797
    %v1800 = vor.u32 %v1798, %v1799
    %v1801 = vsub.s32 4294967266, %v1796
    %v1802 = vadd.s32 %v1801, 127
    %v1803 = vshll.u32 %v1802, 23
    %v1804 = vor.u32 4788187, %v1803
    %v1805 = vand.u32 2147483647, %v1804
    %v1807 = vcvt.s32.f32 %v1800
    %v1808 = vmul.f32 %v1807, %v1805
    %v1809 = vxor.u32 %v1808, 2147483648
    %v1810 = vsel %vm1727, %v1809, %v1808
    %v1811 = vsub.s32 4, %v1787
    %v1812 = vsel %vm1727, %v1811, %v1787
    %v1813 = vsel %vm1726, %v51, %v1810
    %v1814 = vsel %vm1726, 0, %v1812
    %v1815 = vcosq.f32.pop %v1813
    %v1816 = vsinq.f32.pop %v1813
    %vm1817 = vweird.f32 %v51
    %v1818 = vand.u32 %v1814, 3
    %vm1819 = vcmp.lt.s32.totalorder %v1818, 2
    %vm1820 = vcmp.eq.s32.totalorder %v1818, 0
    %v1821 = vxor.u32 %v1816, 2147483648
    %v1822 = vsel %vm1820, %v1815, %v1821
    %vm1823 = vcmp.eq.s32.totalorder %v1818, 2
    %v1824 = vxor.u32 %v1815, 2147483648
    %v1825 = vsel %vm1823, %v1824, %v1816
    %v1826 = vsel %vm1819, %v1822, %v1825
    %v1827 = vsel %vm1817, nan, %v1826
    %v1828 = vand.u32 2147483647, %v52
    %vm1829 = vcmp.le.f32.partialorder %v1828, 0.7853982
    %vm1830 = vcmp.lt.s32.totalorder %v52, 0
    %v1831 = vand.u32 %v52, 2139095040
    %v1832 = vshrl.u32 %v1831, 23
    %v1833 = vsub.s32 %v1832, 127
    %v1834 = vand.u32 2147483647, %v52
    %v1835 = vand.u32 %v1834, 8388607
    %v1836 = vor.u32 %v1835, 8388608
    %v1837 = vsub.s32 0, %v1836
    %v1838 = vadd.s32 %v1833, 1
    %vm1839 = vcmp.gt.s32.totalorder %v1838, 0
    %v1840 = vsel %vm1839, %v1838, 0
    %v1841 = vshrl.u32 %v1840, 5
    %v1842 = vand.u32 %v1840, 31
    %v1843 = vsub.s32 32, %v1842
    %v1844 = vshrl.u32 683565275, %v1843
    %v1845 = vshll.u32 683565275, %v1842
    %v1846 = vshrl.u32 2475754826, %v1843
    %v1847 = vor.u32 %v1845, %v1846
    %v1848 = vshll.u32 2475754826, %v1842
    %v1849 = vshrl.u32 2131351028, %v1843
    %v1850 = vor.u32 %v1848, %v1849
    %v1851 = vshll.u32 2131351028, %v1842
    %v1852 = vshrl.u32 2102212464, %v1843
    %v1853 = vor.u32 %v1851, %v1852
    %v1854 = vshll.u32 2102212464, %v1842
    %v1855 = vshrl.u32 920167782, %v1843
    %v1856 = vor.u32 %v1854, %v1855
    %v1857 = vshll.u32 920167782, %v1842
    %v1858 = vshrl.u32 1326507024, %v1843
    %v1859 = vor.u32 %v1857, %v1858
    %vm1860 = vcmp.lt.s32.totalorder %v1841, 1
    %vm1861 = vcmp.lt.s32.totalorder %v1841, 2
    %vm1862 = vcmp.lt.s32.totalorder %v1841, 3
    %vm1863 = vcmp.lt.s32.totalorder %v1841, 4
    %v1864 = vsel %vm1860, %v1844, %v1847
    %v1865 = vsel %vm1863, %v1853, 2102212464
    %v1866 = vsel %vm1862, %v1850, %v1865
    %v1867 = vsel %vm1861, %v1864, %v1866
    %v1868 = vsel %vm1860, %v1847, %v1850
    %v1869 = vsel %vm1863, %v1856, 920167782
    %v1870 = vsel %vm1862, %v1853, %v1869
    %v1871 = vsel %vm1861, %v1868, %v1870
    %v1872 = vsel %vm1860, %v1850, %v1853
    %v1873 = vsel %vm1863, %v1859, 1326507024
    %v1874 = vsel %vm1862, %v1856, %v1873
    %v1875 = vsel %vm1861, %v1872, %v1874
    %v1876 = vshll.u32 %v1836, 8
    %v1877 = vmul.u32.u64.compose %v1876, %v1875
    %v1878 = vextract.low.u32 %v1877
    %v1879 = vextract.high.u32 %v1877
    %v1880 = vmul.u32.u64.compose %v1876, %v1871
    %v1881 = vextract.low.u32 %v1880
    %v1882 = vextract.high.u32 %v1880
    %v1883 = vmul.u32 %v1876, %v1867
    %v1884 = vadd.s32 %v1879, %v1881
    %vm1885 = vc.u32 %v1879, %v1881
    %v1886 = vadd.s32 %v1882, 1
    %v1887 = vsel %vm1885, %v1886, %v1882
    %v1888 = vadd.s32 %v1883, %v1887
    %v1889 = vadd.s32 %v1888, 536870912
    %v1890 = vshrl.u32 %v1889, 30
    %v1891 = vshll.u32 %v1890, 30
    %v1892 = vsub.s32 %v1888, %v1891
    %vm1893 = vcmp.lt.s32.totalorder %v1892, 0
    %v1894 = vsub.s32 0, %v1892
    %v1895 = vsel %vm1893, %v1894, %v1892
    %v1896 = vclz %v1895
    %v1897 = vsub.s32 %v1896, 2
    %vm1898 = vcmp.gt.s32.totalorder 0, %v1897
    %v1899 = vsel %vm1898, 0, %v1897
    %v1900 = vsub.s32 32, %v1899
    %v1901 = vshll.u32 %v1892, %v1899
    %v1902 = vshrl.u32 %v1884, %v1900
    %v1903 = vor.u32 %v1901, %v1902
    %v1904 = vsub.s32 4294967266, %v1899
    %v1905 = vadd.s32 %v1904, 127
    %v1906 = vshll.u32 %v1905, 23
    %v1907 = vor.u32 4788187, %v1906
    %v1908 = vand.u32 2147483647, %v1907
    %v1910 = vcvt.s32.f32 %v1903
    %v1911 = vmul.f32 %v1910, %v1908
    %v1912 = vxor.u32 %v1911, 2147483648
    %v1913 = vsel %vm1830, %v1912, %v1911
    %v1914 = vsub.s32 4, %v1890
    %v1915 = vsel %vm1830, %v1914, %v1890
    %v1916 = vsel %vm1829, %v52, %v1913
    %v1917 = vsel %vm1829, 0, %v1915
    %v1918 = vcosq.f32.pop %v1916
    %v1919 = vsinq.f32.pop %v1916
    %vm1920 = vweird.f32 %v52
    %v1921 = vand.u32 %v1917, 3
    %vm1922 = vcmp.lt.s32.totalorder %v1921, 2
    %vm1923 = vcmp.eq.s32.totalorder %v1921, 0
    %v1924 = vxor.u32 %v1919, 2147483648
    %v1925 = vsel %vm1923, %v1918, %v1924
    %vm1926 = vcmp.eq.s32.totalorder %v1921, 2
    %v1927 = vxor.u32 %v1918, 2147483648
    %v1928 = vsel %vm1926, %v1927, %v1919
    %v1929 = vsel %vm1922, %v1925, %v1928
    %v1930 = vsel %vm1920, nan, %v1929
    %v1931 = vand.u32 2147483647, %v53
    %vm1932 = vcmp.le.f32.partialorder %v1931, 0.7853982
    %vm1933 = vcmp.lt.s32.totalorder %v53, 0
    %v1934 = vand.u32 %v53, 2139095040
    %v1935 = vshrl.u32 %v1934, 23
    %v1936 = vsub.s32 %v1935, 127
    %v1937 = vand.u32 2147483647, %v53
    %v1938 = vand.u32 %v1937, 8388607
    %v1939 = vor.u32 %v1938, 8388608
    %v1940 = vsub.s32 0, %v1939
    %v1941 = vadd.s32 %v1936, 1
    %vm1942 = vcmp.gt.s32.totalorder %v1941, 0
    %v1943 = vsel %vm1942, %v1941, 0
    %v1944 = vshrl.u32 %v1943, 5
    %v1945 = vand.u32 %v1943, 31
    %v1946 = vsub.s32 32, %v1945
    %v1947 = vshrl.u32 683565275, %v1946
    %v1948 = vshll.u32 683565275, %v1945
    %v1949 = vshrl.u32 2475754826, %v1946
    %v1950 = vor.u32 %v1948, %v1949
    %v1951 = vshll.u32 2475754826, %v1945
    %v1952 = vshrl.u32 2131351028, %v1946
    %v1953 = vor.u32 %v1951, %v1952
    %v1954 = vshll.u32 2131351028, %v1945
    %v1955 = vshrl.u32 2102212464, %v1946
    %v1956 = vor.u32 %v1954, %v1955
    %v1957 = vshll.u32 2102212464, %v1945
    %v1958 = vshrl.u32 920167782, %v1946
    %v1959 = vor.u32 %v1957, %v1958
    %v1960 = vshll.u32 920167782, %v1945
    %v1961 = vshrl.u32 1326507024, %v1946
    %v1962 = vor.u32 %v1960, %v1961
    %vm1963 = vcmp.lt.s32.totalorder %v1944, 1
    %vm1964 = vcmp.lt.s32.totalorder %v1944, 2
    %vm1965 = vcmp.lt.s32.totalorder %v1944, 3
    %vm1966 = vcmp.lt.s32.totalorder %v1944, 4
    %v1967 = vsel %vm1963, %v1947, %v1950
    %v1968 = vsel %vm1966, %v1956, 2102212464
    %v1969 = vsel %vm1965, %v1953, %v1968
    %v1970 = vsel %vm1964, %v1967, %v1969
    %v1971 = vsel %vm1963, %v1950, %v1953
    %v1972 = vsel %vm1966, %v1959, 920167782
    %v1973 = vsel %vm1965, %v1956, %v1972
    %v1974 = vsel %vm1964, %v1971, %v1973
    %v1975 = vsel %vm1963, %v1953, %v1956
    %v1976 = vsel %vm1966, %v1962, 1326507024
    %v1977 = vsel %vm1965, %v1959, %v1976
    %v1978 = vsel %vm1964, %v1975, %v1977
    %v1979 = vshll.u32 %v1939, 8
    %v1980 = vmul.u32.u64.compose %v1979, %v1978
    %v1981 = vextract.low.u32 %v1980
    %v1982 = vextract.high.u32 %v1980
    %v1983 = vmul.u32.u64.compose %v1979, %v1974
    %v1984 = vextract.low.u32 %v1983
    %v1985 = vextract.high.u32 %v1983
    %v1986 = vmul.u32 %v1979, %v1970
    %v1987 = vadd.s32 %v1982, %v1984
    %vm1988 = vc.u32 %v1982, %v1984
    %v1989 = vadd.s32 %v1985, 1
    %v1990 = vsel %vm1988, %v1989, %v1985
    %v1991 = vadd.s32 %v1986, %v1990
    %v1992 = vadd.s32 %v1991, 536870912
    %v1993 = vshrl.u32 %v1992, 30
    %v1994 = vshll.u32 %v1993, 30
    %v1995 = vsub.s32 %v1991, %v1994
    %vm1996 = vcmp.lt.s32.totalorder %v1995, 0
    %v1997 = vsub.s32 0, %v1995
    %v1998 = vsel %vm1996, %v1997, %v1995
    %v1999 = vclz %v1998
    %v2000 = vsub.s32 %v1999, 2
    %vm2001 = vcmp.gt.s32.totalorder 0, %v2000
    %v2002 = vsel %vm2001, 0, %v2000
    %v2003 = vsub.s32 32, %v2002
    %v2004 = vshll.u32 %v1995, %v2002
    %v2005 = vshrl.u32 %v1987, %v2003
    %v2006 = vor.u32 %v2004, %v2005
    %v2007 = vsub.s32 4294967266, %v2002
    %v2008 = vadd.s32 %v2007, 127
    %v2009 = vshll.u32 %v2008, 23
    %v2010 = vor.u32 4788187, %v2009
    %v2011 = vand.u32 2147483647, %v2010
    %v2013 = vcvt.s32.f32 %v2006
    %v2014 = vmul.f32 %v2013, %v2011
    %v2015 = vxor.u32 %v2014, 2147483648
    %v2016 = vsel %vm1933, %v2015, %v2014
    %v2017 = vsub.s32 4, %v1993
    %v2018 = vsel %vm1933, %v2017, %v1993
    %v2019 = vsel %vm1932, %v53, %v2016
    %v2020 = vsel %vm1932, 0, %v2018
    %v2021 = vcosq.f32.pop %v2019
    %v2022 = vsinq.f32.pop %v2019
    %vm2023 = vweird.f32 %v53
    %v2024 = vand.u32 %v2020, 3
    %vm2025 = vcmp.lt.s32.totalorder %v2024, 2
    %vm2026 = vcmp.eq.s32.totalorder %v2024, 0
    %v2027 = vxor.u32 %v2022, 2147483648
    %v2028 = vsel %vm2026, %v2021, %v2027
    %vm2029 = vcmp.eq.s32.totalorder %v2024, 2
    %v2030 = vxor.u32 %v2021, 2147483648
    %v2031 = vsel %vm2029, %v2030, %v2022
    %v2032 = vsel %vm2025, %v2028, %v2031
    %v2033 = vsel %vm2023, nan, %v2032
    %v2034 = vand.u32 2147483647, %v54
    %vm2035 = vcmp.le.f32.partialorder %v2034, 0.7853982
    %vm2036 = vcmp.lt.s32.totalorder %v54, 0
    %v2037 = vand.u32 %v54, 2139095040
    %v2038 = vshrl.u32 %v2037, 23
    %v2039 = vsub.s32 %v2038, 127
    %v2040 = vand.u32 2147483647, %v54
    %v2041 = vand.u32 %v2040, 8388607
    %v2042 = vor.u32 %v2041, 8388608
    %v2043 = vsub.s32 0, %v2042
    %v2044 = vadd.s32 %v2039, 1
    %vm2045 = vcmp.gt.s32.totalorder %v2044, 0
    %v2046 = vsel %vm2045, %v2044, 0
    %v2047 = vshrl.u32 %v2046, 5
    %v2048 = vand.u32 %v2046, 31
    %v2049 = vsub.s32 32, %v2048
    %v2050 = vshrl.u32 683565275, %v2049
    %v2051 = vshll.u32 683565275, %v2048
    %v2052 = vshrl.u32 2475754826, %v2049
    %v2053 = vor.u32 %v2051, %v2052
    %v2054 = vshll.u32 2475754826, %v2048
    %v2055 = vshrl.u32 2131351028, %v2049
    %v2056 = vor.u32 %v2054, %v2055
    %v2057 = vshll.u32 2131351028, %v2048
    %v2058 = vshrl.u32 2102212464, %v2049
    %v2059 = vor.u32 %v2057, %v2058
    %v2060 = vshll.u32 2102212464, %v2048
    %v2061 = vshrl.u32 920167782, %v2049
    %v2062 = vor.u32 %v2060, %v2061
    %v2063 = vshll.u32 920167782, %v2048
    %v2064 = vshrl.u32 1326507024, %v2049
    %v2065 = vor.u32 %v2063, %v2064
    %vm2066 = vcmp.lt.s32.totalorder %v2047, 1
    %vm2067 = vcmp.lt.s32.totalorder %v2047, 2
    %vm2068 = vcmp.lt.s32.totalorder %v2047, 3
    %vm2069 = vcmp.lt.s32.totalorder %v2047, 4
    %v2070 = vsel %vm2066, %v2050, %v2053
    %v2071 = vsel %vm2069, %v2059, 2102212464
    %v2072 = vsel %vm2068, %v2056, %v2071
    %v2073 = vsel %vm2067, %v2070, %v2072
    %v2074 = vsel %vm2066, %v2053, %v2056
    %v2075 = vsel %vm2069, %v2062, 920167782
    %v2076 = vsel %vm2068, %v2059, %v2075
    %v2077 = vsel %vm2067, %v2074, %v2076
    %v2078 = vsel %vm2066, %v2056, %v2059
    %v2079 = vsel %vm2069, %v2065, 1326507024
    %v2080 = vsel %vm2068, %v2062, %v2079
    %v2081 = vsel %vm2067, %v2078, %v2080
    %v2082 = vshll.u32 %v2042, 8
    %v2083 = vmul.u32.u64.compose %v2082, %v2081
    %v2084 = vextract.low.u32 %v2083
    %v2085 = vextract.high.u32 %v2083
    %v2086 = vmul.u32.u64.compose %v2082, %v2077
    %v2087 = vextract.low.u32 %v2086
    %v2088 = vextract.high.u32 %v2086
    %v2089 = vmul.u32 %v2082, %v2073
    %v2090 = vadd.s32 %v2085, %v2087
    %vm2091 = vc.u32 %v2085, %v2087
    %v2092 = vadd.s32 %v2088, 1
    %v2093 = vsel %vm2091, %v2092, %v2088
    %v2094 = vadd.s32 %v2089, %v2093
    %v2095 = vadd.s32 %v2094, 536870912
    %v2096 = vshrl.u32 %v2095, 30
    %v2097 = vshll.u32 %v2096, 30
    %v2098 = vsub.s32 %v2094, %v2097
    %vm2099 = vcmp.lt.s32.totalorder %v2098, 0
    %v2100 = vsub.s32 0, %v2098
    %v2101 = vsel %vm2099, %v2100, %v2098
    %v2102 = vclz %v2101
    %v2103 = vsub.s32 %v2102, 2
    %vm2104 = vcmp.gt.s32.totalorder 0, %v2103
    %v2105 = vsel %vm2104, 0, %v2103
    %v2106 = vsub.s32 32, %v2105
    %v2107 = vshll.u32 %v2098, %v2105
    %v2108 = vshrl.u32 %v2090, %v2106
    %v2109 = vor.u32 %v2107, %v2108
    %v2110 = vsub.s32 4294967266, %v2105
    %v2111 = vadd.s32 %v2110, 127
    %v2112 = vshll.u32 %v2111, 23
    %v2113 = vor.u32 4788187, %v2112
    %v2114 = vand.u32 2147483647, %v2113
    %v2116 = vcvt.s32.f32 %v2109
    %v2117 = vmul.f32 %v2116, %v2114
    %v2118 = vxor.u32 %v2117, 2147483648
    %v2119 = vsel %vm2036, %v2118, %v2117
    %v2120 = vsub.s32 4, %v2096
    %v2121 = vsel %vm2036, %v2120, %v2096
    %v2122 = vsel %vm2035, %v54, %v2119
    %v2123 = vsel %vm2035, 0, %v2121
    %v2124 = vcosq.f32.pop %v2122
    %v2125 = vsinq.f32.pop %v2122
    %vm2126 = vweird.f32 %v54
    %v2127 = vand.u32 %v2123, 3
    %vm2128 = vcmp.lt.s32.totalorder %v2127, 2
    %vm2129 = vcmp.eq.s32.totalorder %v2127, 0
    %v2130 = vxor.u32 %v2125, 2147483648
    %v2131 = vsel %vm2129, %v2124, %v2130
    %vm2132 = vcmp.eq.s32.totalorder %v2127, 2
    %v2133 = vxor.u32 %v2124, 2147483648
    %v2134 = vsel %vm2132, %v2133, %v2125
    %v2135 = vsel %vm2128, %v2131, %v2134
    %v2136 = vsel %vm2126, nan, %v2135
    %v2137 = vand.u32 2147483647, %v55
    %vm2138 = vcmp.le.f32.partialorder %v2137, 0.7853982
    %vm2139 = vcmp.lt.s32.totalorder %v55, 0
    %v2140 = vand.u32 %v55, 2139095040
    %v2141 = vshrl.u32 %v2140, 23
    %v2142 = vsub.s32 %v2141, 127
    %v2143 = vand.u32 2147483647, %v55
    %v2144 = vand.u32 %v2143, 8388607
    %v2145 = vor.u32 %v2144, 8388608
    %v2146 = vsub.s32 0, %v2145
    %v2147 = vadd.s32 %v2142, 1
    %vm2148 = vcmp.gt.s32.totalorder %v2147, 0
    %v2149 = vsel %vm2148, %v2147, 0
    %v2150 = vshrl.u32 %v2149, 5
    %v2151 = vand.u32 %v2149, 31
    %v2152 = vsub.s32 32, %v2151
    %v2153 = vshrl.u32 683565275, %v2152
    %v2154 = vshll.u32 683565275, %v2151
    %v2155 = vshrl.u32 2475754826, %v2152
    %v2156 = vor.u32 %v2154, %v2155
    %v2157 = vshll.u32 2475754826, %v2151
    %v2158 = vshrl.u32 2131351028, %v2152
    %v2159 = vor.u32 %v2157, %v2158
    %v2160 = vshll.u32 2131351028, %v2151
    %v2161 = vshrl.u32 2102212464, %v2152
    %v2162 = vor.u32 %v2160, %v2161
    %v2163 = vshll.u32 2102212464, %v2151
    %v2164 = vshrl.u32 920167782, %v2152
    %v2165 = vor.u32 %v2163, %v2164
    %v2166 = vshll.u32 920167782, %v2151
    %v2167 = vshrl.u32 1326507024, %v2152
    %v2168 = vor.u32 %v2166, %v2167
    %vm2169 = vcmp.lt.s32.totalorder %v2150, 1
    %vm2170 = vcmp.lt.s32.totalorder %v2150, 2
    %vm2171 = vcmp.lt.s32.totalorder %v2150, 3
    %vm2172 = vcmp.lt.s32.totalorder %v2150, 4
    %v2173 = vsel %vm2169, %v2153, %v2156
    %v2174 = vsel %vm2172, %v2162, 2102212464
    %v2175 = vsel %vm2171, %v2159, %v2174
    %v2176 = vsel %vm2170, %v2173, %v2175
    %v2177 = vsel %vm2169, %v2156, %v2159
    %v2178 = vsel %vm2172, %v2165, 920167782
    %v2179 = vsel %vm2171, %v2162, %v2178
    %v2180 = vsel %vm2170, %v2177, %v2179
    %v2181 = vsel %vm2169, %v2159, %v2162
    %v2182 = vsel %vm2172, %v2168, 1326507024
    %v2183 = vsel %vm2171, %v2165, %v2182
    %v2184 = vsel %vm2170, %v2181, %v2183
    %v2185 = vshll.u32 %v2145, 8
    %v2186 = vmul.u32.u64.compose %v2185, %v2184
    %v2187 = vextract.low.u32 %v2186
    %v2188 = vextract.high.u32 %v2186
    %v2189 = vmul.u32.u64.compose %v2185, %v2180
    %v2190 = vextract.low.u32 %v2189
    %v2191 = vextract.high.u32 %v2189
    %v2192 = vmul.u32 %v2185, %v2176
    %v2193 = vadd.s32 %v2188, %v2190
    %vm2194 = vc.u32 %v2188, %v2190
    %v2195 = vadd.s32 %v2191, 1
    %v2196 = vsel %vm2194, %v2195, %v2191
    %v2197 = vadd.s32 %v2192, %v2196
    %v2198 = vadd.s32 %v2197, 536870912
    %v2199 = vshrl.u32 %v2198, 30
    %v2200 = vshll.u32 %v2199, 30
    %v2201 = vsub.s32 %v2197, %v2200
    %vm2202 = vcmp.lt.s32.totalorder %v2201, 0
    %v2203 = vsub.s32 0, %v2201
    %v2204 = vsel %vm2202, %v2203, %v2201
    %v2205 = vclz %v2204
    %v2206 = vsub.s32 %v2205, 2
    %vm2207 = vcmp.gt.s32.totalorder 0, %v2206
    %v2208 = vsel %vm2207, 0, %v2206
    %v2209 = vsub.s32 32, %v2208
    %v2210 = vshll.u32 %v2201, %v2208
    %v2211 = vshrl.u32 %v2193, %v2209
    %v2212 = vor.u32 %v2210, %v2211
    %v2213 = vsub.s32 4294967266, %v2208
    %v2214 = vadd.s32 %v2213, 127
    %v2215 = vshll.u32 %v2214, 23
    %v2216 = vor.u32 4788187, %v2215
    %v2217 = vand.u32 2147483647, %v2216
    %v2219 = vcvt.s32.f32 %v2212
    %v2220 = vmul.f32 %v2219, %v2217
    %v2221 = vxor.u32 %v2220, 2147483648
    %v2222 = vsel %vm2139, %v2221, %v2220
    %v2223 = vsub.s32 4, %v2199
    %v2224 = vsel %vm2139, %v2223, %v2199
    %v2225 = vsel %vm2138, %v55, %v2222
    %v2226 = vsel %vm2138, 0, %v2224
    %v2227 = vcosq.f32.pop %v2225
    %v2228 = vsinq.f32.pop %v2225
    %vm2229 = vweird.f32 %v55
    %v2230 = vand.u32 %v2226, 3
    %vm2231 = vcmp.lt.s32.totalorder %v2230, 2
    %vm2232 = vcmp.eq.s32.totalorder %v2230, 0
    %v2233 = vxor.u32 %v2228, 2147483648
    %v2234 = vsel %vm2232, %v2227, %v2233
    %vm2235 = vcmp.eq.s32.totalorder %v2230, 2
    %v2236 = vxor.u32 %v2227, 2147483648
    %v2237 = vsel %vm2235, %v2236, %v2228
    %v2238 = vsel %vm2231, %v2234, %v2237
    %v2239 = vsel %vm2229, nan, %v2238
    %v2240 = vand.u32 2147483647, %v56
    %vm2241 = vcmp.le.f32.partialorder %v2240, 0.7853982
    %vm2242 = vcmp.lt.s32.totalorder %v56, 0
    %v2243 = vand.u32 %v56, 2139095040
    %v2244 = vshrl.u32 %v2243, 23
    %v2245 = vsub.s32 %v2244, 127
    %v2246 = vand.u32 2147483647, %v56
    %v2247 = vand.u32 %v2246, 8388607
    %v2248 = vor.u32 %v2247, 8388608
    %v2249 = vsub.s32 0, %v2248
    %v2250 = vadd.s32 %v2245, 1
    %vm2251 = vcmp.gt.s32.totalorder %v2250, 0
    %v2252 = vsel %vm2251, %v2250, 0
    %v2253 = vshrl.u32 %v2252, 5
    %v2254 = vand.u32 %v2252, 31
    %v2255 = vsub.s32 32, %v2254
    %v2256 = vshrl.u32 683565275, %v2255
    %v2257 = vshll.u32 683565275, %v2254
    %v2258 = vshrl.u32 2475754826, %v2255
    %v2259 = vor.u32 %v2257, %v2258
    %v2260 = vshll.u32 2475754826, %v2254
    %v2261 = vshrl.u32 2131351028, %v2255
    %v2262 = vor.u32 %v2260, %v2261
    %v2263 = vshll.u32 2131351028, %v2254
    %v2264 = vshrl.u32 2102212464, %v2255
    %v2265 = vor.u32 %v2263, %v2264
    %v2266 = vshll.u32 2102212464, %v2254
    %v2267 = vshrl.u32 920167782, %v2255
    %v2268 = vor.u32 %v2266, %v2267
    %v2269 = vshll.u32 920167782, %v2254
    %v2270 = vshrl.u32 1326507024, %v2255
    %v2271 = vor.u32 %v2269, %v2270
    %vm2272 = vcmp.lt.s32.totalorder %v2253, 1
    %vm2273 = vcmp.lt.s32.totalorder %v2253, 2
    %vm2274 = vcmp.lt.s32.totalorder %v2253, 3
    %vm2275 = vcmp.lt.s32.totalorder %v2253, 4
    %v2276 = vsel %vm2272, %v2256, %v2259
    %v2277 = vsel %vm2275, %v2265, 2102212464
    %v2278 = vsel %vm2274, %v2262, %v2277
    %v2279 = vsel %vm2273, %v2276, %v2278
    %v2280 = vsel %vm2272, %v2259, %v2262
    %v2281 = vsel %vm2275, %v2268, 920167782
    %v2282 = vsel %vm2274, %v2265, %v2281
    %v2283 = vsel %vm2273, %v2280, %v2282
    %v2284 = vsel %vm2272, %v2262, %v2265
    %v2285 = vsel %vm2275, %v2271, 1326507024
    %v2286 = vsel %vm2274, %v2268, %v2285
    %v2287 = vsel %vm2273, %v2284, %v2286
    %v2288 = vshll.u32 %v2248, 8
    %v2289 = vmul.u32.u64.compose %v2288, %v2287
    %v2290 = vextract.low.u32 %v2289
    %v2291 = vextract.high.u32 %v2289
    %v2292 = vmul.u32.u64.compose %v2288, %v2283
    %v2293 = vextract.low.u32 %v2292
    %v2294 = vextract.high.u32 %v2292
    %v2295 = vmul.u32 %v2288, %v2279
    %v2296 = vadd.s32 %v2291, %v2293
    %vm2297 = vc.u32 %v2291, %v2293
    %v2298 = vadd.s32 %v2294, 1
    %v2299 = vsel %vm2297, %v2298, %v2294
    %v2300 = vadd.s32 %v2295, %v2299
    %v2301 = vadd.s32 %v2300, 536870912
    %v2302 = vshrl.u32 %v2301, 30
    %v2303 = vshll.u32 %v2302, 30
    %v2304 = vsub.s32 %v2300, %v2303
    %vm2305 = vcmp.lt.s32.totalorder %v2304, 0
    %v2306 = vsub.s32 0, %v2304
    %v2307 = vsel %vm2305, %v2306, %v2304
    %v2308 = vclz %v2307
    %v2309 = vsub.s32 %v2308, 2
    %vm2310 = vcmp.gt.s32.totalorder 0, %v2309
    %v2311 = vsel %vm2310, 0, %v2309
    %v2312 = vsub.s32 32, %v2311
    %v2313 = vshll.u32 %v2304, %v2311
    %v2314 = vshrl.u32 %v2296, %v2312
    %v2315 = vor.u32 %v2313, %v2314
    %v2316 = vsub.s32 4294967266, %v2311
    %v2317 = vadd.s32 %v2316, 127
    %v2318 = vshll.u32 %v2317, 23
    %v2319 = vor.u32 4788187, %v2318
    %v2320 = vand.u32 2147483647, %v2319
    %v2322 = vcvt.s32.f32 %v2315
    %v2323 = vmul.f32 %v2322, %v2320
    %v2324 = vxor.u32 %v2323, 2147483648
    %v2325 = vsel %vm2242, %v2324, %v2323
    %v2326 = vsub.s32 4, %v2302
    %v2327 = vsel %vm2242, %v2326, %v2302
    %v2328 = vsel %vm2241, %v56, %v2325
    %v2329 = vsel %vm2241, 0, %v2327
    %v2330 = vcosq.f32.pop %v2328
    %v2331 = vsinq.f32.pop %v2328
    %vm2332 = vweird.f32 %v56
    %v2333 = vand.u32 %v2329, 3
    %vm2334 = vcmp.lt.s32.totalorder %v2333, 2
    %vm2335 = vcmp.eq.s32.totalorder %v2333, 0
    %v2336 = vxor.u32 %v2331, 2147483648
    %v2337 = vsel %vm2335, %v2330, %v2336
    %vm2338 = vcmp.eq.s32.totalorder %v2333, 2
    %v2339 = vxor.u32 %v2330, 2147483648
    %v2340 = vsel %vm2338, %v2339, %v2331
    %v2341 = vsel %vm2334, %v2337, %v2340
    %v2342 = vsel %vm2332, nan, %v2341
    %v2343 = vand.u32 2147483647, %v57
    %vm2344 = vcmp.le.f32.partialorder %v2343, 0.7853982
    %vm2345 = vcmp.lt.s32.totalorder %v57, 0
    %v2346 = vand.u32 %v57, 2139095040
    %v2347 = vshrl.u32 %v2346, 23
    %v2348 = vsub.s32 %v2347, 127
    %v2349 = vand.u32 2147483647, %v57
    %v2350 = vand.u32 %v2349, 8388607
    %v2351 = vor.u32 %v2350, 8388608
    %v2352 = vsub.s32 0, %v2351
    %v2353 = vadd.s32 %v2348, 1
    %vm2354 = vcmp.gt.s32.totalorder %v2353, 0
    %v2355 = vsel %vm2354, %v2353, 0
    %v2356 = vshrl.u32 %v2355, 5
    %v2357 = vand.u32 %v2355, 31
    %v2358 = vsub.s32 32, %v2357
    %v2359 = vshrl.u32 683565275, %v2358
    %v2360 = vshll.u32 683565275, %v2357
    %v2361 = vshrl.u32 2475754826, %v2358
    %v2362 = vor.u32 %v2360, %v2361
    %v2363 = vshll.u32 2475754826, %v2357
    %v2364 = vshrl.u32 2131351028, %v2358
    %v2365 = vor.u32 %v2363, %v2364
    %v2366 = vshll.u32 2131351028, %v2357
    %v2367 = vshrl.u32 2102212464, %v2358
    %v2368 = vor.u32 %v2366, %v2367
    %v2369 = vshll.u32 2102212464, %v2357
    %v2370 = vshrl.u32 920167782, %v2358
    %v2371 = vor.u32 %v2369, %v2370
    %v2372 = vshll.u32 920167782, %v2357
    %v2373 = vshrl.u32 1326507024, %v2358
    %v2374 = vor.u32 %v2372, %v2373
    %vm2375 = vcmp.lt.s32.totalorder %v2356, 1
    %vm2376 = vcmp.lt.s32.totalorder %v2356, 2
    %vm2377 = vcmp.lt.s32.totalorder %v2356, 3
    %vm2378 = vcmp.lt.s32.totalorder %v2356, 4
    %v2379 = vsel %vm2375, %v2359, %v2362
    %v2380 = vsel %vm2378, %v2368, 2102212464
    %v2381 = vsel %vm2377, %v2365, %v2380
    %v2382 = vsel %vm2376, %v2379, %v2381
    %v2383 = vsel %vm2375, %v2362, %v2365
    %v2384 = vsel %vm2378, %v2371, 920167782
    %v2385 = vsel %vm2377, %v2368, %v2384
    %v2386 = vsel %vm2376, %v2383, %v2385
    %v2387 = vsel %vm2375, %v2365, %v2368
    %v2388 = vsel %vm2378, %v2374, 1326507024
    %v2389 = vsel %vm2377, %v2371, %v2388
    %v2390 = vsel %vm2376, %v2387, %v2389
    %v2391 = vshll.u32 %v2351, 8
    %v2392 = vmul.u32.u64.compose %v2391, %v2390
    %v2393 = vextract.low.u32 %v2392
    %v2394 = vextract.high.u32 %v2392
    %v2395 = vmul.u32.u64.compose %v2391, %v2386
    %v2396 = vextract.low.u32 %v2395
    %v2397 = vextract.high.u32 %v2395
    %v2398 = vmul.u32 %v2391, %v2382
    %v2399 = vadd.s32 %v2394, %v2396
    %vm2400 = vc.u32 %v2394, %v2396
    %v2401 = vadd.s32 %v2397, 1
    %v2402 = vsel %vm2400, %v2401, %v2397
    %v2403 = vadd.s32 %v2398, %v2402
    %v2404 = vadd.s32 %v2403, 536870912
    %v2405 = vshrl.u32 %v2404, 30
    %v2406 = vshll.u32 %v2405, 30
    %v2407 = vsub.s32 %v2403, %v2406
    %vm2408 = vcmp.lt.s32.totalorder %v2407, 0
    %v2409 = vsub.s32 0, %v2407
    %v2410 = vsel %vm2408, %v2409, %v2407
    %v2411 = vclz %v2410
    %v2412 = vsub.s32 %v2411, 2
    %vm2413 = vcmp.gt.s32.totalorder 0, %v2412
    %v2414 = vsel %vm2413, 0, %v2412
    %v2415 = vsub.s32 32, %v2414
    %v2416 = vshll.u32 %v2407, %v2414
    %v2417 = vshrl.u32 %v2399, %v2415
    %v2418 = vor.u32 %v2416, %v2417
    %v2419 = vsub.s32 4294967266, %v2414
    %v2420 = vadd.s32 %v2419, 127
    %v2421 = vshll.u32 %v2420, 23
    %v2422 = vor.u32 4788187, %v2421
    %v2423 = vand.u32 2147483647, %v2422
    %v2425 = vcvt.s32.f32 %v2418
    %v2426 = vmul.f32 %v2425, %v2423
    %v2427 = vxor.u32 %v2426, 2147483648
    %v2428 = vsel %vm2345, %v2427, %v2426
    %v2429 = vsub.s32 4, %v2405
    %v2430 = vsel %vm2345, %v2429, %v2405
    %v2431 = vsel %vm2344, %v57, %v2428
    %v2432 = vsel %vm2344, 0, %v2430
    %v2433 = vcosq.f32.pop %v2431
    %v2434 = vsinq.f32.pop %v2431
    %vm2435 = vweird.f32 %v57
    %v2436 = vand.u32 %v2432, 3
    %vm2437 = vcmp.lt.s32.totalorder %v2436, 2
    %vm2438 = vcmp.eq.s32.totalorder %v2436, 0
    %v2439 = vxor.u32 %v2434, 2147483648
    %v2440 = vsel %vm2438, %v2433, %v2439
    %vm2441 = vcmp.eq.s32.totalorder %v2436, 2
    %v2442 = vxor.u32 %v2433, 2147483648
    %v2443 = vsel %vm2441, %v2442, %v2434
    %v2444 = vsel %vm2437, %v2440, %v2443
    %v2445 = vsel %vm2435, nan, %v2444
    %v2446 = vand.u32 2147483647, %v58
    %vm2447 = vcmp.le.f32.partialorder %v2446, 0.7853982
    %vm2448 = vcmp.lt.s32.totalorder %v58, 0
    %v2449 = vand.u32 %v58, 2139095040
    %v2450 = vshrl.u32 %v2449, 23
    %v2451 = vsub.s32 %v2450, 127
    %v2452 = vand.u32 2147483647, %v58
    %v2453 = vand.u32 %v2452, 8388607
    %v2454 = vor.u32 %v2453, 8388608
    %v2455 = vsub.s32 0, %v2454
    %v2456 = vadd.s32 %v2451, 1
    %vm2457 = vcmp.gt.s32.totalorder %v2456, 0
    %v2458 = vsel %vm2457, %v2456, 0
    %v2459 = vshrl.u32 %v2458, 5
    %v2460 = vand.u32 %v2458, 31
    %v2461 = vsub.s32 32, %v2460
    %v2462 = vshrl.u32 683565275, %v2461
    %v2463 = vshll.u32 683565275, %v2460
    %v2464 = vshrl.u32 2475754826, %v2461
    %v2465 = vor.u32 %v2463, %v2464
    %v2466 = vshll.u32 2475754826, %v2460
    %v2467 = vshrl.u32 2131351028, %v2461
    %v2468 = vor.u32 %v2466, %v2467
    %v2469 = vshll.u32 2131351028, %v2460
    %v2470 = vshrl.u32 2102212464, %v2461
    %v2471 = vor.u32 %v2469, %v2470
    %v2472 = vshll.u32 2102212464, %v2460
    %v2473 = vshrl.u32 920167782, %v2461
    %v2474 = vor.u32 %v2472, %v2473
    %v2475 = vshll.u32 920167782, %v2460
    %v2476 = vshrl.u32 1326507024, %v2461
    %v2477 = vor.u32 %v2475, %v2476
    %vm2478 = vcmp.lt.s32.totalorder %v2459, 1
    %vm2479 = vcmp.lt.s32.totalorder %v2459, 2
    %vm2480 = vcmp.lt.s32.totalorder %v2459, 3
    %vm2481 = vcmp.lt.s32.totalorder %v2459, 4
    %v2482 = vsel %vm2478, %v2462, %v2465
    %v2483 = vsel %vm2481, %v2471, 2102212464
    %v2484 = vsel %vm2480, %v2468, %v2483
    %v2485 = vsel %vm2479, %v2482, %v2484
    %v2486 = vsel %vm2478, %v2465, %v2468
    %v2487 = vsel %vm2481, %v2474, 920167782
    %v2488 = vsel %vm2480, %v2471, %v2487
    %v2489 = vsel %vm2479, %v2486, %v2488
    %v2490 = vsel %vm2478, %v2468, %v2471
    %v2491 = vsel %vm2481, %v2477, 1326507024
    %v2492 = vsel %vm2480, %v2474, %v2491
    %v2493 = vsel %vm2479, %v2490, %v2492
    %v2494 = vshll.u32 %v2454, 8
    %v2495 = vmul.u32.u64.compose %v2494, %v2493
    %v2496 = vextract.low.u32 %v2495
    %v2497 = vextract.high.u32 %v2495
    %v2498 = vmul.u32.u64.compose %v2494, %v2489
    %v2499 = vextract.low.u32 %v2498
    %v2500 = vextract.high.u32 %v2498
    %v2501 = vmul.u32 %v2494, %v2485
    %v2502 = vadd.s32 %v2497, %v2499
    %vm2503 = vc.u32 %v2497, %v2499
    %v2504 = vadd.s32 %v2500, 1
    %v2505 = vsel %vm2503, %v2504, %v2500
    %v2506 = vadd.s32 %v2501, %v2505
    %v2507 = vadd.s32 %v2506, 536870912
    %v2508 = vshrl.u32 %v2507, 30
    %v2509 = vshll.u32 %v2508, 30
    %v2510 = vsub.s32 %v2506, %v2509
    %vm2511 = vcmp.lt.s32.totalorder %v2510, 0
    %v2512 = vsub.s32 0, %v2510
    %v2513 = vsel %vm2511, %v2512, %v2510
    %v2514 = vclz %v2513
    %v2515 = vsub.s32 %v2514, 2
    %vm2516 = vcmp.gt.s32.totalorder 0, %v2515
    %v2517 = vsel %vm2516, 0, %v2515
    %v2518 = vsub.s32 32, %v2517
    %v2519 = vshll.u32 %v2510, %v2517
    %v2520 = vshrl.u32 %v2502, %v2518
    %v2521 = vor.u32 %v2519, %v2520
    %v2522 = vsub.s32 4294967266, %v2517
    %v2523 = vadd.s32 %v2522, 127
    %v2524 = vshll.u32 %v2523, 23
    %v2525 = vor.u32 4788187, %v2524
    %v2526 = vand.u32 2147483647, %v2525
    %v2528 = vcvt.s32.f32 %v2521
    %v2529 = vmul.f32 %v2528, %v2526
    %v2530 = vxor.u32 %v2529, 2147483648
    %v2531 = vsel %vm2448, %v2530, %v2529
    %v2532 = vsub.s32 4, %v2508
    %v2533 = vsel %vm2448, %v2532, %v2508
    %v2534 = vsel %vm2447, %v58, %v2531
    %v2535 = vsel %vm2447, 0, %v2533
    %v2536 = vcosq.f32.pop %v2534
    %v2537 = vsinq.f32.pop %v2534
    %vm2538 = vweird.f32 %v58
    %v2539 = vand.u32 %v2535, 3
    %vm2540 = vcmp.lt.s32.totalorder %v2539, 2
    %vm2541 = vcmp.eq.s32.totalorder %v2539, 0
    %v2542 = vxor.u32 %v2537, 2147483648
    %v2543 = vsel %vm2541, %v2536, %v2542
    %vm2544 = vcmp.eq.s32.totalorder %v2539, 2
    %v2545 = vxor.u32 %v2536, 2147483648
    %v2546 = vsel %vm2544, %v2545, %v2537
    %v2547 = vsel %vm2540, %v2543, %v2546
    %v2548 = vsel %vm2538, nan, %v2547
    %v2549 = vand.u32 2147483647, %v59
    %vm2550 = vcmp.le.f32.partialorder %v2549, 0.7853982
    %vm2551 = vcmp.lt.s32.totalorder %v59, 0
    %v2552 = vand.u32 %v59, 2139095040
    %v2553 = vshrl.u32 %v2552, 23
    %v2554 = vsub.s32 %v2553, 127
    %v2555 = vand.u32 2147483647, %v59
    %v2556 = vand.u32 %v2555, 8388607
    %v2557 = vor.u32 %v2556, 8388608
    %v2558 = vsub.s32 0, %v2557
    %v2559 = vadd.s32 %v2554, 1
    %vm2560 = vcmp.gt.s32.totalorder %v2559, 0
    %v2561 = vsel %vm2560, %v2559, 0
    %v2562 = vshrl.u32 %v2561, 5
    %v2563 = vand.u32 %v2561, 31
    %v2564 = vsub.s32 32, %v2563
    %v2565 = vshrl.u32 683565275, %v2564
    %v2566 = vshll.u32 683565275, %v2563
    %v2567 = vshrl.u32 2475754826, %v2564
    %v2568 = vor.u32 %v2566, %v2567
    %v2569 = vshll.u32 2475754826, %v2563
    %v2570 = vshrl.u32 2131351028, %v2564
    %v2571 = vor.u32 %v2569, %v2570
    %v2572 = vshll.u32 2131351028, %v2563
    %v2573 = vshrl.u32 2102212464, %v2564
    %v2574 = vor.u32 %v2572, %v2573
    %v2575 = vshll.u32 2102212464, %v2563
    %v2576 = vshrl.u32 920167782, %v2564
    %v2577 = vor.u32 %v2575, %v2576
    %v2578 = vshll.u32 920167782, %v2563
    %v2579 = vshrl.u32 1326507024, %v2564
    %v2580 = vor.u32 %v2578, %v2579
    %vm2581 = vcmp.lt.s32.totalorder %v2562, 1
    %vm2582 = vcmp.lt.s32.totalorder %v2562, 2
    %vm2583 = vcmp.lt.s32.totalorder %v2562, 3
    %vm2584 = vcmp.lt.s32.totalorder %v2562, 4
    %v2585 = vsel %vm2581, %v2565, %v2568
    %v2586 = vsel %vm2584, %v2574, 2102212464
    %v2587 = vsel %vm2583, %v2571, %v2586
    %v2588 = vsel %vm2582, %v2585, %v2587
    %v2589 = vsel %vm2581, %v2568, %v2571
    %v2590 = vsel %vm2584, %v2577, 920167782
    %v2591 = vsel %vm2583, %v2574, %v2590
    %v2592 = vsel %vm2582, %v2589, %v2591
    %v2593 = vsel %vm2581, %v2571, %v2574
    %v2594 = vsel %vm2584, %v2580, 1326507024
    %v2595 = vsel %vm2583, %v2577, %v2594
    %v2596 = vsel %vm2582, %v2593, %v2595
    %v2597 = vshll.u32 %v2557, 8
    %v2598 = vmul.u32.u64.compose %v2597, %v2596
    %v2599 = vextract.low.u32 %v2598
    %v2600 = vextract.high.u32 %v2598
    %v2601 = vmul.u32.u64.compose %v2597, %v2592
    %v2602 = vextract.low.u32 %v2601
    %v2603 = vextract.high.u32 %v2601
    %v2604 = vmul.u32 %v2597, %v2588
    %v2605 = vadd.s32 %v2600, %v2602
    %vm2606 = vc.u32 %v2600, %v2602
    %v2607 = vadd.s32 %v2603, 1
    %v2608 = vsel %vm2606, %v2607, %v2603
    %v2609 = vadd.s32 %v2604, %v2608
    %v2610 = vadd.s32 %v2609, 536870912
    %v2611 = vshrl.u32 %v2610, 30
    %v2612 = vshll.u32 %v2611, 30
    %v2613 = vsub.s32 %v2609, %v2612
    %vm2614 = vcmp.lt.s32.totalorder %v2613, 0
    %v2615 = vsub.s32 0, %v2613
    %v2616 = vsel %vm2614, %v2615, %v2613
    %v2617 = vclz %v2616
    %v2618 = vsub.s32 %v2617, 2
    %vm2619 = vcmp.gt.s32.totalorder 0, %v2618
    %v2620 = vsel %vm2619, 0, %v2618
    %v2621 = vsub.s32 32, %v2620
    %v2622 = vshll.u32 %v2613, %v2620
    %v2623 = vshrl.u32 %v2605, %v2621
    %v2624 = vor.u32 %v2622, %v2623
    %v2625 = vsub.s32 4294967266, %v2620
    %v2626 = vadd.s32 %v2625, 127
    %v2627 = vshll.u32 %v2626, 23
    %v2628 = vor.u32 4788187, %v2627
    %v2629 = vand.u32 2147483647, %v2628
    %v2631 = vcvt.s32.f32 %v2624
    %v2632 = vmul.f32 %v2631, %v2629
    %v2633 = vxor.u32 %v2632, 2147483648
    %v2634 = vsel %vm2551, %v2633, %v2632
    %v2635 = vsub.s32 4, %v2611
    %v2636 = vsel %vm2551, %v2635, %v2611
    %v2637 = vsel %vm2550, %v59, %v2634
    %v2638 = vsel %vm2550, 0, %v2636
    %v2639 = vcosq.f32.pop %v2637
    %v2640 = vsinq.f32.pop %v2637
    %vm2641 = vweird.f32 %v59
    %v2642 = vand.u32 %v2638, 3
    %vm2643 = vcmp.lt.s32.totalorder %v2642, 2
    %vm2644 = vcmp.eq.s32.totalorder %v2642, 0
    %v2645 = vxor.u32 %v2640, 2147483648
    %v2646 = vsel %vm2644, %v2639, %v2645
    %vm2647 = vcmp.eq.s32.totalorder %v2642, 2
    %v2648 = vxor.u32 %v2639, 2147483648
    %v2649 = vsel %vm2647, %v2648, %v2640
    %v2650 = vsel %vm2643, %v2646, %v2649
    %v2651 = vsel %vm2641, nan, %v2650
    %v2652 = vand.u32 2147483647, %v60
    %vm2653 = vcmp.le.f32.partialorder %v2652, 0.7853982
    %vm2654 = vcmp.lt.s32.totalorder %v60, 0
    %v2655 = vand.u32 %v60, 2139095040
    %v2656 = vshrl.u32 %v2655, 23
    %v2657 = vsub.s32 %v2656, 127
    %v2658 = vand.u32 2147483647, %v60
    %v2659 = vand.u32 %v2658, 8388607
    %v2660 = vor.u32 %v2659, 8388608
    %v2661 = vsub.s32 0, %v2660
    %v2662 = vadd.s32 %v2657, 1
    %vm2663 = vcmp.gt.s32.totalorder %v2662, 0
    %v2664 = vsel %vm2663, %v2662, 0
    %v2665 = vshrl.u32 %v2664, 5
    %v2666 = vand.u32 %v2664, 31
    %v2667 = vsub.s32 32, %v2666
    %v2668 = vshrl.u32 683565275, %v2667
    %v2669 = vshll.u32 683565275, %v2666
    %v2670 = vshrl.u32 2475754826, %v2667
    %v2671 = vor.u32 %v2669, %v2670
    %v2672 = vshll.u32 2475754826, %v2666
    %v2673 = vshrl.u32 2131351028, %v2667
    %v2674 = vor.u32 %v2672, %v2673
    %v2675 = vshll.u32 2131351028, %v2666
    %v2676 = vshrl.u32 2102212464, %v2667
    %v2677 = vor.u32 %v2675, %v2676
    %v2678 = vshll.u32 2102212464, %v2666
    %v2679 = vshrl.u32 920167782, %v2667
    %v2680 = vor.u32 %v2678, %v2679
    %v2681 = vshll.u32 920167782, %v2666
    %v2682 = vshrl.u32 1326507024, %v2667
    %v2683 = vor.u32 %v2681, %v2682
    %vm2684 = vcmp.lt.s32.totalorder %v2665, 1
    %vm2685 = vcmp.lt.s32.totalorder %v2665, 2
    %vm2686 = vcmp.lt.s32.totalorder %v2665, 3
    %vm2687 = vcmp.lt.s32.totalorder %v2665, 4
    %v2688 = vsel %vm2684, %v2668, %v2671
    %v2689 = vsel %vm2687, %v2677, 2102212464
    %v2690 = vsel %vm2686, %v2674, %v2689
    %v2691 = vsel %vm2685, %v2688, %v2690
    %v2692 = vsel %vm2684, %v2671, %v2674
    %v2693 = vsel %vm2687, %v2680, 920167782
    %v2694 = vsel %vm2686, %v2677, %v2693
    %v2695 = vsel %vm2685, %v2692, %v2694
    %v2696 = vsel %vm2684, %v2674, %v2677
    %v2697 = vsel %vm2687, %v2683, 1326507024
    %v2698 = vsel %vm2686, %v2680, %v2697
    %v2699 = vsel %vm2685, %v2696, %v2698
    %v2700 = vshll.u32 %v2660, 8
    %v2701 = vmul.u32.u64.compose %v2700, %v2699
    %v2702 = vextract.low.u32 %v2701
    %v2703 = vextract.high.u32 %v2701
    %v2704 = vmul.u32.u64.compose %v2700, %v2695
    %v2705 = vextract.low.u32 %v2704
    %v2706 = vextract.high.u32 %v2704
    %v2707 = vmul.u32 %v2700, %v2691
    %v2708 = vadd.s32 %v2703, %v2705
    %vm2709 = vc.u32 %v2703, %v2705
    %v2710 = vadd.s32 %v2706, 1
    %v2711 = vsel %vm2709, %v2710, %v2706
    %v2712 = vadd.s32 %v2707, %v2711
    %v2713 = vadd.s32 %v2712, 536870912
    %v2714 = vshrl.u32 %v2713, 30
    %v2715 = vshll.u32 %v2714, 30
    %v2716 = vsub.s32 %v2712, %v2715
    %vm2717 = vcmp.lt.s32.totalorder %v2716, 0
    %v2718 = vsub.s32 0, %v2716
    %v2719 = vsel %vm2717, %v2718, %v2716
    %v2720 = vclz %v2719
    %v2721 = vsub.s32 %v2720, 2
    %vm2722 = vcmp.gt.s32.totalorder 0, %v2721
    %v2723 = vsel %vm2722, 0, %v2721
    %v2724 = vsub.s32 32, %v2723
    %v2725 = vshll.u32 %v2716, %v2723
    %v2726 = vshrl.u32 %v2708, %v2724
    %v2727 = vor.u32 %v2725, %v2726
    %v2728 = vsub.s32 4294967266, %v2723
    %v2729 = vadd.s32 %v2728, 127
    %v2730 = vshll.u32 %v2729, 23
    %v2731 = vor.u32 4788187, %v2730
    %v2732 = vand.u32 2147483647, %v2731
    %v2734 = vcvt.s32.f32 %v2727
    %v2735 = vmul.f32 %v2734, %v2732
    %v2736 = vxor.u32 %v2735, 2147483648
    %v2737 = vsel %vm2654, %v2736, %v2735
    %v2738 = vsub.s32 4, %v2714
    %v2739 = vsel %vm2654, %v2738, %v2714
    %v2740 = vsel %vm2653, %v60, %v2737
    %v2741 = vsel %vm2653, 0, %v2739
    %v2742 = vcosq.f32.pop %v2740
    %v2743 = vsinq.f32.pop %v2740
    %vm2744 = vweird.f32 %v60
    %v2745 = vand.u32 %v2741, 3
    %vm2746 = vcmp.lt.s32.totalorder %v2745, 2
    %vm2747 = vcmp.eq.s32.totalorder %v2745, 0
    %v2748 = vxor.u32 %v2743, 2147483648
    %v2749 = vsel %vm2747, %v2742, %v2748
    %vm2750 = vcmp.eq.s32.totalorder %v2745, 2
    %v2751 = vxor.u32 %v2742, 2147483648
    %v2752 = vsel %vm2750, %v2751, %v2743
    %v2753 = vsel %vm2746, %v2749, %v2752
    %v2754 = vsel %vm2744, nan, %v2753
    %v2755 = vand.u32 2147483647, %v61
    %vm2756 = vcmp.le.f32.partialorder %v2755, 0.7853982
    %vm2757 = vcmp.lt.s32.totalorder %v61, 0
    %v2758 = vand.u32 %v61, 2139095040
    %v2759 = vshrl.u32 %v2758, 23
    %v2760 = vsub.s32 %v2759, 127
    %v2761 = vand.u32 2147483647, %v61
    %v2762 = vand.u32 %v2761, 8388607
    %v2763 = vor.u32 %v2762, 8388608
    %v2764 = vsub.s32 0, %v2763
    %v2765 = vadd.s32 %v2760, 1
    %vm2766 = vcmp.gt.s32.totalorder %v2765, 0
    %v2767 = vsel %vm2766, %v2765, 0
    %v2768 = vshrl.u32 %v2767, 5
    %v2769 = vand.u32 %v2767, 31
    %v2770 = vsub.s32 32, %v2769
    %v2771 = vshrl.u32 683565275, %v2770
    %v2772 = vshll.u32 683565275, %v2769
    %v2773 = vshrl.u32 2475754826, %v2770
    %v2774 = vor.u32 %v2772, %v2773
    %v2775 = vshll.u32 2475754826, %v2769
    %v2776 = vshrl.u32 2131351028, %v2770
    %v2777 = vor.u32 %v2775, %v2776
    %v2778 = vshll.u32 2131351028, %v2769
    %v2779 = vshrl.u32 2102212464, %v2770
    %v2780 = vor.u32 %v2778, %v2779
    %v2781 = vshll.u32 2102212464, %v2769
    %v2782 = vshrl.u32 920167782, %v2770
    %v2783 = vor.u32 %v2781, %v2782
    %v2784 = vshll.u32 920167782, %v2769
    %v2785 = vshrl.u32 1326507024, %v2770
    %v2786 = vor.u32 %v2784, %v2785
    %vm2787 = vcmp.lt.s32.totalorder %v2768, 1
    %vm2788 = vcmp.lt.s32.totalorder %v2768, 2
    %vm2789 = vcmp.lt.s32.totalorder %v2768, 3
    %vm2790 = vcmp.lt.s32.totalorder %v2768, 4
    %v2791 = vsel %vm2787, %v2771, %v2774
    %v2792 = vsel %vm2790, %v2780, 2102212464
    %v2793 = vsel %vm2789, %v2777, %v2792
    %v2794 = vsel %vm2788, %v2791, %v2793
    %v2795 = vsel %vm2787, %v2774, %v2777
    %v2796 = vsel %vm2790, %v2783, 920167782
    %v2797 = vsel %vm2789, %v2780, %v2796
    %v2798 = vsel %vm2788, %v2795, %v2797
    %v2799 = vsel %vm2787, %v2777, %v2780
    %v2800 = vsel %vm2790, %v2786, 1326507024
    %v2801 = vsel %vm2789, %v2783, %v2800
    %v2802 = vsel %vm2788, %v2799, %v2801
    %v2803 = vshll.u32 %v2763, 8
    %v2804 = vmul.u32.u64.compose %v2803, %v2802
    %v2805 = vextract.low.u32 %v2804
    %v2806 = vextract.high.u32 %v2804
    %v2807 = vmul.u32.u64.compose %v2803, %v2798
    %v2808 = vextract.low.u32 %v2807
    %v2809 = vextract.high.u32 %v2807
    %v2810 = vmul.u32 %v2803, %v2794
    %v2811 = vadd.s32 %v2806, %v2808
    %vm2812 = vc.u32 %v2806, %v2808
    %v2813 = vadd.s32 %v2809, 1
    %v2814 = vsel %vm2812, %v2813, %v2809
    %v2815 = vadd.s32 %v2810, %v2814
    %v2816 = vadd.s32 %v2815, 536870912
    %v2817 = vshrl.u32 %v2816, 30
    %v2818 = vshll.u32 %v2817, 30
    %v2819 = vsub.s32 %v2815, %v2818
    %vm2820 = vcmp.lt.s32.totalorder %v2819, 0
    %v2821 = vsub.s32 0, %v2819
    %v2822 = vsel %vm2820, %v2821, %v2819
    %v2823 = vclz %v2822
    %v2824 = vsub.s32 %v2823, 2
    %vm2825 = vcmp.gt.s32.totalorder 0, %v2824
    %v2826 = vsel %vm2825, 0, %v2824
    %v2827 = vsub.s32 32, %v2826
    %v2828 = vshll.u32 %v2819, %v2826
    %v2829 = vshrl.u32 %v2811, %v2827
    %v2830 = vor.u32 %v2828, %v2829
    %v2831 = vsub.s32 4294967266, %v2826
    %v2832 = vadd.s32 %v2831, 127
    %v2833 = vshll.u32 %v2832, 23
    %v2834 = vor.u32 4788187, %v2833
    %v2835 = vand.u32 2147483647, %v2834
    %v2837 = vcvt.s32.f32 %v2830
    %v2838 = vmul.f32 %v2837, %v2835
    %v2839 = vxor.u32 %v2838, 2147483648
    %v2840 = vsel %vm2757, %v2839, %v2838
    %v2841 = vsub.s32 4, %v2817
    %v2842 = vsel %vm2757, %v2841, %v2817
    %v2843 = vsel %vm2756, %v61, %v2840
    %v2844 = vsel %vm2756, 0, %v2842
    %v2845 = vcosq.f32.pop %v2843
    %v2846 = vsinq.f32.pop %v2843
    %vm2847 = vweird.f32 %v61
    %v2848 = vand.u32 %v2844, 3
    %vm2849 = vcmp.lt.s32.totalorder %v2848, 2
    %vm2850 = vcmp.eq.s32.totalorder %v2848, 0
    %v2851 = vxor.u32 %v2846, 2147483648
    %v2852 = vsel %vm2850, %v2845, %v2851
    %vm2853 = vcmp.eq.s32.totalorder %v2848, 2
    %v2854 = vxor.u32 %v2845, 2147483648
    %v2855 = vsel %vm2853, %v2854, %v2846
    %v2856 = vsel %vm2849, %v2852, %v2855
    %v2857 = vsel %vm2847, nan, %v2856
    %v2858 = vand.u32 2147483647, %v62
    %vm2859 = vcmp.le.f32.partialorder %v2858, 0.7853982
    %vm2860 = vcmp.lt.s32.totalorder %v62, 0
    %v2861 = vand.u32 %v62, 2139095040
    %v2862 = vshrl.u32 %v2861, 23
    %v2863 = vsub.s32 %v2862, 127
    %v2864 = vand.u32 2147483647, %v62
    %v2865 = vand.u32 %v2864, 8388607
    %v2866 = vor.u32 %v2865, 8388608
    %v2867 = vsub.s32 0, %v2866
    %v2868 = vadd.s32 %v2863, 1
    %vm2869 = vcmp.gt.s32.totalorder %v2868, 0
    %v2870 = vsel %vm2869, %v2868, 0
    %v2871 = vshrl.u32 %v2870, 5
    %v2872 = vand.u32 %v2870, 31
    %v2873 = vsub.s32 32, %v2872
    %v2874 = vshrl.u32 683565275, %v2873
    %v2875 = vshll.u32 683565275, %v2872
    %v2876 = vshrl.u32 2475754826, %v2873
    %v2877 = vor.u32 %v2875, %v2876
    %v2878 = vshll.u32 2475754826, %v2872
    %v2879 = vshrl.u32 2131351028, %v2873
    %v2880 = vor.u32 %v2878, %v2879
    %v2881 = vshll.u32 2131351028, %v2872
    %v2882 = vshrl.u32 2102212464, %v2873
    %v2883 = vor.u32 %v2881, %v2882
    %v2884 = vshll.u32 2102212464, %v2872
    %v2885 = vshrl.u32 920167782, %v2873
    %v2886 = vor.u32 %v2884, %v2885
    %v2887 = vshll.u32 920167782, %v2872
    %v2888 = vshrl.u32 1326507024, %v2873
    %v2889 = vor.u32 %v2887, %v2888
    %vm2890 = vcmp.lt.s32.totalorder %v2871, 1
    %vm2891 = vcmp.lt.s32.totalorder %v2871, 2
    %vm2892 = vcmp.lt.s32.totalorder %v2871, 3
    %vm2893 = vcmp.lt.s32.totalorder %v2871, 4
    %v2894 = vsel %vm2890, %v2874, %v2877
    %v2895 = vsel %vm2893, %v2883, 2102212464
    %v2896 = vsel %vm2892, %v2880, %v2895
    %v2897 = vsel %vm2891, %v2894, %v2896
    %v2898 = vsel %vm2890, %v2877, %v2880
    %v2899 = vsel %vm2893, %v2886, 920167782
    %v2900 = vsel %vm2892, %v2883, %v2899
    %v2901 = vsel %vm2891, %v2898, %v2900
    %v2902 = vsel %vm2890, %v2880, %v2883
    %v2903 = vsel %vm2893, %v2889, 1326507024
    %v2904 = vsel %vm2892, %v2886, %v2903
    %v2905 = vsel %vm2891, %v2902, %v2904
    %v2906 = vshll.u32 %v2866, 8
    %v2907 = vmul.u32.u64.compose %v2906, %v2905
    %v2908 = vextract.low.u32 %v2907
    %v2909 = vextract.high.u32 %v2907
    %v2910 = vmul.u32.u64.compose %v2906, %v2901
    %v2911 = vextract.low.u32 %v2910
    %v2912 = vextract.high.u32 %v2910
    %v2913 = vmul.u32 %v2906, %v2897
    %v2914 = vadd.s32 %v2909, %v2911
    %vm2915 = vc.u32 %v2909, %v2911
    %v2916 = vadd.s32 %v2912, 1
    %v2917 = vsel %vm2915, %v2916, %v2912
    %v2918 = vadd.s32 %v2913, %v2917
    %v2919 = vadd.s32 %v2918, 536870912
    %v2920 = vshrl.u32 %v2919, 30
    %v2921 = vshll.u32 %v2920, 30
    %v2922 = vsub.s32 %v2918, %v2921
    %vm2923 = vcmp.lt.s32.totalorder %v2922, 0
    %v2924 = vsub.s32 0, %v2922
    %v2925 = vsel %vm2923, %v2924, %v2922
    %v2926 = vclz %v2925
    %v2927 = vsub.s32 %v2926, 2
    %vm2928 = vcmp.gt.s32.totalorder 0, %v2927
    %v2929 = vsel %vm2928, 0, %v2927
    %v2930 = vsub.s32 32, %v2929
    %v2931 = vshll.u32 %v2922, %v2929
    %v2932 = vshrl.u32 %v2914, %v2930
    %v2933 = vor.u32 %v2931, %v2932
    %v2934 = vsub.s32 4294967266, %v2929
    %v2935 = vadd.s32 %v2934, 127
    %v2936 = vshll.u32 %v2935, 23
    %v2937 = vor.u32 4788187, %v2936
    %v2938 = vand.u32 2147483647, %v2937
    %v2940 = vcvt.s32.f32 %v2933
    %v2941 = vmul.f32 %v2940, %v2938
    %v2942 = vxor.u32 %v2941, 2147483648
    %v2943 = vsel %vm2860, %v2942, %v2941
    %v2944 = vsub.s32 4, %v2920
    %v2945 = vsel %vm2860, %v2944, %v2920
    %v2946 = vsel %vm2859, %v62, %v2943
    %v2947 = vsel %vm2859, 0, %v2945
    %v2948 = vcosq.f32.pop %v2946
    %v2949 = vsinq.f32.pop %v2946
    %vm2950 = vweird.f32 %v62
    %v2951 = vand.u32 %v2947, 3
    %vm2952 = vcmp.lt.s32.totalorder %v2951, 2
    %vm2953 = vcmp.eq.s32.totalorder %v2951, 0
    %v2954 = vxor.u32 %v2949, 2147483648
    %v2955 = vsel %vm2953, %v2948, %v2954
    %vm2956 = vcmp.eq.s32.totalorder %v2951, 2
    %v2957 = vxor.u32 %v2948, 2147483648
    %v2958 = vsel %vm2956, %v2957, %v2949
    %v2959 = vsel %vm2952, %v2955, %v2958
    %v2960 = vsel %vm2950, nan, %v2959
    %v2961 = vmul.f32 %v166, %v166
    %v2962 = vmul.f32 %v270, %v270
    %v2963 = vmul.f32 %v374, %v374
    %v2964 = vmul.f32 %v478, %v478
    %v2965 = vmul.f32 %v582, %v582
    %v2966 = vmul.f32 %v686, %v686
    %v2967 = vmul.f32 %v790, %v790
    %v2968 = vmul.f32 %v894, %v894
    %v2969 = vmul.f32 %v998, %v998
    %v2970 = vmul.f32 %v1102, %v1102
    %v2971 = vmul.f32 %v1206, %v1206
    %v2972 = vmul.f32 %v1310, %v1310
    %v2973 = vmul.f32 %v1414, %v1414
    %v2974 = vmul.f32 %v1518, %v1518
    %v2975 = vmul.f32 %v166, 2.0
    %v2976 = vmul.f32 %v270, 2.0
    %v2977 = vmul.f32 %v374, 2.0
    %v2978 = vmul.f32 %v478, 2.0
    %v2979 = vmul.f32 %v582, 2.0
    %v2980 = vmul.f32 %v686, 2.0
    %v2981 = vmul.f32 %v790, 2.0
    %v2982 = vmul.f32 %v894, 2.0
    %v2983 = vmul.f32 %v998, 2.0
    %v2984 = vmul.f32 %v1102, 2.0
    %v2985 = vmul.f32 %v1206, 2.0
    %v2986 = vmul.f32 %v1310, 2.0
    %v2987 = vmul.f32 %v1414, 2.0
    %v2988 = vmul.f32 %v1518, 2.0
    %v2989 = vmul.f32 %v2975, %v1621
    %v2990 = vmul.f32 %v2976, %v1724
    %v2991 = vmul.f32 %v2977, %v1827
    %v2992 = vmul.f32 %v2978, %v1930
    %v2993 = vmul.f32 %v2979, %v2033
    %v2994 = vmul.f32 %v2980, %v2136
    %v2995 = vmul.f32 %v2981, %v2239
    %v2996 = vmul.f32 %v2982, %v2342
    %v2997 = vmul.f32 %v2983, %v2445
    %v2998 = vmul.f32 %v2984, %v2548
    %v2999 = vmul.f32 %v2985, %v2651
    %v3000 = vmul.f32 %v2986, %v2754
    %v3001 = vmul.f32 %v2987, %v2857
    %v3002 = vmul.f32 %v2988, %v2960
    %v3003 = vmul.f32 %v2961, 2.0
    %v3004 = vmul.f32 %v2962, 2.0
    %v3005 = vmul.f32 %v2963, 2.0
    %v3006 = vmul.f32 %v2964, 2.0
    %v3007 = vmul.f32 %v2965, 2.0
    %v3008 = vmul.f32 %v2966, 2.0
    %v3009 = vmul.f32 %v2967, 2.0
    %v3010 = vmul.f32 %v2968, 2.0
    %v3011 = vmul.f32 %v2969, 2.0
    %v3012 = vmul.f32 %v2970, 2.0
    %v3013 = vmul.f32 %v2971, 2.0
    %v3014 = vmul.f32 %v2972, 2.0
    %v3015 = vmul.f32 %v2973, 2.0
    %v3016 = vmul.f32 %v2974, 2.0
    %v3017 = vsub.f32 1.0, %v3003
    %v3018 = vsub.f32 1.0, %v3004
    %v3019 = vsub.f32 1.0, %v3005
    %v3020 = vsub.f32 1.0, %v3006
    %v3021 = vsub.f32 1.0, %v3007
    %v3022 = vsub.f32 1.0, %v3008
    %v3023 = vsub.f32 1.0, %v3009
    %v3024 = vsub.f32 1.0, %v3010
    %v3025 = vsub.f32 1.0, %v3011
    %v3026 = vsub.f32 1.0, %v3012
    %v3027 = vsub.f32 1.0, %v3013
    %v3028 = vsub.f32 1.0, %v3014
    %v3029 = vsub.f32 1.0, %v3015
    %v3030 = vsub.f32 1.0, %v3016
    %v3031 = vmul.f32 %v2961, 4.0
    %v3032 = vmul.f32 %v2962, 4.0
    %v3033 = vmul.f32 %v2963, 4.0
    %v3034 = vmul.f32 %v2964, 4.0
    %v3035 = vmul.f32 %v2965, 4.0
    %v3036 = vmul.f32 %v2966, 4.0
    %v3037 = vmul.f32 %v2967, 4.0
    %v3038 = vmul.f32 %v2968, 4.0
    %v3039 = vmul.f32 %v2969, 4.0
    %v3040 = vmul.f32 %v2970, 4.0
    %v3041 = vmul.f32 %v2971, 4.0
    %v3042 = vmul.f32 %v2972, 4.0
    %v3043 = vmul.f32 %v2973, 4.0
    %v3044 = vmul.f32 %v2974, 4.0
    %v3045 = vsub.f32 3.0, %v3031
    %v3046 = vsub.f32 3.0, %v3032
    %v3047 = vsub.f32 3.0, %v3033
    %v3048 = vsub.f32 3.0, %v3034
    %v3049 = vsub.f32 3.0, %v3035
    %v3050 = vsub.f32 3.0, %v3036
    %v3051 = vsub.f32 3.0, %v3037
    %v3052 = vsub.f32 3.0, %v3038
    %v3053 = vsub.f32 3.0, %v3039
    %v3054 = vsub.f32 3.0, %v3040
    %v3055 = vsub.f32 3.0, %v3041
    %v3056 = vsub.f32 3.0, %v3042
    %v3057 = vsub.f32 3.0, %v3043
    %v3058 = vsub.f32 3.0, %v3044
    %v3059 = vmul.f32 %v166, %v3045
    %v3060 = vmul.f32 %v270, %v3046
    %v3061 = vmul.f32 %v374, %v3047
    %v3062 = vmul.f32 %v478, %v3048
    %v3063 = vmul.f32 %v582, %v3049
    %v3064 = vmul.f32 %v686, %v3050
    %v3065 = vmul.f32 %v790, %v3051
    %v3066 = vmul.f32 %v894, %v3052
    %v3067 = vmul.f32 %v998, %v3053
    %v3068 = vmul.f32 %v1102, %v3054
    %v3069 = vmul.f32 %v1206, %v3055
    %v3070 = vmul.f32 %v1310, %v3056
    %v3071 = vmul.f32 %v1414, %v3057
    %v3072 = vmul.f32 %v1518, %v3058
    %v3073 = vmul.f32 %v1621, %v1621
    %v3074 = vmul.f32 %v1724, %v1724
    %v3075 = vmul.f32 %v1827, %v1827
    %v3076 = vmul.f32 %v1930, %v1930
    %v3077 = vmul.f32 %v2033, %v2033
    %v3078 = vmul.f32 %v2136, %v2136
    %v3079 = vmul.f32 %v2239, %v2239
    %v3080 = vmul.f32 %v2342, %v2342
    %v3081 = vmul.f32 %v2445, %v2445
    %v3082 = vmul.f32 %v2548, %v2548
    %v3083 = vmul.f32 %v2651, %v2651
    %v3084 = vmul.f32 %v2754, %v2754
    %v3085 = vmul.f32 %v2857, %v2857
    %v3086 = vmul.f32 %v2960, %v2960
    %v3087 = vmul.f32 %v3073, 4.0
    %v3088 = vmul.f32 %v3074, 4.0
    %v3089 = vmul.f32 %v3075, 4.0
    %v3090 = vmul.f32 %v3076, 4.0
    %v3091 = vmul.f32 %v3077, 4.0
    %v3092 = vmul.f32 %v3078, 4.0
    %v3093 = vmul.f32 %v3079, 4.0
    %v3094 = vmul.f32 %v3080, 4.0
    %v3095 = vmul.f32 %v3081, 4.0
    %v3096 = vmul.f32 %v3082, 4.0
    %v3097 = vmul.f32 %v3083, 4.0
    %v3098 = vmul.f32 %v3084, 4.0
    %v3099 = vmul.f32 %v3085, 4.0
    %v3100 = vmul.f32 %v3086, 4.0
    %v3101 = vsub.f32 %v3087, 3.0
    %v3102 = vsub.f32 %v3088, 3.0
    %v3103 = vsub.f32 %v3089, 3.0
    %v3104 = vsub.f32 %v3090, 3.0
    %v3105 = vsub.f32 %v3091, 3.0
    %v3106 = vsub.f32 %v3092, 3.0
    %v3107 = vsub.f32 %v3093, 3.0
    %v3108 = vsub.f32 %v3094, 3.0
    %v3109 = vsub.f32 %v3095, 3.0
    %v3110 = vsub.f32 %v3096, 3.0
    %v3111 = vsub.f32 %v3097, 3.0
    %v3112 = vsub.f32 %v3098, 3.0
    %v3113 = vsub.f32 %v3099, 3.0
    %v3114 = vsub.f32 %v3100, 3.0
    %v3115 = vmul.f32 %v1621, %v3101
    %v3116 = vmul.f32 %v1724, %v3102
    %v3117 = vmul.f32 %v1827, %v3103
    %v3118 = vmul.f32 %v1930, %v3104
    %v3119 = vmul.f32 %v2033, %v3105
    %v3120 = vmul.f32 %v2136, %v3106
    %v3121 = vmul.f32 %v2239, %v3107
    %v3122 = vmul.f32 %v2342, %v3108
    %v3123 = vmul.f32 %v2445, %v3109
    %v3124 = vmul.f32 %v2548, %v3110
    %v3125 = vmul.f32 %v2651, %v3111
    %v3126 = vmul.f32 %v2754, %v3112
    %v3127 = vmul.f32 %v2857, %v3113
    %v3128 = vmul.f32 %v2960, %v3114
    %v3129 = vpack.c.bf16 %v894, %v166
    %v3130 = vpack.c.bf16 %v998, %v270
    %v3131 = vpack.c.bf16 %v1102, %v374
    %v3132 = vpack.c.bf16 %v1206, %v478
    %v3133 = vpack.c.bf16 %v1310, %v582
    %v3134 = vpack.c.bf16 %v1414, %v686
    %v3135 = vpack.c.bf16 %v1518, %v790
    %v3136 = vpack.c.bf16 %v2996, %v2989
    %v3137 = vpack.c.bf16 %v2997, %v2990
    %v3138 = vpack.c.bf16 %v2998, %v2991
    %v3139 = vpack.c.bf16 %v2999, %v2992
    %v3140 = vpack.c.bf16 %v3000, %v2993
    %v3141 = vpack.c.bf16 %v3001, %v2994
    %v3142 = vpack.c.bf16 %v3002, %v2995
    %v3143 = vpack.c.bf16 %v3066, %v3059
    %v3144 = vpack.c.bf16 %v3067, %v3060
    %v3145 = vpack.c.bf16 %v3068, %v3061
    %v3146 = vpack.c.bf16 %v3069, %v3062
    %v3147 = vpack.c.bf16 %v3070, %v3063
    %v3148 = vpack.c.bf16 %v3071, %v3064
    %v3149 = vpack.c.bf16 %v3072, %v3065
    %v3150 = vpack.c.bf16 %v2342, %v1621
    %v3151 = vpack.c.bf16 %v2445, %v1724
    %v3152 = vpack.c.bf16 %v2548, %v1827
    %v3153 = vpack.c.bf16 %v2651, %v1930
    %v3154 = vpack.c.bf16 %v2754, %v2033
    %v3155 = vpack.c.bf16 %v2857, %v2136
    %v3156 = vpack.c.bf16 %v2960, %v2239
    %v3157 = vpack.c.bf16 %v3024, %v3017
    %v3158 = vpack.c.bf16 %v3025, %v3018
    %v3159 = vpack.c.bf16 %v3026, %v3019
    %v3160 = vpack.c.bf16 %v3027, %v3020
    %v3161 = vpack.c.bf16 %v3028, %v3021
    %v3162 = vpack.c.bf16 %v3029, %v3022
    %v3163 = vpack.c.bf16 %v3030, %v3023
    %v3164 = vpack.c.bf16 %v3122, %v3115
    %v3165 = vpack.c.bf16 %v3123, %v3116
    %v3166 = vpack.c.bf16 %v3124, %v3117
    %v3167 = vpack.c.bf16 %v3125, %v3118
    %v3168 = vpack.c.bf16 %v3126, %v3119
    %v3169 = vpack.c.bf16 %v3127, %v3120
    %v3170 = vpack.c.bf16 %v3128, %v3121
    %v3171 = vld [vmem:[%s1] sm:$0xf]
    %v3172 = vld [vmem:[%s1 + $0x4] sm:$0xf]
    %v3173 = vld [vmem:[%s1 + $0x8] sm:$0xf]
    %v3174 = vld [vmem:[%s1 + $0xc] sm:$0xf]
    %v3175 = vld [vmem:[%s1 + $0x10] sm:$0xf]
    %v3176 = vld [vmem:[%s1 + $0x14] sm:$0xf]
    %v3177 = vld [vmem:[%s1 + $0x18] sm:$0xf]
    %v3178 = vld [vmem:[%s1 + $0x1c] sm:$0xf]
    %v3179 = vld [vmem:[%s1 + $0x20] sm:$0xf]
    %v3180 = vld [vmem:[%s1 + $0x24] sm:$0xf]
    %v3181 = vld [vmem:[%s1 + $0x28] sm:$0xf]
    %v3182 = vld [vmem:[%s1 + $0x2c] sm:$0xf]
    %v3183 = vld [vmem:[%s1 + $0x30] sm:$0xf]
    %v3184 = vld [vmem:[%s1 + $0x34] sm:$0xf]
    %v3185 = vld [vmem:[%s1 + $0x38] sm:$0xf]
    %v3186 = vld [vmem:[%s1 + $0x3c] sm:$0xf]
    %v3187 = vld [vmem:[%s1 + $0x40] sm:$0xf]
    %v3188 = vld [vmem:[%s1 + $0x44] sm:$0xf]
    %v3189 = vld [vmem:[%s1 + $0x48] sm:$0xf]
    %v3190 = vld [vmem:[%s1 + $0x4c] sm:$0xf]
    %v3191 = vld [vmem:[%s1 + $0x50] sm:$0xf]
    %v3192 = vld [vmem:[%s1 + $0x54] sm:$0xf]
    %v3193 = vld [vmem:[%s1 + $0x58] sm:$0xf]
    %v3194 = vld [vmem:[%s1 + $0x5c] sm:$0xf]
    %v3195 = vld [vmem:[%s1 + $0x60] sm:$0xf]
    %v3196 = vld [vmem:[%s1 + $0x64] sm:$0xf]
    %v3197 = vld [vmem:[%s1 + $0x68] sm:$0xf]
    %v3198 = vld [vmem:[%s1 + $0x6c] sm:$0xf]
    %v3199 = vld [vmem:[%s1 + $0x70] sm:$0xf]
    %v3200 = vld [vmem:[%s1 + $0x74] sm:$0xf]
    %v3201 = vld [vmem:[%s1 + $0x78] sm:$0xf]
    %v3202 = vld [vmem:[%s1 + $0x7c] sm:$0xf]
    %v3203 = vld [vmem:[%s1 + $0x80] sm:$0xf]
    %v3204 = vld [vmem:[%s1 + $0x84] sm:$0xf]
    %v3205 = vld [vmem:[%s1 + $0x88] sm:$0xf]
    %v3206 = vld [vmem:[%s1 + $0x8c] sm:$0xf]
    %v3207 = vld [vmem:[%s1 + $0x90] sm:$0xf]
    %v3208 = vld [vmem:[%s1 + $0x94] sm:$0xf]
    %v3209 = vld [vmem:[%s1 + $0x98] sm:$0xf]
    %v3210 = vld [vmem:[%s1 + $0x9c] sm:$0xf]
    %v3211 = vld [vmem:[%s1 + $0xa0] sm:$0xf]
    %v3212 = vld [vmem:[%s1 + $0xa4] sm:$0xf]
    %v3213 = vld [vmem:[%s1 + $0xa8] sm:$0xf]
    %v3214 = vld [vmem:[%s1 + $0xac] sm:$0xf]
    %v3215 = vld [vmem:[%s1 + $0xb0] sm:$0xf]
    %v3216 = vld [vmem:[%s1 + $0xb4] sm:$0xf]
    %v3217 = vld [vmem:[%s1 + $0xb8] sm:$0xf]
    %v3218 = vld [vmem:[%s1 + $0xbc] sm:$0xf]
    %v3219 = vld [vmem:[%s1 + $0xc0] sm:$0xf]
    %v3220 = vld [vmem:[%s1 + $0xc4] sm:$0xf]
    %v3221 = vld [vmem:[%s1 + $0xc8] sm:$0xf]
    %v3222 = vld [vmem:[%s1 + $0xcc] sm:$0xf]
    %v3223 = vld [vmem:[%s1 + $0xd0] sm:$0xf]
    %v3224 = vld [vmem:[%s1 + $0xd4] sm:$0xf]
    %v3225 = vld [vmem:[%s1 + $0xd8] sm:$0xf]
    %v3226 = vld [vmem:[%s1 + $0xdc] sm:$0xf]
    %v3227 = vld [vmem:[%s1 + $0xe0] sm:$0xf]
    %v3228 = vld [vmem:[%s1 + $0xe4] sm:$0xf]
    %v3229 = vld [vmem:[%s1 + $0xe8] sm:$0xf]
    %v3230 = vld [vmem:[%s1 + $0xec] sm:$0xf]
    %v3231 = vld [vmem:[%s1 + $0xf0] sm:$0xf]
    %v3232 = vld [vmem:[%s1 + $0xf4] sm:$0xf]
    %v3233 = vld [vmem:[%s1 + $0xf8] sm:$0xf]
    %v3234 = vld [vmem:[%s1 + $0xfc] sm:$0xf]
    %v3235 = vld [vmem:[%s1 + $0x100] sm:$0xf]
    %v3236 = vld [vmem:[%s1 + $0x104] sm:$0xf]
    %v3237 = vld [vmem:[%s1 + $0x108] sm:$0xf]
    %v3238 = vld [vmem:[%s1 + $0x10c] sm:$0xf]
    %v3239 = vld [vmem:[%s1 + $0x110] sm:$0xf]
    %v3240 = vld [vmem:[%s1 + $0x114] sm:$0xf]
    %v3241 = vld [vmem:[%s1 + $0x118] sm:$0xf]
    %v3242 = vld [vmem:[%s1 + $0x11c] sm:$0xf]
    %v3243 = vld [vmem:[%s1 + $0x120] sm:$0xf]
    %v3244 = vld [vmem:[%s1 + $0x124] sm:$0xf]
    %v3245 = vld [vmem:[%s1 + $0x128] sm:$0xf]
    %v3246 = vld [vmem:[%s1 + $0x12c] sm:$0xf]
    %v3247 = vld [vmem:[%s1 + $0x130] sm:$0xf]
    %v3248 = vld [vmem:[%s1 + $0x134] sm:$0xf]
    %v3249 = vld [vmem:[%s1 + $0x138] sm:$0xf]
    %v3250 = vld [vmem:[%s1 + $0x13c] sm:$0xf]
    %v3251 = vld [vmem:[%s1 + $0x140] sm:$0xf]
    %v3252 = vld [vmem:[%s1 + $0x144] sm:$0xf]
    %v3253 = vld [vmem:[%s1 + $0x148] sm:$0xf]
    %v3254 = vld [vmem:[%s1 + $0x14c] sm:$0xf]
    %v3255 = vld [vmem:[%s1 + $0x150] sm:$0xf]
    %v3256 = vld [vmem:[%s1 + $0x154] sm:$0xf]
    %v3257 = vld [vmem:[%s1 + $0x158] sm:$0xf]
    %v3258 = vld [vmem:[%s1 + $0x15c] sm:$0xf]
    %v3259 = vld [vmem:[%s1 + $0x160] sm:$0xf]
    %v3260 = vld [vmem:[%s1 + $0x164] sm:$0xf]
    %v3261 = vld [vmem:[%s1 + $0x168] sm:$0xf]
    %v3262 = vld [vmem:[%s1 + $0x16c] sm:$0xf]
    %v3263 = vld [vmem:[%s1 + $0x170] sm:$0xf]
    %v3264 = vld [vmem:[%s1 + $0x174] sm:$0xf]
    %v3265 = vld [vmem:[%s1 + $0x178] sm:$0xf]
    %v3266 = vld [vmem:[%s1 + $0x17c] sm:$0xf]
    %v3267 = vld [vmem:[%s1 + $0x180] sm:$0xf]
    %v3268 = vld [vmem:[%s1 + $0x184] sm:$0xf]
    %v3269 = vld [vmem:[%s2] sm:$0xf]
    %v3270 = vld [vmem:[%s2 + $0x4] sm:$0xf]
    %v3271 = vld [vmem:[%s2 + $0x8] sm:$0xf]
    %v3272 = vld [vmem:[%s2 + $0xc] sm:$0xf]
    %v3273 = vld [vmem:[%s2 + $0x10] sm:$0xf]
    %v3274 = vld [vmem:[%s2 + $0x14] sm:$0xf]
    %v3275 = vld [vmem:[%s2 + $0x18] sm:$0xf]
    %v3276 = vld [vmem:[%s2 + $0x1c] sm:$0xf]
    %v3277 = vld [vmem:[%s2 + $0x20] sm:$0xf]
    %v3278 = vld [vmem:[%s2 + $0x24] sm:$0xf]
    %v3279 = vld [vmem:[%s2 + $0x28] sm:$0xf]
    %v3280 = vld [vmem:[%s2 + $0x2c] sm:$0xf]
    %v3281 = vld [vmem:[%s2 + $0x30] sm:$0xf]
    %v3282 = vld [vmem:[%s2 + $0x34] sm:$0xf]
    %v3283 = vld [vmem:[%s2 + $0x38] sm:$0xf]
    %v3284 = vld [vmem:[%s2 + $0x3c] sm:$0xf]
    %v3285 = vld [vmem:[%s2 + $0x40] sm:$0xf]
    %v3286 = vld [vmem:[%s2 + $0x44] sm:$0xf]
    %v3287 = vld [vmem:[%s2 + $0x48] sm:$0xf]
    %v3288 = vld [vmem:[%s2 + $0x4c] sm:$0xf]
    %v3289 = vld [vmem:[%s2 + $0x50] sm:$0xf]
    %v3290 = vld [vmem:[%s2 + $0x54] sm:$0xf]
    %v3291 = vld [vmem:[%s2 + $0x58] sm:$0xf]
    %v3292 = vld [vmem:[%s2 + $0x5c] sm:$0xf]
    %v3293 = vld [vmem:[%s2 + $0x60] sm:$0xf]
    %v3294 = vld [vmem:[%s2 + $0x64] sm:$0xf]
    %v3295 = vld [vmem:[%s2 + $0x68] sm:$0xf]
    %v3296 = vld [vmem:[%s2 + $0x6c] sm:$0xf]
    %v3297 = vld [vmem:[%s2 + $0x70] sm:$0xf]
    %v3298 = vld [vmem:[%s2 + $0x74] sm:$0xf]
    %v3299 = vld [vmem:[%s2 + $0x78] sm:$0xf]
    %v3300 = vld [vmem:[%s2 + $0x7c] sm:$0xf]
    %v3301 = vld [vmem:[%s2 + $0x80] sm:$0xf]
    %v3302 = vld [vmem:[%s2 + $0x84] sm:$0xf]
    %v3303 = vld [vmem:[%s2 + $0x88] sm:$0xf]
    %v3304 = vld [vmem:[%s2 + $0x8c] sm:$0xf]
    %v3305 = vld [vmem:[%s2 + $0x90] sm:$0xf]
    %v3306 = vld [vmem:[%s2 + $0x94] sm:$0xf]
    %v3307 = vld [vmem:[%s2 + $0x98] sm:$0xf]
    %v3308 = vld [vmem:[%s2 + $0x9c] sm:$0xf]
    %v3309 = vld [vmem:[%s2 + $0xa0] sm:$0xf]
    %v3310 = vld [vmem:[%s2 + $0xa4] sm:$0xf]
    %v3311 = vld [vmem:[%s2 + $0xa8] sm:$0xf]
    %v3312 = vld [vmem:[%s2 + $0xac] sm:$0xf]
    %v3313 = vld [vmem:[%s2 + $0xb0] sm:$0xf]
    %v3314 = vld [vmem:[%s2 + $0xb4] sm:$0xf]
    %v3315 = vld [vmem:[%s2 + $0xb8] sm:$0xf]
    %v3316 = vld [vmem:[%s2 + $0xbc] sm:$0xf]
    %v3317 = vld [vmem:[%s2 + $0xc0] sm:$0xf]
    %v3318 = vld [vmem:[%s2 + $0xc4] sm:$0xf]
    %v3319 = vld [vmem:[%s2 + $0xc8] sm:$0xf]
    %v3320 = vld [vmem:[%s2 + $0xcc] sm:$0xf]
    %v3321 = vld [vmem:[%s2 + $0xd0] sm:$0xf]
    %v3322 = vld [vmem:[%s2 + $0xd4] sm:$0xf]
    %v3323 = vld [vmem:[%s2 + $0xd8] sm:$0xf]
    %v3324 = vld [vmem:[%s2 + $0xdc] sm:$0xf]
    %v3325 = vld [vmem:[%s2 + $0xe0] sm:$0xf]
    %v3326 = vld [vmem:[%s2 + $0xe4] sm:$0xf]
    %v3327 = vld [vmem:[%s2 + $0xe8] sm:$0xf]
    %v3328 = vld [vmem:[%s2 + $0xec] sm:$0xf]
    %v3329 = vld [vmem:[%s2 + $0xf0] sm:$0xf]
    %v3330 = vld [vmem:[%s2 + $0xf4] sm:$0xf]
    %v3331 = vld [vmem:[%s2 + $0xf8] sm:$0xf]
    %v3332 = vld [vmem:[%s2 + $0xfc] sm:$0xf]
    %v3333 = vld [vmem:[%s2 + $0x100] sm:$0xf]
    %v3334 = vld [vmem:[%s2 + $0x104] sm:$0xf]
    %v3335 = vld [vmem:[%s2 + $0x108] sm:$0xf]
    %v3336 = vld [vmem:[%s2 + $0x10c] sm:$0xf]
    %v3337 = vld [vmem:[%s2 + $0x110] sm:$0xf]
    %v3338 = vld [vmem:[%s2 + $0x114] sm:$0xf]
    %v3339 = vld [vmem:[%s2 + $0x118] sm:$0xf]
    %v3340 = vld [vmem:[%s2 + $0x11c] sm:$0xf]
    %v3341 = vld [vmem:[%s2 + $0x120] sm:$0xf]
    %v3342 = vld [vmem:[%s2 + $0x124] sm:$0xf]
    %v3343 = vld [vmem:[%s2 + $0x128] sm:$0xf]
    %v3344 = vld [vmem:[%s2 + $0x12c] sm:$0xf]
    %v3345 = vld [vmem:[%s2 + $0x130] sm:$0xf]
    %v3346 = vld [vmem:[%s2 + $0x134] sm:$0xf]
    %v3347 = vld [vmem:[%s2 + $0x138] sm:$0xf]
    %v3348 = vld [vmem:[%s2 + $0x13c] sm:$0xf]
    %v3349 = vld [vmem:[%s2 + $0x140] sm:$0xf]
    %v3350 = vld [vmem:[%s2 + $0x144] sm:$0xf]
    %v3351 = vld [vmem:[%s2 + $0x148] sm:$0xf]
    %v3352 = vld [vmem:[%s2 + $0x14c] sm:$0xf]
    %v3353 = vld [vmem:[%s2 + $0x150] sm:$0xf]
    %v3354 = vld [vmem:[%s2 + $0x154] sm:$0xf]
    %v3355 = vld [vmem:[%s2 + $0x158] sm:$0xf]
    %v3356 = vld [vmem:[%s2 + $0x15c] sm:$0xf]
    %v3357 = vld [vmem:[%s2 + $0x160] sm:$0xf]
    %v3358 = vld [vmem:[%s2 + $0x164] sm:$0xf]
    %v3359 = vld [vmem:[%s2 + $0x168] sm:$0xf]
    %v3360 = vld [vmem:[%s2 + $0x16c] sm:$0xf]
    %v3361 = vld [vmem:[%s2 + $0x170] sm:$0xf]
    %v3362 = vld [vmem:[%s2 + $0x174] sm:$0xf]
    %v3363 = vld [vmem:[%s2 + $0x178] sm:$0xf]
    %v3364 = vld [vmem:[%s2 + $0x17c] sm:$0xf]
    %v3365 = vld [vmem:[%s2 + $0x180] sm:$0xf]
    %v3366 = vld [vmem:[%s2 + $0x184] sm:$0xf]
    %v3465 = vunpack.c.l.b16 %v3269
    %v3466 = vunpack.c.l.b16 %v3270
    %v3467 = vunpack.c.l.b16 %v3271
    %v3468 = vunpack.c.l.b16 %v3272
    %v3469 = vunpack.c.l.b16 %v3273
    %v3470 = vunpack.c.l.b16 %v3274
    %v3471 = vunpack.c.l.b16 %v3275
    %v3472 = vunpack.c.l.b16 %v3276
    %v3473 = vunpack.c.l.b16 %v3277
    %v3474 = vunpack.c.l.b16 %v3278
    %v3475 = vunpack.c.l.b16 %v3279
    %v3476 = vunpack.c.l.b16 %v3280
    %v3477 = vunpack.c.l.b16 %v3281
    %v3478 = vunpack.c.l.b16 %v3282
    %v3479 = vunpack.c.l.b16 %v3283
    %v3480 = vunpack.c.l.b16 %v3284
    %v3481 = vunpack.c.l.b16 %v3285
    %v3482 = vunpack.c.l.b16 %v3286
    %v3483 = vunpack.c.l.b16 %v3287
    %v3484 = vunpack.c.l.b16 %v3288
    %v3485 = vunpack.c.l.b16 %v3289
    %v3486 = vunpack.c.l.b16 %v3290
    %v3487 = vunpack.c.l.b16 %v3291
    %v3488 = vunpack.c.l.b16 %v3292
    %v3489 = vunpack.c.l.b16 %v3293
    %v3490 = vunpack.c.l.b16 %v3294
    %v3491 = vunpack.c.l.b16 %v3295
    %v3492 = vunpack.c.l.b16 %v3296
    %v3493 = vunpack.c.l.b16 %v3297
    %v3494 = vunpack.c.l.b16 %v3298
    %v3495 = vunpack.c.l.b16 %v3299
    %v3496 = vunpack.c.l.b16 %v3300
    %v3497 = vunpack.c.l.b16 %v3301
    %v3498 = vunpack.c.l.b16 %v3302
    %v3499 = vunpack.c.l.b16 %v3303
    %v3500 = vunpack.c.l.b16 %v3304
    %v3501 = vunpack.c.l.b16 %v3305
    %v3502 = vunpack.c.l.b16 %v3306
    %v3503 = vunpack.c.l.b16 %v3307
    %v3504 = vunpack.c.l.b16 %v3308
    %v3505 = vunpack.c.l.b16 %v3309
    %v3506 = vunpack.c.l.b16 %v3310
    %v3507 = vunpack.c.l.b16 %v3311
    %v3508 = vunpack.c.l.b16 %v3312
    %v3509 = vunpack.c.l.b16 %v3313
    %v3510 = vunpack.c.l.b16 %v3314
    %v3511 = vunpack.c.l.b16 %v3315
    %v3512 = vunpack.c.l.b16 %v3316
    %v3513 = vunpack.c.l.b16 %v3317
    %v3514 = vunpack.c.l.b16 %v3318
    %v3515 = vunpack.c.l.b16 %v3319
    %v3516 = vunpack.c.l.b16 %v3320
    %v3517 = vunpack.c.l.b16 %v3321
    %v3518 = vunpack.c.l.b16 %v3322
    %v3519 = vunpack.c.l.b16 %v3323
    %v3520 = vunpack.c.l.b16 %v3324
    %v3521 = vunpack.c.l.b16 %v3325
    %v3522 = vunpack.c.l.b16 %v3326
    %v3523 = vunpack.c.l.b16 %v3327
    %v3524 = vunpack.c.l.b16 %v3328
    %v3525 = vunpack.c.l.b16 %v3329
    %v3526 = vunpack.c.l.b16 %v3330
    %v3527 = vunpack.c.l.b16 %v3331
    %v3528 = vunpack.c.l.b16 %v3332
    %v3529 = vunpack.c.l.b16 %v3333
    %v3530 = vunpack.c.l.b16 %v3334
    %v3531 = vunpack.c.l.b16 %v3335
    %v3532 = vunpack.c.l.b16 %v3336
    %v3533 = vunpack.c.l.b16 %v3337
    %v3534 = vunpack.c.l.b16 %v3338
    %v3535 = vunpack.c.l.b16 %v3339
    %v3536 = vunpack.c.l.b16 %v3340
    %v3537 = vunpack.c.l.b16 %v3341
    %v3538 = vunpack.c.l.b16 %v3342
    %v3539 = vunpack.c.l.b16 %v3343
    %v3540 = vunpack.c.l.b16 %v3344
    %v3541 = vunpack.c.l.b16 %v3345
    %v3542 = vunpack.c.l.b16 %v3346
    %v3543 = vunpack.c.l.b16 %v3347
    %v3544 = vunpack.c.l.b16 %v3348
    %v3545 = vunpack.c.l.b16 %v3349
    %v3546 = vunpack.c.l.b16 %v3350
    %v3547 = vunpack.c.l.b16 %v3351
    %v3548 = vunpack.c.l.b16 %v3352
    %v3549 = vunpack.c.l.b16 %v3353
    %v3550 = vunpack.c.l.b16 %v3354
    %v3551 = vunpack.c.l.b16 %v3355
    %v3552 = vunpack.c.l.b16 %v3356
    %v3553 = vunpack.c.l.b16 %v3357
    %v3554 = vunpack.c.l.b16 %v3358
    %v3555 = vunpack.c.l.b16 %v3359
    %v3556 = vunpack.c.l.b16 %v3360
    %v3557 = vunpack.c.l.b16 %v3361
    %v3558 = vunpack.c.l.b16 %v3362
    %v3559 = vunpack.c.l.b16 %v3363
    %v3560 = vunpack.c.l.b16 %v3364
    %v3561 = vunpack.c.l.b16 %v3365
    %v3562 = vunpack.c.l.b16 %v3366
    %v3563 = vpack.c.b16 %v3466, %v3465
    %v3564 = vpack.c.b16 %v3468, %v3467
    %v3565 = vpack.c.b16 %v3470, %v3469
    %v3566 = vpack.c.b16 %v3472, %v3471
    %v3567 = vpack.c.b16 %v3474, %v3473
    %v3568 = vpack.c.b16 %v3476, %v3475
    %v3569 = vpack.c.b16 %v3478, %v3477
    %v3570 = vpack.c.b16 %v3480, %v3479
    %v3571 = vpack.c.b16 %v3482, %v3481
    %v3572 = vpack.c.b16 %v3484, %v3483
    %v3573 = vpack.c.b16 %v3486, %v3485
    %v3574 = vpack.c.b16 %v3488, %v3487
    %v3575 = vpack.c.b16 %v3490, %v3489
    %v3576 = vpack.c.b16 %v3492, %v3491
    %v3577 = vpack.c.b16 %v3494, %v3493
    %v3578 = vpack.c.b16 %v3496, %v3495
    %v3579 = vpack.c.b16 %v3498, %v3497
    %v3580 = vpack.c.b16 %v3500, %v3499
    %v3581 = vpack.c.b16 %v3502, %v3501
    %v3582 = vpack.c.b16 %v3504, %v3503
    %v3583 = vpack.c.b16 %v3506, %v3505
    %v3584 = vpack.c.b16 %v3508, %v3507
    %v3585 = vpack.c.b16 %v3510, %v3509
    %v3586 = vpack.c.b16 %v3512, %v3511
    %v3587 = vpack.c.b16 %v3514, %v3513
    %v3588 = vpack.c.b16 %v3516, %v3515
    %v3589 = vpack.c.b16 %v3518, %v3517
    %v3590 = vpack.c.b16 %v3520, %v3519
    %v3591 = vpack.c.b16 %v3522, %v3521
    %v3592 = vpack.c.b16 %v3524, %v3523
    %v3593 = vpack.c.b16 %v3526, %v3525
    %v3594 = vpack.c.b16 %v3528, %v3527
    %v3595 = vpack.c.b16 %v3530, %v3529
    %v3596 = vpack.c.b16 %v3532, %v3531
    %v3597 = vpack.c.b16 %v3534, %v3533
    %v3598 = vpack.c.b16 %v3536, %v3535
    %v3599 = vpack.c.b16 %v3538, %v3537
    %v3600 = vpack.c.b16 %v3540, %v3539
    %v3601 = vpack.c.b16 %v3542, %v3541
    %v3602 = vpack.c.b16 %v3544, %v3543
    %v3603 = vpack.c.b16 %v3546, %v3545
    %v3604 = vpack.c.b16 %v3548, %v3547
    %v3605 = vpack.c.b16 %v3550, %v3549
    %v3606 = vpack.c.b16 %v3552, %v3551
    %v3607 = vpack.c.b16 %v3554, %v3553
    %v3608 = vpack.c.b16 %v3556, %v3555
    %v3609 = vpack.c.b16 %v3558, %v3557
    %v3610 = vpack.c.b16 %v3560, %v3559
    %v3611 = vpack.c.b16 %v3562, %v3561
    %vm3661 = vcmask 130048
    %v3663 = vsel %vm3661, %v3156, 0
    %3665 = vmatprep.subr.bf16.mxu0 0
    %3666 = vmatpush1.bf16.msra.mxu0 %v3563
    %3667 = vmatprep.subr.bf16.mxu0 0
    %3668 = vmatpush1.bf16.msra.mxu0 %v3564
    %3669 = vmatprep.subr.bf16.mxu0 0
    %3670 = vmatpush1.bf16.msra.mxu0 %v3565
    %3671 = vmatprep.subr.bf16.mxu0 0
    %3672 = vmatpush1.bf16.msra.mxu0 %v3566
    %3673 = vmatprep.subr.bf16.mxu0 0
    %3674 = vmatpush1.bf16.msra.mxu0 %v3567
    %3675 = vmatprep.subr.bf16.mxu0 0
    %3676 = vmatpush1.bf16.msra.mxu0 %v3568
    %3677 = vmatprep.subr.bf16.mxu0 0
    %3678 = vmatpush1.bf16.msra.mxu0 %v3569
    %3679 = vmatprep.subr.bf16.mxu0 0
    %3680 = vmatpush1.bf16.msra.mxu0 %v3570
    %3681 = vmatprep.subr.bf16.mxu0 0
    %3682 = vmatpush1.bf16.msra.mxu0 %v3571
    %3683 = vmatprep.subr.bf16.mxu0 0
    %3684 = vmatpush1.bf16.msra.mxu0 %v3572
    %3685 = vmatprep.subr.bf16.mxu0 0
    %3686 = vmatpush1.bf16.msra.mxu0 %v3573
    %3687 = vmatprep.subr.bf16.mxu0 0
    %3688 = vmatpush1.bf16.msra.mxu0 %v3574
    %3689 = vmatprep.subr.bf16.mxu0 0
    %3690 = vmatpush1.bf16.msra.mxu0 %v3575
    %3691 = vmatprep.subr.bf16.mxu0 0
    %3692 = vmatpush1.bf16.msra.mxu0 %v3576
    %3693 = vmatprep.subr.bf16.mxu0 0
    %3694 = vmatpush1.bf16.msra.mxu0 %v3577
    %3695 = vmatprep.subr.bf16.mxu0 0
    %3696 = vmatpush1.bf16.msra.mxu0 %v3578
    %3697 = vmatprep.mubr.bf16.mxu0 %v3151
    %3698 = vmatmul.mubr.bf16.gmra.mrb[0].mxu0 %v3150
    %v3699 = vpop.f32.mrb[0].mxu0
    %v3700 = vadd.f32 0.0, %v3699
    %v3701 = vpop.f32.mrb[0].mxu0
    %v3702 = vpop.f32.mrb[0].mxu0
    %v3703 = vadd.f32 0.0, %v3702
    %v3704 = vpop.f32.mrb[0].mxu0
    %3705 = vdwg.mxu0
    %3706 = vmatprep.subr.bf16.mxu0 0
    %3707 = vmatpush1.bf16.msra.mxu0 %v3579
    %3708 = vmatprep.subr.bf16.mxu0 0
    %3709 = vmatpush1.bf16.msra.mxu0 %v3580
    %3710 = vmatprep.subr.bf16.mxu0 0
    %3711 = vmatpush1.bf16.msra.mxu0 %v3581
    %3712 = vmatprep.subr.bf16.mxu0 0
    %3713 = vmatpush1.bf16.msra.mxu0 %v3582
    %3714 = vmatprep.subr.bf16.mxu0 0
    %3715 = vmatpush1.bf16.msra.mxu0 %v3583
    %3716 = vmatprep.subr.bf16.mxu0 0
    %3717 = vmatpush1.bf16.msra.mxu0 %v3584
    %3718 = vmatprep.subr.bf16.mxu0 0
    %3719 = vmatpush1.bf16.msra.mxu0 %v3585
    %3720 = vmatprep.subr.bf16.mxu0 0
    %3721 = vmatpush1.bf16.msra.mxu0 %v3586
    %3722 = vmatprep.subr.bf16.mxu0 0
    %3723 = vmatpush1.bf16.msra.mxu0 %v3587
    %3724 = vmatprep.subr.bf16.mxu0 0
    %3725 = vmatpush1.bf16.msra.mxu0 %v3588
    %3726 = vmatprep.subr.bf16.mxu0 0
    %3727 = vmatpush1.bf16.msra.mxu0 %v3589
    %3728 = vmatprep.subr.bf16.mxu0 0
    %3729 = vmatpush1.bf16.msra.mxu0 %v3590
    %3730 = vmatprep.subr.bf16.mxu0 0
    %3731 = vmatpush1.bf16.msra.mxu0 %v3591
    %3732 = vmatprep.subr.bf16.mxu0 0
    %3733 = vmatpush1.bf16.msra.mxu0 %v3592
    %3734 = vmatprep.subr.bf16.mxu0 0
    %3735 = vmatpush1.bf16.msra.mxu0 %v3593
    %3736 = vmatprep.subr.bf16.mxu0 0
    %3737 = vmatpush1.bf16.msra.mxu0 %v3594
    %3738 = vmatprep.mubr.bf16.mxu0 %v3153
    %3739 = vmatmul.mubr.bf16.gmra.mrb[0].mxu0 %v3152
    %v3740 = vpop.f32.mrb[0].mxu0
    %v3741 = vadd.f32 %v3700, %v3740
    %v3742 = vpop.f32.mrb[0].mxu0
    %v3743 = vpop.f32.mrb[0].mxu0
    %v3744 = vadd.f32 %v3703, %v3743
    %v3745 = vpop.f32.mrb[0].mxu0
    %3746 = vdwg.mxu0
    %3747 = vmatprep.subr.bf16.mxu0 0
    %3748 = vmatpush1.bf16.msra.mxu0 %v3595
    %3749 = vmatprep.subr.bf16.mxu0 0
    %3750 = vmatpush1.bf16.msra.mxu0 %v3596
    %3751 = vmatprep.subr.bf16.mxu0 0
    %3752 = vmatpush1.bf16.msra.mxu0 %v3597
    %3753 = vmatprep.subr.bf16.mxu0 0
    %3754 = vmatpush1.bf16.msra.mxu0 %v3598
    %3755 = vmatprep.subr.bf16.mxu0 0
    %3756 = vmatpush1.bf16.msra.mxu0 %v3599
    %3757 = vmatprep.subr.bf16.mxu0 0
    %3758 = vmatpush1.bf16.msra.mxu0 %v3600
    %3759 = vmatprep.subr.bf16.mxu0 0
    %3760 = vmatpush1.bf16.msra.mxu0 %v3601
    %3761 = vmatprep.subr.bf16.mxu0 0
    %3762 = vmatpush1.bf16.msra.mxu0 %v3602
    %3763 = vmatprep.subr.bf16.mxu0 0
    %3764 = vmatpush1.bf16.msra.mxu0 %v3603
    %3765 = vmatprep.subr.bf16.mxu0 0
    %3766 = vmatpush1.bf16.msra.mxu0 %v3604
    %3767 = vmatprep.subr.bf16.mxu0 0
    %3768 = vmatpush1.bf16.msra.mxu0 %v3605
    %3769 = vmatprep.subr.bf16.mxu0 0
    %3770 = vmatpush1.bf16.msra.mxu0 %v3606
    %3771 = vmatprep.subr.bf16.mxu0 0
    %3772 = vmatpush1.bf16.msra.mxu0 %v3607
    %3773 = vmatprep.subr.bf16.mxu0 0
    %3774 = vmatpush1.bf16.msra.mxu0 %v3608
    %3775 = vmatprep.subr.bf16.mxu0 0
    %3776 = vmatpush1.bf16.msra.mxu0 %v3609
    %3777 = vmatprep.subr.bf16.mxu0 0
    %3778 = vmatpush1.bf16.msra.mxu0 %v3610
    %3779 = vmatprep.mubr.bf16.mxu0 %v3155
    %3780 = vmatmul.mubr.bf16.gmra.mrb[0].mxu0 %v3154
    %v3781 = vpop.f32.mrb[0].mxu0
    %v3782 = vadd.f32 %v3741, %v3781
    %v3783 = vpop.f32.mrb[0].mxu0
    %v3784 = vpop.f32.mrb[0].mxu0
    %v3785 = vadd.f32 %v3744, %v3784
    %v3786 = vpop.f32.mrb[0].mxu0
    %3787 = vdwg.mxu0
    %3788 = vmatprep.subr.bf16.mxu0 0
    %3789 = vmatpush1.bf16.msra.mxu0 %v3611
    %3790 = vmatprep.subr.bf16.mxu0 0
    %3791 = vmatpush1.bf16.msra.mxu0 0
    %3792 = vmatprep.subr.bf16.mxu0 0
    %3793 = vmatpush1.bf16.msra.mxu0 0
    %3794 = vmatprep.subr.bf16.mxu0 0
    %3795 = vmatpush1.bf16.msra.mxu0 0
    %3796 = vmatprep.subr.bf16.mxu0 0
    %3797 = vmatpush1.bf16.msra.mxu0 0
    %3798 = vmatprep.subr.bf16.mxu0 0
    %3799 = vmatpush1.bf16.msra.mxu0 0
    %3800 = vmatprep.subr.bf16.mxu0 0
    %3801 = vmatpush1.bf16.msra.mxu0 0
    %3802 = vmatprep.subr.bf16.mxu0 0
    %3803 = vmatpush1.bf16.msra.mxu0 0
    %3804 = vmatprep.subr.bf16.mxu0 0
    %3805 = vmatpush1.bf16.msra.mxu0 0
    %3806 = vmatprep.subr.bf16.mxu0 0
    %3807 = vmatpush1.bf16.msra.mxu0 0
    %3808 = vmatprep.subr.bf16.mxu0 0
    %3809 = vmatpush1.bf16.msra.mxu0 0
    %3810 = vmatprep.subr.bf16.mxu0 0
    %3811 = vmatpush1.bf16.msra.mxu0 0
    %3812 = vmatprep.subr.bf16.mxu0 0
    %3813 = vmatpush1.bf16.msra.mxu0 0
    %3814 = vmatprep.subr.bf16.mxu0 0
    %3815 = vmatpush1.bf16.msra.mxu0 0
    %3816 = vmatprep.subr.bf16.mxu0 0
    %3817 = vmatpush1.bf16.msra.mxu0 0
    %3818 = vmatprep.subr.bf16.mxu0 0
    %3819 = vmatpush1.bf16.msra.mxu0 0
    %3820 = vmatprep.mubr.bf16.mxu0 0
    %3821 = vmatmul.mubr.bf16.gmra.mrb[0].mxu0 %v3663
    %v3822 = vpop.f32.mrb[0].mxu0
    %v3823 = vadd.f32 %v3782, %v3822
    %v3824 = vpop.f32.mrb[0].mxu0
    %v3825 = vpop.f32.mrb[0].mxu0
    %v3826 = vadd.f32 %v3785, %v3825
    %v3827 = vpop.f32.mrb[0].mxu0
    %3828 = vdwg.mxu0
    %v3927 = vunpack.c.l.b16 %v3171
    %v3928 = vunpack.c.l.b16 %v3172
    %v3929 = vunpack.c.l.b16 %v3173
    %v3930 = vunpack.c.l.b16 %v3174
    %v3931 = vunpack.c.l.b16 %v3175
    %v3932 = vunpack.c.l.b16 %v3176
    %v3933 = vunpack.c.l.b16 %v3177
    %v3934 = vunpack.c.l.b16 %v3178
    %v3935 = vunpack.c.l.b16 %v3179
    %v3936 = vunpack.c.l.b16 %v3180
    %v3937 = vunpack.c.l.b16 %v3181
    %v3938 = vunpack.c.l.b16 %v3182
    %v3939 = vunpack.c.l.b16 %v3183
    %v3940 = vunpack.c.l.b16 %v3184
    %v3941 = vunpack.c.l.b16 %v3185
    %v3942 = vunpack.c.l.b16 %v3186
    %v3943 = vunpack.c.l.b16 %v3187
    %v3944 = vunpack.c.l.b16 %v3188
    %v3945 = vunpack.c.l.b16 %v3189
    %v3946 = vunpack.c.l.b16 %v3190
    %v3947 = vunpack.c.l.b16 %v3191
    %v3948 = vunpack.c.l.b16 %v3192
    %v3949 = vunpack.c.l.b16 %v3193
    %v3950 = vunpack.c.l.b16 %v3194
    %v3951 = vunpack.c.l.b16 %v3195
    %v3952 = vunpack.c.l.b16 %v3196
    %v3953 = vunpack.c.l.b16 %v3197
    %v3954 = vunpack.c.l.b16 %v3198
    %v3955 = vunpack.c.l.b16 %v3199
    %v3956 = vunpack.c.l.b16 %v3200
    %v3957 = vunpack.c.l.b16 %v3201
    %v3958 = vunpack.c.l.b16 %v3202
    %v3959 = vunpack.c.l.b16 %v3203
    %v3960 = vunpack.c.l.b16 %v3204
    %v3961 = vunpack.c.l.b16 %v3205
    %v3962 = vunpack.c.l.b16 %v3206
    %v3963 = vunpack.c.l.b16 %v3207
    %v3964 = vunpack.c.l.b16 %v3208
    %v3965 = vunpack.c.l.b16 %v3209
    %v3966 = vunpack.c.l.b16 %v3210
    %v3967 = vunpack.c.l.b16 %v3211
    %v3968 = vunpack.c.l.b16 %v3212
    %v3969 = vunpack.c.l.b16 %v3213
    %v3970 = vunpack.c.l.b16 %v3214
    %v3971 = vunpack.c.l.b16 %v3215
    %v3972 = vunpack.c.l.b16 %v3216
    %v3973 = vunpack.c.l.b16 %v3217
    %v3974 = vunpack.c.l.b16 %v3218
    %v3975 = vunpack.c.l.b16 %v3219
    %v3976 = vunpack.c.l.b16 %v3220
    %v3977 = vunpack.c.l.b16 %v3221
    %v3978 = vunpack.c.l.b16 %v3222
    %v3979 = vunpack.c.l.b16 %v3223
    %v3980 = vunpack.c.l.b16 %v3224
    %v3981 = vunpack.c.l.b16 %v3225
    %v3982 = vunpack.c.l.b16 %v3226
    %v3983 = vunpack.c.l.b16 %v3227
    %v3984 = vunpack.c.l.b16 %v3228
    %v3985 = vunpack.c.l.b16 %v3229
    %v3986 = vunpack.c.l.b16 %v3230
    %v3987 = vunpack.c.l.b16 %v3231
    %v3988 = vunpack.c.l.b16 %v3232
    %v3989 = vunpack.c.l.b16 %v3233
    %v3990 = vunpack.c.l.b16 %v3234
    %v3991 = vunpack.c.l.b16 %v3235
    %v3992 = vunpack.c.l.b16 %v3236
    %v3993 = vunpack.c.l.b16 %v3237
    %v3994 = vunpack.c.l.b16 %v3238
    %v3995 = vunpack.c.l.b16 %v3239
    %v3996 = vunpack.c.l.b16 %v3240
    %v3997 = vunpack.c.l.b16 %v3241
    %v3998 = vunpack.c.l.b16 %v3242
    %v3999 = vunpack.c.l.b16 %v3243
    %v4000 = vunpack.c.l.b16 %v3244
    %v4001 = vunpack.c.l.b16 %v3245
    %v4002 = vunpack.c.l.b16 %v3246
    %v4003 = vunpack.c.l.b16 %v3247
    %v4004 = vunpack.c.l.b16 %v3248
    %v4005 = vunpack.c.l.b16 %v3249
    %v4006 = vunpack.c.l.b16 %v3250
    %v4007 = vunpack.c.l.b16 %v3251
    %v4008 = vunpack.c.l.b16 %v3252
    %v4009 = vunpack.c.l.b16 %v3253
    %v4010 = vunpack.c.l.b16 %v3254
    %v4011 = vunpack.c.l.b16 %v3255
    %v4012 = vunpack.c.l.b16 %v3256
    %v4013 = vunpack.c.l.b16 %v3257
    %v4014 = vunpack.c.l.b16 %v3258
    %v4015 = vunpack.c.l.b16 %v3259
    %v4016 = vunpack.c.l.b16 %v3260
    %v4017 = vunpack.c.l.b16 %v3261
    %v4018 = vunpack.c.l.b16 %v3262
    %v4019 = vunpack.c.l.b16 %v3263
    %v4020 = vunpack.c.l.b16 %v3264
    %v4021 = vunpack.c.l.b16 %v3265
    %v4022 = vunpack.c.l.b16 %v3266
    %v4023 = vunpack.c.l.b16 %v3267
    %v4024 = vunpack.c.l.b16 %v3268
    %v4025 = vpack.c.b16 %v3928, %v3927
    %v4026 = vpack.c.b16 %v3930, %v3929
    %v4027 = vpack.c.b16 %v3932, %v3931
    %v4028 = vpack.c.b16 %v3934, %v3933
    %v4029 = vpack.c.b16 %v3936, %v3935
    %v4030 = vpack.c.b16 %v3938, %v3937
    %v4031 = vpack.c.b16 %v3940, %v3939
    %v4032 = vpack.c.b16 %v3942, %v3941
    %v4033 = vpack.c.b16 %v3944, %v3943
    %v4034 = vpack.c.b16 %v3946, %v3945
    %v4035 = vpack.c.b16 %v3948, %v3947
    %v4036 = vpack.c.b16 %v3950, %v3949
    %v4037 = vpack.c.b16 %v3952, %v3951
    %v4038 = vpack.c.b16 %v3954, %v3953
    %v4039 = vpack.c.b16 %v3956, %v3955
    %v4040 = vpack.c.b16 %v3958, %v3957
    %v4041 = vpack.c.b16 %v3960, %v3959
    %v4042 = vpack.c.b16 %v3962, %v3961
    %v4043 = vpack.c.b16 %v3964, %v3963
    %v4044 = vpack.c.b16 %v3966, %v3965
    %v4045 = vpack.c.b16 %v3968, %v3967
    %v4046 = vpack.c.b16 %v3970, %v3969
    %v4047 = vpack.c.b16 %v3972, %v3971
    %v4048 = vpack.c.b16 %v3974, %v3973
    %v4049 = vpack.c.b16 %v3976, %v3975
    %v4050 = vpack.c.b16 %v3978, %v3977
    %v4051 = vpack.c.b16 %v3980, %v3979
    %v4052 = vpack.c.b16 %v3982, %v3981
    %v4053 = vpack.c.b16 %v3984, %v3983
    %v4054 = vpack.c.b16 %v3986, %v3985
    %v4055 = vpack.c.b16 %v3988, %v3987
    %v4056 = vpack.c.b16 %v3990, %v3989
    %v4057 = vpack.c.b16 %v3992, %v3991
    %v4058 = vpack.c.b16 %v3994, %v3993
    %v4059 = vpack.c.b16 %v3996, %v3995
    %v4060 = vpack.c.b16 %v3998, %v3997
    %v4061 = vpack.c.b16 %v4000, %v3999
    %v4062 = vpack.c.b16 %v4002, %v4001
    %v4063 = vpack.c.b16 %v4004, %v4003
    %v4064 = vpack.c.b16 %v4006, %v4005
    %v4065 = vpack.c.b16 %v4008, %v4007
    %v4066 = vpack.c.b16 %v4010, %v4009
    %v4067 = vpack.c.b16 %v4012, %v4011
    %v4068 = vpack.c.b16 %v4014, %v4013
    %v4069 = vpack.c.b16 %v4016, %v4015
    %v4070 = vpack.c.b16 %v4018, %v4017
    %v4071 = vpack.c.b16 %v4020, %v4019
    %v4072 = vpack.c.b16 %v4022, %v4021
    %v4073 = vpack.c.b16 %v4024, %v4023
    %v4124 = vsel %vm3661, %v3135, 0
    %4126 = vmatprep.subr.bf16.mxu0 0
    %4127 = vmatpush1.bf16.msra.mxu0 %v4025
    %4128 = vmatprep.subr.bf16.mxu0 0
    %4129 = vmatpush1.bf16.msra.mxu0 %v4026
    %4130 = vmatprep.subr.bf16.mxu0 0
    %4131 = vmatpush1.bf16.msra.mxu0 %v4027
    %4132 = vmatprep.subr.bf16.mxu0 0
    %4133 = vmatpush1.bf16.msra.mxu0 %v4028
    %4134 = vmatprep.subr.bf16.mxu0 0
    %4135 = vmatpush1.bf16.msra.mxu0 %v4029
    %4136 = vmatprep.subr.bf16.mxu0 0
    %4137 = vmatpush1.bf16.msra.mxu0 %v4030
    %4138 = vmatprep.subr.bf16.mxu0 0
    %4139 = vmatpush1.bf16.msra.mxu0 %v4031
    %4140 = vmatprep.subr.bf16.mxu0 0
    %4141 = vmatpush1.bf16.msra.mxu0 %v4032
    %4142 = vmatprep.subr.bf16.mxu0 0
    %4143 = vmatpush1.bf16.msra.mxu0 %v4033
    %4144 = vmatprep.subr.bf16.mxu0 0
    %4145 = vmatpush1.bf16.msra.mxu0 %v4034
    %4146 = vmatprep.subr.bf16.mxu0 0
    %4147 = vmatpush1.bf16.msra.mxu0 %v4035
    %4148 = vmatprep.subr.bf16.mxu0 0
    %4149 = vmatpush1.bf16.msra.mxu0 %v4036
    %4150 = vmatprep.subr.bf16.mxu0 0
    %4151 = vmatpush1.bf16.msra.mxu0 %v4037
    %4152 = vmatprep.subr.bf16.mxu0 0
    %4153 = vmatpush1.bf16.msra.mxu0 %v4038
    %4154 = vmatprep.subr.bf16.mxu0 0
    %4155 = vmatpush1.bf16.msra.mxu0 %v4039
    %4156 = vmatprep.subr.bf16.mxu0 0
    %4157 = vmatpush1.bf16.msra.mxu0 %v4040
    %4158 = vmatprep.mubr.bf16.mxu0 %v3130
    %4159 = vmatmul.mubr.bf16.gmra.mrb[0].mxu0 %v3129
    %v4160 = vpop.f32.mrb[0].mxu0
    %v4161 = vadd.f32 %v3823, %v4160
    %v4162 = vpop.f32.mrb[0].mxu0
    %v4163 = vpop.f32.mrb[0].mxu0
    %v4164 = vadd.f32 %v3826, %v4163
    %v4165 = vpop.f32.mrb[0].mxu0
    %4166 = vdwg.mxu0
    %4167 = vmatprep.subr.bf16.mxu0 0
    %4168 = vmatpush1.bf16.msra.mxu0 %v4041
    %4169 = vmatprep.subr.bf16.mxu0 0
    %4170 = vmatpush1.bf16.msra.mxu0 %v4042
    %4171 = vmatprep.subr.bf16.mxu0 0
    %4172 = vmatpush1.bf16.msra.mxu0 %v4043
    %4173 = vmatprep.subr.bf16.mxu0 0
    %4174 = vmatpush1.bf16.msra.mxu0 %v4044
    %4175 = vmatprep.subr.bf16.mxu0 0
    %4176 = vmatpush1.bf16.msra.mxu0 %v4045
    %4177 = vmatprep.subr.bf16.mxu0 0
    %4178 = vmatpush1.bf16.msra.mxu0 %v4046
    %4179 = vmatprep.subr.bf16.mxu0 0
    %4180 = vmatpush1.bf16.msra.mxu0 %v4047
    %4181 = vmatprep.subr.bf16.mxu0 0
    %4182 = vmatpush1.bf16.msra.mxu0 %v4048
    %4183 = vmatprep.subr.bf16.mxu0 0
    %4184 = vmatpush1.bf16.msra.mxu0 %v4049
    %4185 = vmatprep.subr.bf16.mxu0 0
    %4186 = vmatpush1.bf16.msra.mxu0 %v4050
    %4187 = vmatprep.subr.bf16.mxu0 0
    %4188 = vmatpush1.bf16.msra.mxu0 %v4051
    %4189 = vmatprep.subr.bf16.mxu0 0
    %4190 = vmatpush1.bf16.msra.mxu0 %v4052
    %4191 = vmatprep.subr.bf16.mxu0 0
    %4192 = vmatpush1.bf16.msra.mxu0 %v4053
    %4193 = vmatprep.subr.bf16.mxu0 0
    %4194 = vmatpush1.bf16.msra.mxu0 %v4054
    %4195 = vmatprep.subr.bf16.mxu0 0
    %4196 = vmatpush1.bf16.msra.mxu0 %v4055
    %4197 = vmatprep.subr.bf16.mxu0 0
    %4198 = vmatpush1.bf16.msra.mxu0 %v4056
    %4199 = vmatprep.mubr.bf16.mxu0 %v3132
    %4200 = vmatmul.mubr.bf16.gmra.mrb[0].mxu0 %v3131
    %v4201 = vpop.f32.mrb[0].mxu0
    %v4202 = vadd.f32 %v4161, %v4201
    %v4203 = vpop.f32.mrb[0].mxu0
    %v4204 = vpop.f32.mrb[0].mxu0
    %v4205 = vadd.f32 %v4164, %v4204
    %v4206 = vpop.f32.mrb[0].mxu0
    %4207 = vdwg.mxu0
    %4208 = vmatprep.subr.bf16.mxu0 0
    %4209 = vmatpush1.bf16.msra.mxu0 %v4057
    %4210 = vmatprep.subr.bf16.mxu0 0
    %4211 = vmatpush1.bf16.msra.mxu0 %v4058
    %4212 = vmatprep.subr.bf16.mxu0 0
    %4213 = vmatpush1.bf16.msra.mxu0 %v4059
    %4214 = vmatprep.subr.bf16.mxu0 0
    %4215 = vmatpush1.bf16.msra.mxu0 %v4060
    %4216 = vmatprep.subr.bf16.mxu0 0
    %4217 = vmatpush1.bf16.msra.mxu0 %v4061
    %4218 = vmatprep.subr.bf16.mxu0 0
    %4219 = vmatpush1.bf16.msra.mxu0 %v4062
    %4220 = vmatprep.subr.bf16.mxu0 0
    %4221 = vmatpush1.bf16.msra.mxu0 %v4063
    %4222 = vmatprep.subr.bf16.mxu0 0
    %4223 = vmatpush1.bf16.msra.mxu0 %v4064
    %4224 = vmatprep.subr.bf16.mxu0 0
    %4225 = vmatpush1.bf16.msra.mxu0 %v4065
    %4226 = vmatprep.subr.bf16.mxu0 0
    %4227 = vmatpush1.bf16.msra.mxu0 %v4066
    %4228 = vmatprep.subr.bf16.mxu0 0
    %4229 = vmatpush1.bf16.msra.mxu0 %v4067
    %4230 = vmatprep.subr.bf16.mxu0 0
    %4231 = vmatpush1.bf16.msra.mxu0 %v4068
    %4232 = vmatprep.subr.bf16.mxu0 0
    %4233 = vmatpush1.bf16.msra.mxu0 %v4069
    %4234 = vmatprep.subr.bf16.mxu0 0
    %4235 = vmatpush1.bf16.msra.mxu0 %v4070
    %4236 = vmatprep.subr.bf16.mxu0 0
    %4237 = vmatpush1.bf16.msra.mxu0 %v4071
    %4238 = vmatprep.subr.bf16.mxu0 0
    %4239 = vmatpush1.bf16.msra.mxu0 %v4072
    %4240 = vmatprep.mubr.bf16.mxu0 %v3134
    %4241 = vmatmul.mubr.bf16.gmra.mrb[0].mxu0 %v3133
    %v4242 = vpop.f32.mrb[0].mxu0
    %v4243 = vadd.f32 %v4202, %v4242
    %v4244 = vpop.f32.mrb[0].mxu0
    %v4245 = vpop.f32.mrb[0].mxu0
    %v4246 = vadd.f32 %v4205, %v4245
    %v4247 = vpop.f32.mrb[0].mxu0
    %4248 = vdwg.mxu0
    %4249 = vmatprep.subr.bf16.mxu0 0
    %4250 = vmatpush1.bf16.msra.mxu0 %v4073
    %4251 = vmatprep.subr.bf16.mxu0 0
    %4252 = vmatpush1.bf16.msra.mxu0 0
    %4253 = vmatprep.subr.bf16.mxu0 0
    %4254 = vmatpush1.bf16.msra.mxu0 0
    %4255 = vmatprep.subr.bf16.mxu0 0
    %4256 = vmatpush1.bf16.msra.mxu0 0
    %4257 = vmatprep.subr.bf16.mxu0 0
    %4258 = vmatpush1.bf16.msra.mxu0 0
    %4259 = vmatprep.subr.bf16.mxu0 0
    %4260 = vmatpush1.bf16.msra.mxu0 0
    %4261 = vmatprep.subr.bf16.mxu0 0
    %4262 = vmatpush1.bf16.msra.mxu0 0
    %4263 = vmatprep.subr.bf16.mxu0 0
    %4264 = vmatpush1.bf16.msra.mxu0 0
    %4265 = vmatprep.subr.bf16.mxu0 0
    %4266 = vmatpush1.bf16.msra.mxu0 0
    %4267 = vmatprep.subr.bf16.mxu0 0
    %4268 = vmatpush1.bf16.msra.mxu0 0
    %4269 = vmatprep.subr.bf16.mxu0 0
    %4270 = vmatpush1.bf16.msra.mxu0 0
    %4271 = vmatprep.subr.bf16.mxu0 0
    %4272 = vmatpush1.bf16.msra.mxu0 0
    %4273 = vmatprep.subr.bf16.mxu0 0
    %4274 = vmatpush1.bf16.msra.mxu0 0
    %4275 = vmatprep.subr.bf16.mxu0 0
    %4276 = vmatpush1.bf16.msra.mxu0 0
    %4277 = vmatprep.subr.bf16.mxu0 0
    %4278 = vmatpush1.bf16.msra.mxu0 0
    %4279 = vmatprep.subr.bf16.mxu0 0
    %4280 = vmatpush1.bf16.msra.mxu0 0
    %4281 = vmatprep.mubr.bf16.mxu0 0
    %4282 = vmatmul.mubr.bf16.gmra.mrb[0].mxu0 %v4124
    %v4283 = vpop.f32.mrb[0].mxu0
    %v4284 = vadd.f32 %v4243, %v4283
    %v4285 = vpop.f32.mrb[0].mxu0
    %v4286 = vpop.f32.mrb[0].mxu0
    %v4287 = vadd.f32 %v4246, %v4286
    %v4288 = vpop.f32.mrb[0].mxu0
    %4289 = vdwg.mxu0
    %s4290 = scalar_lea.vmem %s1, 392
    %v4291 = vld [vmem:[%s4290] sm:$0xf]
    %v4292 = vld [vmem:[%s4290 + $0x4] sm:$0xf]
    %v4293 = vld [vmem:[%s4290 + $0x8] sm:$0xf]
    %v4294 = vld [vmem:[%s4290 + $0xc] sm:$0xf]
    %v4295 = vld [vmem:[%s4290 + $0x10] sm:$0xf]
    %v4296 = vld [vmem:[%s4290 + $0x14] sm:$0xf]
    %v4297 = vld [vmem:[%s4290 + $0x18] sm:$0xf]
    %v4298 = vld [vmem:[%s4290 + $0x1c] sm:$0xf]
    %v4299 = vld [vmem:[%s4290 + $0x20] sm:$0xf]
    %v4300 = vld [vmem:[%s4290 + $0x24] sm:$0xf]
    %v4301 = vld [vmem:[%s4290 + $0x28] sm:$0xf]
    %v4302 = vld [vmem:[%s4290 + $0x2c] sm:$0xf]
    %v4303 = vld [vmem:[%s4290 + $0x30] sm:$0xf]
    %v4304 = vld [vmem:[%s4290 + $0x34] sm:$0xf]
    %v4305 = vld [vmem:[%s4290 + $0x38] sm:$0xf]
    %v4306 = vld [vmem:[%s4290 + $0x3c] sm:$0xf]
    %v4307 = vld [vmem:[%s4290 + $0x40] sm:$0xf]
    %v4308 = vld [vmem:[%s4290 + $0x44] sm:$0xf]
    %v4309 = vld [vmem:[%s4290 + $0x48] sm:$0xf]
    %v4310 = vld [vmem:[%s4290 + $0x4c] sm:$0xf]
    %v4311 = vld [vmem:[%s4290 + $0x50] sm:$0xf]
    %v4312 = vld [vmem:[%s4290 + $0x54] sm:$0xf]
    %v4313 = vld [vmem:[%s4290 + $0x58] sm:$0xf]
    %v4314 = vld [vmem:[%s4290 + $0x5c] sm:$0xf]
    %v4315 = vld [vmem:[%s4290 + $0x60] sm:$0xf]
    %v4316 = vld [vmem:[%s4290 + $0x64] sm:$0xf]
    %v4317 = vld [vmem:[%s4290 + $0x68] sm:$0xf]
    %v4318 = vld [vmem:[%s4290 + $0x6c] sm:$0xf]
    %v4319 = vld [vmem:[%s4290 + $0x70] sm:$0xf]
    %v4320 = vld [vmem:[%s4290 + $0x74] sm:$0xf]
    %v4321 = vld [vmem:[%s4290 + $0x78] sm:$0xf]
    %v4322 = vld [vmem:[%s4290 + $0x7c] sm:$0xf]
    %v4323 = vld [vmem:[%s4290 + $0x80] sm:$0xf]
    %v4324 = vld [vmem:[%s4290 + $0x84] sm:$0xf]
    %v4325 = vld [vmem:[%s4290 + $0x88] sm:$0xf]
    %v4326 = vld [vmem:[%s4290 + $0x8c] sm:$0xf]
    %v4327 = vld [vmem:[%s4290 + $0x90] sm:$0xf]
    %v4328 = vld [vmem:[%s4290 + $0x94] sm:$0xf]
    %v4329 = vld [vmem:[%s4290 + $0x98] sm:$0xf]
    %v4330 = vld [vmem:[%s4290 + $0x9c] sm:$0xf]
    %v4331 = vld [vmem:[%s4290 + $0xa0] sm:$0xf]
    %v4332 = vld [vmem:[%s4290 + $0xa4] sm:$0xf]
    %v4333 = vld [vmem:[%s4290 + $0xa8] sm:$0xf]
    %v4334 = vld [vmem:[%s4290 + $0xac] sm:$0xf]
    %v4335 = vld [vmem:[%s4290 + $0xb0] sm:$0xf]
    %v4336 = vld [vmem:[%s4290 + $0xb4] sm:$0xf]
    %v4337 = vld [vmem:[%s4290 + $0xb8] sm:$0xf]
    %v4338 = vld [vmem:[%s4290 + $0xbc] sm:$0xf]
    %v4339 = vld [vmem:[%s4290 + $0xc0] sm:$0xf]
    %v4340 = vld [vmem:[%s4290 + $0xc4] sm:$0xf]
    %v4341 = vld [vmem:[%s4290 + $0xc8] sm:$0xf]
    %v4342 = vld [vmem:[%s4290 + $0xcc] sm:$0xf]
    %v4343 = vld [vmem:[%s4290 + $0xd0] sm:$0xf]
    %v4344 = vld [vmem:[%s4290 + $0xd4] sm:$0xf]
    %v4345 = vld [vmem:[%s4290 + $0xd8] sm:$0xf]
    %v4346 = vld [vmem:[%s4290 + $0xdc] sm:$0xf]
    %v4347 = vld [vmem:[%s4290 + $0xe0] sm:$0xf]
    %v4348 = vld [vmem:[%s4290 + $0xe4] sm:$0xf]
    %v4349 = vld [vmem:[%s4290 + $0xe8] sm:$0xf]
    %v4350 = vld [vmem:[%s4290 + $0xec] sm:$0xf]
    %v4351 = vld [vmem:[%s4290 + $0xf0] sm:$0xf]
    %v4352 = vld [vmem:[%s4290 + $0xf4] sm:$0xf]
    %v4353 = vld [vmem:[%s4290 + $0xf8] sm:$0xf]
    %v4354 = vld [vmem:[%s4290 + $0xfc] sm:$0xf]
    %v4355 = vld [vmem:[%s4290 + $0x100] sm:$0xf]
    %v4356 = vld [vmem:[%s4290 + $0x104] sm:$0xf]
    %v4357 = vld [vmem:[%s4290 + $0x108] sm:$0xf]
    %v4358 = vld [vmem:[%s4290 + $0x10c] sm:$0xf]
    %v4359 = vld [vmem:[%s4290 + $0x110] sm:$0xf]
    %v4360 = vld [vmem:[%s4290 + $0x114] sm:$0xf]
    %v4361 = vld [vmem:[%s4290 + $0x118] sm:$0xf]
    %v4362 = vld [vmem:[%s4290 + $0x11c] sm:$0xf]
    %v4363 = vld [vmem:[%s4290 + $0x120] sm:$0xf]
    %v4364 = vld [vmem:[%s4290 + $0x124] sm:$0xf]
    %v4365 = vld [vmem:[%s4290 + $0x128] sm:$0xf]
    %v4366 = vld [vmem:[%s4290 + $0x12c] sm:$0xf]
    %v4367 = vld [vmem:[%s4290 + $0x130] sm:$0xf]
    %v4368 = vld [vmem:[%s4290 + $0x134] sm:$0xf]
    %v4369 = vld [vmem:[%s4290 + $0x138] sm:$0xf]
    %v4370 = vld [vmem:[%s4290 + $0x13c] sm:$0xf]
    %v4371 = vld [vmem:[%s4290 + $0x140] sm:$0xf]
    %v4372 = vld [vmem:[%s4290 + $0x144] sm:$0xf]
    %v4373 = vld [vmem:[%s4290 + $0x148] sm:$0xf]
    %v4374 = vld [vmem:[%s4290 + $0x14c] sm:$0xf]
    %v4375 = vld [vmem:[%s4290 + $0x150] sm:$0xf]
    %v4376 = vld [vmem:[%s4290 + $0x154] sm:$0xf]
    %v4377 = vld [vmem:[%s4290 + $0x158] sm:$0xf]
    %v4378 = vld [vmem:[%s4290 + $0x15c] sm:$0xf]
    %v4379 = vld [vmem:[%s4290 + $0x160] sm:$0xf]
    %v4380 = vld [vmem:[%s4290 + $0x164] sm:$0xf]
    %v4381 = vld [vmem:[%s4290 + $0x168] sm:$0xf]
    %v4382 = vld [vmem:[%s4290 + $0x16c] sm:$0xf]
    %v4383 = vld [vmem:[%s4290 + $0x170] sm:$0xf]
    %v4384 = vld [vmem:[%s4290 + $0x174] sm:$0xf]
    %v4385 = vld [vmem:[%s4290 + $0x178] sm:$0xf]
    %v4386 = vld [vmem:[%s4290 + $0x17c] sm:$0xf]
    %v4387 = vld [vmem:[%s4290 + $0x180] sm:$0xf]
    %v4388 = vld [vmem:[%s4290 + $0x184] sm:$0xf]
    %v4487 = vunpack.c.l.b16 %v4291
    %v4488 = vunpack.c.l.b16 %v4292
    %v4489 = vunpack.c.l.b16 %v4293
    %v4490 = vunpack.c.l.b16 %v4294
    %v4491 = vunpack.c.l.b16 %v4295
    %v4492 = vunpack.c.l.b16 %v4296
    %v4493 = vunpack.c.l.b16 %v4297
    %v4494 = vunpack.c.l.b16 %v4298
    %v4495 = vunpack.c.l.b16 %v4299
    %v4496 = vunpack.c.l.b16 %v4300
    %v4497 = vunpack.c.l.b16 %v4301
    %v4498 = vunpack.c.l.b16 %v4302
    %v4499 = vunpack.c.l.b16 %v4303
    %v4500 = vunpack.c.l.b16 %v4304
    %v4501 = vunpack.c.l.b16 %v4305
    %v4502 = vunpack.c.l.b16 %v4306
    %v4503 = vunpack.c.l.b16 %v4307
    %v4504 = vunpack.c.l.b16 %v4308
    %v4505 = vunpack.c.l.b16 %v4309
    %v4506 = vunpack.c.l.b16 %v4310
    %v4507 = vunpack.c.l.b16 %v4311
    %v4508 = vunpack.c.l.b16 %v4312
    %v4509 = vunpack.c.l.b16 %v4313
    %v4510 = vunpack.c.l.b16 %v4314
    %v4511 = vunpack.c.l.b16 %v4315
    %v4512 = vunpack.c.l.b16 %v4316
    %v4513 = vunpack.c.l.b16 %v4317
    %v4514 = vunpack.c.l.b16 %v4318
    %v4515 = vunpack.c.l.b16 %v4319
    %v4516 = vunpack.c.l.b16 %v4320
    %v4517 = vunpack.c.l.b16 %v4321
    %v4518 = vunpack.c.l.b16 %v4322
    %v4519 = vunpack.c.l.b16 %v4323
    %v4520 = vunpack.c.l.b16 %v4324
    %v4521 = vunpack.c.l.b16 %v4325
    %v4522 = vunpack.c.l.b16 %v4326
    %v4523 = vunpack.c.l.b16 %v4327
    %v4524 = vunpack.c.l.b16 %v4328
    %v4525 = vunpack.c.l.b16 %v4329
    %v4526 = vunpack.c.l.b16 %v4330
    %v4527 = vunpack.c.l.b16 %v4331
    %v4528 = vunpack.c.l.b16 %v4332
    %v4529 = vunpack.c.l.b16 %v4333
    %v4530 = vunpack.c.l.b16 %v4334
    %v4531 = vunpack.c.l.b16 %v4335
    %v4532 = vunpack.c.l.b16 %v4336
    %v4533 = vunpack.c.l.b16 %v4337
    %v4534 = vunpack.c.l.b16 %v4338
    %v4535 = vunpack.c.l.b16 %v4339
    %v4536 = vunpack.c.l.b16 %v4340
    %v4537 = vunpack.c.l.b16 %v4341
    %v4538 = vunpack.c.l.b16 %v4342
    %v4539 = vunpack.c.l.b16 %v4343
    %v4540 = vunpack.c.l.b16 %v4344
    %v4541 = vunpack.c.l.b16 %v4345
    %v4542 = vunpack.c.l.b16 %v4346
    %v4543 = vunpack.c.l.b16 %v4347
    %v4544 = vunpack.c.l.b16 %v4348
    %v4545 = vunpack.c.l.b16 %v4349
    %v4546 = vunpack.c.l.b16 %v4350
    %v4547 = vunpack.c.l.b16 %v4351
    %v4548 = vunpack.c.l.b16 %v4352
    %v4549 = vunpack.c.l.b16 %v4353
    %v4550 = vunpack.c.l.b16 %v4354
    %v4551 = vunpack.c.l.b16 %v4355
    %v4552 = vunpack.c.l.b16 %v4356
    %v4553 = vunpack.c.l.b16 %v4357
    %v4554 = vunpack.c.l.b16 %v4358
    %v4555 = vunpack.c.l.b16 %v4359
    %v4556 = vunpack.c.l.b16 %v4360
    %v4557 = vunpack.c.l.b16 %v4361
    %v4558 = vunpack.c.l.b16 %v4362
    %v4559 = vunpack.c.l.b16 %v4363
    %v4560 = vunpack.c.l.b16 %v4364
    %v4561 = vunpack.c.l.b16 %v4365
    %v4562 = vunpack.c.l.b16 %v4366
    %v4563 = vunpack.c.l.b16 %v4367
    %v4564 = vunpack.c.l.b16 %v4368
    %v4565 = vunpack.c.l.b16 %v4369
    %v4566 = vunpack.c.l.b16 %v4370
    %v4567 = vunpack.c.l.b16 %v4371
    %v4568 = vunpack.c.l.b16 %v4372
    %v4569 = vunpack.c.l.b16 %v4373
    %v4570 = vunpack.c.l.b16 %v4374
    %v4571 = vunpack.c.l.b16 %v4375
    %v4572 = vunpack.c.l.b16 %v4376
    %v4573 = vunpack.c.l.b16 %v4377
    %v4574 = vunpack.c.l.b16 %v4378
    %v4575 = vunpack.c.l.b16 %v4379
    %v4576 = vunpack.c.l.b16 %v4380
    %v4577 = vunpack.c.l.b16 %v4381
    %v4578 = vunpack.c.l.b16 %v4382
    %v4579 = vunpack.c.l.b16 %v4383
    %v4580 = vunpack.c.l.b16 %v4384
    %v4581 = vunpack.c.l.b16 %v4385
    %v4582 = vunpack.c.l.b16 %v4386
    %v4583 = vunpack.c.l.b16 %v4387
    %v4584 = vunpack.c.l.b16 %v4388
    %v4585 = vpack.c.b16 %v4488, %v4487
    %v4586 = vpack.c.b16 %v4490, %v4489
    %v4587 = vpack.c.b16 %v4492, %v4491
    %v4588 = vpack.c.b16 %v4494, %v4493
    %v4589 = vpack.c.b16 %v4496, %v4495
    %v4590 = vpack.c.b16 %v4498, %v4497
    %v4591 = vpack.c.b16 %v4500, %v4499
    %v4592 = vpack.c.b16 %v4502, %v4501
    %v4593 = vpack.c.b16 %v4504, %v4503
    %v4594 = vpack.c.b16 %v4506, %v4505
    %v4595 = vpack.c.b16 %v4508, %v4507
    %v4596 = vpack.c.b16 %v4510, %v4509
    %v4597 = vpack.c.b16 %v4512, %v4511
    %v4598 = vpack.c.b16 %v4514, %v4513
    %v4599 = vpack.c.b16 %v4516, %v4515
    %v4600 = vpack.c.b16 %v4518, %v4517
    %v4601 = vpack.c.b16 %v4520, %v4519
    %v4602 = vpack.c.b16 %v4522, %v4521
    %v4603 = vpack.c.b16 %v4524, %v4523
    %v4604 = vpack.c.b16 %v4526, %v4525
    %v4605 = vpack.c.b16 %v4528, %v4527
    %v4606 = vpack.c.b16 %v4530, %v4529
    %v4607 = vpack.c.b16 %v4532, %v4531
    %v4608 = vpack.c.b16 %v4534, %v4533
    %v4609 = vpack.c.b16 %v4536, %v4535
    %v4610 = vpack.c.b16 %v4538, %v4537
    %v4611 = vpack.c.b16 %v4540, %v4539
    %v4612 = vpack.c.b16 %v4542, %v4541
    %v4613 = vpack.c.b16 %v4544, %v4543
    %v4614 = vpack.c.b16 %v4546, %v4545
    %v4615 = vpack.c.b16 %v4548, %v4547
    %v4616 = vpack.c.b16 %v4550, %v4549
    %v4617 = vpack.c.b16 %v4552, %v4551
    %v4618 = vpack.c.b16 %v4554, %v4553
    %v4619 = vpack.c.b16 %v4556, %v4555
    %v4620 = vpack.c.b16 %v4558, %v4557
    %v4621 = vpack.c.b16 %v4560, %v4559
    %v4622 = vpack.c.b16 %v4562, %v4561
    %v4623 = vpack.c.b16 %v4564, %v4563
    %v4624 = vpack.c.b16 %v4566, %v4565
    %v4625 = vpack.c.b16 %v4568, %v4567
    %v4626 = vpack.c.b16 %v4570, %v4569
    %v4627 = vpack.c.b16 %v4572, %v4571
    %v4628 = vpack.c.b16 %v4574, %v4573
    %v4629 = vpack.c.b16 %v4576, %v4575
    %v4630 = vpack.c.b16 %v4578, %v4577
    %v4631 = vpack.c.b16 %v4580, %v4579
    %v4632 = vpack.c.b16 %v4582, %v4581
    %v4633 = vpack.c.b16 %v4584, %v4583
    %v4684 = vsel %vm3661, %v3142, 0
    %4686 = vmatprep.subr.bf16.mxu0 0
    %4687 = vmatpush1.bf16.msra.mxu0 %v4585
    %4688 = vmatprep.subr.bf16.mxu0 0
    %4689 = vmatpush1.bf16.msra.mxu0 %v4586
    %4690 = vmatprep.subr.bf16.mxu0 0
    %4691 = vmatpush1.bf16.msra.mxu0 %v4587
    %4692 = vmatprep.subr.bf16.mxu0 0
    %4693 = vmatpush1.bf16.msra.mxu0 %v4588
    %4694 = vmatprep.subr.bf16.mxu0 0
    %4695 = vmatpush1.bf16.msra.mxu0 %v4589
    %4696 = vmatprep.subr.bf16.mxu0 0
    %4697 = vmatpush1.bf16.msra.mxu0 %v4590
    %4698 = vmatprep.subr.bf16.mxu0 0
    %4699 = vmatpush1.bf16.msra.mxu0 %v4591
    %4700 = vmatprep.subr.bf16.mxu0 0
    %4701 = vmatpush1.bf16.msra.mxu0 %v4592
    %4702 = vmatprep.subr.bf16.mxu0 0
    %4703 = vmatpush1.bf16.msra.mxu0 %v4593
    %4704 = vmatprep.subr.bf16.mxu0 0
    %4705 = vmatpush1.bf16.msra.mxu0 %v4594
    %4706 = vmatprep.subr.bf16.mxu0 0
    %4707 = vmatpush1.bf16.msra.mxu0 %v4595
    %4708 = vmatprep.subr.bf16.mxu0 0
    %4709 = vmatpush1.bf16.msra.mxu0 %v4596
    %4710 = vmatprep.subr.bf16.mxu0 0
    %4711 = vmatpush1.bf16.msra.mxu0 %v4597
    %4712 = vmatprep.subr.bf16.mxu0 0
    %4713 = vmatpush1.bf16.msra.mxu0 %v4598
    %4714 = vmatprep.subr.bf16.mxu0 0
    %4715 = vmatpush1.bf16.msra.mxu0 %v4599
    %4716 = vmatprep.subr.bf16.mxu0 0
    %4717 = vmatpush1.bf16.msra.mxu0 %v4600
    %4718 = vmatprep.mubr.bf16.mxu0 %v3137
    %4719 = vmatmul.mubr.bf16.gmra.mrb[0].mxu0 %v3136
    %v4720 = vpop.f32.mrb[0].mxu0
    %v4721 = vadd.f32 0.0, %v4720
    %v4722 = vpop.f32.mrb[0].mxu0
    %v4723 = vpop.f32.mrb[0].mxu0
    %v4724 = vadd.f32 0.0, %v4723
    %v4725 = vpop.f32.mrb[0].mxu0
    %4726 = vdwg.mxu0
    %4727 = vmatprep.subr.bf16.mxu0 0
    %4728 = vmatpush1.bf16.msra.mxu0 %v4601
    %4729 = vmatprep.subr.bf16.mxu0 0
    %4730 = vmatpush1.bf16.msra.mxu0 %v4602
    %4731 = vmatprep.subr.bf16.mxu0 0
    %4732 = vmatpush1.bf16.msra.mxu0 %v4603
    %4733 = vmatprep.subr.bf16.mxu0 0
    %4734 = vmatpush1.bf16.msra.mxu0 %v4604
    %4735 = vmatprep.subr.bf16.mxu0 0
    %4736 = vmatpush1.bf16.msra.mxu0 %v4605
    %4737 = vmatprep.subr.bf16.mxu0 0
    %4738 = vmatpush1.bf16.msra.mxu0 %v4606
    %4739 = vmatprep.subr.bf16.mxu0 0
    %4740 = vmatpush1.bf16.msra.mxu0 %v4607
    %4741 = vmatprep.subr.bf16.mxu0 0
    %4742 = vmatpush1.bf16.msra.mxu0 %v4608
    %4743 = vmatprep.subr.bf16.mxu0 0
    %4744 = vmatpush1.bf16.msra.mxu0 %v4609
    %4745 = vmatprep.subr.bf16.mxu0 0
    %4746 = vmatpush1.bf16.msra.mxu0 %v4610
    %4747 = vmatprep.subr.bf16.mxu0 0
    %4748 = vmatpush1.bf16.msra.mxu0 %v4611
    %4749 = vmatprep.subr.bf16.mxu0 0
    %4750 = vmatpush1.bf16.msra.mxu0 %v4612
    %4751 = vmatprep.subr.bf16.mxu0 0
    %4752 = vmatpush1.bf16.msra.mxu0 %v4613
    %4753 = vmatprep.subr.bf16.mxu0 0
    %4754 = vmatpush1.bf16.msra.mxu0 %v4614
    %4755 = vmatprep.subr.bf16.mxu0 0
    %4756 = vmatpush1.bf16.msra.mxu0 %v4615
    %4757 = vmatprep.subr.bf16.mxu0 0
    %4758 = vmatpush1.bf16.msra.mxu0 %v4616
    %4759 = vmatprep.mubr.bf16.mxu0 %v3139
    %4760 = vmatmul.mubr.bf16.gmra.mrb[0].mxu0 %v3138
    %v4761 = vpop.f32.mrb[0].mxu0
    %v4762 = vadd.f32 %v4721, %v4761
    %v4763 = vpop.f32.mrb[0].mxu0
    %v4764 = vpop.f32.mrb[0].mxu0
    %v4765 = vadd.f32 %v4724, %v4764
    %v4766 = vpop.f32.mrb[0].mxu0
    %4767 = vdwg.mxu0
    %4768 = vmatprep.subr.bf16.mxu0 0
    %4769 = vmatpush1.bf16.msra.mxu0 %v4617
    %4770 = vmatprep.subr.bf16.mxu0 0
    %4771 = vmatpush1.bf16.msra.mxu0 %v4618
    %4772 = vmatprep.subr.bf16.mxu0 0
    %4773 = vmatpush1.bf16.msra.mxu0 %v4619
    %4774 = vmatprep.subr.bf16.mxu0 0
    %4775 = vmatpush1.bf16.msra.mxu0 %v4620
    %4776 = vmatprep.subr.bf16.mxu0 0
    %4777 = vmatpush1.bf16.msra.mxu0 %v4621
    %4778 = vmatprep.subr.bf16.mxu0 0
    %4779 = vmatpush1.bf16.msra.mxu0 %v4622
    %4780 = vmatprep.subr.bf16.mxu0 0
    %4781 = vmatpush1.bf16.msra.mxu0 %v4623
    %4782 = vmatprep.subr.bf16.mxu0 0
    %4783 = vmatpush1.bf16.msra.mxu0 %v4624
    %4784 = vmatprep.subr.bf16.mxu0 0
    %4785 = vmatpush1.bf16.msra.mxu0 %v4625
    %4786 = vmatprep.subr.bf16.mxu0 0
    %4787 = vmatpush1.bf16.msra.mxu0 %v4626
    %4788 = vmatprep.subr.bf16.mxu0 0
    %4789 = vmatpush1.bf16.msra.mxu0 %v4627
    %4790 = vmatprep.subr.bf16.mxu0 0
    %4791 = vmatpush1.bf16.msra.mxu0 %v4628
    %4792 = vmatprep.subr.bf16.mxu0 0
    %4793 = vmatpush1.bf16.msra.mxu0 %v4629
    %4794 = vmatprep.subr.bf16.mxu0 0
    %4795 = vmatpush1.bf16.msra.mxu0 %v4630
    %4796 = vmatprep.subr.bf16.mxu0 0
    %4797 = vmatpush1.bf16.msra.mxu0 %v4631
    %4798 = vmatprep.subr.bf16.mxu0 0
    %4799 = vmatpush1.bf16.msra.mxu0 %v4632
    %4800 = vmatprep.mubr.bf16.mxu0 %v3141
    %4801 = vmatmul.mubr.bf16.gmra.mrb[0].mxu0 %v3140
    %v4802 = vpop.f32.mrb[0].mxu0
    %v4803 = vadd.f32 %v4762, %v4802
    %v4804 = vpop.f32.mrb[0].mxu0
    %v4805 = vpop.f32.mrb[0].mxu0
    %v4806 = vadd.f32 %v4765, %v4805
    %v4807 = vpop.f32.mrb[0].mxu0
    %4808 = vdwg.mxu0
    %4809 = vmatprep.subr.bf16.mxu0 0
    %4810 = vmatpush1.bf16.msra.mxu0 %v4633
    %4811 = vmatprep.subr.bf16.mxu0 0
    %4812 = vmatpush1.bf16.msra.mxu0 0
    %4813 = vmatprep.subr.bf16.mxu0 0
    %4814 = vmatpush1.bf16.msra.mxu0 0
    %4815 = vmatprep.subr.bf16.mxu0 0
    %4816 = vmatpush1.bf16.msra.mxu0 0
    %4817 = vmatprep.subr.bf16.mxu0 0
    %4818 = vmatpush1.bf16.msra.mxu0 0
    %4819 = vmatprep.subr.bf16.mxu0 0
    %4820 = vmatpush1.bf16.msra.mxu0 0
    %4821 = vmatprep.subr.bf16.mxu0 0
    %4822 = vmatpush1.bf16.msra.mxu0 0
    %4823 = vmatprep.subr.bf16.mxu0 0
    %4824 = vmatpush1.bf16.msra.mxu0 0
    %4825 = vmatprep.subr.bf16.mxu0 0
    %4826 = vmatpush1.bf16.msra.mxu0 0
    %4827 = vmatprep.subr.bf16.mxu0 0
    %4828 = vmatpush1.bf16.msra.mxu0 0
    %4829 = vmatprep.subr.bf16.mxu0 0
    %4830 = vmatpush1.bf16.msra.mxu0 0
    %4831 = vmatprep.subr.bf16.mxu0 0
    %4832 = vmatpush1.bf16.msra.mxu0 0
    %4833 = vmatprep.subr.bf16.mxu0 0
    %4834 = vmatpush1.bf16.msra.mxu0 0
    %4835 = vmatprep.subr.bf16.mxu0 0
    %4836 = vmatpush1.bf16.msra.mxu0 0
    %4837 = vmatprep.subr.bf16.mxu0 0
    %4838 = vmatpush1.bf16.msra.mxu0 0
    %4839 = vmatprep.subr.bf16.mxu0 0
    %4840 = vmatpush1.bf16.msra.mxu0 0
    %4841 = vmatprep.mubr.bf16.mxu0 0
    %4842 = vmatmul.mubr.bf16.gmra.mrb[0].mxu0 %v4684
    %v4843 = vpop.f32.mrb[0].mxu0
    %v4844 = vadd.f32 %v4803, %v4843
    %v4845 = vpop.f32.mrb[0].mxu0
    %v4846 = vpop.f32.mrb[0].mxu0
    %v4847 = vadd.f32 %v4806, %v4846
    %v4848 = vpop.f32.mrb[0].mxu0
    %4849 = vdwg.mxu0
    %v4850 = vadd.f32 %v4284, %v4844
    %v4851 = vadd.f32 %v4287, %v4847
    %s4852 = scalar_lea.vmem %s2, 392
    %v4853 = vld [vmem:[%s4852] sm:$0xf]
    %v4854 = vld [vmem:[%s4852 + $0x4] sm:$0xf]
    %v4855 = vld [vmem:[%s4852 + $0x8] sm:$0xf]
    %v4856 = vld [vmem:[%s4852 + $0xc] sm:$0xf]
    %v4857 = vld [vmem:[%s4852 + $0x10] sm:$0xf]
    %v4858 = vld [vmem:[%s4852 + $0x14] sm:$0xf]
    %v4859 = vld [vmem:[%s4852 + $0x18] sm:$0xf]
    %v4860 = vld [vmem:[%s4852 + $0x1c] sm:$0xf]
    %v4861 = vld [vmem:[%s4852 + $0x20] sm:$0xf]
    %v4862 = vld [vmem:[%s4852 + $0x24] sm:$0xf]
    %v4863 = vld [vmem:[%s4852 + $0x28] sm:$0xf]
    %v4864 = vld [vmem:[%s4852 + $0x2c] sm:$0xf]
    %v4865 = vld [vmem:[%s4852 + $0x30] sm:$0xf]
    %v4866 = vld [vmem:[%s4852 + $0x34] sm:$0xf]
    %v4867 = vld [vmem:[%s4852 + $0x38] sm:$0xf]
    %v4868 = vld [vmem:[%s4852 + $0x3c] sm:$0xf]
    %v4869 = vld [vmem:[%s4852 + $0x40] sm:$0xf]
    %v4870 = vld [vmem:[%s4852 + $0x44] sm:$0xf]
    %v4871 = vld [vmem:[%s4852 + $0x48] sm:$0xf]
    %v4872 = vld [vmem:[%s4852 + $0x4c] sm:$0xf]
    %v4873 = vld [vmem:[%s4852 + $0x50] sm:$0xf]
    %v4874 = vld [vmem:[%s4852 + $0x54] sm:$0xf]
    %v4875 = vld [vmem:[%s4852 + $0x58] sm:$0xf]
    %v4876 = vld [vmem:[%s4852 + $0x5c] sm:$0xf]
    %v4877 = vld [vmem:[%s4852 + $0x60] sm:$0xf]
    %v4878 = vld [vmem:[%s4852 + $0x64] sm:$0xf]
    %v4879 = vld [vmem:[%s4852 + $0x68] sm:$0xf]
    %v4880 = vld [vmem:[%s4852 + $0x6c] sm:$0xf]
    %v4881 = vld [vmem:[%s4852 + $0x70] sm:$0xf]
    %v4882 = vld [vmem:[%s4852 + $0x74] sm:$0xf]
    %v4883 = vld [vmem:[%s4852 + $0x78] sm:$0xf]
    %v4884 = vld [vmem:[%s4852 + $0x7c] sm:$0xf]
    %v4885 = vld [vmem:[%s4852 + $0x80] sm:$0xf]
    %v4886 = vld [vmem:[%s4852 + $0x84] sm:$0xf]
    %v4887 = vld [vmem:[%s4852 + $0x88] sm:$0xf]
    %v4888 = vld [vmem:[%s4852 + $0x8c] sm:$0xf]
    %v4889 = vld [vmem:[%s4852 + $0x90] sm:$0xf]
    %v4890 = vld [vmem:[%s4852 + $0x94] sm:$0xf]
    %v4891 = vld [vmem:[%s4852 + $0x98] sm:$0xf]
    %v4892 = vld [vmem:[%s4852 + $0x9c] sm:$0xf]
    %v4893 = vld [vmem:[%s4852 + $0xa0] sm:$0xf]
    %v4894 = vld [vmem:[%s4852 + $0xa4] sm:$0xf]
    %v4895 = vld [vmem:[%s4852 + $0xa8] sm:$0xf]
    %v4896 = vld [vmem:[%s4852 + $0xac] sm:$0xf]
    %v4897 = vld [vmem:[%s4852 + $0xb0] sm:$0xf]
    %v4898 = vld [vmem:[%s4852 + $0xb4] sm:$0xf]
    %v4899 = vld [vmem:[%s4852 + $0xb8] sm:$0xf]
    %v4900 = vld [vmem:[%s4852 + $0xbc] sm:$0xf]
    %v4901 = vld [vmem:[%s4852 + $0xc0] sm:$0xf]
    %v4902 = vld [vmem:[%s4852 + $0xc4] sm:$0xf]
    %v4903 = vld [vmem:[%s4852 + $0xc8] sm:$0xf]
    %v4904 = vld [vmem:[%s4852 + $0xcc] sm:$0xf]
    %v4905 = vld [vmem:[%s4852 + $0xd0] sm:$0xf]
    %v4906 = vld [vmem:[%s4852 + $0xd4] sm:$0xf]
    %v4907 = vld [vmem:[%s4852 + $0xd8] sm:$0xf]
    %v4908 = vld [vmem:[%s4852 + $0xdc] sm:$0xf]
    %v4909 = vld [vmem:[%s4852 + $0xe0] sm:$0xf]
    %v4910 = vld [vmem:[%s4852 + $0xe4] sm:$0xf]
    %v4911 = vld [vmem:[%s4852 + $0xe8] sm:$0xf]
    %v4912 = vld [vmem:[%s4852 + $0xec] sm:$0xf]
    %v4913 = vld [vmem:[%s4852 + $0xf0] sm:$0xf]
    %v4914 = vld [vmem:[%s4852 + $0xf4] sm:$0xf]
    %v4915 = vld [vmem:[%s4852 + $0xf8] sm:$0xf]
    %v4916 = vld [vmem:[%s4852 + $0xfc] sm:$0xf]
    %v4917 = vld [vmem:[%s4852 + $0x100] sm:$0xf]
    %v4918 = vld [vmem:[%s4852 + $0x104] sm:$0xf]
    %v4919 = vld [vmem:[%s4852 + $0x108] sm:$0xf]
    %v4920 = vld [vmem:[%s4852 + $0x10c] sm:$0xf]
    %v4921 = vld [vmem:[%s4852 + $0x110] sm:$0xf]
    %v4922 = vld [vmem:[%s4852 + $0x114] sm:$0xf]
    %v4923 = vld [vmem:[%s4852 + $0x118] sm:$0xf]
    %v4924 = vld [vmem:[%s4852 + $0x11c] sm:$0xf]
    %v4925 = vld [vmem:[%s4852 + $0x120] sm:$0xf]
    %v4926 = vld [vmem:[%s4852 + $0x124] sm:$0xf]
    %v4927 = vld [vmem:[%s4852 + $0x128] sm:$0xf]
    %v4928 = vld [vmem:[%s4852 + $0x12c] sm:$0xf]
    %v4929 = vld [vmem:[%s4852 + $0x130] sm:$0xf]
    %v4930 = vld [vmem:[%s4852 + $0x134] sm:$0xf]
    %v4931 = vld [vmem:[%s4852 + $0x138] sm:$0xf]
    %v4932 = vld [vmem:[%s4852 + $0x13c] sm:$0xf]
    %v4933 = vld [vmem:[%s4852 + $0x140] sm:$0xf]
    %v4934 = vld [vmem:[%s4852 + $0x144] sm:$0xf]
    %v4935 = vld [vmem:[%s4852 + $0x148] sm:$0xf]
    %v4936 = vld [vmem:[%s4852 + $0x14c] sm:$0xf]
    %v4937 = vld [vmem:[%s4852 + $0x150] sm:$0xf]
    %v4938 = vld [vmem:[%s4852 + $0x154] sm:$0xf]
    %v4939 = vld [vmem:[%s4852 + $0x158] sm:$0xf]
    %v4940 = vld [vmem:[%s4852 + $0x15c] sm:$0xf]
    %v4941 = vld [vmem:[%s4852 + $0x160] sm:$0xf]
    %v4942 = vld [vmem:[%s4852 + $0x164] sm:$0xf]
    %v4943 = vld [vmem:[%s4852 + $0x168] sm:$0xf]
    %v4944 = vld [vmem:[%s4852 + $0x16c] sm:$0xf]
    %v4945 = vld [vmem:[%s4852 + $0x170] sm:$0xf]
    %v4946 = vld [vmem:[%s4852 + $0x174] sm:$0xf]
    %v4947 = vld [vmem:[%s4852 + $0x178] sm:$0xf]
    %v4948 = vld [vmem:[%s4852 + $0x17c] sm:$0xf]
    %v4949 = vld [vmem:[%s4852 + $0x180] sm:$0xf]
    %v4950 = vld [vmem:[%s4852 + $0x184] sm:$0xf]
    %v5049 = vunpack.c.l.b16 %v4853
    %v5050 = vunpack.c.l.b16 %v4854
    %v5051 = vunpack.c.l.b16 %v4855
    %v5052 = vunpack.c.l.b16 %v4856
    %v5053 = vunpack.c.l.b16 %v4857
    %v5054 = vunpack.c.l.b16 %v4858
    %v5055 = vunpack.c.l.b16 %v4859
    %v5056 = vunpack.c.l.b16 %v4860
    %v5057 = vunpack.c.l.b16 %v4861
    %v5058 = vunpack.c.l.b16 %v4862
    %v5059 = vunpack.c.l.b16 %v4863
    %v5060 = vunpack.c.l.b16 %v4864
    %v5061 = vunpack.c.l.b16 %v4865
    %v5062 = vunpack.c.l.b16 %v4866
    %v5063 = vunpack.c.l.b16 %v4867
    %v5064 = vunpack.c.l.b16 %v4868
    %v5065 = vunpack.c.l.b16 %v4869
    %v5066 = vunpack.c.l.b16 %v4870
    %v5067 = vunpack.c.l.b16 %v4871
    %v5068 = vunpack.c.l.b16 %v4872
    %v5069 = vunpack.c.l.b16 %v4873
    %v5070 = vunpack.c.l.b16 %v4874
    %v5071 = vunpack.c.l.b16 %v4875
    %v5072 = vunpack.c.l.b16 %v4876
    %v5073 = vunpack.c.l.b16 %v4877
    %v5074 = vunpack.c.l.b16 %v4878
    %v5075 = vunpack.c.l.b16 %v4879
    %v5076 = vunpack.c.l.b16 %v4880
    %v5077 = vunpack.c.l.b16 %v4881
    %v5078 = vunpack.c.l.b16 %v4882
    %v5079 = vunpack.c.l.b16 %v4883
    %v5080 = vunpack.c.l.b16 %v4884
    %v5081 = vunpack.c.l.b16 %v4885
    %v5082 = vunpack.c.l.b16 %v4886
    %v5083 = vunpack.c.l.b16 %v4887
    %v5084 = vunpack.c.l.b16 %v4888
    %v5085 = vunpack.c.l.b16 %v4889
    %v5086 = vunpack.c.l.b16 %v4890
    %v5087 = vunpack.c.l.b16 %v4891
    %v5088 = vunpack.c.l.b16 %v4892
    %v5089 = vunpack.c.l.b16 %v4893
    %v5090 = vunpack.c.l.b16 %v4894
    %v5091 = vunpack.c.l.b16 %v4895
    %v5092 = vunpack.c.l.b16 %v4896
    %v5093 = vunpack.c.l.b16 %v4897
    %v5094 = vunpack.c.l.b16 %v4898
    %v5095 = vunpack.c.l.b16 %v4899
    %v5096 = vunpack.c.l.b16 %v4900
    %v5097 = vunpack.c.l.b16 %v4901
    %v5098 = vunpack.c.l.b16 %v4902
    %v5099 = vunpack.c.l.b16 %v4903
    %v5100 = vunpack.c.l.b16 %v4904
    %v5101 = vunpack.c.l.b16 %v4905
    %v5102 = vunpack.c.l.b16 %v4906
    %v5103 = vunpack.c.l.b16 %v4907
    %v5104 = vunpack.c.l.b16 %v4908
    %v5105 = vunpack.c.l.b16 %v4909
    %v5106 = vunpack.c.l.b16 %v4910
    %v5107 = vunpack.c.l.b16 %v4911
    %v5108 = vunpack.c.l.b16 %v4912
    %v5109 = vunpack.c.l.b16 %v4913
    %v5110 = vunpack.c.l.b16 %v4914
    %v5111 = vunpack.c.l.b16 %v4915
    %v5112 = vunpack.c.l.b16 %v4916
    %v5113 = vunpack.c.l.b16 %v4917
    %v5114 = vunpack.c.l.b16 %v4918
    %v5115 = vunpack.c.l.b16 %v4919
    %v5116 = vunpack.c.l.b16 %v4920
    %v5117 = vunpack.c.l.b16 %v4921
    %v5118 = vunpack.c.l.b16 %v4922
    %v5119 = vunpack.c.l.b16 %v4923
    %v5120 = vunpack.c.l.b16 %v4924
    %v5121 = vunpack.c.l.b16 %v4925
    %v5122 = vunpack.c.l.b16 %v4926
    %v5123 = vunpack.c.l.b16 %v4927
    %v5124 = vunpack.c.l.b16 %v4928
    %v5125 = vunpack.c.l.b16 %v4929
    %v5126 = vunpack.c.l.b16 %v4930
    %v5127 = vunpack.c.l.b16 %v4931
    %v5128 = vunpack.c.l.b16 %v4932
    %v5129 = vunpack.c.l.b16 %v4933
    %v5130 = vunpack.c.l.b16 %v4934
    %v5131 = vunpack.c.l.b16 %v4935
    %v5132 = vunpack.c.l.b16 %v4936
    %v5133 = vunpack.c.l.b16 %v4937
    %v5134 = vunpack.c.l.b16 %v4938
    %v5135 = vunpack.c.l.b16 %v4939
    %v5136 = vunpack.c.l.b16 %v4940
    %v5137 = vunpack.c.l.b16 %v4941
    %v5138 = vunpack.c.l.b16 %v4942
    %v5139 = vunpack.c.l.b16 %v4943
    %v5140 = vunpack.c.l.b16 %v4944
    %v5141 = vunpack.c.l.b16 %v4945
    %v5142 = vunpack.c.l.b16 %v4946
    %v5143 = vunpack.c.l.b16 %v4947
    %v5144 = vunpack.c.l.b16 %v4948
    %v5145 = vunpack.c.l.b16 %v4949
    %v5146 = vunpack.c.l.b16 %v4950
    %v5147 = vpack.c.b16 %v5050, %v5049
    %v5148 = vpack.c.b16 %v5052, %v5051
    %v5149 = vpack.c.b16 %v5054, %v5053
    %v5150 = vpack.c.b16 %v5056, %v5055
    %v5151 = vpack.c.b16 %v5058, %v5057
    %v5152 = vpack.c.b16 %v5060, %v5059
    %v5153 = vpack.c.b16 %v5062, %v5061
    %v5154 = vpack.c.b16 %v5064, %v5063
    %v5155 = vpack.c.b16 %v5066, %v5065
    %v5156 = vpack.c.b16 %v5068, %v5067
    %v5157 = vpack.c.b16 %v5070, %v5069
    %v5158 = vpack.c.b16 %v5072, %v5071
    %v5159 = vpack.c.b16 %v5074, %v5073
    %v5160 = vpack.c.b16 %v5076, %v5075
    %v5161 = vpack.c.b16 %v5078, %v5077
    %v5162 = vpack.c.b16 %v5080, %v5079
    %v5163 = vpack.c.b16 %v5082, %v5081
    %v5164 = vpack.c.b16 %v5084, %v5083
    %v5165 = vpack.c.b16 %v5086, %v5085
    %v5166 = vpack.c.b16 %v5088, %v5087
    %v5167 = vpack.c.b16 %v5090, %v5089
    %v5168 = vpack.c.b16 %v5092, %v5091
    %v5169 = vpack.c.b16 %v5094, %v5093
    %v5170 = vpack.c.b16 %v5096, %v5095
    %v5171 = vpack.c.b16 %v5098, %v5097
    %v5172 = vpack.c.b16 %v5100, %v5099
    %v5173 = vpack.c.b16 %v5102, %v5101
    %v5174 = vpack.c.b16 %v5104, %v5103
    %v5175 = vpack.c.b16 %v5106, %v5105
    %v5176 = vpack.c.b16 %v5108, %v5107
    %v5177 = vpack.c.b16 %v5110, %v5109
    %v5178 = vpack.c.b16 %v5112, %v5111
    %v5179 = vpack.c.b16 %v5114, %v5113
    %v5180 = vpack.c.b16 %v5116, %v5115
    %v5181 = vpack.c.b16 %v5118, %v5117
    %v5182 = vpack.c.b16 %v5120, %v5119
    %v5183 = vpack.c.b16 %v5122, %v5121
    %v5184 = vpack.c.b16 %v5124, %v5123
    %v5185 = vpack.c.b16 %v5126, %v5125
    %v5186 = vpack.c.b16 %v5128, %v5127
    %v5187 = vpack.c.b16 %v5130, %v5129
    %v5188 = vpack.c.b16 %v5132, %v5131
    %v5189 = vpack.c.b16 %v5134, %v5133
    %v5190 = vpack.c.b16 %v5136, %v5135
    %v5191 = vpack.c.b16 %v5138, %v5137
    %v5192 = vpack.c.b16 %v5140, %v5139
    %v5193 = vpack.c.b16 %v5142, %v5141
    %v5194 = vpack.c.b16 %v5144, %v5143
    %v5195 = vpack.c.b16 %v5146, %v5145
    %v5246 = vsel %vm3661, %v3163, 0
    %5248 = vmatprep.subr.bf16.mxu0 0
    %5249 = vmatpush1.bf16.msra.mxu0 %v5147
    %5250 = vmatprep.subr.bf16.mxu0 0
    %5251 = vmatpush1.bf16.msra.mxu0 %v5148
    %5252 = vmatprep.subr.bf16.mxu0 0
    %5253 = vmatpush1.bf16.msra.mxu0 %v5149
    %5254 = vmatprep.subr.bf16.mxu0 0
    %5255 = vmatpush1.bf16.msra.mxu0 %v5150
    %5256 = vmatprep.subr.bf16.mxu0 0
    %5257 = vmatpush1.bf16.msra.mxu0 %v5151
    %5258 = vmatprep.subr.bf16.mxu0 0
    %5259 = vmatpush1.bf16.msra.mxu0 %v5152
    %5260 = vmatprep.subr.bf16.mxu0 0
    %5261 = vmatpush1.bf16.msra.mxu0 %v5153
    %5262 = vmatprep.subr.bf16.mxu0 0
    %5263 = vmatpush1.bf16.msra.mxu0 %v5154
    %5264 = vmatprep.subr.bf16.mxu0 0
    %5265 = vmatpush1.bf16.msra.mxu0 %v5155
    %5266 = vmatprep.subr.bf16.mxu0 0
    %5267 = vmatpush1.bf16.msra.mxu0 %v5156
    %5268 = vmatprep.subr.bf16.mxu0 0
    %5269 = vmatpush1.bf16.msra.mxu0 %v5157
    %5270 = vmatprep.subr.bf16.mxu0 0
    %5271 = vmatpush1.bf16.msra.mxu0 %v5158
    %5272 = vmatprep.subr.bf16.mxu0 0
    %5273 = vmatpush1.bf16.msra.mxu0 %v5159
    %5274 = vmatprep.subr.bf16.mxu0 0
    %5275 = vmatpush1.bf16.msra.mxu0 %v5160
    %5276 = vmatprep.subr.bf16.mxu0 0
    %5277 = vmatpush1.bf16.msra.mxu0 %v5161
    %5278 = vmatprep.subr.bf16.mxu0 0
    %5279 = vmatpush1.bf16.msra.mxu0 %v5162
    %5280 = vmatprep.mubr.bf16.mxu0 %v3158
    %5281 = vmatmul.mubr.bf16.gmra.mrb[0].mxu0 %v3157
    %v5282 = vpop.f32.mrb[0].mxu0
    %v5283 = vadd.f32 0.0, %v5282
    %v5284 = vpop.f32.mrb[0].mxu0
    %v5285 = vpop.f32.mrb[0].mxu0
    %v5286 = vadd.f32 0.0, %v5285
    %v5287 = vpop.f32.mrb[0].mxu0
    %5288 = vdwg.mxu0
    %5289 = vmatprep.subr.bf16.mxu0 0
    %5290 = vmatpush1.bf16.msra.mxu0 %v5163
    %5291 = vmatprep.subr.bf16.mxu0 0
    %5292 = vmatpush1.bf16.msra.mxu0 %v5164
    %5293 = vmatprep.subr.bf16.mxu0 0
    %5294 = vmatpush1.bf16.msra.mxu0 %v5165
    %5295 = vmatprep.subr.bf16.mxu0 0
    %5296 = vmatpush1.bf16.msra.mxu0 %v5166
    %5297 = vmatprep.subr.bf16.mxu0 0
    %5298 = vmatpush1.bf16.msra.mxu0 %v5167
    %5299 = vmatprep.subr.bf16.mxu0 0
    %5300 = vmatpush1.bf16.msra.mxu0 %v5168
    %5301 = vmatprep.subr.bf16.mxu0 0
    %5302 = vmatpush1.bf16.msra.mxu0 %v5169
    %5303 = vmatprep.subr.bf16.mxu0 0
    %5304 = vmatpush1.bf16.msra.mxu0 %v5170
    %5305 = vmatprep.subr.bf16.mxu0 0
    %5306 = vmatpush1.bf16.msra.mxu0 %v5171
    %5307 = vmatprep.subr.bf16.mxu0 0
    %5308 = vmatpush1.bf16.msra.mxu0 %v5172
    %5309 = vmatprep.subr.bf16.mxu0 0
    %5310 = vmatpush1.bf16.msra.mxu0 %v5173
    %5311 = vmatprep.subr.bf16.mxu0 0
    %5312 = vmatpush1.bf16.msra.mxu0 %v5174
    %5313 = vmatprep.subr.bf16.mxu0 0
    %5314 = vmatpush1.bf16.msra.mxu0 %v5175
    %5315 = vmatprep.subr.bf16.mxu0 0
    %5316 = vmatpush1.bf16.msra.mxu0 %v5176
    %5317 = vmatprep.subr.bf16.mxu0 0
    %5318 = vmatpush1.bf16.msra.mxu0 %v5177
    %5319 = vmatprep.subr.bf16.mxu0 0
    %5320 = vmatpush1.bf16.msra.mxu0 %v5178
    %5321 = vmatprep.mubr.bf16.mxu0 %v3160
    %5322 = vmatmul.mubr.bf16.gmra.mrb[0].mxu0 %v3159
    %v5323 = vpop.f32.mrb[0].mxu0
    %v5324 = vadd.f32 %v5283, %v5323
    %v5325 = vpop.f32.mrb[0].mxu0
    %v5326 = vpop.f32.mrb[0].mxu0
    %v5327 = vadd.f32 %v5286, %v5326
    %v5328 = vpop.f32.mrb[0].mxu0
    %5329 = vdwg.mxu0
    %5330 = vmatprep.subr.bf16.mxu0 0
    %5331 = vmatpush1.bf16.msra.mxu0 %v5179
    %5332 = vmatprep.subr.bf16.mxu0 0
    %5333 = vmatpush1.bf16.msra.mxu0 %v5180
    %5334 = vmatprep.subr.bf16.mxu0 0
    %5335 = vmatpush1.bf16.msra.mxu0 %v5181
    %5336 = vmatprep.subr.bf16.mxu0 0
    %5337 = vmatpush1.bf16.msra.mxu0 %v5182
    %5338 = vmatprep.subr.bf16.mxu0 0
    %5339 = vmatpush1.bf16.msra.mxu0 %v5183
    %5340 = vmatprep.subr.bf16.mxu0 0
    %5341 = vmatpush1.bf16.msra.mxu0 %v5184
    %5342 = vmatprep.subr.bf16.mxu0 0
    %5343 = vmatpush1.bf16.msra.mxu0 %v5185
    %5344 = vmatprep.subr.bf16.mxu0 0
    %5345 = vmatpush1.bf16.msra.mxu0 %v5186
    %5346 = vmatprep.subr.bf16.mxu0 0
    %5347 = vmatpush1.bf16.msra.mxu0 %v5187
    %5348 = vmatprep.subr.bf16.mxu0 0
    %5349 = vmatpush1.bf16.msra.mxu0 %v5188
    %5350 = vmatprep.subr.bf16.mxu0 0
    %5351 = vmatpush1.bf16.msra.mxu0 %v5189
    %5352 = vmatprep.subr.bf16.mxu0 0
    %5353 = vmatpush1.bf16.msra.mxu0 %v5190
    %5354 = vmatprep.subr.bf16.mxu0 0
    %5355 = vmatpush1.bf16.msra.mxu0 %v5191
    %5356 = vmatprep.subr.bf16.mxu0 0
    %5357 = vmatpush1.bf16.msra.mxu0 %v5192
    %5358 = vmatprep.subr.bf16.mxu0 0
    %5359 = vmatpush1.bf16.msra.mxu0 %v5193
    %5360 = vmatprep.subr.bf16.mxu0 0
    %5361 = vmatpush1.bf16.msra.mxu0 %v5194
    %5362 = vmatprep.mubr.bf16.mxu0 %v3162
    %5363 = vmatmul.mubr.bf16.gmra.mrb[0].mxu0 %v3161
    %v5364 = vpop.f32.mrb[0].mxu0
    %v5365 = vadd.f32 %v5324, %v5364
    %v5366 = vpop.f32.mrb[0].mxu0
    %v5367 = vpop.f32.mrb[0].mxu0
    %v5368 = vadd.f32 %v5327, %v5367
    %v5369 = vpop.f32.mrb[0].mxu0
    %5370 = vdwg.mxu0
    %5371 = vmatprep.subr.bf16.mxu0 0
    %5372 = vmatpush1.bf16.msra.mxu0 %v5195
    %5373 = vmatprep.subr.bf16.mxu0 0
    %5374 = vmatpush1.bf16.msra.mxu0 0
    %5375 = vmatprep.subr.bf16.mxu0 0
    %5376 = vmatpush1.bf16.msra.mxu0 0
    %5377 = vmatprep.subr.bf16.mxu0 0
    %5378 = vmatpush1.bf16.msra.mxu0 0
    %5379 = vmatprep.subr.bf16.mxu0 0
    %5380 = vmatpush1.bf16.msra.mxu0 0
    %5381 = vmatprep.subr.bf16.mxu0 0
    %5382 = vmatpush1.bf16.msra.mxu0 0
    %5383 = vmatprep.subr.bf16.mxu0 0
    %5384 = vmatpush1.bf16.msra.mxu0 0
    %5385 = vmatprep.subr.bf16.mxu0 0
    %5386 = vmatpush1.bf16.msra.mxu0 0
    %5387 = vmatprep.subr.bf16.mxu0 0
    %5388 = vmatpush1.bf16.msra.mxu0 0
    %5389 = vmatprep.subr.bf16.mxu0 0
    %5390 = vmatpush1.bf16.msra.mxu0 0
    %5391 = vmatprep.subr.bf16.mxu0 0
    %5392 = vmatpush1.bf16.msra.mxu0 0
    %5393 = vmatprep.subr.bf16.mxu0 0
    %5394 = vmatpush1.bf16.msra.mxu0 0
    %5395 = vmatprep.subr.bf16.mxu0 0
    %5396 = vmatpush1.bf16.msra.mxu0 0
    %5397 = vmatprep.subr.bf16.mxu0 0
    %5398 = vmatpush1.bf16.msra.mxu0 0
    %5399 = vmatprep.subr.bf16.mxu0 0
    %5400 = vmatpush1.bf16.msra.mxu0 0
    %5401 = vmatprep.subr.bf16.mxu0 0
    %5402 = vmatpush1.bf16.msra.mxu0 0
    %5403 = vmatprep.mubr.bf16.mxu0 0
    %5404 = vmatmul.mubr.bf16.gmra.mrb[0].mxu0 %v5246
    %v5405 = vpop.f32.mrb[0].mxu0
    %v5406 = vadd.f32 %v5365, %v5405
    %v5407 = vpop.f32.mrb[0].mxu0
    %v5408 = vpop.f32.mrb[0].mxu0
    %v5409 = vadd.f32 %v5368, %v5408
    %v5410 = vpop.f32.mrb[0].mxu0
    %5411 = vdwg.mxu0
    %v5412 = vadd.f32 %v4850, %v5406
    %v5413 = vadd.f32 %v4851, %v5409
    %s5414 = scalar_lea.vmem %s1, 784
    %v5415 = vld [vmem:[%s5414] sm:$0xf]
    %v5416 = vld [vmem:[%s5414 + $0x4] sm:$0xf]
    %v5417 = vld [vmem:[%s5414 + $0x8] sm:$0xf]
    %v5418 = vld [vmem:[%s5414 + $0xc] sm:$0xf]
    %v5419 = vld [vmem:[%s5414 + $0x10] sm:$0xf]
    %v5420 = vld [vmem:[%s5414 + $0x14] sm:$0xf]
    %v5421 = vld [vmem:[%s5414 + $0x18] sm:$0xf]
    %v5422 = vld [vmem:[%s5414 + $0x1c] sm:$0xf]
    %v5423 = vld [vmem:[%s5414 + $0x20] sm:$0xf]
    %v5424 = vld [vmem:[%s5414 + $0x24] sm:$0xf]
    %v5425 = vld [vmem:[%s5414 + $0x28] sm:$0xf]
    %v5426 = vld [vmem:[%s5414 + $0x2c] sm:$0xf]
    %v5427 = vld [vmem:[%s5414 + $0x30] sm:$0xf]
    %v5428 = vld [vmem:[%s5414 + $0x34] sm:$0xf]
    %v5429 = vld [vmem:[%s5414 + $0x38] sm:$0xf]
    %v5430 = vld [vmem:[%s5414 + $0x3c] sm:$0xf]
    %v5431 = vld [vmem:[%s5414 + $0x40] sm:$0xf]
    %v5432 = vld [vmem:[%s5414 + $0x44] sm:$0xf]
    %v5433 = vld [vmem:[%s5414 + $0x48] sm:$0xf]
    %v5434 = vld [vmem:[%s5414 + $0x4c] sm:$0xf]
    %v5435 = vld [vmem:[%s5414 + $0x50] sm:$0xf]
    %v5436 = vld [vmem:[%s5414 + $0x54] sm:$0xf]
    %v5437 = vld [vmem:[%s5414 + $0x58] sm:$0xf]
    %v5438 = vld [vmem:[%s5414 + $0x5c] sm:$0xf]
    %v5439 = vld [vmem:[%s5414 + $0x60] sm:$0xf]
    %v5440 = vld [vmem:[%s5414 + $0x64] sm:$0xf]
    %v5441 = vld [vmem:[%s5414 + $0x68] sm:$0xf]
    %v5442 = vld [vmem:[%s5414 + $0x6c] sm:$0xf]
    %v5443 = vld [vmem:[%s5414 + $0x70] sm:$0xf]
    %v5444 = vld [vmem:[%s5414 + $0x74] sm:$0xf]
    %v5445 = vld [vmem:[%s5414 + $0x78] sm:$0xf]
    %v5446 = vld [vmem:[%s5414 + $0x7c] sm:$0xf]
    %v5447 = vld [vmem:[%s5414 + $0x80] sm:$0xf]
    %v5448 = vld [vmem:[%s5414 + $0x84] sm:$0xf]
    %v5449 = vld [vmem:[%s5414 + $0x88] sm:$0xf]
    %v5450 = vld [vmem:[%s5414 + $0x8c] sm:$0xf]
    %v5451 = vld [vmem:[%s5414 + $0x90] sm:$0xf]
    %v5452 = vld [vmem:[%s5414 + $0x94] sm:$0xf]
    %v5453 = vld [vmem:[%s5414 + $0x98] sm:$0xf]
    %v5454 = vld [vmem:[%s5414 + $0x9c] sm:$0xf]
    %v5455 = vld [vmem:[%s5414 + $0xa0] sm:$0xf]
    %v5456 = vld [vmem:[%s5414 + $0xa4] sm:$0xf]
    %v5457 = vld [vmem:[%s5414 + $0xa8] sm:$0xf]
    %v5458 = vld [vmem:[%s5414 + $0xac] sm:$0xf]
    %v5459 = vld [vmem:[%s5414 + $0xb0] sm:$0xf]
    %v5460 = vld [vmem:[%s5414 + $0xb4] sm:$0xf]
    %v5461 = vld [vmem:[%s5414 + $0xb8] sm:$0xf]
    %v5462 = vld [vmem:[%s5414 + $0xbc] sm:$0xf]
    %v5463 = vld [vmem:[%s5414 + $0xc0] sm:$0xf]
    %v5464 = vld [vmem:[%s5414 + $0xc4] sm:$0xf]
    %v5465 = vld [vmem:[%s5414 + $0xc8] sm:$0xf]
    %v5466 = vld [vmem:[%s5414 + $0xcc] sm:$0xf]
    %v5467 = vld [vmem:[%s5414 + $0xd0] sm:$0xf]
    %v5468 = vld [vmem:[%s5414 + $0xd4] sm:$0xf]
    %v5469 = vld [vmem:[%s5414 + $0xd8] sm:$0xf]
    %v5470 = vld [vmem:[%s5414 + $0xdc] sm:$0xf]
    %v5471 = vld [vmem:[%s5414 + $0xe0] sm:$0xf]
    %v5472 = vld [vmem:[%s5414 + $0xe4] sm:$0xf]
    %v5473 = vld [vmem:[%s5414 + $0xe8] sm:$0xf]
    %v5474 = vld [vmem:[%s5414 + $0xec] sm:$0xf]
    %v5475 = vld [vmem:[%s5414 + $0xf0] sm:$0xf]
    %v5476 = vld [vmem:[%s5414 + $0xf4] sm:$0xf]
    %v5477 = vld [vmem:[%s5414 + $0xf8] sm:$0xf]
    %v5478 = vld [vmem:[%s5414 + $0xfc] sm:$0xf]
    %v5479 = vld [vmem:[%s5414 + $0x100] sm:$0xf]
    %v5480 = vld [vmem:[%s5414 + $0x104] sm:$0xf]
    %v5481 = vld [vmem:[%s5414 + $0x108] sm:$0xf]
    %v5482 = vld [vmem:[%s5414 + $0x10c] sm:$0xf]
    %v5483 = vld [vmem:[%s5414 + $0x110] sm:$0xf]
    %v5484 = vld [vmem:[%s5414 + $0x114] sm:$0xf]
    %v5485 = vld [vmem:[%s5414 + $0x118] sm:$0xf]
    %v5486 = vld [vmem:[%s5414 + $0x11c] sm:$0xf]
    %v5487 = vld [vmem:[%s5414 + $0x120] sm:$0xf]
    %v5488 = vld [vmem:[%s5414 + $0x124] sm:$0xf]
    %v5489 = vld [vmem:[%s5414 + $0x128] sm:$0xf]
    %v5490 = vld [vmem:[%s5414 + $0x12c] sm:$0xf]
    %v5491 = vld [vmem:[%s5414 + $0x130] sm:$0xf]
    %v5492 = vld [vmem:[%s5414 + $0x134] sm:$0xf]
    %v5493 = vld [vmem:[%s5414 + $0x138] sm:$0xf]
    %v5494 = vld [vmem:[%s5414 + $0x13c] sm:$0xf]
    %v5495 = vld [vmem:[%s5414 + $0x140] sm:$0xf]
    %v5496 = vld [vmem:[%s5414 + $0x144] sm:$0xf]
    %v5497 = vld [vmem:[%s5414 + $0x148] sm:$0xf]
    %v5498 = vld [vmem:[%s5414 + $0x14c] sm:$0xf]
    %v5499 = vld [vmem:[%s5414 + $0x150] sm:$0xf]
    %v5500 = vld [vmem:[%s5414 + $0x154] sm:$0xf]
    %v5501 = vld [vmem:[%s5414 + $0x158] sm:$0xf]
    %v5502 = vld [vmem:[%s5414 + $0x15c] sm:$0xf]
    %v5503 = vld [vmem:[%s5414 + $0x160] sm:$0xf]
    %v5504 = vld [vmem:[%s5414 + $0x164] sm:$0xf]
    %v5505 = vld [vmem:[%s5414 + $0x168] sm:$0xf]
    %v5506 = vld [vmem:[%s5414 + $0x16c] sm:$0xf]
    %v5507 = vld [vmem:[%s5414 + $0x170] sm:$0xf]
    %v5508 = vld [vmem:[%s5414 + $0x174] sm:$0xf]
    %v5509 = vld [vmem:[%s5414 + $0x178] sm:$0xf]
    %v5510 = vld [vmem:[%s5414 + $0x17c] sm:$0xf]
    %v5511 = vld [vmem:[%s5414 + $0x180] sm:$0xf]
    %v5512 = vld [vmem:[%s5414 + $0x184] sm:$0xf]
    %v5611 = vunpack.c.l.b16 %v5415
    %v5612 = vunpack.c.l.b16 %v5416
    %v5613 = vunpack.c.l.b16 %v5417
    %v5614 = vunpack.c.l.b16 %v5418
    %v5615 = vunpack.c.l.b16 %v5419
    %v5616 = vunpack.c.l.b16 %v5420
    %v5617 = vunpack.c.l.b16 %v5421
    %v5618 = vunpack.c.l.b16 %v5422
    %v5619 = vunpack.c.l.b16 %v5423
    %v5620 = vunpack.c.l.b16 %v5424
    %v5621 = vunpack.c.l.b16 %v5425
    %v5622 = vunpack.c.l.b16 %v5426
    %v5623 = vunpack.c.l.b16 %v5427
    %v5624 = vunpack.c.l.b16 %v5428
    %v5625 = vunpack.c.l.b16 %v5429
    %v5626 = vunpack.c.l.b16 %v5430
    %v5627 = vunpack.c.l.b16 %v5431
    %v5628 = vunpack.c.l.b16 %v5432
    %v5629 = vunpack.c.l.b16 %v5433
    %v5630 = vunpack.c.l.b16 %v5434
    %v5631 = vunpack.c.l.b16 %v5435
    %v5632 = vunpack.c.l.b16 %v5436
    %v5633 = vunpack.c.l.b16 %v5437
    %v5634 = vunpack.c.l.b16 %v5438
    %v5635 = vunpack.c.l.b16 %v5439
    %v5636 = vunpack.c.l.b16 %v5440
    %v5637 = vunpack.c.l.b16 %v5441
    %v5638 = vunpack.c.l.b16 %v5442
    %v5639 = vunpack.c.l.b16 %v5443
    %v5640 = vunpack.c.l.b16 %v5444
    %v5641 = vunpack.c.l.b16 %v5445
    %v5642 = vunpack.c.l.b16 %v5446
    %v5643 = vunpack.c.l.b16 %v5447
    %v5644 = vunpack.c.l.b16 %v5448
    %v5645 = vunpack.c.l.b16 %v5449
    %v5646 = vunpack.c.l.b16 %v5450
    %v5647 = vunpack.c.l.b16 %v5451
    %v5648 = vunpack.c.l.b16 %v5452
    %v5649 = vunpack.c.l.b16 %v5453
    %v5650 = vunpack.c.l.b16 %v5454
    %v5651 = vunpack.c.l.b16 %v5455
    %v5652 = vunpack.c.l.b16 %v5456
    %v5653 = vunpack.c.l.b16 %v5457
    %v5654 = vunpack.c.l.b16 %v5458
    %v5655 = vunpack.c.l.b16 %v5459
    %v5656 = vunpack.c.l.b16 %v5460
    %v5657 = vunpack.c.l.b16 %v5461
    %v5658 = vunpack.c.l.b16 %v5462
    %v5659 = vunpack.c.l.b16 %v5463
    %v5660 = vunpack.c.l.b16 %v5464
    %v5661 = vunpack.c.l.b16 %v5465
    %v5662 = vunpack.c.l.b16 %v5466
    %v5663 = vunpack.c.l.b16 %v5467
    %v5664 = vunpack.c.l.b16 %v5468
    %v5665 = vunpack.c.l.b16 %v5469
    %v5666 = vunpack.c.l.b16 %v5470
    %v5667 = vunpack.c.l.b16 %v5471
    %v5668 = vunpack.c.l.b16 %v5472
    %v5669 = vunpack.c.l.b16 %v5473
    %v5670 = vunpack.c.l.b16 %v5474
    %v5671 = vunpack.c.l.b16 %v5475
    %v5672 = vunpack.c.l.b16 %v5476
    %v5673 = vunpack.c.l.b16 %v5477
    %v5674 = vunpack.c.l.b16 %v5478
    %v5675 = vunpack.c.l.b16 %v5479
    %v5676 = vunpack.c.l.b16 %v5480
    %v5677 = vunpack.c.l.b16 %v5481
    %v5678 = vunpack.c.l.b16 %v5482
    %v5679 = vunpack.c.l.b16 %v5483
    %v5680 = vunpack.c.l.b16 %v5484
    %v5681 = vunpack.c.l.b16 %v5485
    %v5682 = vunpack.c.l.b16 %v5486
    %v5683 = vunpack.c.l.b16 %v5487
    %v5684 = vunpack.c.l.b16 %v5488
    %v5685 = vunpack.c.l.b16 %v5489
    %v5686 = vunpack.c.l.b16 %v5490
    %v5687 = vunpack.c.l.b16 %v5491
    %v5688 = vunpack.c.l.b16 %v5492
    %v5689 = vunpack.c.l.b16 %v5493
    %v5690 = vunpack.c.l.b16 %v5494
    %v5691 = vunpack.c.l.b16 %v5495
    %v5692 = vunpack.c.l.b16 %v5496
    %v5693 = vunpack.c.l.b16 %v5497
    %v5694 = vunpack.c.l.b16 %v5498
    %v5695 = vunpack.c.l.b16 %v5499
    %v5696 = vunpack.c.l.b16 %v5500
    %v5697 = vunpack.c.l.b16 %v5501
    %v5698 = vunpack.c.l.b16 %v5502
    %v5699 = vunpack.c.l.b16 %v5503
    %v5700 = vunpack.c.l.b16 %v5504
    %v5701 = vunpack.c.l.b16 %v5505
    %v5702 = vunpack.c.l.b16 %v5506
    %v5703 = vunpack.c.l.b16 %v5507
    %v5704 = vunpack.c.l.b16 %v5508
    %v5705 = vunpack.c.l.b16 %v5509
    %v5706 = vunpack.c.l.b16 %v5510
    %v5707 = vunpack.c.l.b16 %v5511
    %v5708 = vunpack.c.l.b16 %v5512
    %v5709 = vpack.c.b16 %v5612, %v5611
    %v5710 = vpack.c.b16 %v5614, %v5613
    %v5711 = vpack.c.b16 %v5616, %v5615
    %v5712 = vpack.c.b16 %v5618, %v5617
    %v5713 = vpack.c.b16 %v5620, %v5619
    %v5714 = vpack.c.b16 %v5622, %v5621
    %v5715 = vpack.c.b16 %v5624, %v5623
    %v5716 = vpack.c.b16 %v5626, %v5625
    %v5717 = vpack.c.b16 %v5628, %v5627
    %v5718 = vpack.c.b16 %v5630, %v5629
    %v5719 = vpack.c.b16 %v5632, %v5631
    %v5720 = vpack.c.b16 %v5634, %v5633
    %v5721 = vpack.c.b16 %v5636, %v5635
    %v5722 = vpack.c.b16 %v5638, %v5637
    %v5723 = vpack.c.b16 %v5640, %v5639
    %v5724 = vpack.c.b16 %v5642, %v5641
    %v5725 = vpack.c.b16 %v5644, %v5643
    %v5726 = vpack.c.b16 %v5646, %v5645
    %v5727 = vpack.c.b16 %v5648, %v5647
    %v5728 = vpack.c.b16 %v5650, %v5649
    %v5729 = vpack.c.b16 %v5652, %v5651
    %v5730 = vpack.c.b16 %v5654, %v5653
    %v5731 = vpack.c.b16 %v5656, %v5655
    %v5732 = vpack.c.b16 %v5658, %v5657
    %v5733 = vpack.c.b16 %v5660, %v5659
    %v5734 = vpack.c.b16 %v5662, %v5661
    %v5735 = vpack.c.b16 %v5664, %v5663
    %v5736 = vpack.c.b16 %v5666, %v5665
    %v5737 = vpack.c.b16 %v5668, %v5667
    %v5738 = vpack.c.b16 %v5670, %v5669
    %v5739 = vpack.c.b16 %v5672, %v5671
    %v5740 = vpack.c.b16 %v5674, %v5673
    %v5741 = vpack.c.b16 %v5676, %v5675
    %v5742 = vpack.c.b16 %v5678, %v5677
    %v5743 = vpack.c.b16 %v5680, %v5679
    %v5744 = vpack.c.b16 %v5682, %v5681
    %v5745 = vpack.c.b16 %v5684, %v5683
    %v5746 = vpack.c.b16 %v5686, %v5685
    %v5747 = vpack.c.b16 %v5688, %v5687
    %v5748 = vpack.c.b16 %v5690, %v5689
    %v5749 = vpack.c.b16 %v5692, %v5691
    %v5750 = vpack.c.b16 %v5694, %v5693
    %v5751 = vpack.c.b16 %v5696, %v5695
    %v5752 = vpack.c.b16 %v5698, %v5697
    %v5753 = vpack.c.b16 %v5700, %v5699
    %v5754 = vpack.c.b16 %v5702, %v5701
    %v5755 = vpack.c.b16 %v5704, %v5703
    %v5756 = vpack.c.b16 %v5706, %v5705
    %v5757 = vpack.c.b16 %v5708, %v5707
    %v5808 = vsel %vm3661, %v3149, 0
    %5810 = vmatprep.subr.bf16.mxu0 0
    %5811 = vmatpush1.bf16.msra.mxu0 %v5709
    %5812 = vmatprep.subr.bf16.mxu0 0
    %5813 = vmatpush1.bf16.msra.mxu0 %v5710
    %5814 = vmatprep.subr.bf16.mxu0 0
    %5815 = vmatpush1.bf16.msra.mxu0 %v5711
    %5816 = vmatprep.subr.bf16.mxu0 0
    %5817 = vmatpush1.bf16.msra.mxu0 %v5712
    %5818 = vmatprep.subr.bf16.mxu0 0
    %5819 = vmatpush1.bf16.msra.mxu0 %v5713
    %5820 = vmatprep.subr.bf16.mxu0 0
    %5821 = vmatpush1.bf16.msra.mxu0 %v5714
    %5822 = vmatprep.subr.bf16.mxu0 0
    %5823 = vmatpush1.bf16.msra.mxu0 %v5715
    %5824 = vmatprep.subr.bf16.mxu0 0
    %5825 = vmatpush1.bf16.msra.mxu0 %v5716
    %5826 = vmatprep.subr.bf16.mxu0 0
    %5827 = vmatpush1.bf16.msra.mxu0 %v5717
    %5828 = vmatprep.subr.bf16.mxu0 0
    %5829 = vmatpush1.bf16.msra.mxu0 %v5718
    %5830 = vmatprep.subr.bf16.mxu0 0
    %5831 = vmatpush1.bf16.msra.mxu0 %v5719
    %5832 = vmatprep.subr.bf16.mxu0 0
    %5833 = vmatpush1.bf16.msra.mxu0 %v5720
    %5834 = vmatprep.subr.bf16.mxu0 0
    %5835 = vmatpush1.bf16.msra.mxu0 %v5721
    %5836 = vmatprep.subr.bf16.mxu0 0
    %5837 = vmatpush1.bf16.msra.mxu0 %v5722
    %5838 = vmatprep.subr.bf16.mxu0 0
    %5839 = vmatpush1.bf16.msra.mxu0 %v5723
    %5840 = vmatprep.subr.bf16.mxu0 0
    %5841 = vmatpush1.bf16.msra.mxu0 %v5724
    %5842 = vmatprep.mubr.bf16.mxu0 %v3144
    %5843 = vmatmul.mubr.bf16.gmra.mrb[0].mxu0 %v3143
    %v5844 = vpop.f32.mrb[0].mxu0
    %v5845 = vadd.f32 0.0, %v5844
    %v5846 = vpop.f32.mrb[0].mxu0
    %v5847 = vpop.f32.mrb[0].mxu0
    %v5848 = vadd.f32 0.0, %v5847
    %v5849 = vpop.f32.mrb[0].mxu0
    %5850 = vdwg.mxu0
    %5851 = vmatprep.subr.bf16.mxu0 0
    %5852 = vmatpush1.bf16.msra.mxu0 %v5725
    %5853 = vmatprep.subr.bf16.mxu0 0
    %5854 = vmatpush1.bf16.msra.mxu0 %v5726
    %5855 = vmatprep.subr.bf16.mxu0 0
    %5856 = vmatpush1.bf16.msra.mxu0 %v5727
    %5857 = vmatprep.subr.bf16.mxu0 0
    %5858 = vmatpush1.bf16.msra.mxu0 %v5728
    %5859 = vmatprep.subr.bf16.mxu0 0
    %5860 = vmatpush1.bf16.msra.mxu0 %v5729
    %5861 = vmatprep.subr.bf16.mxu0 0
    %5862 = vmatpush1.bf16.msra.mxu0 %v5730
    %5863 = vmatprep.subr.bf16.mxu0 0
    %5864 = vmatpush1.bf16.msra.mxu0 %v5731
    %5865 = vmatprep.subr.bf16.mxu0 0
    %5866 = vmatpush1.bf16.msra.mxu0 %v5732
    %5867 = vmatprep.subr.bf16.mxu0 0
    %5868 = vmatpush1.bf16.msra.mxu0 %v5733
    %5869 = vmatprep.subr.bf16.mxu0 0
    %5870 = vmatpush1.bf16.msra.mxu0 %v5734
    %5871 = vmatprep.subr.bf16.mxu0 0
    %5872 = vmatpush1.bf16.msra.mxu0 %v5735
    %5873 = vmatprep.subr.bf16.mxu0 0
    %5874 = vmatpush1.bf16.msra.mxu0 %v5736
    %5875 = vmatprep.subr.bf16.mxu0 0
    %5876 = vmatpush1.bf16.msra.mxu0 %v5737
    %5877 = vmatprep.subr.bf16.mxu0 0
    %5878 = vmatpush1.bf16.msra.mxu0 %v5738
    %5879 = vmatprep.subr.bf16.mxu0 0
    %5880 = vmatpush1.bf16.msra.mxu0 %v5739
    %5881 = vmatprep.subr.bf16.mxu0 0
    %5882 = vmatpush1.bf16.msra.mxu0 %v5740
    %5883 = vmatprep.mubr.bf16.mxu0 %v3146
    %5884 = vmatmul.mubr.bf16.gmra.mrb[0].mxu0 %v3145
    %v5885 = vpop.f32.mrb[0].mxu0
    %v5886 = vadd.f32 %v5845, %v5885
    %v5887 = vpop.f32.mrb[0].mxu0
    %v5888 = vpop.f32.mrb[0].mxu0
    %v5889 = vadd.f32 %v5848, %v5888
    %v5890 = vpop.f32.mrb[0].mxu0
    %5891 = vdwg.mxu0
    %5892 = vmatprep.subr.bf16.mxu0 0
    %5893 = vmatpush1.bf16.msra.mxu0 %v5741
    %5894 = vmatprep.subr.bf16.mxu0 0
    %5895 = vmatpush1.bf16.msra.mxu0 %v5742
    %5896 = vmatprep.subr.bf16.mxu0 0
    %5897 = vmatpush1.bf16.msra.mxu0 %v5743
    %5898 = vmatprep.subr.bf16.mxu0 0
    %5899 = vmatpush1.bf16.msra.mxu0 %v5744
    %5900 = vmatprep.subr.bf16.mxu0 0
    %5901 = vmatpush1.bf16.msra.mxu0 %v5745
    %5902 = vmatprep.subr.bf16.mxu0 0
    %5903 = vmatpush1.bf16.msra.mxu0 %v5746
    %5904 = vmatprep.subr.bf16.mxu0 0
    %5905 = vmatpush1.bf16.msra.mxu0 %v5747
    %5906 = vmatprep.subr.bf16.mxu0 0
    %5907 = vmatpush1.bf16.msra.mxu0 %v5748
    %5908 = vmatprep.subr.bf16.mxu0 0
    %5909 = vmatpush1.bf16.msra.mxu0 %v5749
    %5910 = vmatprep.subr.bf16.mxu0 0
    %5911 = vmatpush1.bf16.msra.mxu0 %v5750
    %5912 = vmatprep.subr.bf16.mxu0 0
    %5913 = vmatpush1.bf16.msra.mxu0 %v5751
    %5914 = vmatprep.subr.bf16.mxu0 0
    %5915 = vmatpush1.bf16.msra.mxu0 %v5752
    %5916 = vmatprep.subr.bf16.mxu0 0
    %5917 = vmatpush1.bf16.msra.mxu0 %v5753
    %5918 = vmatprep.subr.bf16.mxu0 0
    %5919 = vmatpush1.bf16.msra.mxu0 %v5754
    %5920 = vmatprep.subr.bf16.mxu0 0
    %5921 = vmatpush1.bf16.msra.mxu0 %v5755
    %5922 = vmatprep.subr.bf16.mxu0 0
    %5923 = vmatpush1.bf16.msra.mxu0 %v5756
    %5924 = vmatprep.mubr.bf16.mxu0 %v3148
    %5925 = vmatmul.mubr.bf16.gmra.mrb[0].mxu0 %v3147
    %v5926 = vpop.f32.mrb[0].mxu0
    %v5927 = vadd.f32 %v5886, %v5926
    %v5928 = vpop.f32.mrb[0].mxu0
    %v5929 = vpop.f32.mrb[0].mxu0
    %v5930 = vadd.f32 %v5889, %v5929
    %v5931 = vpop.f32.mrb[0].mxu0
    %5932 = vdwg.mxu0
    %5933 = vmatprep.subr.bf16.mxu0 0
    %5934 = vmatpush1.bf16.msra.mxu0 %v5757
    %5935 = vmatprep.subr.bf16.mxu0 0
    %5936 = vmatpush1.bf16.msra.mxu0 0
    %5937 = vmatprep.subr.bf16.mxu0 0
    %5938 = vmatpush1.bf16.msra.mxu0 0
    %5939 = vmatprep.subr.bf16.mxu0 0
    %5940 = vmatpush1.bf16.msra.mxu0 0
    %5941 = vmatprep.subr.bf16.mxu0 0
    %5942 = vmatpush1.bf16.msra.mxu0 0
    %5943 = vmatprep.subr.bf16.mxu0 0
    %5944 = vmatpush1.bf16.msra.mxu0 0
    %5945 = vmatprep.subr.bf16.mxu0 0
    %5946 = vmatpush1.bf16.msra.mxu0 0
    %5947 = vmatprep.subr.bf16.mxu0 0
    %5948 = vmatpush1.bf16.msra.mxu0 0
    %5949 = vmatprep.subr.bf16.mxu0 0
    %5950 = vmatpush1.bf16.msra.mxu0 0
    %5951 = vmatprep.subr.bf16.mxu0 0
    %5952 = vmatpush1.bf16.msra.mxu0 0
    %5953 = vmatprep.subr.bf16.mxu0 0
    %5954 = vmatpush1.bf16.msra.mxu0 0
    %5955 = vmatprep.subr.bf16.mxu0 0
    %5956 = vmatpush1.bf16.msra.mxu0 0
    %5957 = vmatprep.subr.bf16.mxu0 0
    %5958 = vmatpush1.bf16.msra.mxu0 0
    %5959 = vmatprep.subr.bf16.mxu0 0
    %5960 = vmatpush1.bf16.msra.mxu0 0
    %5961 = vmatprep.subr.bf16.mxu0 0
    %5962 = vmatpush1.bf16.msra.mxu0 0
    %5963 = vmatprep.subr.bf16.mxu0 0
    %5964 = vmatpush1.bf16.msra.mxu0 0
    %5965 = vmatprep.mubr.bf16.mxu0 0
    %5966 = vmatmul.mubr.bf16.gmra.mrb[0].mxu0 %v5808
    %v5967 = vpop.f32.mrb[0].mxu0
    %v5968 = vadd.f32 %v5927, %v5967
    %v5969 = vpop.f32.mrb[0].mxu0
    %v5970 = vpop.f32.mrb[0].mxu0
    %v5971 = vadd.f32 %v5930, %v5970
    %v5972 = vpop.f32.mrb[0].mxu0
    %5973 = vdwg.mxu0
    %v5974 = vadd.f32 %v5412, %v5968
    %v5975 = vadd.f32 %v5413, %v5971
    %s5976 = scalar_lea.vmem %s2, 784
    %v5977 = vld [vmem:[%s5976] sm:$0xf]
    %v5978 = vld [vmem:[%s5976 + $0x4] sm:$0xf]
    %v5979 = vld [vmem:[%s5976 + $0x8] sm:$0xf]
    %v5980 = vld [vmem:[%s5976 + $0xc] sm:$0xf]
    %v5981 = vld [vmem:[%s5976 + $0x10] sm:$0xf]
    %v5982 = vld [vmem:[%s5976 + $0x14] sm:$0xf]
    %v5983 = vld [vmem:[%s5976 + $0x18] sm:$0xf]
    %v5984 = vld [vmem:[%s5976 + $0x1c] sm:$0xf]
    %v5985 = vld [vmem:[%s5976 + $0x20] sm:$0xf]
    %v5986 = vld [vmem:[%s5976 + $0x24] sm:$0xf]
    %v5987 = vld [vmem:[%s5976 + $0x28] sm:$0xf]
    %v5988 = vld [vmem:[%s5976 + $0x2c] sm:$0xf]
    %v5989 = vld [vmem:[%s5976 + $0x30] sm:$0xf]
    %v5990 = vld [vmem:[%s5976 + $0x34] sm:$0xf]
    %v5991 = vld [vmem:[%s5976 + $0x38] sm:$0xf]
    %v5992 = vld [vmem:[%s5976 + $0x3c] sm:$0xf]
    %v5993 = vld [vmem:[%s5976 + $0x40] sm:$0xf]
    %v5994 = vld [vmem:[%s5976 + $0x44] sm:$0xf]
    %v5995 = vld [vmem:[%s5976 + $0x48] sm:$0xf]
    %v5996 = vld [vmem:[%s5976 + $0x4c] sm:$0xf]
    %v5997 = vld [vmem:[%s5976 + $0x50] sm:$0xf]
    %v5998 = vld [vmem:[%s5976 + $0x54] sm:$0xf]
    %v5999 = vld [vmem:[%s5976 + $0x58] sm:$0xf]
    %v6000 = vld [vmem:[%s5976 + $0x5c] sm:$0xf]
    %v6001 = vld [vmem:[%s5976 + $0x60] sm:$0xf]
    %v6002 = vld [vmem:[%s5976 + $0x64] sm:$0xf]
    %v6003 = vld [vmem:[%s5976 + $0x68] sm:$0xf]
    %v6004 = vld [vmem:[%s5976 + $0x6c] sm:$0xf]
    %v6005 = vld [vmem:[%s5976 + $0x70] sm:$0xf]
    %v6006 = vld [vmem:[%s5976 + $0x74] sm:$0xf]
    %v6007 = vld [vmem:[%s5976 + $0x78] sm:$0xf]
    %v6008 = vld [vmem:[%s5976 + $0x7c] sm:$0xf]
    %v6009 = vld [vmem:[%s5976 + $0x80] sm:$0xf]
    %v6010 = vld [vmem:[%s5976 + $0x84] sm:$0xf]
    %v6011 = vld [vmem:[%s5976 + $0x88] sm:$0xf]
    %v6012 = vld [vmem:[%s5976 + $0x8c] sm:$0xf]
    %v6013 = vld [vmem:[%s5976 + $0x90] sm:$0xf]
    %v6014 = vld [vmem:[%s5976 + $0x94] sm:$0xf]
    %v6015 = vld [vmem:[%s5976 + $0x98] sm:$0xf]
    %v6016 = vld [vmem:[%s5976 + $0x9c] sm:$0xf]
    %v6017 = vld [vmem:[%s5976 + $0xa0] sm:$0xf]
    %v6018 = vld [vmem:[%s5976 + $0xa4] sm:$0xf]
    %v6019 = vld [vmem:[%s5976 + $0xa8] sm:$0xf]
    %v6020 = vld [vmem:[%s5976 + $0xac] sm:$0xf]
    %v6021 = vld [vmem:[%s5976 + $0xb0] sm:$0xf]
    %v6022 = vld [vmem:[%s5976 + $0xb4] sm:$0xf]
    %v6023 = vld [vmem:[%s5976 + $0xb8] sm:$0xf]
    %v6024 = vld [vmem:[%s5976 + $0xbc] sm:$0xf]
    %v6025 = vld [vmem:[%s5976 + $0xc0] sm:$0xf]
    %v6026 = vld [vmem:[%s5976 + $0xc4] sm:$0xf]
    %v6027 = vld [vmem:[%s5976 + $0xc8] sm:$0xf]
    %v6028 = vld [vmem:[%s5976 + $0xcc] sm:$0xf]
    %v6029 = vld [vmem:[%s5976 + $0xd0] sm:$0xf]
    %v6030 = vld [vmem:[%s5976 + $0xd4] sm:$0xf]
    %v6031 = vld [vmem:[%s5976 + $0xd8] sm:$0xf]
    %v6032 = vld [vmem:[%s5976 + $0xdc] sm:$0xf]
    %v6033 = vld [vmem:[%s5976 + $0xe0] sm:$0xf]
    %v6034 = vld [vmem:[%s5976 + $0xe4] sm:$0xf]
    %v6035 = vld [vmem:[%s5976 + $0xe8] sm:$0xf]
    %v6036 = vld [vmem:[%s5976 + $0xec] sm:$0xf]
    %v6037 = vld [vmem:[%s5976 + $0xf0] sm:$0xf]
    %v6038 = vld [vmem:[%s5976 + $0xf4] sm:$0xf]
    %v6039 = vld [vmem:[%s5976 + $0xf8] sm:$0xf]
    %v6040 = vld [vmem:[%s5976 + $0xfc] sm:$0xf]
    %v6041 = vld [vmem:[%s5976 + $0x100] sm:$0xf]
    %v6042 = vld [vmem:[%s5976 + $0x104] sm:$0xf]
    %v6043 = vld [vmem:[%s5976 + $0x108] sm:$0xf]
    %v6044 = vld [vmem:[%s5976 + $0x10c] sm:$0xf]
    %v6045 = vld [vmem:[%s5976 + $0x110] sm:$0xf]
    %v6046 = vld [vmem:[%s5976 + $0x114] sm:$0xf]
    %v6047 = vld [vmem:[%s5976 + $0x118] sm:$0xf]
    %v6048 = vld [vmem:[%s5976 + $0x11c] sm:$0xf]
    %v6049 = vld [vmem:[%s5976 + $0x120] sm:$0xf]
    %v6050 = vld [vmem:[%s5976 + $0x124] sm:$0xf]
    %v6051 = vld [vmem:[%s5976 + $0x128] sm:$0xf]
    %v6052 = vld [vmem:[%s5976 + $0x12c] sm:$0xf]
    %v6053 = vld [vmem:[%s5976 + $0x130] sm:$0xf]
    %v6054 = vld [vmem:[%s5976 + $0x134] sm:$0xf]
    %v6055 = vld [vmem:[%s5976 + $0x138] sm:$0xf]
    %v6056 = vld [vmem:[%s5976 + $0x13c] sm:$0xf]
    %v6057 = vld [vmem:[%s5976 + $0x140] sm:$0xf]
    %v6058 = vld [vmem:[%s5976 + $0x144] sm:$0xf]
    %v6059 = vld [vmem:[%s5976 + $0x148] sm:$0xf]
    %v6060 = vld [vmem:[%s5976 + $0x14c] sm:$0xf]
    %v6061 = vld [vmem:[%s5976 + $0x150] sm:$0xf]
    %v6062 = vld [vmem:[%s5976 + $0x154] sm:$0xf]
    %v6063 = vld [vmem:[%s5976 + $0x158] sm:$0xf]
    %v6064 = vld [vmem:[%s5976 + $0x15c] sm:$0xf]
    %v6065 = vld [vmem:[%s5976 + $0x160] sm:$0xf]
    %v6066 = vld [vmem:[%s5976 + $0x164] sm:$0xf]
    %v6067 = vld [vmem:[%s5976 + $0x168] sm:$0xf]
    %v6068 = vld [vmem:[%s5976 + $0x16c] sm:$0xf]
    %v6069 = vld [vmem:[%s5976 + $0x170] sm:$0xf]
    %v6070 = vld [vmem:[%s5976 + $0x174] sm:$0xf]
    %v6071 = vld [vmem:[%s5976 + $0x178] sm:$0xf]
    %v6072 = vld [vmem:[%s5976 + $0x17c] sm:$0xf]
    %v6073 = vld [vmem:[%s5976 + $0x180] sm:$0xf]
    %v6074 = vld [vmem:[%s5976 + $0x184] sm:$0xf]
    %v6173 = vunpack.c.l.b16 %v5977
    %v6174 = vunpack.c.l.b16 %v5978
    %v6175 = vunpack.c.l.b16 %v5979
    %v6176 = vunpack.c.l.b16 %v5980
    %v6177 = vunpack.c.l.b16 %v5981
    %v6178 = vunpack.c.l.b16 %v5982
    %v6179 = vunpack.c.l.b16 %v5983
    %v6180 = vunpack.c.l.b16 %v5984
    %v6181 = vunpack.c.l.b16 %v5985
    %v6182 = vunpack.c.l.b16 %v5986
    %v6183 = vunpack.c.l.b16 %v5987
    %v6184 = vunpack.c.l.b16 %v5988
    %v6185 = vunpack.c.l.b16 %v5989
    %v6186 = vunpack.c.l.b16 %v5990
    %v6187 = vunpack.c.l.b16 %v5991
    %v6188 = vunpack.c.l.b16 %v5992
    %v6189 = vunpack.c.l.b16 %v5993
    %v6190 = vunpack.c.l.b16 %v5994
    %v6191 = vunpack.c.l.b16 %v5995
    %v6192 = vunpack.c.l.b16 %v5996
    %v6193 = vunpack.c.l.b16 %v5997
    %v6194 = vunpack.c.l.b16 %v5998
    %v6195 = vunpack.c.l.b16 %v5999
    %v6196 = vunpack.c.l.b16 %v6000
    %v6197 = vunpack.c.l.b16 %v6001
    %v6198 = vunpack.c.l.b16 %v6002
    %v6199 = vunpack.c.l.b16 %v6003
    %v6200 = vunpack.c.l.b16 %v6004
    %v6201 = vunpack.c.l.b16 %v6005
    %v6202 = vunpack.c.l.b16 %v6006
    %v6203 = vunpack.c.l.b16 %v6007
    %v6204 = vunpack.c.l.b16 %v6008
    %v6205 = vunpack.c.l.b16 %v6009
    %v6206 = vunpack.c.l.b16 %v6010
    %v6207 = vunpack.c.l.b16 %v6011
    %v6208 = vunpack.c.l.b16 %v6012
    %v6209 = vunpack.c.l.b16 %v6013
    %v6210 = vunpack.c.l.b16 %v6014
    %v6211 = vunpack.c.l.b16 %v6015
    %v6212 = vunpack.c.l.b16 %v6016
    %v6213 = vunpack.c.l.b16 %v6017
    %v6214 = vunpack.c.l.b16 %v6018
    %v6215 = vunpack.c.l.b16 %v6019
    %v6216 = vunpack.c.l.b16 %v6020
    %v6217 = vunpack.c.l.b16 %v6021
    %v6218 = vunpack.c.l.b16 %v6022
    %v6219 = vunpack.c.l.b16 %v6023
    %v6220 = vunpack.c.l.b16 %v6024
    %v6221 = vunpack.c.l.b16 %v6025
    %v6222 = vunpack.c.l.b16 %v6026
    %v6223 = vunpack.c.l.b16 %v6027
    %v6224 = vunpack.c.l.b16 %v6028
    %v6225 = vunpack.c.l.b16 %v6029
    %v6226 = vunpack.c.l.b16 %v6030
    %v6227 = vunpack.c.l.b16 %v6031
    %v6228 = vunpack.c.l.b16 %v6032
    %v6229 = vunpack.c.l.b16 %v6033
    %v6230 = vunpack.c.l.b16 %v6034
    %v6231 = vunpack.c.l.b16 %v6035
    %v6232 = vunpack.c.l.b16 %v6036
    %v6233 = vunpack.c.l.b16 %v6037
    %v6234 = vunpack.c.l.b16 %v6038
    %v6235 = vunpack.c.l.b16 %v6039
    %v6236 = vunpack.c.l.b16 %v6040
    %v6237 = vunpack.c.l.b16 %v6041
    %v6238 = vunpack.c.l.b16 %v6042
    %v6239 = vunpack.c.l.b16 %v6043
    %v6240 = vunpack.c.l.b16 %v6044
    %v6241 = vunpack.c.l.b16 %v6045
    %v6242 = vunpack.c.l.b16 %v6046
    %v6243 = vunpack.c.l.b16 %v6047
    %v6244 = vunpack.c.l.b16 %v6048
    %v6245 = vunpack.c.l.b16 %v6049
    %v6246 = vunpack.c.l.b16 %v6050
    %v6247 = vunpack.c.l.b16 %v6051
    %v6248 = vunpack.c.l.b16 %v6052
    %v6249 = vunpack.c.l.b16 %v6053
    %v6250 = vunpack.c.l.b16 %v6054
    %v6251 = vunpack.c.l.b16 %v6055
    %v6252 = vunpack.c.l.b16 %v6056
    %v6253 = vunpack.c.l.b16 %v6057
    %v6254 = vunpack.c.l.b16 %v6058
    %v6255 = vunpack.c.l.b16 %v6059
    %v6256 = vunpack.c.l.b16 %v6060
    %v6257 = vunpack.c.l.b16 %v6061
    %v6258 = vunpack.c.l.b16 %v6062
    %v6259 = vunpack.c.l.b16 %v6063
    %v6260 = vunpack.c.l.b16 %v6064
    %v6261 = vunpack.c.l.b16 %v6065
    %v6262 = vunpack.c.l.b16 %v6066
    %v6263 = vunpack.c.l.b16 %v6067
    %v6264 = vunpack.c.l.b16 %v6068
    %v6265 = vunpack.c.l.b16 %v6069
    %v6266 = vunpack.c.l.b16 %v6070
    %v6267 = vunpack.c.l.b16 %v6071
    %v6268 = vunpack.c.l.b16 %v6072
    %v6269 = vunpack.c.l.b16 %v6073
    %v6270 = vunpack.c.l.b16 %v6074
    %v6271 = vpack.c.b16 %v6174, %v6173
    %v6272 = vpack.c.b16 %v6176, %v6175
    %v6273 = vpack.c.b16 %v6178, %v6177
    %v6274 = vpack.c.b16 %v6180, %v6179
    %v6275 = vpack.c.b16 %v6182, %v6181
    %v6276 = vpack.c.b16 %v6184, %v6183
    %v6277 = vpack.c.b16 %v6186, %v6185
    %v6278 = vpack.c.b16 %v6188, %v6187
    %v6279 = vpack.c.b16 %v6190, %v6189
    %v6280 = vpack.c.b16 %v6192, %v6191
    %v6281 = vpack.c.b16 %v6194, %v6193
    %v6282 = vpack.c.b16 %v6196, %v6195
    %v6283 = vpack.c.b16 %v6198, %v6197
    %v6284 = vpack.c.b16 %v6200, %v6199
    %v6285 = vpack.c.b16 %v6202, %v6201
    %v6286 = vpack.c.b16 %v6204, %v6203
    %v6287 = vpack.c.b16 %v6206, %v6205
    %v6288 = vpack.c.b16 %v6208, %v6207
    %v6289 = vpack.c.b16 %v6210, %v6209
    %v6290 = vpack.c.b16 %v6212, %v6211
    %v6291 = vpack.c.b16 %v6214, %v6213
    %v6292 = vpack.c.b16 %v6216, %v6215
    %v6293 = vpack.c.b16 %v6218, %v6217
    %v6294 = vpack.c.b16 %v6220, %v6219
    %v6295 = vpack.c.b16 %v6222, %v6221
    %v6296 = vpack.c.b16 %v6224, %v6223
    %v6297 = vpack.c.b16 %v6226, %v6225
    %v6298 = vpack.c.b16 %v6228, %v6227
    %v6299 = vpack.c.b16 %v6230, %v6229
    %v6300 = vpack.c.b16 %v6232, %v6231
    %v6301 = vpack.c.b16 %v6234, %v6233
    %v6302 = vpack.c.b16 %v6236, %v6235
    %v6303 = vpack.c.b16 %v6238, %v6237
    %v6304 = vpack.c.b16 %v6240, %v6239
    %v6305 = vpack.c.b16 %v6242, %v6241
    %v6306 = vpack.c.b16 %v6244, %v6243
    %v6307 = vpack.c.b16 %v6246, %v6245
    %v6308 = vpack.c.b16 %v6248, %v6247
    %v6309 = vpack.c.b16 %v6250, %v6249
    %v6310 = vpack.c.b16 %v6252, %v6251
    %v6311 = vpack.c.b16 %v6254, %v6253
    %v6312 = vpack.c.b16 %v6256, %v6255
    %v6313 = vpack.c.b16 %v6258, %v6257
    %v6314 = vpack.c.b16 %v6260, %v6259
    %v6315 = vpack.c.b16 %v6262, %v6261
    %v6316 = vpack.c.b16 %v6264, %v6263
    %v6317 = vpack.c.b16 %v6266, %v6265
    %v6318 = vpack.c.b16 %v6268, %v6267
    %v6319 = vpack.c.b16 %v6270, %v6269
    %v6370 = vsel %vm3661, %v3170, 0
    %6372 = vmatprep.subr.bf16.mxu0 0
    %6373 = vmatpush1.bf16.msra.mxu0 %v6271
    %6374 = vmatprep.subr.bf16.mxu0 0
    %6375 = vmatpush1.bf16.msra.mxu0 %v6272
    %6376 = vmatprep.subr.bf16.mxu0 0
    %6377 = vmatpush1.bf16.msra.mxu0 %v6273
    %6378 = vmatprep.subr.bf16.mxu0 0
    %6379 = vmatpush1.bf16.msra.mxu0 %v6274
    %6380 = vmatprep.subr.bf16.mxu0 0
    %6381 = vmatpush1.bf16.msra.mxu0 %v6275
    %6382 = vmatprep.subr.bf16.mxu0 0
    %6383 = vmatpush1.bf16.msra.mxu0 %v6276
    %6384 = vmatprep.subr.bf16.mxu0 0
    %6385 = vmatpush1.bf16.msra.mxu0 %v6277
    %6386 = vmatprep.subr.bf16.mxu0 0
    %6387 = vmatpush1.bf16.msra.mxu0 %v6278
    %6388 = vmatprep.subr.bf16.mxu0 0
    %6389 = vmatpush1.bf16.msra.mxu0 %v6279
    %6390 = vmatprep.subr.bf16.mxu0 0
    %6391 = vmatpush1.bf16.msra.mxu0 %v6280
    %6392 = vmatprep.subr.bf16.mxu0 0
    %6393 = vmatpush1.bf16.msra.mxu0 %v6281
    %6394 = vmatprep.subr.bf16.mxu0 0
    %6395 = vmatpush1.bf16.msra.mxu0 %v6282
    %6396 = vmatprep.subr.bf16.mxu0 0
    %6397 = vmatpush1.bf16.msra.mxu0 %v6283
    %6398 = vmatprep.subr.bf16.mxu0 0
    %6399 = vmatpush1.bf16.msra.mxu0 %v6284
    %6400 = vmatprep.subr.bf16.mxu0 0
    %6401 = vmatpush1.bf16.msra.mxu0 %v6285
    %6402 = vmatprep.subr.bf16.mxu0 0
    %6403 = vmatpush1.bf16.msra.mxu0 %v6286
    %6404 = vmatprep.mubr.bf16.mxu0 %v3165
    %6405 = vmatmul.mubr.bf16.gmra.mrb[0].mxu0 %v3164
    %v6406 = vpop.f32.mrb[0].mxu0
    %v6407 = vadd.f32 0.0, %v6406
    %v6408 = vpop.f32.mrb[0].mxu0
    %v6409 = vpop.f32.mrb[0].mxu0
    %v6410 = vadd.f32 0.0, %v6409
    %v6411 = vpop.f32.mrb[0].mxu0
    %6412 = vdwg.mxu0
    %6413 = vmatprep.subr.bf16.mxu0 0
    %6414 = vmatpush1.bf16.msra.mxu0 %v6287
    %6415 = vmatprep.subr.bf16.mxu0 0
    %6416 = vmatpush1.bf16.msra.mxu0 %v6288
    %6417 = vmatprep.subr.bf16.mxu0 0
    %6418 = vmatpush1.bf16.msra.mxu0 %v6289
    %6419 = vmatprep.subr.bf16.mxu0 0
    %6420 = vmatpush1.bf16.msra.mxu0 %v6290
    %6421 = vmatprep.subr.bf16.mxu0 0
    %6422 = vmatpush1.bf16.msra.mxu0 %v6291
    %6423 = vmatprep.subr.bf16.mxu0 0
    %6424 = vmatpush1.bf16.msra.mxu0 %v6292
    %6425 = vmatprep.subr.bf16.mxu0 0
    %6426 = vmatpush1.bf16.msra.mxu0 %v6293
    %6427 = vmatprep.subr.bf16.mxu0 0
    %6428 = vmatpush1.bf16.msra.mxu0 %v6294
    %6429 = vmatprep.subr.bf16.mxu0 0
    %6430 = vmatpush1.bf16.msra.mxu0 %v6295
    %6431 = vmatprep.subr.bf16.mxu0 0
    %6432 = vmatpush1.bf16.msra.mxu0 %v6296
    %6433 = vmatprep.subr.bf16.mxu0 0
    %6434 = vmatpush1.bf16.msra.mxu0 %v6297
    %6435 = vmatprep.subr.bf16.mxu0 0
    %6436 = vmatpush1.bf16.msra.mxu0 %v6298
    %6437 = vmatprep.subr.bf16.mxu0 0
    %6438 = vmatpush1.bf16.msra.mxu0 %v6299
    %6439 = vmatprep.subr.bf16.mxu0 0
    %6440 = vmatpush1.bf16.msra.mxu0 %v6300
    %6441 = vmatprep.subr.bf16.mxu0 0
    %6442 = vmatpush1.bf16.msra.mxu0 %v6301
    %6443 = vmatprep.subr.bf16.mxu0 0
    %6444 = vmatpush1.bf16.msra.mxu0 %v6302
    %6445 = vmatprep.mubr.bf16.mxu0 %v3167
    %6446 = vmatmul.mubr.bf16.gmra.mrb[0].mxu0 %v3166
    %v6447 = vpop.f32.mrb[0].mxu0
    %v6448 = vadd.f32 %v6407, %v6447
    %v6449 = vpop.f32.mrb[0].mxu0
    %v6450 = vpop.f32.mrb[0].mxu0
    %v6451 = vadd.f32 %v6410, %v6450
    %v6452 = vpop.f32.mrb[0].mxu0
    %6453 = vdwg.mxu0
    %6454 = vmatprep.subr.bf16.mxu0 0
    %6455 = vmatpush1.bf16.msra.mxu0 %v6303
    %6456 = vmatprep.subr.bf16.mxu0 0
    %6457 = vmatpush1.bf16.msra.mxu0 %v6304
    %6458 = vmatprep.subr.bf16.mxu0 0
    %6459 = vmatpush1.bf16.msra.mxu0 %v6305
    %6460 = vmatprep.subr.bf16.mxu0 0
    %6461 = vmatpush1.bf16.msra.mxu0 %v6306
    %6462 = vmatprep.subr.bf16.mxu0 0
    %6463 = vmatpush1.bf16.msra.mxu0 %v6307
    %6464 = vmatprep.subr.bf16.mxu0 0
    %6465 = vmatpush1.bf16.msra.mxu0 %v6308
    %6466 = vmatprep.subr.bf16.mxu0 0
    %6467 = vmatpush1.bf16.msra.mxu0 %v6309
    %6468 = vmatprep.subr.bf16.mxu0 0
    %6469 = vmatpush1.bf16.msra.mxu0 %v6310
    %6470 = vmatprep.subr.bf16.mxu0 0
    %6471 = vmatpush1.bf16.msra.mxu0 %v6311
    %6472 = vmatprep.subr.bf16.mxu0 0
    %6473 = vmatpush1.bf16.msra.mxu0 %v6312
    %6474 = vmatprep.subr.bf16.mxu0 0
    %6475 = vmatpush1.bf16.msra.mxu0 %v6313
    %6476 = vmatprep.subr.bf16.mxu0 0
    %6477 = vmatpush1.bf16.msra.mxu0 %v6314
    %6478 = vmatprep.subr.bf16.mxu0 0
    %6479 = vmatpush1.bf16.msra.mxu0 %v6315
    %6480 = vmatprep.subr.bf16.mxu0 0
    %6481 = vmatpush1.bf16.msra.mxu0 %v6316
    %6482 = vmatprep.subr.bf16.mxu0 0
    %6483 = vmatpush1.bf16.msra.mxu0 %v6317
    %6484 = vmatprep.subr.bf16.mxu0 0
    %6485 = vmatpush1.bf16.msra.mxu0 %v6318
    %6486 = vmatprep.mubr.bf16.mxu0 %v3169
    %6487 = vmatmul.mubr.bf16.gmra.mrb[0].mxu0 %v3168
    %v6488 = vpop.f32.mrb[0].mxu0
    %v6489 = vadd.f32 %v6448, %v6488
    %v6490 = vpop.f32.mrb[0].mxu0
    %v6491 = vpop.f32.mrb[0].mxu0
    %v6492 = vadd.f32 %v6451, %v6491
    %v6493 = vpop.f32.mrb[0].mxu0
    %6494 = vdwg.mxu0
    %6495 = vmatprep.subr.bf16.mxu0 0
    %6496 = vmatpush1.bf16.msra.mxu0 %v6319
    %6497 = vmatprep.subr.bf16.mxu0 0
    %6498 = vmatpush1.bf16.msra.mxu0 0
    %6499 = vmatprep.subr.bf16.mxu0 0
    %6500 = vmatpush1.bf16.msra.mxu0 0
    %6501 = vmatprep.subr.bf16.mxu0 0
    %6502 = vmatpush1.bf16.msra.mxu0 0
    %6503 = vmatprep.subr.bf16.mxu0 0
    %6504 = vmatpush1.bf16.msra.mxu0 0
    %6505 = vmatprep.subr.bf16.mxu0 0
    %6506 = vmatpush1.bf16.msra.mxu0 0
    %6507 = vmatprep.subr.bf16.mxu0 0
    %6508 = vmatpush1.bf16.msra.mxu0 0
    %6509 = vmatprep.subr.bf16.mxu0 0
    %6510 = vmatpush1.bf16.msra.mxu0 0
    %6511 = vmatprep.subr.bf16.mxu0 0
    %6512 = vmatpush1.bf16.msra.mxu0 0
    %6513 = vmatprep.subr.bf16.mxu0 0
    %6514 = vmatpush1.bf16.msra.mxu0 0
    %6515 = vmatprep.subr.bf16.mxu0 0
    %6516 = vmatpush1.bf16.msra.mxu0 0
    %6517 = vmatprep.subr.bf16.mxu0 0
    %6518 = vmatpush1.bf16.msra.mxu0 0
    %6519 = vmatprep.subr.bf16.mxu0 0
    %6520 = vmatpush1.bf16.msra.mxu0 0
    %6521 = vmatprep.subr.bf16.mxu0 0
    %6522 = vmatpush1.bf16.msra.mxu0 0
    %6523 = vmatprep.subr.bf16.mxu0 0
    %6524 = vmatpush1.bf16.msra.mxu0 0
    %6525 = vmatprep.subr.bf16.mxu0 0
    %6526 = vmatpush1.bf16.msra.mxu0 0
    %6527 = vmatprep.mubr.bf16.mxu0 0
    %6528 = vmatmul.mubr.bf16.gmra.mrb[0].mxu0 %v6370
    %v6529 = vpop.f32.mrb[0].mxu0
    %v6530 = vadd.f32 %v6489, %v6529
    %v6531 = vpop.f32.mrb[0].mxu0
    %v6532 = vpop.f32.mrb[0].mxu0
    %v6533 = vadd.f32 %v6492, %v6532
    %v6534 = vpop.f32.mrb[0].mxu0
    %6535 = vdwg.mxu0
    %v6536 = vadd.f32 %v5974, %v6530
    %v6537 = vadd.f32 %v5975, %v6533
    %v6538 = vld [vmem:[%s3] sm:$0x1]
    %v6540 = vlaneseq
    %v6541 = vshrl.u32 %v6540, 7
    %v6542 = vsub.s32 0, %v6541
    %v6543 = vrot.slane %v6538, %v6542
    %v6545 = vadd.f32 %v6536, %v6543
    %v6546 = vadd.f32 %v6537, %v6543
    %v6547 = vld [vmem:[%s4] sm:$0x1]
    %v6548 = vld [vmem:[%s5] sm:$0x1]
    %vm6549 = vcmask 261120
    %v6550 = vsel %vm6549, %v6545, 0.0
    %6551 = vadd.xlane.f32.xlu0 %v6550
    %v6552 = vpop.xlane.xlu0 %6551
    %v6553 = vsel %vm6549, %v6546, 0.0
    %6554 = vadd.xlane.f32.xlu0 %v6553
    %v6555 = vpop.xlane.xlu0 %6554
    %v6556 = vrcp.pop 32.0
    %v6557 = vmul.f32 %v6552, %v6556
    %v6558 = vmul.f32 %v6555, %v6556
    %v6559 = vsub.f32 %v6545, %v6557
    %v6560 = vsub.f32 %v6546, %v6558
    %v6561 = vmul.f32 %v6559, %v6559
    %v6562 = vmul.f32 %v6560, %v6560
    %v6563 = vsel %vm6549, %v6561, 0.0
    %6564 = vadd.xlane.f32.xlu0 %v6563
    %v6565 = vpop.xlane.xlu0 %6564
    %v6566 = vsel %vm6549, %v6562, 0.0
    %6567 = vadd.xlane.f32.xlu0 %v6566
    %v6568 = vpop.xlane.xlu0 %6567
    %v6569 = vmul.f32 %v6565, %v6556
    %v6570 = vmul.f32 %v6568, %v6556
    %v6571 = vadd.f32 %v6569, 1e-05
    %v6572 = vadd.f32 %v6570, 1e-05
    %v6573 = vrsqrt.pop %v6571
    %v6574 = vrsqrt.pop %v6572
    %v6575 = vmul.f32 %v6559, %v6573
    %v6576 = vmul.f32 %v6560, %v6574
    %v6578 = vlaneseq
    %v6579 = vshrl.u32 %v6578, 7
    %v6580 = vsub.s32 0, %v6579
    %v6581 = vrot.slane %v6547, %v6580
    %v6583 = vmul.f32 %v6575, %v6581
    %v6584 = vmul.f32 %v6576, %v6581
    %v6586 = vlaneseq
    %v6587 = vshrl.u32 %v6586, 7
    %v6588 = vsub.s32 0, %v6587
    %v6589 = vrot.slane %v6548, %v6588
    %v6591 = vadd.f32 %v6583, %v6589
    %v6592 = vadd.f32 %v6584, %v6589
    %v6593 = vand.u32 2147483647, %v6591
    %vm6594 = vcmp.le.f32.partialorder %v6593, 0.7853982
    %vm6595 = vcmp.lt.s32.totalorder %v6591, 0
    %v6596 = vand.u32 %v6591, 2139095040
    %v6597 = vshrl.u32 %v6596, 23
    %v6598 = vsub.s32 %v6597, 127
    %v6599 = vand.u32 2147483647, %v6591
    %v6600 = vand.u32 %v6599, 8388607
    %v6601 = vor.u32 %v6600, 8388608
    %v6602 = vsub.s32 0, %v6601
    %v6603 = vadd.s32 %v6598, 1
    %vm6604 = vcmp.gt.s32.totalorder %v6603, 0
    %v6605 = vsel %vm6604, %v6603, 0
    %v6606 = vshrl.u32 %v6605, 5
    %v6607 = vand.u32 %v6605, 31
    %v6608 = vsub.s32 32, %v6607
    %v6609 = vshrl.u32 683565275, %v6608
    %v6610 = vshll.u32 683565275, %v6607
    %v6611 = vshrl.u32 2475754826, %v6608
    %v6612 = vor.u32 %v6610, %v6611
    %v6613 = vshll.u32 2475754826, %v6607
    %v6614 = vshrl.u32 2131351028, %v6608
    %v6615 = vor.u32 %v6613, %v6614
    %v6616 = vshll.u32 2131351028, %v6607
    %v6617 = vshrl.u32 2102212464, %v6608
    %v6618 = vor.u32 %v6616, %v6617
    %v6619 = vshll.u32 2102212464, %v6607
    %v6620 = vshrl.u32 920167782, %v6608
    %v6621 = vor.u32 %v6619, %v6620
    %v6622 = vshll.u32 920167782, %v6607
    %v6623 = vshrl.u32 1326507024, %v6608
    %v6624 = vor.u32 %v6622, %v6623
    %vm6625 = vcmp.lt.s32.totalorder %v6606, 1
    %vm6626 = vcmp.lt.s32.totalorder %v6606, 2
    %vm6627 = vcmp.lt.s32.totalorder %v6606, 3
    %vm6628 = vcmp.lt.s32.totalorder %v6606, 4
    %v6629 = vsel %vm6625, %v6609, %v6612
    %v6630 = vsel %vm6628, %v6618, 2102212464
    %v6631 = vsel %vm6627, %v6615, %v6630
    %v6632 = vsel %vm6626, %v6629, %v6631
    %v6633 = vsel %vm6625, %v6612, %v6615
    %v6634 = vsel %vm6628, %v6621, 920167782
    %v6635 = vsel %vm6627, %v6618, %v6634
    %v6636 = vsel %vm6626, %v6633, %v6635
    %v6637 = vsel %vm6625, %v6615, %v6618
    %v6638 = vsel %vm6628, %v6624, 1326507024
    %v6639 = vsel %vm6627, %v6621, %v6638
    %v6640 = vsel %vm6626, %v6637, %v6639
    %v6641 = vshll.u32 %v6601, 8
    %v6642 = vmul.u32.u64.compose %v6641, %v6640
    %v6643 = vextract.low.u32 %v6642
    %v6644 = vextract.high.u32 %v6642
    %v6645 = vmul.u32.u64.compose %v6641, %v6636
    %v6646 = vextract.low.u32 %v6645
    %v6647 = vextract.high.u32 %v6645
    %v6648 = vmul.u32 %v6641, %v6632
    %v6649 = vadd.s32 %v6644, %v6646
    %vm6650 = vc.u32 %v6644, %v6646
    %v6651 = vadd.s32 %v6647, 1
    %v6652 = vsel %vm6650, %v6651, %v6647
    %v6653 = vadd.s32 %v6648, %v6652
    %v6654 = vadd.s32 %v6653, 536870912
    %v6655 = vshrl.u32 %v6654, 30
    %v6656 = vshll.u32 %v6655, 30
    %v6657 = vsub.s32 %v6653, %v6656
    %vm6658 = vcmp.lt.s32.totalorder %v6657, 0
    %v6659 = vsub.s32 0, %v6657
    %v6660 = vsel %vm6658, %v6659, %v6657
    %v6661 = vclz %v6660
    %v6662 = vsub.s32 %v6661, 2
    %vm6663 = vcmp.gt.s32.totalorder 0, %v6662
    %v6664 = vsel %vm6663, 0, %v6662
    %v6665 = vsub.s32 32, %v6664
    %v6666 = vshll.u32 %v6657, %v6664
    %v6667 = vshrl.u32 %v6649, %v6665
    %v6668 = vor.u32 %v6666, %v6667
    %v6669 = vsub.s32 4294967266, %v6664
    %v6670 = vadd.s32 %v6669, 127
    %v6671 = vshll.u32 %v6670, 23
    %v6672 = vor.u32 4788187, %v6671
    %v6673 = vand.u32 2147483647, %v6672
    %v6675 = vcvt.s32.f32 %v6668
    %v6676 = vmul.f32 %v6675, %v6673
    %v6677 = vxor.u32 %v6676, 2147483648
    %v6678 = vsel %vm6595, %v6677, %v6676
    %v6679 = vsub.s32 4, %v6655
    %v6680 = vsel %vm6595, %v6679, %v6655
    %v6681 = vsel %vm6594, %v6591, %v6678
    %v6682 = vsel %vm6594, 0, %v6680
    %v6683 = vcosq.f32.pop %v6681
    %v6684 = vsinq.f32.pop %v6681
    %vm6685 = vweird.f32 %v6591
    %v6686 = vadd.s32 %v6682, 3
    %v6687 = vand.u32 %v6686, 3
    %vm6688 = vcmp.lt.s32.totalorder %v6687, 2
    %vm6689 = vcmp.eq.s32.totalorder %v6687, 0
    %v6690 = vxor.u32 %v6684, 2147483648
    %v6691 = vsel %vm6689, %v6683, %v6690
    %vm6692 = vcmp.eq.s32.totalorder %v6687, 2
    %v6693 = vxor.u32 %v6683, 2147483648
    %v6694 = vsel %vm6692, %v6693, %v6684
    %v6695 = vsel %vm6688, %v6691, %v6694
    %v6696 = vsel %vm6685, nan, %v6695
    %v6697 = vand.u32 2147483647, %v6592
    %vm6698 = vcmp.le.f32.partialorder %v6697, 0.7853982
    %vm6699 = vcmp.lt.s32.totalorder %v6592, 0
    %v6700 = vand.u32 %v6592, 2139095040
    %v6701 = vshrl.u32 %v6700, 23
    %v6702 = vsub.s32 %v6701, 127
    %v6703 = vand.u32 2147483647, %v6592
    %v6704 = vand.u32 %v6703, 8388607
    %v6705 = vor.u32 %v6704, 8388608
    %v6706 = vsub.s32 0, %v6705
    %v6707 = vadd.s32 %v6702, 1
    %vm6708 = vcmp.gt.s32.totalorder %v6707, 0
    %v6709 = vsel %vm6708, %v6707, 0
    %v6710 = vshrl.u32 %v6709, 5
    %v6711 = vand.u32 %v6709, 31
    %v6712 = vsub.s32 32, %v6711
    %v6713 = vshrl.u32 683565275, %v6712
    %v6714 = vshll.u32 683565275, %v6711
    %v6715 = vshrl.u32 2475754826, %v6712
    %v6716 = vor.u32 %v6714, %v6715
    %v6717 = vshll.u32 2475754826, %v6711
    %v6718 = vshrl.u32 2131351028, %v6712
    %v6719 = vor.u32 %v6717, %v6718
    %v6720 = vshll.u32 2131351028, %v6711
    %v6721 = vshrl.u32 2102212464, %v6712
    %v6722 = vor.u32 %v6720, %v6721
    %v6723 = vshll.u32 2102212464, %v6711
    %v6724 = vshrl.u32 920167782, %v6712
    %v6725 = vor.u32 %v6723, %v6724
    %v6726 = vshll.u32 920167782, %v6711
    %v6727 = vshrl.u32 1326507024, %v6712
    %v6728 = vor.u32 %v6726, %v6727
    %vm6729 = vcmp.lt.s32.totalorder %v6710, 1
    %vm6730 = vcmp.lt.s32.totalorder %v6710, 2
    %vm6731 = vcmp.lt.s32.totalorder %v6710, 3
    %vm6732 = vcmp.lt.s32.totalorder %v6710, 4
    %v6733 = vsel %vm6729, %v6713, %v6716
    %v6734 = vsel %vm6732, %v6722, 2102212464
    %v6735 = vsel %vm6731, %v6719, %v6734
    %v6736 = vsel %vm6730, %v6733, %v6735
    %v6737 = vsel %vm6729, %v6716, %v6719
    %v6738 = vsel %vm6732, %v6725, 920167782
    %v6739 = vsel %vm6731, %v6722, %v6738
    %v6740 = vsel %vm6730, %v6737, %v6739
    %v6741 = vsel %vm6729, %v6719, %v6722
    %v6742 = vsel %vm6732, %v6728, 1326507024
    %v6743 = vsel %vm6731, %v6725, %v6742
    %v6744 = vsel %vm6730, %v6741, %v6743
    %v6745 = vshll.u32 %v6705, 8
    %v6746 = vmul.u32.u64.compose %v6745, %v6744
    %v6747 = vextract.low.u32 %v6746
    %v6748 = vextract.high.u32 %v6746
    %v6749 = vmul.u32.u64.compose %v6745, %v6740
    %v6750 = vextract.low.u32 %v6749
    %v6751 = vextract.high.u32 %v6749
    %v6752 = vmul.u32 %v6745, %v6736
    %v6753 = vadd.s32 %v6748, %v6750
    %vm6754 = vc.u32 %v6748, %v6750
    %v6755 = vadd.s32 %v6751, 1
    %v6756 = vsel %vm6754, %v6755, %v6751
    %v6757 = vadd.s32 %v6752, %v6756
    %v6758 = vadd.s32 %v6757, 536870912
    %v6759 = vshrl.u32 %v6758, 30
    %v6760 = vshll.u32 %v6759, 30
    %v6761 = vsub.s32 %v6757, %v6760
    %vm6762 = vcmp.lt.s32.totalorder %v6761, 0
    %v6763 = vsub.s32 0, %v6761
    %v6764 = vsel %vm6762, %v6763, %v6761
    %v6765 = vclz %v6764
    %v6766 = vsub.s32 %v6765, 2
    %vm6767 = vcmp.gt.s32.totalorder 0, %v6766
    %v6768 = vsel %vm6767, 0, %v6766
    %v6769 = vsub.s32 32, %v6768
    %v6770 = vshll.u32 %v6761, %v6768
    %v6771 = vshrl.u32 %v6753, %v6769
    %v6772 = vor.u32 %v6770, %v6771
    %v6773 = vsub.s32 4294967266, %v6768
    %v6774 = vadd.s32 %v6773, 127
    %v6775 = vshll.u32 %v6774, 23
    %v6776 = vor.u32 4788187, %v6775
    %v6777 = vand.u32 2147483647, %v6776
    %v6779 = vcvt.s32.f32 %v6772
    %v6780 = vmul.f32 %v6779, %v6777
    %v6781 = vxor.u32 %v6780, 2147483648
    %v6782 = vsel %vm6699, %v6781, %v6780
    %v6783 = vsub.s32 4, %v6759
    %v6784 = vsel %vm6699, %v6783, %v6759
    %v6785 = vsel %vm6698, %v6592, %v6782
    %v6786 = vsel %vm6698, 0, %v6784
    %v6787 = vcosq.f32.pop %v6785
    %v6788 = vsinq.f32.pop %v6785
    %vm6789 = vweird.f32 %v6592
    %v6790 = vadd.s32 %v6786, 3
    %v6791 = vand.u32 %v6790, 3
    %vm6792 = vcmp.lt.s32.totalorder %v6791, 2
    %vm6793 = vcmp.eq.s32.totalorder %v6791, 0
    %v6794 = vxor.u32 %v6788, 2147483648
    %v6795 = vsel %vm6793, %v6787, %v6794
    %vm6796 = vcmp.eq.s32.totalorder %v6791, 2
    %v6797 = vxor.u32 %v6787, 2147483648
    %v6798 = vsel %vm6796, %v6797, %v6788
    %v6799 = vsel %vm6792, %v6795, %v6798
    %v6800 = vsel %vm6789, nan, %v6799
    %v6801 = vand.u32 2147483647, %v6591
    %vm6802 = vcmp.le.f32.partialorder %v6801, 0.7853982
    %vm6803 = vcmp.lt.s32.totalorder %v6591, 0
    %v6804 = vand.u32 %v6591, 2139095040
    %v6805 = vshrl.u32 %v6804, 23
    %v6806 = vsub.s32 %v6805, 127
    %v6807 = vand.u32 2147483647, %v6591
    %v6808 = vand.u32 %v6807, 8388607
    %v6809 = vor.u32 %v6808, 8388608
    %v6810 = vsub.s32 0, %v6809
    %v6811 = vadd.s32 %v6806, 1
    %vm6812 = vcmp.gt.s32.totalorder %v6811, 0
    %v6813 = vsel %vm6812, %v6811, 0
    %v6814 = vshrl.u32 %v6813, 5
    %v6815 = vand.u32 %v6813, 31
    %v6816 = vsub.s32 32, %v6815
    %v6817 = vshrl.u32 683565275, %v6816
    %v6818 = vshll.u32 683565275, %v6815
    %v6819 = vshrl.u32 2475754826, %v6816
    %v6820 = vor.u32 %v6818, %v6819
    %v6821 = vshll.u32 2475754826, %v6815
    %v6822 = vshrl.u32 2131351028, %v6816
    %v6823 = vor.u32 %v6821, %v6822
    %v6824 = vshll.u32 2131351028, %v6815
    %v6825 = vshrl.u32 2102212464, %v6816
    %v6826 = vor.u32 %v6824, %v6825
    %v6827 = vshll.u32 2102212464, %v6815
    %v6828 = vshrl.u32 920167782, %v6816
    %v6829 = vor.u32 %v6827, %v6828
    %v6830 = vshll.u32 920167782, %v6815
    %v6831 = vshrl.u32 1326507024, %v6816
    %v6832 = vor.u32 %v6830, %v6831
    %vm6833 = vcmp.lt.s32.totalorder %v6814, 1
    %vm6834 = vcmp.lt.s32.totalorder %v6814, 2
    %vm6835 = vcmp.lt.s32.totalorder %v6814, 3
    %vm6836 = vcmp.lt.s32.totalorder %v6814, 4
    %v6837 = vsel %vm6833, %v6817, %v6820
    %v6838 = vsel %vm6836, %v6826, 2102212464
    %v6839 = vsel %vm6835, %v6823, %v6838
    %v6840 = vsel %vm6834, %v6837, %v6839
    %v6841 = vsel %vm6833, %v6820, %v6823
    %v6842 = vsel %vm6836, %v6829, 920167782
    %v6843 = vsel %vm6835, %v6826, %v6842
    %v6844 = vsel %vm6834, %v6841, %v6843
    %v6845 = vsel %vm6833, %v6823, %v6826
    %v6846 = vsel %vm6836, %v6832, 1326507024
    %v6847 = vsel %vm6835, %v6829, %v6846
    %v6848 = vsel %vm6834, %v6845, %v6847
    %v6849 = vshll.u32 %v6809, 8
    %v6850 = vmul.u32.u64.compose %v6849, %v6848
    %v6851 = vextract.low.u32 %v6850
    %v6852 = vextract.high.u32 %v6850
    %v6853 = vmul.u32.u64.compose %v6849, %v6844
    %v6854 = vextract.low.u32 %v6853
    %v6855 = vextract.high.u32 %v6853
    %v6856 = vmul.u32 %v6849, %v6840
    %v6857 = vadd.s32 %v6852, %v6854
    %vm6858 = vc.u32 %v6852, %v6854
    %v6859 = vadd.s32 %v6855, 1
    %v6860 = vsel %vm6858, %v6859, %v6855
    %v6861 = vadd.s32 %v6856, %v6860
    %v6862 = vadd.s32 %v6861, 536870912
    %v6863 = vshrl.u32 %v6862, 30
    %v6864 = vshll.u32 %v6863, 30
    %v6865 = vsub.s32 %v6861, %v6864
    %vm6866 = vcmp.lt.s32.totalorder %v6865, 0
    %v6867 = vsub.s32 0, %v6865
    %v6868 = vsel %vm6866, %v6867, %v6865
    %v6869 = vclz %v6868
    %v6870 = vsub.s32 %v6869, 2
    %vm6871 = vcmp.gt.s32.totalorder 0, %v6870
    %v6872 = vsel %vm6871, 0, %v6870
    %v6873 = vsub.s32 32, %v6872
    %v6874 = vshll.u32 %v6865, %v6872
    %v6875 = vshrl.u32 %v6857, %v6873
    %v6876 = vor.u32 %v6874, %v6875
    %v6877 = vsub.s32 4294967266, %v6872
    %v6878 = vadd.s32 %v6877, 127
    %v6879 = vshll.u32 %v6878, 23
    %v6880 = vor.u32 4788187, %v6879
    %v6881 = vand.u32 2147483647, %v6880
    %v6883 = vcvt.s32.f32 %v6876
    %v6884 = vmul.f32 %v6883, %v6881
    %v6885 = vxor.u32 %v6884, 2147483648
    %v6886 = vsel %vm6803, %v6885, %v6884
    %v6887 = vsub.s32 4, %v6863
    %v6888 = vsel %vm6803, %v6887, %v6863
    %v6889 = vsel %vm6802, %v6591, %v6886
    %v6890 = vsel %vm6802, 0, %v6888
    %v6891 = vcosq.f32.pop %v6889
    %v6892 = vsinq.f32.pop %v6889
    %vm6893 = vweird.f32 %v6591
    %v6894 = vand.u32 %v6890, 3
    %vm6895 = vcmp.lt.s32.totalorder %v6894, 2
    %vm6896 = vcmp.eq.s32.totalorder %v6894, 0
    %v6897 = vxor.u32 %v6892, 2147483648
    %v6898 = vsel %vm6896, %v6891, %v6897
    %vm6899 = vcmp.eq.s32.totalorder %v6894, 2
    %v6900 = vxor.u32 %v6891, 2147483648
    %v6901 = vsel %vm6899, %v6900, %v6892
    %v6902 = vsel %vm6895, %v6898, %v6901
    %v6903 = vsel %vm6893, nan, %v6902
    %v6904 = vand.u32 2147483647, %v6592
    %vm6905 = vcmp.le.f32.partialorder %v6904, 0.7853982
    %vm6906 = vcmp.lt.s32.totalorder %v6592, 0
    %v6907 = vand.u32 %v6592, 2139095040
    %v6908 = vshrl.u32 %v6907, 23
    %v6909 = vsub.s32 %v6908, 127
    %v6910 = vand.u32 2147483647, %v6592
    %v6911 = vand.u32 %v6910, 8388607
    %v6912 = vor.u32 %v6911, 8388608
    %v6913 = vsub.s32 0, %v6912
    %v6914 = vadd.s32 %v6909, 1
    %vm6915 = vcmp.gt.s32.totalorder %v6914, 0
    %v6916 = vsel %vm6915, %v6914, 0
    %v6917 = vshrl.u32 %v6916, 5
    %v6918 = vand.u32 %v6916, 31
    %v6919 = vsub.s32 32, %v6918
    %v6920 = vshrl.u32 683565275, %v6919
    %v6921 = vshll.u32 683565275, %v6918
    %v6922 = vshrl.u32 2475754826, %v6919
    %v6923 = vor.u32 %v6921, %v6922
    %v6924 = vshll.u32 2475754826, %v6918
    %v6925 = vshrl.u32 2131351028, %v6919
    %v6926 = vor.u32 %v6924, %v6925
    %v6927 = vshll.u32 2131351028, %v6918
    %v6928 = vshrl.u32 2102212464, %v6919
    %v6929 = vor.u32 %v6927, %v6928
    %v6930 = vshll.u32 2102212464, %v6918
    %v6931 = vshrl.u32 920167782, %v6919
    %v6932 = vor.u32 %v6930, %v6931
    %v6933 = vshll.u32 920167782, %v6918
    %v6934 = vshrl.u32 1326507024, %v6919
    %v6935 = vor.u32 %v6933, %v6934
    %vm6936 = vcmp.lt.s32.totalorder %v6917, 1
    %vm6937 = vcmp.lt.s32.totalorder %v6917, 2
    %vm6938 = vcmp.lt.s32.totalorder %v6917, 3
    %vm6939 = vcmp.lt.s32.totalorder %v6917, 4
    %v6940 = vsel %vm6936, %v6920, %v6923
    %v6941 = vsel %vm6939, %v6929, 2102212464
    %v6942 = vsel %vm6938, %v6926, %v6941
    %v6943 = vsel %vm6937, %v6940, %v6942
    %v6944 = vsel %vm6936, %v6923, %v6926
    %v6945 = vsel %vm6939, %v6932, 920167782
    %v6946 = vsel %vm6938, %v6929, %v6945
    %v6947 = vsel %vm6937, %v6944, %v6946
    %v6948 = vsel %vm6936, %v6926, %v6929
    %v6949 = vsel %vm6939, %v6935, 1326507024
    %v6950 = vsel %vm6938, %v6932, %v6949
    %v6951 = vsel %vm6937, %v6948, %v6950
    %v6952 = vshll.u32 %v6912, 8
    %v6953 = vmul.u32.u64.compose %v6952, %v6951
    %v6954 = vextract.low.u32 %v6953
    %v6955 = vextract.high.u32 %v6953
    %v6956 = vmul.u32.u64.compose %v6952, %v6947
    %v6957 = vextract.low.u32 %v6956
    %v6958 = vextract.high.u32 %v6956
    %v6959 = vmul.u32 %v6952, %v6943
    %v6960 = vadd.s32 %v6955, %v6957
    %vm6961 = vc.u32 %v6955, %v6957
    %v6962 = vadd.s32 %v6958, 1
    %v6963 = vsel %vm6961, %v6962, %v6958
    %v6964 = vadd.s32 %v6959, %v6963
    %v6965 = vadd.s32 %v6964, 536870912
    %v6966 = vshrl.u32 %v6965, 30
    %v6967 = vshll.u32 %v6966, 30
    %v6968 = vsub.s32 %v6964, %v6967
    %vm6969 = vcmp.lt.s32.totalorder %v6968, 0
    %v6970 = vsub.s32 0, %v6968
    %v6971 = vsel %vm6969, %v6970, %v6968
    %v6972 = vclz %v6971
    %v6973 = vsub.s32 %v6972, 2
    %vm6974 = vcmp.gt.s32.totalorder 0, %v6973
    %v6975 = vsel %vm6974, 0, %v6973
    %v6976 = vsub.s32 32, %v6975
    %v6977 = vshll.u32 %v6968, %v6975
    %v6978 = vshrl.u32 %v6960, %v6976
    %v6979 = vor.u32 %v6977, %v6978
    %v6980 = vsub.s32 4294967266, %v6975
    %v6981 = vadd.s32 %v6980, 127
    %v6982 = vshll.u32 %v6981, 23
    %v6983 = vor.u32 4788187, %v6982
    %v6984 = vand.u32 2147483647, %v6983
    %v6986 = vcvt.s32.f32 %v6979
    %v6987 = vmul.f32 %v6986, %v6984
    %v6988 = vxor.u32 %v6987, 2147483648
    %v6989 = vsel %vm6906, %v6988, %v6987
    %v6990 = vsub.s32 4, %v6966
    %v6991 = vsel %vm6906, %v6990, %v6966
    %v6992 = vsel %vm6905, %v6592, %v6989
    %v6993 = vsel %vm6905, 0, %v6991
    %v6994 = vcosq.f32.pop %v6992
    %v6995 = vsinq.f32.pop %v6992
    %vm6996 = vweird.f32 %v6592
    %v6997 = vand.u32 %v6993, 3
    %vm6998 = vcmp.lt.s32.totalorder %v6997, 2
    %vm6999 = vcmp.eq.s32.totalorder %v6997, 0
    %v7000 = vxor.u32 %v6995, 2147483648
    %v7001 = vsel %vm6999, %v6994, %v7000
    %vm7002 = vcmp.eq.s32.totalorder %v6997, 2
    %v7003 = vxor.u32 %v6994, 2147483648
    %v7004 = vsel %vm7002, %v7003, %v6995
    %v7005 = vsel %vm6998, %v7001, %v7004
    %v7006 = vsel %vm6996, nan, %v7005
    %v7007 = vmul.f32 %v6696, %v6696
    %v7008 = vmul.f32 %v6800, %v6800
    %v7009 = vmul.f32 %v6696, 2.0
    %v7010 = vmul.f32 %v6800, 2.0
    %v7011 = vmul.f32 %v7009, %v6903
    %v7012 = vmul.f32 %v7010, %v7006
    %v7013 = vmul.f32 %v7007, 2.0
    %v7014 = vmul.f32 %v7008, 2.0
    %v7015 = vsub.f32 1.0, %v7013
    %v7016 = vsub.f32 1.0, %v7014
    %v7017 = vmul.f32 %v7007, 4.0
    %v7018 = vmul.f32 %v7008, 4.0
    %v7019 = vsub.f32 3.0, %v7017
    %v7020 = vsub.f32 3.0, %v7018
    %v7021 = vmul.f32 %v6696, %v7019
    %v7022 = vmul.f32 %v6800, %v7020
    %v7023 = vmul.f32 %v6903, %v6903
    %v7024 = vmul.f32 %v7006, %v7006
    %v7025 = vmul.f32 %v7023, 4.0
    %v7026 = vmul.f32 %v7024, 4.0
    %v7027 = vsub.f32 %v7025, 3.0
    %v7028 = vsub.f32 %v7026, 3.0
    %v7029 = vmul.f32 %v6903, %v7027
    %v7030 = vmul.f32 %v7006, %v7028
    %v7031 = vld [vmem:[%s6] sm:$0xff]
    %v7032 = vld [vmem:[%s6 + $0x8] sm:$0xff]
    %v7033 = vld [vmem:[%s6 + $0x10] sm:$0xff]
    %v7034 = vld [vmem:[%s6 + $0x18] sm:$0xff]
    %v7035 = vld [vmem:[%s7] sm:$0xff]
    %v7036 = vld [vmem:[%s7 + $0x8] sm:$0xff]
    %v7037 = vld [vmem:[%s7 + $0x10] sm:$0xff]
    %v7038 = vld [vmem:[%s7 + $0x18] sm:$0xff]
    %v7040 = vsel %vm6549, %v6903, 0
    %v7043 = vsel %vm6549, %v7006, 0
    %7045 = vmatprep.subr.mxu0 0.0
    %7046 = vmatpush1.msra.mxu0 %v7035
    %7047 = vmatprep.subr.mxu0 0.0
    %7048 = vmatpush1.msra.mxu0 %v7036
    %7049 = vmatprep.subr.mxu0 0.0
    %7050 = vmatpush1.msra.mxu0 %v7037
    %7051 = vmatprep.subr.mxu0 0.0
    %7052 = vmatpush1.msra.mxu0 %v7038
    %7053 = vmatprep.subr.mxu0 0.0
    %7054 = vmatpush1.msra.mxu0 0.0
    %7055 = vmatprep.subr.mxu0 0.0
    %7056 = vmatpush1.msra.mxu0 0.0
    %7057 = vmatprep.subr.mxu0 0.0
    %7058 = vmatpush1.msra.mxu0 0.0
    %7059 = vmatprep.subr.mxu0 0.0
    %7060 = vmatpush1.msra.mxu0 0.0
    %7061 = vmatprep.subr.mxu0 0.0
    %7062 = vmatpush1.msra.mxu0 0.0
    %7063 = vmatprep.subr.mxu0 0.0
    %7064 = vmatpush1.msra.mxu0 0.0
    %7065 = vmatprep.subr.mxu0 0.0
    %7066 = vmatpush1.msra.mxu0 0.0
    %7067 = vmatprep.subr.mxu0 0.0
    %7068 = vmatpush1.msra.mxu0 0.0
    %7069 = vmatprep.subr.mxu0 0.0
    %7070 = vmatpush1.msra.mxu0 0.0
    %7071 = vmatprep.subr.mxu0 0.0
    %7072 = vmatpush1.msra.mxu0 0.0
    %7073 = vmatprep.subr.mxu0 0.0
    %7074 = vmatpush1.msra.mxu0 0.0
    %7075 = vmatprep.subr.mxu0 0.0
    %7076 = vmatpush1.msra.mxu0 0.0
    %7077 = vmatprep.subr.mxu0 0.0
    %7078 = vmatpush1.msra.mxu0 0.0
    %7079 = vmatprep.subr.mxu0 0.0
    %7080 = vmatpush1.msra.mxu0 0.0
    %7081 = vmatprep.subr.mxu0 0.0
    %7082 = vmatpush1.msra.mxu0 0.0
    %7083 = vmatprep.subr.mxu0 0.0
    %7084 = vmatpush1.msra.mxu0 0.0
    %7085 = vmatprep.subr.mxu0 0.0
    %7086 = vmatpush1.msra.mxu0 0.0
    %7087 = vmatprep.subr.mxu0 0.0
    %7088 = vmatpush1.msra.mxu0 0.0
    %7089 = vmatprep.subr.mxu0 0.0
    %7090 = vmatpush1.msra.mxu0 0.0
    %7091 = vmatprep.subr.mxu0 0.0
    %7092 = vmatpush1.msra.mxu0 0.0
    %7093 = vmatprep.subr.mxu0 0.0
    %7094 = vmatpush1.msra.mxu0 0.0
    %7095 = vmatprep.subr.mxu0 0.0
    %7096 = vmatpush1.msra.mxu0 0.0
    %7097 = vmatprep.subr.mxu0 0.0
    %7098 = vmatpush1.msra.mxu0 0.0
    %7099 = vmatprep.subr.mxu0 0.0
    %7100 = vmatpush1.msra.mxu0 0.0
    %7101 = vmatprep.subr.mxu0 0.0
    %7102 = vmatpush1.msra.mxu0 0.0
    %7103 = vmatprep.subr.mxu0 0.0
    %7104 = vmatpush1.msra.mxu0 0.0
    %7105 = vmatprep.subr.mxu0 0.0
    %7106 = vmatpush1.msra.mxu0 0.0
    %7107 = vmatprep.subr.mxu0 0.0
    %7108 = vmatpush1.msra.mxu0 0.0
    %7109 = vmatprep.mubr.f32.mxu0 0.0
    %7110 = vmatmul.mubr.f32.gmra.mrb[0].mxu0 %v7040
    %v7111 = vpop.f32.mrb[0].mxu0
    %v7112 = vadd.f32 0.0, %v7111
    %v7113 = vpop.f32.mrb[0].mxu0
    %7114 = vmatprep.mubr.f32.mxu0 0.0
    %7115 = vmatmul.mubr.f32.gmra.mrb[0].mxu0 %v7043
    %v7116 = vpop.f32.mrb[0].mxu0
    %v7117 = vadd.f32 0.0, %v7116
    %v7118 = vpop.f32.mrb[0].mxu0
    %7119 = vdwg.mxu0
    %v7121 = vsel %vm6549, %v6696, 0
    %v7124 = vsel %vm6549, %v6800, 0
    %7126 = vmatprep.subr.mxu0 0.0
    %7127 = vmatpush1.msra.mxu0 %v7031
    %7128 = vmatprep.subr.mxu0 0.0
    %7129 = vmatpush1.msra.mxu0 %v7032
    %7130 = vmatprep.subr.mxu0 0.0
    %7131 = vmatpush1.msra.mxu0 %v7033
    %7132 = vmatprep.subr.mxu0 0.0
    %7133 = vmatpush1.msra.mxu0 %v7034
    %7134 = vmatprep.subr.mxu0 0.0
    %7135 = vmatpush1.msra.mxu0 0.0
    %7136 = vmatprep.subr.mxu0 0.0
    %7137 = vmatpush1.msra.mxu0 0.0
    %7138 = vmatprep.subr.mxu0 0.0
    %7139 = vmatpush1.msra.mxu0 0.0
    %7140 = vmatprep.subr.mxu0 0.0
    %7141 = vmatpush1.msra.mxu0 0.0
    %7142 = vmatprep.subr.mxu0 0.0
    %7143 = vmatpush1.msra.mxu0 0.0
    %7144 = vmatprep.subr.mxu0 0.0
    %7145 = vmatpush1.msra.mxu0 0.0
    %7146 = vmatprep.subr.mxu0 0.0
    %7147 = vmatpush1.msra.mxu0 0.0
    %7148 = vmatprep.subr.mxu0 0.0
    %7149 = vmatpush1.msra.mxu0 0.0
    %7150 = vmatprep.subr.mxu0 0.0
    %7151 = vmatpush1.msra.mxu0 0.0
    %7152 = vmatprep.subr.mxu0 0.0
    %7153 = vmatpush1.msra.mxu0 0.0
    %7154 = vmatprep.subr.mxu0 0.0
    %7155 = vmatpush1.msra.mxu0 0.0
    %7156 = vmatprep.subr.mxu0 0.0
    %7157 = vmatpush1.msra.mxu0 0.0
    %7158 = vmatprep.subr.mxu0 0.0
    %7159 = vmatpush1.msra.mxu0 0.0
    %7160 = vmatprep.subr.mxu0 0.0
    %7161 = vmatpush1.msra.mxu0 0.0
    %7162 = vmatprep.subr.mxu0 0.0
    %7163 = vmatpush1.msra.mxu0 0.0
    %7164 = vmatprep.subr.mxu0 0.0
    %7165 = vmatpush1.msra.mxu0 0.0
    %7166 = vmatprep.subr.mxu0 0.0
    %7167 = vmatpush1.msra.mxu0 0.0
    %7168 = vmatprep.subr.mxu0 0.0
    %7169 = vmatpush1.msra.mxu0 0.0
    %7170 = vmatprep.subr.mxu0 0.0
    %7171 = vmatpush1.msra.mxu0 0.0
    %7172 = vmatprep.subr.mxu0 0.0
    %7173 = vmatpush1.msra.mxu0 0.0
    %7174 = vmatprep.subr.mxu0 0.0
    %7175 = vmatpush1.msra.mxu0 0.0
    %7176 = vmatprep.subr.mxu0 0.0
    %7177 = vmatpush1.msra.mxu0 0.0
    %7178 = vmatprep.subr.mxu0 0.0
    %7179 = vmatpush1.msra.mxu0 0.0
    %7180 = vmatprep.subr.mxu0 0.0
    %7181 = vmatpush1.msra.mxu0 0.0
    %7182 = vmatprep.subr.mxu0 0.0
    %7183 = vmatpush1.msra.mxu0 0.0
    %7184 = vmatprep.subr.mxu0 0.0
    %7185 = vmatpush1.msra.mxu0 0.0
    %7186 = vmatprep.subr.mxu0 0.0
    %7187 = vmatpush1.msra.mxu0 0.0
    %7188 = vmatprep.subr.mxu0 0.0
    %7189 = vmatpush1.msra.mxu0 0.0
    %7190 = vmatprep.mubr.f32.mxu0 0.0
    %7191 = vmatmul.mubr.f32.gmra.mrb[0].mxu0 %v7121
    %v7192 = vpop.f32.mrb[0].mxu0
    %v7193 = vadd.f32 %v7112, %v7192
    %v7194 = vpop.f32.mrb[0].mxu0
    %7195 = vmatprep.mubr.f32.mxu0 0.0
    %7196 = vmatmul.mubr.f32.gmra.mrb[0].mxu0 %v7124
    %v7197 = vpop.f32.mrb[0].mxu0
    %v7198 = vadd.f32 %v7117, %v7197
    %v7199 = vpop.f32.mrb[0].mxu0
    %7200 = vdwg.mxu0
    %s7201 = scalar_lea.vmem %s6, 32
    %v7202 = vld [vmem:[%s7201] sm:$0xff]
    %v7203 = vld [vmem:[%s7201 + $0x8] sm:$0xff]
    %v7204 = vld [vmem:[%s7201 + $0x10] sm:$0xff]
    %v7205 = vld [vmem:[%s7201 + $0x18] sm:$0xff]
    %v7207 = vsel %vm6549, %v7011, 0
    %v7210 = vsel %vm6549, %v7012, 0
    %7212 = vmatprep.subr.mxu0 0.0
    %7213 = vmatpush1.msra.mxu0 %v7202
    %7214 = vmatprep.subr.mxu0 0.0
    %7215 = vmatpush1.msra.mxu0 %v7203
    %7216 = vmatprep.subr.mxu0 0.0
    %7217 = vmatpush1.msra.mxu0 %v7204
    %7218 = vmatprep.subr.mxu0 0.0
    %7219 = vmatpush1.msra.mxu0 %v7205
    %7220 = vmatprep.subr.mxu0 0.0
    %7221 = vmatpush1.msra.mxu0 0.0
    %7222 = vmatprep.subr.mxu0 0.0
    %7223 = vmatpush1.msra.mxu0 0.0
    %7224 = vmatprep.subr.mxu0 0.0
    %7225 = vmatpush1.msra.mxu0 0.0
    %7226 = vmatprep.subr.mxu0 0.0
    %7227 = vmatpush1.msra.mxu0 0.0
    %7228 = vmatprep.subr.mxu0 0.0
    %7229 = vmatpush1.msra.mxu0 0.0
    %7230 = vmatprep.subr.mxu0 0.0
    %7231 = vmatpush1.msra.mxu0 0.0
    %7232 = vmatprep.subr.mxu0 0.0
    %7233 = vmatpush1.msra.mxu0 0.0
    %7234 = vmatprep.subr.mxu0 0.0
    %7235 = vmatpush1.msra.mxu0 0.0
    %7236 = vmatprep.subr.mxu0 0.0
    %7237 = vmatpush1.msra.mxu0 0.0
    %7238 = vmatprep.subr.mxu0 0.0
    %7239 = vmatpush1.msra.mxu0 0.0
    %7240 = vmatprep.subr.mxu0 0.0
    %7241 = vmatpush1.msra.mxu0 0.0
    %7242 = vmatprep.subr.mxu0 0.0
    %7243 = vmatpush1.msra.mxu0 0.0
    %7244 = vmatprep.subr.mxu0 0.0
    %7245 = vmatpush1.msra.mxu0 0.0
    %7246 = vmatprep.subr.mxu0 0.0
    %7247 = vmatpush1.msra.mxu0 0.0
    %7248 = vmatprep.subr.mxu0 0.0
    %7249 = vmatpush1.msra.mxu0 0.0
    %7250 = vmatprep.subr.mxu0 0.0
    %7251 = vmatpush1.msra.mxu0 0.0
    %7252 = vmatprep.subr.mxu0 0.0
    %7253 = vmatpush1.msra.mxu0 0.0
    %7254 = vmatprep.subr.mxu0 0.0
    %7255 = vmatpush1.msra.mxu0 0.0
    %7256 = vmatprep.subr.mxu0 0.0
    %7257 = vmatpush1.msra.mxu0 0.0
    %7258 = vmatprep.subr.mxu0 0.0
    %7259 = vmatpush1.msra.mxu0 0.0
    %7260 = vmatprep.subr.mxu0 0.0
    %7261 = vmatpush1.msra.mxu0 0.0
    %7262 = vmatprep.subr.mxu0 0.0
    %7263 = vmatpush1.msra.mxu0 0.0
    %7264 = vmatprep.subr.mxu0 0.0
    %7265 = vmatpush1.msra.mxu0 0.0
    %7266 = vmatprep.subr.mxu0 0.0
    %7267 = vmatpush1.msra.mxu0 0.0
    %7268 = vmatprep.subr.mxu0 0.0
    %7269 = vmatpush1.msra.mxu0 0.0
    %7270 = vmatprep.subr.mxu0 0.0
    %7271 = vmatpush1.msra.mxu0 0.0
    %7272 = vmatprep.subr.mxu0 0.0
    %7273 = vmatpush1.msra.mxu0 0.0
    %7274 = vmatprep.subr.mxu0 0.0
    %7275 = vmatpush1.msra.mxu0 0.0
    %7276 = vmatprep.mubr.f32.mxu0 0.0
    %7277 = vmatmul.mubr.f32.gmra.mrb[0].mxu0 %v7207
    %v7278 = vpop.f32.mrb[0].mxu0
    %v7279 = vadd.f32 0.0, %v7278
    %v7280 = vpop.f32.mrb[0].mxu0
    %7281 = vmatprep.mubr.f32.mxu0 0.0
    %7282 = vmatmul.mubr.f32.gmra.mrb[0].mxu0 %v7210
    %v7283 = vpop.f32.mrb[0].mxu0
    %v7284 = vadd.f32 0.0, %v7283
    %v7285 = vpop.f32.mrb[0].mxu0
    %7286 = vdwg.mxu0
    %v7287 = vadd.f32 %v7193, %v7279
    %v7288 = vadd.f32 %v7198, %v7284
    %s7289 = scalar_lea.vmem %s7, 32
    %v7290 = vld [vmem:[%s7289] sm:$0xff]
    %v7291 = vld [vmem:[%s7289 + $0x8] sm:$0xff]
    %v7292 = vld [vmem:[%s7289 + $0x10] sm:$0xff]
    %v7293 = vld [vmem:[%s7289 + $0x18] sm:$0xff]
    %v7295 = vsel %vm6549, %v7015, 0
    %v7298 = vsel %vm6549, %v7016, 0
    %7300 = vmatprep.subr.mxu0 0.0
    %7301 = vmatpush1.msra.mxu0 %v7290
    %7302 = vmatprep.subr.mxu0 0.0
    %7303 = vmatpush1.msra.mxu0 %v7291
    %7304 = vmatprep.subr.mxu0 0.0
    %7305 = vmatpush1.msra.mxu0 %v7292
    %7306 = vmatprep.subr.mxu0 0.0
    %7307 = vmatpush1.msra.mxu0 %v7293
    %7308 = vmatprep.subr.mxu0 0.0
    %7309 = vmatpush1.msra.mxu0 0.0
    %7310 = vmatprep.subr.mxu0 0.0
    %7311 = vmatpush1.msra.mxu0 0.0
    %7312 = vmatprep.subr.mxu0 0.0
    %7313 = vmatpush1.msra.mxu0 0.0
    %7314 = vmatprep.subr.mxu0 0.0
    %7315 = vmatpush1.msra.mxu0 0.0
    %7316 = vmatprep.subr.mxu0 0.0
    %7317 = vmatpush1.msra.mxu0 0.0
    %7318 = vmatprep.subr.mxu0 0.0
    %7319 = vmatpush1.msra.mxu0 0.0
    %7320 = vmatprep.subr.mxu0 0.0
    %7321 = vmatpush1.msra.mxu0 0.0
    %7322 = vmatprep.subr.mxu0 0.0
    %7323 = vmatpush1.msra.mxu0 0.0
    %7324 = vmatprep.subr.mxu0 0.0
    %7325 = vmatpush1.msra.mxu0 0.0
    %7326 = vmatprep.subr.mxu0 0.0
    %7327 = vmatpush1.msra.mxu0 0.0
    %7328 = vmatprep.subr.mxu0 0.0
    %7329 = vmatpush1.msra.mxu0 0.0
    %7330 = vmatprep.subr.mxu0 0.0
    %7331 = vmatpush1.msra.mxu0 0.0
    %7332 = vmatprep.subr.mxu0 0.0
    %7333 = vmatpush1.msra.mxu0 0.0
    %7334 = vmatprep.subr.mxu0 0.0
    %7335 = vmatpush1.msra.mxu0 0.0
    %7336 = vmatprep.subr.mxu0 0.0
    %7337 = vmatpush1.msra.mxu0 0.0
    %7338 = vmatprep.subr.mxu0 0.0
    %7339 = vmatpush1.msra.mxu0 0.0
    %7340 = vmatprep.subr.mxu0 0.0
    %7341 = vmatpush1.msra.mxu0 0.0
    %7342 = vmatprep.subr.mxu0 0.0
    %7343 = vmatpush1.msra.mxu0 0.0
    %7344 = vmatprep.subr.mxu0 0.0
    %7345 = vmatpush1.msra.mxu0 0.0
    %7346 = vmatprep.subr.mxu0 0.0
    %7347 = vmatpush1.msra.mxu0 0.0
    %7348 = vmatprep.subr.mxu0 0.0
    %7349 = vmatpush1.msra.mxu0 0.0
    %7350 = vmatprep.subr.mxu0 0.0
    %7351 = vmatpush1.msra.mxu0 0.0
    %7352 = vmatprep.subr.mxu0 0.0
    %7353 = vmatpush1.msra.mxu0 0.0
    %7354 = vmatprep.subr.mxu0 0.0
    %7355 = vmatpush1.msra.mxu0 0.0
    %7356 = vmatprep.subr.mxu0 0.0
    %7357 = vmatpush1.msra.mxu0 0.0
    %7358 = vmatprep.subr.mxu0 0.0
    %7359 = vmatpush1.msra.mxu0 0.0
    %7360 = vmatprep.subr.mxu0 0.0
    %7361 = vmatpush1.msra.mxu0 0.0
    %7362 = vmatprep.subr.mxu0 0.0
    %7363 = vmatpush1.msra.mxu0 0.0
    %7364 = vmatprep.mubr.f32.mxu0 0.0
    %7365 = vmatmul.mubr.f32.gmra.mrb[0].mxu0 %v7295
    %v7366 = vpop.f32.mrb[0].mxu0
    %v7367 = vadd.f32 0.0, %v7366
    %v7368 = vpop.f32.mrb[0].mxu0
    %7369 = vmatprep.mubr.f32.mxu0 0.0
    %7370 = vmatmul.mubr.f32.gmra.mrb[0].mxu0 %v7298
    %v7371 = vpop.f32.mrb[0].mxu0
    %v7372 = vadd.f32 0.0, %v7371
    %v7373 = vpop.f32.mrb[0].mxu0
    %7374 = vdwg.mxu0
    %v7375 = vadd.f32 %v7287, %v7367
    %v7376 = vadd.f32 %v7288, %v7372
    %s7377 = scalar_lea.vmem %s6, 64
    %v7378 = vld [vmem:[%s7377] sm:$0xff]
    %v7379 = vld [vmem:[%s7377 + $0x8] sm:$0xff]
    %v7380 = vld [vmem:[%s7377 + $0x10] sm:$0xff]
    %v7381 = vld [vmem:[%s7377 + $0x18] sm:$0xff]
    %v7383 = vsel %vm6549, %v7021, 0
    %v7386 = vsel %vm6549, %v7022, 0
    %7388 = vmatprep.subr.mxu0 0.0
    %7389 = vmatpush1.msra.mxu0 %v7378
    %7390 = vmatprep.subr.mxu0 0.0
    %7391 = vmatpush1.msra.mxu0 %v7379
    %7392 = vmatprep.subr.mxu0 0.0
    %7393 = vmatpush1.msra.mxu0 %v7380
    %7394 = vmatprep.subr.mxu0 0.0
    %7395 = vmatpush1.msra.mxu0 %v7381
    %7396 = vmatprep.subr.mxu0 0.0
    %7397 = vmatpush1.msra.mxu0 0.0
    %7398 = vmatprep.subr.mxu0 0.0
    %7399 = vmatpush1.msra.mxu0 0.0
    %7400 = vmatprep.subr.mxu0 0.0
    %7401 = vmatpush1.msra.mxu0 0.0
    %7402 = vmatprep.subr.mxu0 0.0
    %7403 = vmatpush1.msra.mxu0 0.0
    %7404 = vmatprep.subr.mxu0 0.0
    %7405 = vmatpush1.msra.mxu0 0.0
    %7406 = vmatprep.subr.mxu0 0.0
    %7407 = vmatpush1.msra.mxu0 0.0
    %7408 = vmatprep.subr.mxu0 0.0
    %7409 = vmatpush1.msra.mxu0 0.0
    %7410 = vmatprep.subr.mxu0 0.0
    %7411 = vmatpush1.msra.mxu0 0.0
    %7412 = vmatprep.subr.mxu0 0.0
    %7413 = vmatpush1.msra.mxu0 0.0
    %7414 = vmatprep.subr.mxu0 0.0
    %7415 = vmatpush1.msra.mxu0 0.0
    %7416 = vmatprep.subr.mxu0 0.0
    %7417 = vmatpush1.msra.mxu0 0.0
    %7418 = vmatprep.subr.mxu0 0.0
    %7419 = vmatpush1.msra.mxu0 0.0
    %7420 = vmatprep.subr.mxu0 0.0
    %7421 = vmatpush1.msra.mxu0 0.0
    %7422 = vmatprep.subr.mxu0 0.0
    %7423 = vmatpush1.msra.mxu0 0.0
    %7424 = vmatprep.subr.mxu0 0.0
    %7425 = vmatpush1.msra.mxu0 0.0
    %7426 = vmatprep.subr.mxu0 0.0
    %7427 = vmatpush1.msra.mxu0 0.0
    %7428 = vmatprep.subr.mxu0 0.0
    %7429 = vmatpush1.msra.mxu0 0.0
    %7430 = vmatprep.subr.mxu0 0.0
    %7431 = vmatpush1.msra.mxu0 0.0
    %7432 = vmatprep.subr.mxu0 0.0
    %7433 = vmatpush1.msra.mxu0 0.0
    %7434 = vmatprep.subr.mxu0 0.0
    %7435 = vmatpush1.msra.mxu0 0.0
    %7436 = vmatprep.subr.mxu0 0.0
    %7437 = vmatpush1.msra.mxu0 0.0
    %7438 = vmatprep.subr.mxu0 0.0
    %7439 = vmatpush1.msra.mxu0 0.0
    %7440 = vmatprep.subr.mxu0 0.0
    %7441 = vmatpush1.msra.mxu0 0.0
    %7442 = vmatprep.subr.mxu0 0.0
    %7443 = vmatpush1.msra.mxu0 0.0
    %7444 = vmatprep.subr.mxu0 0.0
    %7445 = vmatpush1.msra.mxu0 0.0
    %7446 = vmatprep.subr.mxu0 0.0
    %7447 = vmatpush1.msra.mxu0 0.0
    %7448 = vmatprep.subr.mxu0 0.0
    %7449 = vmatpush1.msra.mxu0 0.0
    %7450 = vmatprep.subr.mxu0 0.0
    %7451 = vmatpush1.msra.mxu0 0.0
    %7452 = vmatprep.mubr.f32.mxu0 0.0
    %7453 = vmatmul.mubr.f32.gmra.mrb[0].mxu0 %v7383
    %v7454 = vpop.f32.mrb[0].mxu0
    %v7455 = vadd.f32 0.0, %v7454
    %v7456 = vpop.f32.mrb[0].mxu0
    %7457 = vmatprep.mubr.f32.mxu0 0.0
    %7458 = vmatmul.mubr.f32.gmra.mrb[0].mxu0 %v7386
    %v7459 = vpop.f32.mrb[0].mxu0
    %v7460 = vadd.f32 0.0, %v7459
    %v7461 = vpop.f32.mrb[0].mxu0
    %7462 = vdwg.mxu0
    %v7463 = vadd.f32 %v7375, %v7455
    %v7464 = vadd.f32 %v7376, %v7460
    %s7465 = scalar_lea.vmem %s7, 64
    %v7466 = vld [vmem:[%s7465] sm:$0xff]
    %v7467 = vld [vmem:[%s7465 + $0x8] sm:$0xff]
    %v7468 = vld [vmem:[%s7465 + $0x10] sm:$0xff]
    %v7469 = vld [vmem:[%s7465 + $0x18] sm:$0xff]
    %v7471 = vsel %vm6549, %v7029, 0
    %v7474 = vsel %vm6549, %v7030, 0
    %7476 = vmatprep.subr.mxu0 0.0
    %7477 = vmatpush1.msra.mxu0 %v7466
    %7478 = vmatprep.subr.mxu0 0.0
    %7479 = vmatpush1.msra.mxu0 %v7467
    %7480 = vmatprep.subr.mxu0 0.0
    %7481 = vmatpush1.msra.mxu0 %v7468
    %7482 = vmatprep.subr.mxu0 0.0
    %7483 = vmatpush1.msra.mxu0 %v7469
    %7484 = vmatprep.subr.mxu0 0.0
    %7485 = vmatpush1.msra.mxu0 0.0
    %7486 = vmatprep.subr.mxu0 0.0
    %7487 = vmatpush1.msra.mxu0 0.0
    %7488 = vmatprep.subr.mxu0 0.0
    %7489 = vmatpush1.msra.mxu0 0.0
    %7490 = vmatprep.subr.mxu0 0.0
    %7491 = vmatpush1.msra.mxu0 0.0
    %7492 = vmatprep.subr.mxu0 0.0
    %7493 = vmatpush1.msra.mxu0 0.0
    %7494 = vmatprep.subr.mxu0 0.0
    %7495 = vmatpush1.msra.mxu0 0.0
    %7496 = vmatprep.subr.mxu0 0.0
    %7497 = vmatpush1.msra.mxu0 0.0
    %7498 = vmatprep.subr.mxu0 0.0
    %7499 = vmatpush1.msra.mxu0 0.0
    %7500 = vmatprep.subr.mxu0 0.0
    %7501 = vmatpush1.msra.mxu0 0.0
    %7502 = vmatprep.subr.mxu0 0.0
    %7503 = vmatpush1.msra.mxu0 0.0
    %7504 = vmatprep.subr.mxu0 0.0
    %7505 = vmatpush1.msra.mxu0 0.0
    %7506 = vmatprep.subr.mxu0 0.0
    %7507 = vmatpush1.msra.mxu0 0.0
    %7508 = vmatprep.subr.mxu0 0.0
    %7509 = vmatpush1.msra.mxu0 0.0
    %7510 = vmatprep.subr.mxu0 0.0
    %7511 = vmatpush1.msra.mxu0 0.0
    %7512 = vmatprep.subr.mxu0 0.0
    %7513 = vmatpush1.msra.mxu0 0.0
    %7514 = vmatprep.subr.mxu0 0.0
    %7515 = vmatpush1.msra.mxu0 0.0
    %7516 = vmatprep.subr.mxu0 0.0
    %7517 = vmatpush1.msra.mxu0 0.0
    %7518 = vmatprep.subr.mxu0 0.0
    %7519 = vmatpush1.msra.mxu0 0.0
    %7520 = vmatprep.subr.mxu0 0.0
    %7521 = vmatpush1.msra.mxu0 0.0
    %7522 = vmatprep.subr.mxu0 0.0
    %7523 = vmatpush1.msra.mxu0 0.0
    %7524 = vmatprep.subr.mxu0 0.0
    %7525 = vmatpush1.msra.mxu0 0.0
    %7526 = vmatprep.subr.mxu0 0.0
    %7527 = vmatpush1.msra.mxu0 0.0
    %7528 = vmatprep.subr.mxu0 0.0
    %7529 = vmatpush1.msra.mxu0 0.0
    %7530 = vmatprep.subr.mxu0 0.0
    %7531 = vmatpush1.msra.mxu0 0.0
    %7532 = vmatprep.subr.mxu0 0.0
    %7533 = vmatpush1.msra.mxu0 0.0
    %7534 = vmatprep.subr.mxu0 0.0
    %7535 = vmatpush1.msra.mxu0 0.0
    %7536 = vmatprep.subr.mxu0 0.0
    %7537 = vmatpush1.msra.mxu0 0.0
    %7538 = vmatprep.subr.mxu0 0.0
    %7539 = vmatpush1.msra.mxu0 0.0
    %7540 = vmatprep.mubr.f32.mxu0 0.0
    %7541 = vmatmul.mubr.f32.gmra.mrb[0].mxu0 %v7471
    %v7542 = vpop.f32.mrb[0].mxu0
    %v7543 = vadd.f32 0.0, %v7542
    %v7544 = vpop.f32.mrb[0].mxu0
    %7545 = vmatprep.mubr.f32.mxu0 0.0
    %7546 = vmatmul.mubr.f32.gmra.mrb[0].mxu0 %v7474
    %v7547 = vpop.f32.mrb[0].mxu0
    %v7548 = vadd.f32 0.0, %v7547
    %v7549 = vpop.f32.mrb[0].mxu0
    %7550 = vdwg.mxu0
    %v7551 = vadd.f32 %v7463, %v7543
    %v7552 = vadd.f32 %v7464, %v7548
    %v7553 = vld [vmem:[%s8] sm:$0x1]
    %v7555 = vlaneseq
    %v7556 = vshrl.u32 %v7555, 7
    %v7557 = vsub.s32 0, %v7556
    %v7558 = vrot.slane %v7553, %v7557
    %v7560 = vadd.f32 %v7551, %v7558
    %v7561 = vadd.f32 %v7552, %v7558
    %v7562 = vld [vmem:[%s9] sm:$0x1]
    %v7563 = vld [vmem:[%s10] sm:$0x1]
    %v7564 = vsel %vm3661, %v7560, 0.0
    %7565 = vadd.xlane.f32.xlu0 %v7564
    %v7566 = vpop.xlane.xlu0 %7565
    %v7567 = vsel %vm3661, %v7561, 0.0
    %7568 = vadd.xlane.f32.xlu0 %v7567
    %v7569 = vpop.xlane.xlu0 %7568
    %v7570 = vrcp.pop 16.0
    %v7571 = vmul.f32 %v7566, %v7570
    %v7572 = vmul.f32 %v7569, %v7570
    %v7573 = vsub.f32 %v7560, %v7571
    %v7574 = vsub.f32 %v7561, %v7572
    %v7575 = vmul.f32 %v7573, %v7573
    %v7576 = vmul.f32 %v7574, %v7574
    %v7577 = vsel %vm3661, %v7575, 0.0
    %7578 = vadd.xlane.f32.xlu0 %v7577
    %v7579 = vpop.xlane.xlu0 %7578
    %v7580 = vsel %vm3661, %v7576, 0.0
    %7581 = vadd.xlane.f32.xlu0 %v7580
    %v7582 = vpop.xlane.xlu0 %7581
    %v7583 = vmul.f32 %v7579, %v7570
    %v7584 = vmul.f32 %v7582, %v7570
    %v7585 = vadd.f32 %v7583, 1e-05
    %v7586 = vadd.f32 %v7584, 1e-05
    %v7587 = vrsqrt.pop %v7585
    %v7588 = vrsqrt.pop %v7586
    %v7589 = vmul.f32 %v7573, %v7587
    %v7590 = vmul.f32 %v7574, %v7588
    %v7592 = vlaneseq
    %v7593 = vshrl.u32 %v7592, 7
    %v7594 = vsub.s32 0, %v7593
    %v7595 = vrot.slane %v7562, %v7594
    %v7597 = vmul.f32 %v7589, %v7595
    %v7598 = vmul.f32 %v7590, %v7595
    %v7600 = vlaneseq
    %v7601 = vshrl.u32 %v7600, 7
    %v7602 = vsub.s32 0, %v7601
    %v7603 = vrot.slane %v7563, %v7602
    %v7605 = vadd.f32 %v7597, %v7603
    %v7606 = vadd.f32 %v7598, %v7603
    %v7607 = vand.u32 2147483647, %v7605
    %vm7608 = vcmp.le.f32.partialorder %v7607, 0.7853982
    %vm7609 = vcmp.lt.s32.totalorder %v7605, 0
    %v7610 = vand.u32 %v7605, 2139095040
    %v7611 = vshrl.u32 %v7610, 23
    %v7612 = vsub.s32 %v7611, 127
    %v7613 = vand.u32 2147483647, %v7605
    %v7614 = vand.u32 %v7613, 8388607
    %v7615 = vor.u32 %v7614, 8388608
    %v7616 = vsub.s32 0, %v7615
    %v7617 = vadd.s32 %v7612, 1
    %vm7618 = vcmp.gt.s32.totalorder %v7617, 0
    %v7619 = vsel %vm7618, %v7617, 0
    %v7620 = vshrl.u32 %v7619, 5
    %v7621 = vand.u32 %v7619, 31
    %v7622 = vsub.s32 32, %v7621
    %v7623 = vshrl.u32 683565275, %v7622
    %v7624 = vshll.u32 683565275, %v7621
    %v7625 = vshrl.u32 2475754826, %v7622
    %v7626 = vor.u32 %v7624, %v7625
    %v7627 = vshll.u32 2475754826, %v7621
    %v7628 = vshrl.u32 2131351028, %v7622
    %v7629 = vor.u32 %v7627, %v7628
    %v7630 = vshll.u32 2131351028, %v7621
    %v7631 = vshrl.u32 2102212464, %v7622
    %v7632 = vor.u32 %v7630, %v7631
    %v7633 = vshll.u32 2102212464, %v7621
    %v7634 = vshrl.u32 920167782, %v7622
    %v7635 = vor.u32 %v7633, %v7634
    %v7636 = vshll.u32 920167782, %v7621
    %v7637 = vshrl.u32 1326507024, %v7622
    %v7638 = vor.u32 %v7636, %v7637
    %vm7639 = vcmp.lt.s32.totalorder %v7620, 1
    %vm7640 = vcmp.lt.s32.totalorder %v7620, 2
    %vm7641 = vcmp.lt.s32.totalorder %v7620, 3
    %vm7642 = vcmp.lt.s32.totalorder %v7620, 4
    %v7643 = vsel %vm7639, %v7623, %v7626
    %v7644 = vsel %vm7642, %v7632, 2102212464
    %v7645 = vsel %vm7641, %v7629, %v7644
    %v7646 = vsel %vm7640, %v7643, %v7645
    %v7647 = vsel %vm7639, %v7626, %v7629
    %v7648 = vsel %vm7642, %v7635, 920167782
    %v7649 = vsel %vm7641, %v7632, %v7648
    %v7650 = vsel %vm7640, %v7647, %v7649
    %v7651 = vsel %vm7639, %v7629, %v7632
    %v7652 = vsel %vm7642, %v7638, 1326507024
    %v7653 = vsel %vm7641, %v7635, %v7652
    %v7654 = vsel %vm7640, %v7651, %v7653
    %v7655 = vshll.u32 %v7615, 8
    %v7656 = vmul.u32.u64.compose %v7655, %v7654
    %v7657 = vextract.low.u32 %v7656
    %v7658 = vextract.high.u32 %v7656
    %v7659 = vmul.u32.u64.compose %v7655, %v7650
    %v7660 = vextract.low.u32 %v7659
    %v7661 = vextract.high.u32 %v7659
    %v7662 = vmul.u32 %v7655, %v7646
    %v7663 = vadd.s32 %v7658, %v7660
    %vm7664 = vc.u32 %v7658, %v7660
    %v7665 = vadd.s32 %v7661, 1
    %v7666 = vsel %vm7664, %v7665, %v7661
    %v7667 = vadd.s32 %v7662, %v7666
    %v7668 = vadd.s32 %v7667, 536870912
    %v7669 = vshrl.u32 %v7668, 30
    %v7670 = vshll.u32 %v7669, 30
    %v7671 = vsub.s32 %v7667, %v7670
    %vm7672 = vcmp.lt.s32.totalorder %v7671, 0
    %v7673 = vsub.s32 0, %v7671
    %v7674 = vsel %vm7672, %v7673, %v7671
    %v7675 = vclz %v7674
    %v7676 = vsub.s32 %v7675, 2
    %vm7677 = vcmp.gt.s32.totalorder 0, %v7676
    %v7678 = vsel %vm7677, 0, %v7676
    %v7679 = vsub.s32 32, %v7678
    %v7680 = vshll.u32 %v7671, %v7678
    %v7681 = vshrl.u32 %v7663, %v7679
    %v7682 = vor.u32 %v7680, %v7681
    %v7683 = vsub.s32 4294967266, %v7678
    %v7684 = vadd.s32 %v7683, 127
    %v7685 = vshll.u32 %v7684, 23
    %v7686 = vor.u32 4788187, %v7685
    %v7687 = vand.u32 2147483647, %v7686
    %v7689 = vcvt.s32.f32 %v7682
    %v7690 = vmul.f32 %v7689, %v7687
    %v7691 = vxor.u32 %v7690, 2147483648
    %v7692 = vsel %vm7609, %v7691, %v7690
    %v7693 = vsub.s32 4, %v7669
    %v7694 = vsel %vm7609, %v7693, %v7669
    %v7695 = vsel %vm7608, %v7605, %v7692
    %v7696 = vsel %vm7608, 0, %v7694
    %v7697 = vcosq.f32.pop %v7695
    %v7698 = vsinq.f32.pop %v7695
    %vm7699 = vweird.f32 %v7605
    %v7700 = vadd.s32 %v7696, 3
    %v7701 = vand.u32 %v7700, 3
    %vm7702 = vcmp.lt.s32.totalorder %v7701, 2
    %vm7703 = vcmp.eq.s32.totalorder %v7701, 0
    %v7704 = vxor.u32 %v7698, 2147483648
    %v7705 = vsel %vm7703, %v7697, %v7704
    %vm7706 = vcmp.eq.s32.totalorder %v7701, 2
    %v7707 = vxor.u32 %v7697, 2147483648
    %v7708 = vsel %vm7706, %v7707, %v7698
    %v7709 = vsel %vm7702, %v7705, %v7708
    %v7710 = vsel %vm7699, nan, %v7709
    %v7711 = vand.u32 2147483647, %v7606
    %vm7712 = vcmp.le.f32.partialorder %v7711, 0.7853982
    %vm7713 = vcmp.lt.s32.totalorder %v7606, 0
    %v7714 = vand.u32 %v7606, 2139095040
    %v7715 = vshrl.u32 %v7714, 23
    %v7716 = vsub.s32 %v7715, 127
    %v7717 = vand.u32 2147483647, %v7606
    %v7718 = vand.u32 %v7717, 8388607
    %v7719 = vor.u32 %v7718, 8388608
    %v7720 = vsub.s32 0, %v7719
    %v7721 = vadd.s32 %v7716, 1
    %vm7722 = vcmp.gt.s32.totalorder %v7721, 0
    %v7723 = vsel %vm7722, %v7721, 0
    %v7724 = vshrl.u32 %v7723, 5
    %v7725 = vand.u32 %v7723, 31
    %v7726 = vsub.s32 32, %v7725
    %v7727 = vshrl.u32 683565275, %v7726
    %v7728 = vshll.u32 683565275, %v7725
    %v7729 = vshrl.u32 2475754826, %v7726
    %v7730 = vor.u32 %v7728, %v7729
    %v7731 = vshll.u32 2475754826, %v7725
    %v7732 = vshrl.u32 2131351028, %v7726
    %v7733 = vor.u32 %v7731, %v7732
    %v7734 = vshll.u32 2131351028, %v7725
    %v7735 = vshrl.u32 2102212464, %v7726
    %v7736 = vor.u32 %v7734, %v7735
    %v7737 = vshll.u32 2102212464, %v7725
    %v7738 = vshrl.u32 920167782, %v7726
    %v7739 = vor.u32 %v7737, %v7738
    %v7740 = vshll.u32 920167782, %v7725
    %v7741 = vshrl.u32 1326507024, %v7726
    %v7742 = vor.u32 %v7740, %v7741
    %vm7743 = vcmp.lt.s32.totalorder %v7724, 1
    %vm7744 = vcmp.lt.s32.totalorder %v7724, 2
    %vm7745 = vcmp.lt.s32.totalorder %v7724, 3
    %vm7746 = vcmp.lt.s32.totalorder %v7724, 4
    %v7747 = vsel %vm7743, %v7727, %v7730
    %v7748 = vsel %vm7746, %v7736, 2102212464
    %v7749 = vsel %vm7745, %v7733, %v7748
    %v7750 = vsel %vm7744, %v7747, %v7749
    %v7751 = vsel %vm7743, %v7730, %v7733
    %v7752 = vsel %vm7746, %v7739, 920167782
    %v7753 = vsel %vm7745, %v7736, %v7752
    %v7754 = vsel %vm7744, %v7751, %v7753
    %v7755 = vsel %vm7743, %v7733, %v7736
    %v7756 = vsel %vm7746, %v7742, 1326507024
    %v7757 = vsel %vm7745, %v7739, %v7756
    %v7758 = vsel %vm7744, %v7755, %v7757
    %v7759 = vshll.u32 %v7719, 8
    %v7760 = vmul.u32.u64.compose %v7759, %v7758
    %v7761 = vextract.low.u32 %v7760
    %v7762 = vextract.high.u32 %v7760
    %v7763 = vmul.u32.u64.compose %v7759, %v7754
    %v7764 = vextract.low.u32 %v7763
    %v7765 = vextract.high.u32 %v7763
    %v7766 = vmul.u32 %v7759, %v7750
    %v7767 = vadd.s32 %v7762, %v7764
    %vm7768 = vc.u32 %v7762, %v7764
    %v7769 = vadd.s32 %v7765, 1
    %v7770 = vsel %vm7768, %v7769, %v7765
    %v7771 = vadd.s32 %v7766, %v7770
    %v7772 = vadd.s32 %v7771, 536870912
    %v7773 = vshrl.u32 %v7772, 30
    %v7774 = vshll.u32 %v7773, 30
    %v7775 = vsub.s32 %v7771, %v7774
    %vm7776 = vcmp.lt.s32.totalorder %v7775, 0
    %v7777 = vsub.s32 0, %v7775
    %v7778 = vsel %vm7776, %v7777, %v7775
    %v7779 = vclz %v7778
    %v7780 = vsub.s32 %v7779, 2
    %vm7781 = vcmp.gt.s32.totalorder 0, %v7780
    %v7782 = vsel %vm7781, 0, %v7780
    %v7783 = vsub.s32 32, %v7782
    %v7784 = vshll.u32 %v7775, %v7782
    %v7785 = vshrl.u32 %v7767, %v7783
    %v7786 = vor.u32 %v7784, %v7785
    %v7787 = vsub.s32 4294967266, %v7782
    %v7788 = vadd.s32 %v7787, 127
    %v7789 = vshll.u32 %v7788, 23
    %v7790 = vor.u32 4788187, %v7789
    %v7791 = vand.u32 2147483647, %v7790
    %v7793 = vcvt.s32.f32 %v7786
    %v7794 = vmul.f32 %v7793, %v7791
    %v7795 = vxor.u32 %v7794, 2147483648
    %v7796 = vsel %vm7713, %v7795, %v7794
    %v7797 = vsub.s32 4, %v7773
    %v7798 = vsel %vm7713, %v7797, %v7773
    %v7799 = vsel %vm7712, %v7606, %v7796
    %v7800 = vsel %vm7712, 0, %v7798
    %v7801 = vcosq.f32.pop %v7799
    %v7802 = vsinq.f32.pop %v7799
    %vm7803 = vweird.f32 %v7606
    %v7804 = vadd.s32 %v7800, 3
    %v7805 = vand.u32 %v7804, 3
    %vm7806 = vcmp.lt.s32.totalorder %v7805, 2
    %vm7807 = vcmp.eq.s32.totalorder %v7805, 0
    %v7808 = vxor.u32 %v7802, 2147483648
    %v7809 = vsel %vm7807, %v7801, %v7808
    %vm7810 = vcmp.eq.s32.totalorder %v7805, 2
    %v7811 = vxor.u32 %v7801, 2147483648
    %v7812 = vsel %vm7810, %v7811, %v7802
    %v7813 = vsel %vm7806, %v7809, %v7812
    %v7814 = vsel %vm7803, nan, %v7813
    %v7815 = vand.u32 2147483647, %v7605
    %vm7816 = vcmp.le.f32.partialorder %v7815, 0.7853982
    %vm7817 = vcmp.lt.s32.totalorder %v7605, 0
    %v7818 = vand.u32 %v7605, 2139095040
    %v7819 = vshrl.u32 %v7818, 23
    %v7820 = vsub.s32 %v7819, 127
    %v7821 = vand.u32 2147483647, %v7605
    %v7822 = vand.u32 %v7821, 8388607
    %v7823 = vor.u32 %v7822, 8388608
    %v7824 = vsub.s32 0, %v7823
    %v7825 = vadd.s32 %v7820, 1
    %vm7826 = vcmp.gt.s32.totalorder %v7825, 0
    %v7827 = vsel %vm7826, %v7825, 0
    %v7828 = vshrl.u32 %v7827, 5
    %v7829 = vand.u32 %v7827, 31
    %v7830 = vsub.s32 32, %v7829
    %v7831 = vshrl.u32 683565275, %v7830
    %v7832 = vshll.u32 683565275, %v7829
    %v7833 = vshrl.u32 2475754826, %v7830
    %v7834 = vor.u32 %v7832, %v7833
    %v7835 = vshll.u32 2475754826, %v7829
    %v7836 = vshrl.u32 2131351028, %v7830
    %v7837 = vor.u32 %v7835, %v7836
    %v7838 = vshll.u32 2131351028, %v7829
    %v7839 = vshrl.u32 2102212464, %v7830
    %v7840 = vor.u32 %v7838, %v7839
    %v7841 = vshll.u32 2102212464, %v7829
    %v7842 = vshrl.u32 920167782, %v7830
    %v7843 = vor.u32 %v7841, %v7842
    %v7844 = vshll.u32 920167782, %v7829
    %v7845 = vshrl.u32 1326507024, %v7830
    %v7846 = vor.u32 %v7844, %v7845
    %vm7847 = vcmp.lt.s32.totalorder %v7828, 1
    %vm7848 = vcmp.lt.s32.totalorder %v7828, 2
    %vm7849 = vcmp.lt.s32.totalorder %v7828, 3
    %vm7850 = vcmp.lt.s32.totalorder %v7828, 4
    %v7851 = vsel %vm7847, %v7831, %v7834
    %v7852 = vsel %vm7850, %v7840, 2102212464
    %v7853 = vsel %vm7849, %v7837, %v7852
    %v7854 = vsel %vm7848, %v7851, %v7853
    %v7855 = vsel %vm7847, %v7834, %v7837
    %v7856 = vsel %vm7850, %v7843, 920167782
    %v7857 = vsel %vm7849, %v7840, %v7856
    %v7858 = vsel %vm7848, %v7855, %v7857
    %v7859 = vsel %vm7847, %v7837, %v7840
    %v7860 = vsel %vm7850, %v7846, 1326507024
    %v7861 = vsel %vm7849, %v7843, %v7860
    %v7862 = vsel %vm7848, %v7859, %v7861
    %v7863 = vshll.u32 %v7823, 8
    %v7864 = vmul.u32.u64.compose %v7863, %v7862
    %v7865 = vextract.low.u32 %v7864
    %v7866 = vextract.high.u32 %v7864
    %v7867 = vmul.u32.u64.compose %v7863, %v7858
    %v7868 = vextract.low.u32 %v7867
    %v7869 = vextract.high.u32 %v7867
    %v7870 = vmul.u32 %v7863, %v7854
    %v7871 = vadd.s32 %v7866, %v7868
    %vm7872 = vc.u32 %v7866, %v7868
    %v7873 = vadd.s32 %v7869, 1
    %v7874 = vsel %vm7872, %v7873, %v7869
    %v7875 = vadd.s32 %v7870, %v7874
    %v7876 = vadd.s32 %v7875, 536870912
    %v7877 = vshrl.u32 %v7876, 30
    %v7878 = vshll.u32 %v7877, 30
    %v7879 = vsub.s32 %v7875, %v7878
    %vm7880 = vcmp.lt.s32.totalorder %v7879, 0
    %v7881 = vsub.s32 0, %v7879
    %v7882 = vsel %vm7880, %v7881, %v7879
    %v7883 = vclz %v7882
    %v7884 = vsub.s32 %v7883, 2
    %vm7885 = vcmp.gt.s32.totalorder 0, %v7884
    %v7886 = vsel %vm7885, 0, %v7884
    %v7887 = vsub.s32 32, %v7886
    %v7888 = vshll.u32 %v7879, %v7886
    %v7889 = vshrl.u32 %v7871, %v7887
    %v7890 = vor.u32 %v7888, %v7889
    %v7891 = vsub.s32 4294967266, %v7886
    %v7892 = vadd.s32 %v7891, 127
    %v7893 = vshll.u32 %v7892, 23
    %v7894 = vor.u32 4788187, %v7893
    %v7895 = vand.u32 2147483647, %v7894
    %v7897 = vcvt.s32.f32 %v7890
    %v7898 = vmul.f32 %v7897, %v7895
    %v7899 = vxor.u32 %v7898, 2147483648
    %v7900 = vsel %vm7817, %v7899, %v7898
    %v7901 = vsub.s32 4, %v7877
    %v7902 = vsel %vm7817, %v7901, %v7877
    %v7903 = vsel %vm7816, %v7605, %v7900
    %v7904 = vsel %vm7816, 0, %v7902
    %v7905 = vcosq.f32.pop %v7903
    %v7906 = vsinq.f32.pop %v7903
    %vm7907 = vweird.f32 %v7605
    %v7908 = vand.u32 %v7904, 3
    %vm7909 = vcmp.lt.s32.totalorder %v7908, 2
    %vm7910 = vcmp.eq.s32.totalorder %v7908, 0
    %v7911 = vxor.u32 %v7906, 2147483648
    %v7912 = vsel %vm7910, %v7905, %v7911
    %vm7913 = vcmp.eq.s32.totalorder %v7908, 2
    %v7914 = vxor.u32 %v7905, 2147483648
    %v7915 = vsel %vm7913, %v7914, %v7906
    %v7916 = vsel %vm7909, %v7912, %v7915
    %v7917 = vsel %vm7907, nan, %v7916
    %v7918 = vand.u32 2147483647, %v7606
    %vm7919 = vcmp.le.f32.partialorder %v7918, 0.7853982
    %vm7920 = vcmp.lt.s32.totalorder %v7606, 0
    %v7921 = vand.u32 %v7606, 2139095040
    %v7922 = vshrl.u32 %v7921, 23
    %v7923 = vsub.s32 %v7922, 127
    %v7924 = vand.u32 2147483647, %v7606
    %v7925 = vand.u32 %v7924, 8388607
    %v7926 = vor.u32 %v7925, 8388608
    %v7927 = vsub.s32 0, %v7926
    %v7928 = vadd.s32 %v7923, 1
    %vm7929 = vcmp.gt.s32.totalorder %v7928, 0
    %v7930 = vsel %vm7929, %v7928, 0
    %v7931 = vshrl.u32 %v7930, 5
    %v7932 = vand.u32 %v7930, 31
    %v7933 = vsub.s32 32, %v7932
    %v7934 = vshrl.u32 683565275, %v7933
    %v7935 = vshll.u32 683565275, %v7932
    %v7936 = vshrl.u32 2475754826, %v7933
    %v7937 = vor.u32 %v7935, %v7936
    %v7938 = vshll.u32 2475754826, %v7932
    %v7939 = vshrl.u32 2131351028, %v7933
    %v7940 = vor.u32 %v7938, %v7939
    %v7941 = vshll.u32 2131351028, %v7932
    %v7942 = vshrl.u32 2102212464, %v7933
    %v7943 = vor.u32 %v7941, %v7942
    %v7944 = vshll.u32 2102212464, %v7932
    %v7945 = vshrl.u32 920167782, %v7933
    %v7946 = vor.u32 %v7944, %v7945
    %v7947 = vshll.u32 920167782, %v7932
    %v7948 = vshrl.u32 1326507024, %v7933
    %v7949 = vor.u32 %v7947, %v7948
    %vm7950 = vcmp.lt.s32.totalorder %v7931, 1
    %vm7951 = vcmp.lt.s32.totalorder %v7931, 2
    %vm7952 = vcmp.lt.s32.totalorder %v7931, 3
    %vm7953 = vcmp.lt.s32.totalorder %v7931, 4
    %v7954 = vsel %vm7950, %v7934, %v7937
    %v7955 = vsel %vm7953, %v7943, 2102212464
    %v7956 = vsel %vm7952, %v7940, %v7955
    %v7957 = vsel %vm7951, %v7954, %v7956
    %v7958 = vsel %vm7950, %v7937, %v7940
    %v7959 = vsel %vm7953, %v7946, 920167782
    %v7960 = vsel %vm7952, %v7943, %v7959
    %v7961 = vsel %vm7951, %v7958, %v7960
    %v7962 = vsel %vm7950, %v7940, %v7943
    %v7963 = vsel %vm7953, %v7949, 1326507024
    %v7964 = vsel %vm7952, %v7946, %v7963
    %v7965 = vsel %vm7951, %v7962, %v7964
    %v7966 = vshll.u32 %v7926, 8
    %v7967 = vmul.u32.u64.compose %v7966, %v7965
    %v7968 = vextract.low.u32 %v7967
    %v7969 = vextract.high.u32 %v7967
    %v7970 = vmul.u32.u64.compose %v7966, %v7961
    %v7971 = vextract.low.u32 %v7970
    %v7972 = vextract.high.u32 %v7970
    %v7973 = vmul.u32 %v7966, %v7957
    %v7974 = vadd.s32 %v7969, %v7971
    %vm7975 = vc.u32 %v7969, %v7971
    %v7976 = vadd.s32 %v7972, 1
    %v7977 = vsel %vm7975, %v7976, %v7972
    %v7978 = vadd.s32 %v7973, %v7977
    %v7979 = vadd.s32 %v7978, 536870912
    %v7980 = vshrl.u32 %v7979, 30
    %v7981 = vshll.u32 %v7980, 30
    %v7982 = vsub.s32 %v7978, %v7981
    %vm7983 = vcmp.lt.s32.totalorder %v7982, 0
    %v7984 = vsub.s32 0, %v7982
    %v7985 = vsel %vm7983, %v7984, %v7982
    %v7986 = vclz %v7985
    %v7987 = vsub.s32 %v7986, 2
    %vm7988 = vcmp.gt.s32.totalorder 0, %v7987
    %v7989 = vsel %vm7988, 0, %v7987
    %v7990 = vsub.s32 32, %v7989
    %v7991 = vshll.u32 %v7982, %v7989
    %v7992 = vshrl.u32 %v7974, %v7990
    %v7993 = vor.u32 %v7991, %v7992
    %v7994 = vsub.s32 4294967266, %v7989
    %v7995 = vadd.s32 %v7994, 127
    %v7996 = vshll.u32 %v7995, 23
    %v7997 = vor.u32 4788187, %v7996
    %v7998 = vand.u32 2147483647, %v7997
    %v8000 = vcvt.s32.f32 %v7993
    %v8001 = vmul.f32 %v8000, %v7998
    %v8002 = vxor.u32 %v8001, 2147483648
    %v8003 = vsel %vm7920, %v8002, %v8001
    %v8004 = vsub.s32 4, %v7980
    %v8005 = vsel %vm7920, %v8004, %v7980
    %v8006 = vsel %vm7919, %v7606, %v8003
    %v8007 = vsel %vm7919, 0, %v8005
    %v8008 = vcosq.f32.pop %v8006
    %v8009 = vsinq.f32.pop %v8006
    %vm8010 = vweird.f32 %v7606
    %v8011 = vand.u32 %v8007, 3
    %vm8012 = vcmp.lt.s32.totalorder %v8011, 2
    %vm8013 = vcmp.eq.s32.totalorder %v8011, 0
    %v8014 = vxor.u32 %v8009, 2147483648
    %v8015 = vsel %vm8013, %v8008, %v8014
    %vm8016 = vcmp.eq.s32.totalorder %v8011, 2
    %v8017 = vxor.u32 %v8008, 2147483648
    %v8018 = vsel %vm8016, %v8017, %v8009
    %v8019 = vsel %vm8012, %v8015, %v8018
    %v8020 = vsel %vm8010, nan, %v8019
    %v8021 = vmul.f32 %v7710, %v7710
    %v8022 = vmul.f32 %v7814, %v7814
    %v8023 = vmul.f32 %v7710, 2.0
    %v8024 = vmul.f32 %v7814, 2.0
    %v8025 = vmul.f32 %v8023, %v7917
    %v8026 = vmul.f32 %v8024, %v8020
    %v8027 = vmul.f32 %v8021, 2.0
    %v8028 = vmul.f32 %v8022, 2.0
    %v8029 = vsub.f32 1.0, %v8027
    %v8030 = vsub.f32 1.0, %v8028
    %v8031 = vmul.f32 %v8021, 4.0
    %v8032 = vmul.f32 %v8022, 4.0
    %v8033 = vsub.f32 3.0, %v8031
    %v8034 = vsub.f32 3.0, %v8032
    %v8035 = vmul.f32 %v7710, %v8033
    %v8036 = vmul.f32 %v7814, %v8034
    %v8037 = vmul.f32 %v7917, %v7917
    %v8038 = vmul.f32 %v8020, %v8020
    %v8039 = vmul.f32 %v8037, 4.0
    %v8040 = vmul.f32 %v8038, 4.0
    %v8041 = vsub.f32 %v8039, 3.0
    %v8042 = vsub.f32 %v8040, 3.0
    %v8043 = vmul.f32 %v7917, %v8041
    %v8044 = vmul.f32 %v8020, %v8042
    %v8045 = vld [vmem:[%s11] sm:$0xff]
    %v8046 = vld [vmem:[%s11 + $0x8] sm:$0xff]
    %v8047 = vld [vmem:[%s12] sm:$0xff]
    %v8048 = vld [vmem:[%s12 + $0x8] sm:$0xff]
    %v8050 = vsel %vm3661, %v7917, 0
    %v8053 = vsel %vm3661, %v8020, 0
    %8055 = vmatprep.subr.mxu0 0.0
    %8056 = vmatpush1.msra.mxu0 %v8047
    %8057 = vmatprep.subr.mxu0 0.0
    %8058 = vmatpush1.msra.mxu0 %v8048
    %8059 = vmatprep.subr.mxu0 0.0
    %8060 = vmatpush1.msra.mxu0 0.0
    %8061 = vmatprep.subr.mxu0 0.0
    %8062 = vmatpush1.msra.mxu0 0.0
    %8063 = vmatprep.subr.mxu0 0.0
    %8064 = vmatpush1.msra.mxu0 0.0
    %8065 = vmatprep.subr.mxu0 0.0
    %8066 = vmatpush1.msra.mxu0 0.0
    %8067 = vmatprep.subr.mxu0 0.0
    %8068 = vmatpush1.msra.mxu0 0.0
    %8069 = vmatprep.subr.mxu0 0.0
    %8070 = vmatpush1.msra.mxu0 0.0
    %8071 = vmatprep.subr.mxu0 0.0
    %8072 = vmatpush1.msra.mxu0 0.0
    %8073 = vmatprep.subr.mxu0 0.0
    %8074 = vmatpush1.msra.mxu0 0.0
    %8075 = vmatprep.subr.mxu0 0.0
    %8076 = vmatpush1.msra.mxu0 0.0
    %8077 = vmatprep.subr.mxu0 0.0
    %8078 = vmatpush1.msra.mxu0 0.0
    %8079 = vmatprep.subr.mxu0 0.0
    %8080 = vmatpush1.msra.mxu0 0.0
    %8081 = vmatprep.subr.mxu0 0.0
    %8082 = vmatpush1.msra.mxu0 0.0
    %8083 = vmatprep.subr.mxu0 0.0
    %8084 = vmatpush1.msra.mxu0 0.0
    %8085 = vmatprep.subr.mxu0 0.0
    %8086 = vmatpush1.msra.mxu0 0.0
    %8087 = vmatprep.subr.mxu0 0.0
    %8088 = vmatpush1.msra.mxu0 0.0
    %8089 = vmatprep.subr.mxu0 0.0
    %8090 = vmatpush1.msra.mxu0 0.0
    %8091 = vmatprep.subr.mxu0 0.0
    %8092 = vmatpush1.msra.mxu0 0.0
    %8093 = vmatprep.subr.mxu0 0.0
    %8094 = vmatpush1.msra.mxu0 0.0
    %8095 = vmatprep.subr.mxu0 0.0
    %8096 = vmatpush1.msra.mxu0 0.0
    %8097 = vmatprep.subr.mxu0 0.0
    %8098 = vmatpush1.msra.mxu0 0.0
    %8099 = vmatprep.subr.mxu0 0.0
    %8100 = vmatpush1.msra.mxu0 0.0
    %8101 = vmatprep.subr.mxu0 0.0
    %8102 = vmatpush1.msra.mxu0 0.0
    %8103 = vmatprep.subr.mxu0 0.0
    %8104 = vmatpush1.msra.mxu0 0.0
    %8105 = vmatprep.subr.mxu0 0.0
    %8106 = vmatpush1.msra.mxu0 0.0
    %8107 = vmatprep.subr.mxu0 0.0
    %8108 = vmatpush1.msra.mxu0 0.0
    %8109 = vmatprep.subr.mxu0 0.0
    %8110 = vmatpush1.msra.mxu0 0.0
    %8111 = vmatprep.subr.mxu0 0.0
    %8112 = vmatpush1.msra.mxu0 0.0
    %8113 = vmatprep.subr.mxu0 0.0
    %8114 = vmatpush1.msra.mxu0 0.0
    %8115 = vmatprep.subr.mxu0 0.0
    %8116 = vmatpush1.msra.mxu0 0.0
    %8117 = vmatprep.subr.mxu0 0.0
    %8118 = vmatpush1.msra.mxu0 0.0
    %8119 = vmatprep.mubr.f32.mxu0 0.0
    %8120 = vmatmul.mubr.f32.gmra.mrb[0].mxu0 %v8050
    %v8121 = vpop.f32.mrb[0].mxu0
    %v8122 = vadd.f32 0.0, %v8121
    %v8123 = vpop.f32.mrb[0].mxu0
    %8124 = vmatprep.mubr.f32.mxu0 0.0
    %8125 = vmatmul.mubr.f32.gmra.mrb[0].mxu0 %v8053
    %v8126 = vpop.f32.mrb[0].mxu0
    %v8127 = vadd.f32 0.0, %v8126
    %v8128 = vpop.f32.mrb[0].mxu0
    %8129 = vdwg.mxu0
    %v8131 = vsel %vm3661, %v7710, 0
    %v8134 = vsel %vm3661, %v7814, 0
    %8136 = vmatprep.subr.mxu0 0.0
    %8137 = vmatpush1.msra.mxu0 %v8045
    %8138 = vmatprep.subr.mxu0 0.0
    %8139 = vmatpush1.msra.mxu0 %v8046
    %8140 = vmatprep.subr.mxu0 0.0
    %8141 = vmatpush1.msra.mxu0 0.0
    %8142 = vmatprep.subr.mxu0 0.0
    %8143 = vmatpush1.msra.mxu0 0.0
    %8144 = vmatprep.subr.mxu0 0.0
    %8145 = vmatpush1.msra.mxu0 0.0
    %8146 = vmatprep.subr.mxu0 0.0
    %8147 = vmatpush1.msra.mxu0 0.0
    %8148 = vmatprep.subr.mxu0 0.0
    %8149 = vmatpush1.msra.mxu0 0.0
    %8150 = vmatprep.subr.mxu0 0.0
    %8151 = vmatpush1.msra.mxu0 0.0
    %8152 = vmatprep.subr.mxu0 0.0
    %8153 = vmatpush1.msra.mxu0 0.0
    %8154 = vmatprep.subr.mxu0 0.0
    %8155 = vmatpush1.msra.mxu0 0.0
    %8156 = vmatprep.subr.mxu0 0.0
    %8157 = vmatpush1.msra.mxu0 0.0
    %8158 = vmatprep.subr.mxu0 0.0
    %8159 = vmatpush1.msra.mxu0 0.0
    %8160 = vmatprep.subr.mxu0 0.0
    %8161 = vmatpush1.msra.mxu0 0.0
    %8162 = vmatprep.subr.mxu0 0.0
    %8163 = vmatpush1.msra.mxu0 0.0
    %8164 = vmatprep.subr.mxu0 0.0
    %8165 = vmatpush1.msra.mxu0 0.0
    %8166 = vmatprep.subr.mxu0 0.0
    %8167 = vmatpush1.msra.mxu0 0.0
    %8168 = vmatprep.subr.mxu0 0.0
    %8169 = vmatpush1.msra.mxu0 0.0
    %8170 = vmatprep.subr.mxu0 0.0
    %8171 = vmatpush1.msra.mxu0 0.0
    %8172 = vmatprep.subr.mxu0 0.0
    %8173 = vmatpush1.msra.mxu0 0.0
    %8174 = vmatprep.subr.mxu0 0.0
    %8175 = vmatpush1.msra.mxu0 0.0
    %8176 = vmatprep.subr.mxu0 0.0
    %8177 = vmatpush1.msra.mxu0 0.0
    %8178 = vmatprep.subr.mxu0 0.0
    %8179 = vmatpush1.msra.mxu0 0.0
    %8180 = vmatprep.subr.mxu0 0.0
    %8181 = vmatpush1.msra.mxu0 0.0
    %8182 = vmatprep.subr.mxu0 0.0
    %8183 = vmatpush1.msra.mxu0 0.0
    %8184 = vmatprep.subr.mxu0 0.0
    %8185 = vmatpush1.msra.mxu0 0.0
    %8186 = vmatprep.subr.mxu0 0.0
    %8187 = vmatpush1.msra.mxu0 0.0
    %8188 = vmatprep.subr.mxu0 0.0
    %8189 = vmatpush1.msra.mxu0 0.0
    %8190 = vmatprep.subr.mxu0 0.0
    %8191 = vmatpush1.msra.mxu0 0.0
    %8192 = vmatprep.subr.mxu0 0.0
    %8193 = vmatpush1.msra.mxu0 0.0
    %8194 = vmatprep.subr.mxu0 0.0
    %8195 = vmatpush1.msra.mxu0 0.0
    %8196 = vmatprep.subr.mxu0 0.0
    %8197 = vmatpush1.msra.mxu0 0.0
    %8198 = vmatprep.subr.mxu0 0.0
    %8199 = vmatpush1.msra.mxu0 0.0
    %8200 = vmatprep.mubr.f32.mxu0 0.0
    %8201 = vmatmul.mubr.f32.gmra.mrb[0].mxu0 %v8131
    %v8202 = vpop.f32.mrb[0].mxu0
    %v8203 = vadd.f32 %v8122, %v8202
    %v8204 = vpop.f32.mrb[0].mxu0
    %8205 = vmatprep.mubr.f32.mxu0 0.0
    %8206 = vmatmul.mubr.f32.gmra.mrb[0].mxu0 %v8134
    %v8207 = vpop.f32.mrb[0].mxu0
    %v8208 = vadd.f32 %v8127, %v8207
    %v8209 = vpop.f32.mrb[0].mxu0
    %8210 = vdwg.mxu0
    %s8211 = scalar_lea.vmem %s11, 16
    %v8212 = vld [vmem:[%s8211] sm:$0xff]
    %v8213 = vld [vmem:[%s8211 + $0x8] sm:$0xff]
    %v8215 = vsel %vm3661, %v8025, 0
    %v8218 = vsel %vm3661, %v8026, 0
    %8220 = vmatprep.subr.mxu0 0.0
    %8221 = vmatpush1.msra.mxu0 %v8212
    %8222 = vmatprep.subr.mxu0 0.0
    %8223 = vmatpush1.msra.mxu0 %v8213
    %8224 = vmatprep.subr.mxu0 0.0
    %8225 = vmatpush1.msra.mxu0 0.0
    %8226 = vmatprep.subr.mxu0 0.0
    %8227 = vmatpush1.msra.mxu0 0.0
    %8228 = vmatprep.subr.mxu0 0.0
    %8229 = vmatpush1.msra.mxu0 0.0
    %8230 = vmatprep.subr.mxu0 0.0
    %8231 = vmatpush1.msra.mxu0 0.0
    %8232 = vmatprep.subr.mxu0 0.0
    %8233 = vmatpush1.msra.mxu0 0.0
    %8234 = vmatprep.subr.mxu0 0.0
    %8235 = vmatpush1.msra.mxu0 0.0
    %8236 = vmatprep.subr.mxu0 0.0
    %8237 = vmatpush1.msra.mxu0 0.0
    %8238 = vmatprep.subr.mxu0 0.0
    %8239 = vmatpush1.msra.mxu0 0.0
    %8240 = vmatprep.subr.mxu0 0.0
    %8241 = vmatpush1.msra.mxu0 0.0
    %8242 = vmatprep.subr.mxu0 0.0
    %8243 = vmatpush1.msra.mxu0 0.0
    %8244 = vmatprep.subr.mxu0 0.0
    %8245 = vmatpush1.msra.mxu0 0.0
    %8246 = vmatprep.subr.mxu0 0.0
    %8247 = vmatpush1.msra.mxu0 0.0
    %8248 = vmatprep.subr.mxu0 0.0
    %8249 = vmatpush1.msra.mxu0 0.0
    %8250 = vmatprep.subr.mxu0 0.0
    %8251 = vmatpush1.msra.mxu0 0.0
    %8252 = vmatprep.subr.mxu0 0.0
    %8253 = vmatpush1.msra.mxu0 0.0
    %8254 = vmatprep.subr.mxu0 0.0
    %8255 = vmatpush1.msra.mxu0 0.0
    %8256 = vmatprep.subr.mxu0 0.0
    %8257 = vmatpush1.msra.mxu0 0.0
    %8258 = vmatprep.subr.mxu0 0.0
    %8259 = vmatpush1.msra.mxu0 0.0
    %8260 = vmatprep.subr.mxu0 0.0
    %8261 = vmatpush1.msra.mxu0 0.0
    %8262 = vmatprep.subr.mxu0 0.0
    %8263 = vmatpush1.msra.mxu0 0.0
    %8264 = vmatprep.subr.mxu0 0.0
    %8265 = vmatpush1.msra.mxu0 0.0
    %8266 = vmatprep.subr.mxu0 0.0
    %8267 = vmatpush1.msra.mxu0 0.0
    %8268 = vmatprep.subr.mxu0 0.0
    %8269 = vmatpush1.msra.mxu0 0.0
    %8270 = vmatprep.subr.mxu0 0.0
    %8271 = vmatpush1.msra.mxu0 0.0
    %8272 = vmatprep.subr.mxu0 0.0
    %8273 = vmatpush1.msra.mxu0 0.0
    %8274 = vmatprep.subr.mxu0 0.0
    %8275 = vmatpush1.msra.mxu0 0.0
    %8276 = vmatprep.subr.mxu0 0.0
    %8277 = vmatpush1.msra.mxu0 0.0
    %8278 = vmatprep.subr.mxu0 0.0
    %8279 = vmatpush1.msra.mxu0 0.0
    %8280 = vmatprep.subr.mxu0 0.0
    %8281 = vmatpush1.msra.mxu0 0.0
    %8282 = vmatprep.subr.mxu0 0.0
    %8283 = vmatpush1.msra.mxu0 0.0
    %8284 = vmatprep.mubr.f32.mxu0 0.0
    %8285 = vmatmul.mubr.f32.gmra.mrb[0].mxu0 %v8215
    %v8286 = vpop.f32.mrb[0].mxu0
    %v8287 = vadd.f32 0.0, %v8286
    %v8288 = vpop.f32.mrb[0].mxu0
    %8289 = vmatprep.mubr.f32.mxu0 0.0
    %8290 = vmatmul.mubr.f32.gmra.mrb[0].mxu0 %v8218
    %v8291 = vpop.f32.mrb[0].mxu0
    %v8292 = vadd.f32 0.0, %v8291
    %v8293 = vpop.f32.mrb[0].mxu0
    %8294 = vdwg.mxu0
    %v8295 = vadd.f32 %v8203, %v8287
    %v8296 = vadd.f32 %v8208, %v8292
    %s8297 = scalar_lea.vmem %s12, 16
    %v8298 = vld [vmem:[%s8297] sm:$0xff]
    %v8299 = vld [vmem:[%s8297 + $0x8] sm:$0xff]
    %v8301 = vsel %vm3661, %v8029, 0
    %v8304 = vsel %vm3661, %v8030, 0
    %8306 = vmatprep.subr.mxu0 0.0
    %8307 = vmatpush1.msra.mxu0 %v8298
    %8308 = vmatprep.subr.mxu0 0.0
    %8309 = vmatpush1.msra.mxu0 %v8299
    %8310 = vmatprep.subr.mxu0 0.0
    %8311 = vmatpush1.msra.mxu0 0.0
    %8312 = vmatprep.subr.mxu0 0.0
    %8313 = vmatpush1.msra.mxu0 0.0
    %8314 = vmatprep.subr.mxu0 0.0
    %8315 = vmatpush1.msra.mxu0 0.0
    %8316 = vmatprep.subr.mxu0 0.0
    %8317 = vmatpush1.msra.mxu0 0.0
    %8318 = vmatprep.subr.mxu0 0.0
    %8319 = vmatpush1.msra.mxu0 0.0
    %8320 = vmatprep.subr.mxu0 0.0
    %8321 = vmatpush1.msra.mxu0 0.0
    %8322 = vmatprep.subr.mxu0 0.0
    %8323 = vmatpush1.msra.mxu0 0.0
    %8324 = vmatprep.subr.mxu0 0.0
    %8325 = vmatpush1.msra.mxu0 0.0
    %8326 = vmatprep.subr.mxu0 0.0
    %8327 = vmatpush1.msra.mxu0 0.0
    %8328 = vmatprep.subr.mxu0 0.0
    %8329 = vmatpush1.msra.mxu0 0.0
    %8330 = vmatprep.subr.mxu0 0.0
    %8331 = vmatpush1.msra.mxu0 0.0
    %8332 = vmatprep.subr.mxu0 0.0
    %8333 = vmatpush1.msra.mxu0 0.0
    %8334 = vmatprep.subr.mxu0 0.0
    %8335 = vmatpush1.msra.mxu0 0.0
    %8336 = vmatprep.subr.mxu0 0.0
    %8337 = vmatpush1.msra.mxu0 0.0
    %8338 = vmatprep.subr.mxu0 0.0
    %8339 = vmatpush1.msra.mxu0 0.0
    %8340 = vmatprep.subr.mxu0 0.0
    %8341 = vmatpush1.msra.mxu0 0.0
    %8342 = vmatprep.subr.mxu0 0.0
    %8343 = vmatpush1.msra.mxu0 0.0
    %8344 = vmatprep.subr.mxu0 0.0
    %8345 = vmatpush1.msra.mxu0 0.0
    %8346 = vmatprep.subr.mxu0 0.0
    %8347 = vmatpush1.msra.mxu0 0.0
    %8348 = vmatprep.subr.mxu0 0.0
    %8349 = vmatpush1.msra.mxu0 0.0
    %8350 = vmatprep.subr.mxu0 0.0
    %8351 = vmatpush1.msra.mxu0 0.0
    %8352 = vmatprep.subr.mxu0 0.0
    %8353 = vmatpush1.msra.mxu0 0.0
    %8354 = vmatprep.subr.mxu0 0.0
    %8355 = vmatpush1.msra.mxu0 0.0
    %8356 = vmatprep.subr.mxu0 0.0
    %8357 = vmatpush1.msra.mxu0 0.0
    %8358 = vmatprep.subr.mxu0 0.0
    %8359 = vmatpush1.msra.mxu0 0.0
    %8360 = vmatprep.subr.mxu0 0.0
    %8361 = vmatpush1.msra.mxu0 0.0
    %8362 = vmatprep.subr.mxu0 0.0
    %8363 = vmatpush1.msra.mxu0 0.0
    %8364 = vmatprep.subr.mxu0 0.0
    %8365 = vmatpush1.msra.mxu0 0.0
    %8366 = vmatprep.subr.mxu0 0.0
    %8367 = vmatpush1.msra.mxu0 0.0
    %8368 = vmatprep.subr.mxu0 0.0
    %8369 = vmatpush1.msra.mxu0 0.0
    %8370 = vmatprep.mubr.f32.mxu0 0.0
    %8371 = vmatmul.mubr.f32.gmra.mrb[0].mxu0 %v8301
    %v8372 = vpop.f32.mrb[0].mxu0
    %v8373 = vadd.f32 0.0, %v8372
    %v8374 = vpop.f32.mrb[0].mxu0
    %8375 = vmatprep.mubr.f32.mxu0 0.0
    %8376 = vmatmul.mubr.f32.gmra.mrb[0].mxu0 %v8304
    %v8377 = vpop.f32.mrb[0].mxu0
    %v8378 = vadd.f32 0.0, %v8377
    %v8379 = vpop.f32.mrb[0].mxu0
    %8380 = vdwg.mxu0
    %v8381 = vadd.f32 %v8295, %v8373
    %v8382 = vadd.f32 %v8296, %v8378
    %s8383 = scalar_lea.vmem %s11, 32
    %v8384 = vld [vmem:[%s8383] sm:$0xff]
    %v8385 = vld [vmem:[%s8383 + $0x8] sm:$0xff]
    %v8387 = vsel %vm3661, %v8035, 0
    %v8390 = vsel %vm3661, %v8036, 0
    %8392 = vmatprep.subr.mxu0 0.0
    %8393 = vmatpush1.msra.mxu0 %v8384
    %8394 = vmatprep.subr.mxu0 0.0
    %8395 = vmatpush1.msra.mxu0 %v8385
    %8396 = vmatprep.subr.mxu0 0.0
    %8397 = vmatpush1.msra.mxu0 0.0
    %8398 = vmatprep.subr.mxu0 0.0
    %8399 = vmatpush1.msra.mxu0 0.0
    %8400 = vmatprep.subr.mxu0 0.0
    %8401 = vmatpush1.msra.mxu0 0.0
    %8402 = vmatprep.subr.mxu0 0.0
    %8403 = vmatpush1.msra.mxu0 0.0
    %8404 = vmatprep.subr.mxu0 0.0
    %8405 = vmatpush1.msra.mxu0 0.0
    %8406 = vmatprep.subr.mxu0 0.0
    %8407 = vmatpush1.msra.mxu0 0.0
    %8408 = vmatprep.subr.mxu0 0.0
    %8409 = vmatpush1.msra.mxu0 0.0
    %8410 = vmatprep.subr.mxu0 0.0
    %8411 = vmatpush1.msra.mxu0 0.0
    %8412 = vmatprep.subr.mxu0 0.0
    %8413 = vmatpush1.msra.mxu0 0.0
    %8414 = vmatprep.subr.mxu0 0.0
    %8415 = vmatpush1.msra.mxu0 0.0
    %8416 = vmatprep.subr.mxu0 0.0
    %8417 = vmatpush1.msra.mxu0 0.0
    %8418 = vmatprep.subr.mxu0 0.0
    %8419 = vmatpush1.msra.mxu0 0.0
    %8420 = vmatprep.subr.mxu0 0.0
    %8421 = vmatpush1.msra.mxu0 0.0
    %8422 = vmatprep.subr.mxu0 0.0
    %8423 = vmatpush1.msra.mxu0 0.0
    %8424 = vmatprep.subr.mxu0 0.0
    %8425 = vmatpush1.msra.mxu0 0.0
    %8426 = vmatprep.subr.mxu0 0.0
    %8427 = vmatpush1.msra.mxu0 0.0
    %8428 = vmatprep.subr.mxu0 0.0
    %8429 = vmatpush1.msra.mxu0 0.0
    %8430 = vmatprep.subr.mxu0 0.0
    %8431 = vmatpush1.msra.mxu0 0.0
    %8432 = vmatprep.subr.mxu0 0.0
    %8433 = vmatpush1.msra.mxu0 0.0
    %8434 = vmatprep.subr.mxu0 0.0
    %8435 = vmatpush1.msra.mxu0 0.0
    %8436 = vmatprep.subr.mxu0 0.0
    %8437 = vmatpush1.msra.mxu0 0.0
    %8438 = vmatprep.subr.mxu0 0.0
    %8439 = vmatpush1.msra.mxu0 0.0
    %8440 = vmatprep.subr.mxu0 0.0
    %8441 = vmatpush1.msra.mxu0 0.0
    %8442 = vmatprep.subr.mxu0 0.0
    %8443 = vmatpush1.msra.mxu0 0.0
    %8444 = vmatprep.subr.mxu0 0.0
    %8445 = vmatpush1.msra.mxu0 0.0
    %8446 = vmatprep.subr.mxu0 0.0
    %8447 = vmatpush1.msra.mxu0 0.0
    %8448 = vmatprep.subr.mxu0 0.0
    %8449 = vmatpush1.msra.mxu0 0.0
    %8450 = vmatprep.subr.mxu0 0.0
    %8451 = vmatpush1.msra.mxu0 0.0
    %8452 = vmatprep.subr.mxu0 0.0
    %8453 = vmatpush1.msra.mxu0 0.0
    %8454 = vmatprep.subr.mxu0 0.0
    %8455 = vmatpush1.msra.mxu0 0.0
    %8456 = vmatprep.mubr.f32.mxu0 0.0
    %8457 = vmatmul.mubr.f32.gmra.mrb[0].mxu0 %v8387
    %v8458 = vpop.f32.mrb[0].mxu0
    %v8459 = vadd.f32 0.0, %v8458
    %v8460 = vpop.f32.mrb[0].mxu0
    %8461 = vmatprep.mubr.f32.mxu0 0.0
    %8462 = vmatmul.mubr.f32.gmra.mrb[0].mxu0 %v8390
    %v8463 = vpop.f32.mrb[0].mxu0
    %v8464 = vadd.f32 0.0, %v8463
    %v8465 = vpop.f32.mrb[0].mxu0
    %8466 = vdwg.mxu0
    %v8467 = vadd.f32 %v8381, %v8459
    %v8468 = vadd.f32 %v8382, %v8464
    %s8469 = scalar_lea.vmem %s12, 32
    %v8470 = vld [vmem:[%s8469] sm:$0xff]
    %v8471 = vld [vmem:[%s8469 + $0x8] sm:$0xff]
    %v8473 = vsel %vm3661, %v8043, 0
    %v8476 = vsel %vm3661, %v8044, 0
    %8478 = vmatprep.subr.mxu0 0.0
    %8479 = vmatpush1.msra.mxu0 %v8470
    %8480 = vmatprep.subr.mxu0 0.0
    %8481 = vmatpush1.msra.mxu0 %v8471
    %8482 = vmatprep.subr.mxu0 0.0
    %8483 = vmatpush1.msra.mxu0 0.0
    %8484 = vmatprep.subr.mxu0 0.0
    %8485 = vmatpush1.msra.mxu0 0.0
    %8486 = vmatprep.subr.mxu0 0.0
    %8487 = vmatpush1.msra.mxu0 0.0
    %8488 = vmatprep.subr.mxu0 0.0
    %8489 = vmatpush1.msra.mxu0 0.0
    %8490 = vmatprep.subr.mxu0 0.0
    %8491 = vmatpush1.msra.mxu0 0.0
    %8492 = vmatprep.subr.mxu0 0.0
    %8493 = vmatpush1.msra.mxu0 0.0
    %8494 = vmatprep.subr.mxu0 0.0
    %8495 = vmatpush1.msra.mxu0 0.0
    %8496 = vmatprep.subr.mxu0 0.0
    %8497 = vmatpush1.msra.mxu0 0.0
    %8498 = vmatprep.subr.mxu0 0.0
    %8499 = vmatpush1.msra.mxu0 0.0
    %8500 = vmatprep.subr.mxu0 0.0
    %8501 = vmatpush1.msra.mxu0 0.0
    %8502 = vmatprep.subr.mxu0 0.0
    %8503 = vmatpush1.msra.mxu0 0.0
    %8504 = vmatprep.subr.mxu0 0.0
    %8505 = vmatpush1.msra.mxu0 0.0
    %8506 = vmatprep.subr.mxu0 0.0
    %8507 = vmatpush1.msra.mxu0 0.0
    %8508 = vmatprep.subr.mxu0 0.0
    %8509 = vmatpush1.msra.mxu0 0.0
    %8510 = vmatprep.subr.mxu0 0.0
    %8511 = vmatpush1.msra.mxu0 0.0
    %8512 = vmatprep.subr.mxu0 0.0
    %8513 = vmatpush1.msra.mxu0 0.0
    %8514 = vmatprep.subr.mxu0 0.0
    %8515 = vmatpush1.msra.mxu0 0.0
    %8516 = vmatprep.subr.mxu0 0.0
    %8517 = vmatpush1.msra.mxu0 0.0
    %8518 = vmatprep.subr.mxu0 0.0
    %8519 = vmatpush1.msra.mxu0 0.0
    %8520 = vmatprep.subr.mxu0 0.0
    %8521 = vmatpush1.msra.mxu0 0.0
    %8522 = vmatprep.subr.mxu0 0.0
    %8523 = vmatpush1.msra.mxu0 0.0
    %8524 = vmatprep.subr.mxu0 0.0
    %8525 = vmatpush1.msra.mxu0 0.0
    %8526 = vmatprep.subr.mxu0 0.0
    %8527 = vmatpush1.msra.mxu0 0.0
    %8528 = vmatprep.subr.mxu0 0.0
    %8529 = vmatpush1.msra.mxu0 0.0
    %8530 = vmatprep.subr.mxu0 0.0
    %8531 = vmatpush1.msra.mxu0 0.0
    %8532 = vmatprep.subr.mxu0 0.0
    %8533 = vmatpush1.msra.mxu0 0.0
    %8534 = vmatprep.subr.mxu0 0.0
    %8535 = vmatpush1.msra.mxu0 0.0
    %8536 = vmatprep.subr.mxu0 0.0
    %8537 = vmatpush1.msra.mxu0 0.0
    %8538 = vmatprep.subr.mxu0 0.0
    %8539 = vmatpush1.msra.mxu0 0.0
    %8540 = vmatprep.subr.mxu0 0.0
    %8541 = vmatpush1.msra.mxu0 0.0
    %8542 = vmatprep.mubr.f32.mxu0 0.0
    %8543 = vmatmul.mubr.f32.gmra.mrb[0].mxu0 %v8473
    %v8544 = vpop.f32.mrb[0].mxu0
    %v8545 = vadd.f32 0.0, %v8544
    %v8546 = vpop.f32.mrb[0].mxu0
    %8547 = vmatprep.mubr.f32.mxu0 0.0
    %8548 = vmatmul.mubr.f32.gmra.mrb[0].mxu0 %v8476
    %v8549 = vpop.f32.mrb[0].mxu0
    %v8550 = vadd.f32 0.0, %v8549
    %v8551 = vpop.f32.mrb[0].mxu0
    %8552 = vdwg.mxu0
    %v8553 = vadd.f32 %v8467, %v8545
    %v8554 = vadd.f32 %v8468, %v8550
    %v8555 = vld [vmem:[%s13] sm:$0x1]
    %v8557 = vlaneseq
    %v8558 = vshrl.u32 %v8557, 7
    %v8559 = vsub.s32 0, %v8558
    %v8560 = vrot.slane %v8555, %v8559
    %v8562 = vadd.f32 %v8553, %v8560
    %v8563 = vadd.f32 %v8554, %v8560
    %8564 = vst [vmem:[#allocation2] sm:$0xff] %v8562
    %8565 = vst [vmem:[#allocation2 + $0x8] sm:$0xff] %v8563
    // Predicated region
    $region58: #{tpu_custom_call.1} parent=1 // pred_check
      _
    $region59: #{tpu_custom_call.1} parent=1 // pred_check_branch
      %8567 = sbr.rel (0) target = $region61
    $region60: #{tpu_custom_call.1} parent=1 // pred_region
      %s8569 = ssub.s32 256, 256
      %8570 = vsyncadd [#allocation3], %s8569
      %s8571 = sshll.u32 [#allocation2], 4
      %s8572 = int_to_ptr.vmem [resolvable:$true] %s8571
      %8577 = dma.vmem_to_hbm [thread:$0]  %s8572, 256, %s14, [#allocation3], 128, 128, 8
    $region61: #{tpu_custom_call.1} parent=1 // pred_fallthru
      _
    // Predicated region
    $region62: #{tpu_custom_call.1} parent=1 // pred_check
      _
    $region63: #{tpu_custom_call.1} parent=1 // pred_check_branch
      %8579 = sbr.rel (0) target = $region65
    $region64: #{tpu_custom_call.1} parent=1 // pred_region
      %8580 = dma.done [#allocation3], 256
    $region65: #{tpu_custom_call.1} parent=1 // pred_fallthru
      _
    %8581 = vsyncpa [#allocation3], 1

</llo_original>
